<compile_context>
chip_gen: v7x
topology: tpu7x:2x2x1
jax: 0.10.0
libtpu: 0.0.40
codegen_flags: <defaults>
</compile_context>

<pallas_src>
import functools
import math

import numpy as np
import jax
import jax.numpy as jnp
from jax import lax
from jax.experimental import pallas as pl
from jax.experimental.pallas import tpu as pltpu

DILATION = 3
D_K = 2 * DILATION - 1      # conv0 kernel size  (= 5)
D_P = (D_K - 1) // 2        # conv0 padding      (= 2)


def _lka_kernel(x_ref, w0_ref, b0_ref, w1_ref, b1_ref, wg_ref, bc1_ref,
                fc1f_ref, fc2f_ref, o_ref, pad0_ref, pad1_ref, *,
                H, W, C, dd_k, dd_p, p0_row0, p0_col0, p1_row0, p1_col0):
    """One batch element of LKA + SE scaling, lane-dense (H, W*C) layout."""
    WC = W * C
    GL = 128                      # lanes per conv1 group (= (128 // C) columns)
    n_groups = WC // GL

    # ---- per-step zero of both padded scratches ----------------------------
    # Zeroed every step (not once) so the batch grid axis can run "parallel"
    # on v7x megacore; the memsets are ~(96 + 240) KB of plain vst traffic and
    # hide under the conv compute.
    pad0_ref[...] = jnp.zeros(pad0_ref.shape, pad0_ref.dtype)
    pad1_ref[...] = jnp.zeros(pad1_ref.shape, pad1_ref.dtype)

    # ---- x block -> conv0 padded scratch interior ---------------------------
    # Aligned store: p0_row0 % 8 == 0 and (p0_col0 * C) % 128 == 0.
    pad0_ref[p0_row0:p0_row0 + H, p0_col0 * C:p0_col0 * C + WC] = x_ref[0]

    # ---- conv0: depthwise 5x5, pad 2 ----------------------------------------
    # kx outer: ONE column-shifted strip per kx (5 lane-unaligned loads, not
    # 25) and only that kx's 5 weight rows live; ky taps are sublane slices.
    acc = jnp.zeros((H, WC), jnp.float32)
    r0 = p0_row0 - D_P
    for kx in range(D_K):
        col = (p0_col0 - D_P + kx) * C
        strip = pad0_ref[r0:r0 + H + D_K - 1, col:col + WC]        # (H+4, WC)
        wk = w0_ref[kx * D_K:(kx + 1) * D_K, :]                    # (5, WC)
        for ky in range(D_K):
            acc = acc + strip[ky:ky + H, :] * wk[ky]
    attn = acc + b0_ref[0]

    # ---- attn -> conv_spatial padded scratch interior (aligned) ------------
    pad1_ref[p1_row0:p1_row0 + H, p1_col0 * C:p1_col0 * C + WC] = attn

    # ---- conv_spatial: depthwise dd_k x dd_k, dilation 3, pad dd_p ----------
    acc2 = jnp.zeros((H, WC), jnp.float32)
    r1 = p1_row0 - dd_p
    span = H + (dd_k - 1) * DILATION
    for kx in range(dd_k):
        col = (p1_col0 - dd_p + kx * DILATION) * C
        strip = pad1_ref[r1:r1 + span, col:col + WC]               # (span, WC)
        wk = w1_ref[kx * dd_k:(kx + 1) * dd_k, :]                  # (dd_k, WC)
        for ky in range(dd_k):
            row = ky * DILATION
            acc2 = acc2 + strip[row:row + H, :] * wk[ky]
    attn2 = acc2 + b1_ref[0]

    # ---- conv1 (1x1 channel mix): per-128-lane-group MXU matmuls ------------
    # wg is the (C, C) pointwise weight expanded to a single (128, 128) block
    # diagonal; every slice / concat below is 128-lane aligned and the weight
    # size is independent of W.
    wg = wg_ref[...]
    parts = []
    for g in range(n_groups):
        blk = attn2[:, g * GL:(g + 1) * GL]                        # (H, 128)
        parts.append(jnp.dot(blk, wg, preferred_element_type=jnp.float32))
    f_x = jnp.concatenate(parts, axis=1) + bc1_ref[0]

    # ---- squeeze-excite, fully in-kernel ------------------------------------
    # fc1f = tile(fc1_w.T, (W, 1)) / (H*W): one lane-dense matmul performs the
    # per-channel spatial mean AND the first FC.  fc2f = tile(fc2_w.T, (1, W)):
    # the second FC lands already replicated to the (1, W*C) lane layout, and
    # sigmoid(tile(z)) == tile(sigmoid(z)), so no in-kernel re-tiling needed.
    xsum = jnp.sum(x_ref[0], axis=0, keepdims=True)                # (1, WC)
    h1 = jnp.maximum(
        jnp.dot(xsum, fc1f_ref[...], preferred_element_type=jnp.float32), 0.0)
    z = jnp.dot(h1, fc2f_ref[...], preferred_element_type=jnp.float32)
    se = 1.0 / (1.0 + jnp.exp(-z))                                 # (1, WC)

    # ---- out = se * f_x * x  (aligned, lane-dense reads and store) ----------
    o_ref[0] = se * f_x * x_ref[0]


def temporal_attention_forward(x_nchw, params, kernel_size=21, dilation=DILATION):
    """Pallas forward of TemporalAttentionModule. x_nchw: (B, C, H, W) f32."""
    dd_k = kernel_size // dilation + (kernel_size // dilation % 2 - 1)
    dd_p = dilation * (dd_k - 1) // 2

    x = jnp.transpose(x_nchw, (0, 2, 3, 1)).astype(jnp.float32)    # NHWC
    B, H, W, C = x.shape
    WC = W * C
    assert 128 % C == 0 and WC % 128 == 0, "needs C | 128 and 128 | W*C"
    Wg = 128 // C                                                  # columns per conv1 group
    Ch = params["fc1_w"].shape[0]                                  # SE hidden width

    x2 = x.reshape(B, H, WC)                                       # lane-dense, unpadded

    # -- depthwise tap weights: kx-major rows, channels tiled across W --------
    w0t = jnp.tile(jnp.transpose(params["conv0_w"][:, 0], (2, 1, 0))
                   .reshape(D_K * D_K, C), (1, W))                 # (25, W*C)
    b0t = jnp.tile(params["conv0_b"], W)[None, :]                  # (1, W*C)
    w1t = jnp.tile(jnp.transpose(params["conv_spatial_w"][:, 0], (2, 1, 0))
                   .reshape(dd_k * dd_k, C), (1, W))               # (49, W*C)
    b1t = jnp.tile(params["conv_spatial_b"], W)[None, :]

    # -- conv1: single (128,128) block-diagonal group weight ------------------
    wc1 = params["conv1_w"][:, :, 0, 0].T                          # (Cin, Cout)
    wg = jnp.kron(jnp.eye(Wg, dtype=jnp.float32), wc1)             # (128, 128)
    bc1t = jnp.tile(params["conv1_b"], W)[None, :]

    # -- SE FC weights folded into lane-dense matmuls -------------------------
    fc1f = jnp.tile(params["fc1_w"].T, (W, 1)) / float(H * W)      # (W*C, Ch)
    fc2f = jnp.tile(params["fc2_w"].T, (1, W))                     # (Ch, W*C)

    # -- aligned geometry for both padded scratches ---------------------------
    def _ru(v, m):
        return -(-v // m) * m
    col_step = 128 // math.gcd(128, C)
    p0_row0 = _ru(D_P, 8)
    p0_rows = _ru(p0_row0 + H + D_P, 8)
    p0_col0 = _ru(D_P, col_step)
    p0_lanes = _ru((p0_col0 + W + D_P) * C, 128)
    p1_row0 = _ru(dd_p, 8)
    p1_rows = _ru(p1_row0 + H + dd_p, 8)
    p1_col0 = _ru(dd_p, col_step)
    p1_lanes = _ru((p1_col0 + W + dd_p) * C, 128)

    kernel = functools.partial(_lka_kernel, H=H, W=W, C=C, dd_k=dd_k, dd_p=dd_p,
                               p0_row0=p0_row0, p0_col0=p0_col0,
                               p1_row0=p1_row0, p1_col0=p1_col0)

    out = pl.pallas_call(
        kernel,
        out_shape=jax.ShapeDtypeStruct((B, H, WC), jnp.float32),
        grid_spec=pltpu.PrefetchScalarGridSpec(
            num_scalar_prefetch=0,
            grid=(B,),
            in_specs=[
                pl.BlockSpec((1, H, WC), lambda b: (b, 0, 0)),       # x (unpadded)
                pl.BlockSpec((D_K * D_K, WC), lambda b: (0, 0)),     # conv0 taps
                pl.BlockSpec((1, WC), lambda b: (0, 0)),             # conv0 bias
                pl.BlockSpec((dd_k * dd_k, WC), lambda b: (0, 0)),   # conv_spatial taps
                pl.BlockSpec((1, WC), lambda b: (0, 0)),             # conv_spatial bias
                pl.BlockSpec((128, 128), lambda b: (0, 0)),          # conv1 group weight
                pl.BlockSpec((1, WC), lambda b: (0, 0)),             # conv1 bias
                pl.BlockSpec((WC, Ch), lambda b: (0, 0)),            # SE fc1 (folded mean)
                pl.BlockSpec((Ch, WC), lambda b: (0, 0)),            # SE fc2 (folded tile)
            ],
            out_specs=pl.BlockSpec((1, H, WC), lambda b: (b, 0, 0)),
            scratch_shapes=[
                pltpu.VMEM((p0_rows, p0_lanes), jnp.float32),        # conv0 padded scratch
                pltpu.VMEM((p1_rows, p1_lanes), jnp.float32),        # conv_spatial padded scratch
            ],
        ),
        # Per-step scratch zeroing makes the batch axis race-free under
        # "parallel", so v7x megacore splits the batch across its 2 cores.
        compiler_params=pltpu.CompilerParams(
            dimension_semantics=("parallel",),
            vmem_limit_bytes=32 * 1024 * 1024),
    )(x2, w0t, b0t, w1t, b1t, wg, bc1t, fc1f, fc2f)

    out = out.reshape(B, H, W, C)
    return jnp.transpose(out, (0, 3, 1, 2))                         # back to NCHW


def reference_forward(x, params, kernel_size=21, dilation=DILATION):
    """Pure-JAX reference (matches the PyTorch module semantics), NCHW."""
    dim = x.shape[1]
    dd_k = kernel_size // dilation + (kernel_size // dilation % 2 - 1)
    dd_p = dilation * (dd_k - 1) // 2
    dn = ("NCHW", "OIHW", "NCHW")

    attn = lax.conv_general_dilated(
        x, params["conv0_w"], (1, 1), [(D_P, D_P), (D_P, D_P)],
        dimension_numbers=dn, feature_group_count=dim)
    attn = attn + params["conv0_b"][None, :, None, None]

    attn = lax.conv_general_dilated(
        attn, params["conv_spatial_w"], (1, 1), [(dd_p, dd_p), (dd_p, dd_p)],
        rhs_dilation=(dilation, dilation),
        dimension_numbers=dn, feature_group_count=dim)
    attn = attn + params["conv_spatial_b"][None, :, None, None]

    f_x = lax.conv_general_dilated(
        attn, params["conv1_w"], (1, 1), [(0, 0), (0, 0)], dimension_numbers=dn)
    f_x = f_x + params["conv1_b"][None, :, None, None]

    se = jnp.mean(x, axis=(2, 3))                                   # (B, C)
    se = jnp.maximum(se @ params["fc1_w"].T, 0.0)
    se = jax.nn.sigmoid(se @ params["fc2_w"].T)
    return se[:, :, None, None] * f_x * x


if __name__ == "__main__":
    B, C, H, W = 2, 32, 16, 16
    kernel_size, reduction = 21, 16
    dd_k = kernel_size // DILATION + (kernel_size // DILATION % 2 - 1)   # 7
    red = max(C // reduction, 4)                                         # 4
    Ch = C // red                                                        # 8

    key = jax.random.PRNGKey(0)
    ks = jax.random.split(key, 10)
    params = {
        "conv0_w": 0.1 * jax.random.normal(ks[0], (C, 1, D_K, D_K), jnp.float32),
        "conv0_b": 0.1 * jax.random.normal(ks[1], (C,), jnp.float32),
        "conv_spatial_w": 0.1 * jax.random.normal(ks[2], (C, 1, dd_k, dd_k), jnp.float32),
        "conv_spatial_b": 0.1 * jax.random.normal(ks[3], (C,), jnp.float32),
        "conv1_w": 0.1 * jax.random.normal(ks[4], (C, C, 1, 1), jnp.float32),
        "conv1_b": 0.1 * jax.random.normal(ks[5], (C,), jnp.float32),
        "fc1_w": 0.1 * jax.random.normal(ks[6], (Ch, C), jnp.float32),   # Linear(C -> Ch), no bias
        "fc2_w": 0.1 * jax.random.normal(ks[7], (C, Ch), jnp.float32),   # Linear(Ch -> C), no bias
    }
    x = jax.random.normal(ks[8], (B, C, H, W), jnp.float32)

    out = temporal_attention_forward(x, params, kernel_size=kernel_size)
    out = jax.block_until_ready(out)

    ref = reference_forward(x, params, kernel_size=kernel_size)
    np.testing.assert_allclose(np.asarray(out), np.asarray(ref), atol=1e-3, rtol=1e-3)

    print("KERNEL_OK")
</pallas_src>

<mosaic_0001>
module attributes {stable_mosaic.version = 11 : i64} {
  func.func @_lka_kernel(%arg0: i32, %arg1: memref<1x16x512xf32, #tpu.memory_space<vmem>>, %arg2: memref<25x512xf32, #tpu.memory_space<vmem>>, %arg3: memref<1x512xf32, #tpu.memory_space<vmem>>, %arg4: memref<49x512xf32, #tpu.memory_space<vmem>>, %arg5: memref<1x512xf32, #tpu.memory_space<vmem>>, %arg6: memref<128x128xf32, #tpu.memory_space<vmem>>, %arg7: memref<1x512xf32, #tpu.memory_space<vmem>>, %arg8: memref<512x8xf32, #tpu.memory_space<vmem>>, %arg9: memref<8x512xf32, #tpu.memory_space<vmem>>, %arg10: memref<1x16x512xf32, #tpu.memory_space<vmem>>, %arg11: memref<32x768xf32, #tpu.memory_space<vmem>>, %arg12: memref<48x1280xf32, #tpu.memory_space<vmem>>) attributes {dimension_semantics = [#tpu.dimension_semantics<parallel>], iteration_bounds = array<i64: 2>, scalar_prefetch = 0 : i64, scratch_operands = 2 : i64, tpu.core_type = #tpu.core_type<tc>, window_params = [{transform_indices = @transform_0, window_bounds = array<i64: 1, 16, 512>}, {pipeline_mode = #tpu.pipeline_mode<synchronous>, transform_indices = @transform_1, window_bounds = array<i64: 25, 512>}, {pipeline_mode = #tpu.pipeline_mode<synchronous>, transform_indices = @transform_2, window_bounds = array<i64: 1, 512>}, {pipeline_mode = #tpu.pipeline_mode<synchronous>, transform_indices = @transform_3, window_bounds = array<i64: 49, 512>}, {pipeline_mode = #tpu.pipeline_mode<synchronous>, transform_indices = @transform_4, window_bounds = array<i64: 1, 512>}, {pipeline_mode = #tpu.pipeline_mode<synchronous>, transform_indices = @transform_5, window_bounds = array<i64: 128, 128>}, {pipeline_mode = #tpu.pipeline_mode<synchronous>, transform_indices = @transform_6, window_bounds = array<i64: 1, 512>}, {pipeline_mode = #tpu.pipeline_mode<synchronous>, transform_indices = @transform_7, window_bounds = array<i64: 512, 8>}, {pipeline_mode = #tpu.pipeline_mode<synchronous>, transform_indices = @transform_8, window_bounds = array<i64: 8, 512>}, {transform_indices = @transform_9, window_bounds = array<i64: 1, 16, 512>}]} {
    %cst = arith.constant 0.000000e+00 : f32
    %0 = vector.broadcast %cst : f32 to vector<32x768xf32>
    %c0 = arith.constant 0 : index
    %c0_0 = arith.constant 0 : index
    %1 = vector.load %arg11[%c0, %c0_0] : memref<32x768xf32, #tpu.memory_space<vmem>>, vector<32x768xf32>
    tpu.vector_store %arg11[%c0, %c0_0], %0 {strides = array<i32>} : memref<32x768xf32, #tpu.memory_space<vmem>>, vector<32x768xf32>,
    %cst_1 = arith.constant 0.000000e+00 : f32
    %2 = vector.broadcast %cst_1 : f32 to vector<48x1280xf32>
    %c0_2 = arith.constant 0 : index
    %c0_3 = arith.constant 0 : index
    %3 = vector.load %arg12[%c0_2, %c0_3] : memref<48x1280xf32, #tpu.memory_space<vmem>>, vector<48x1280xf32>
    tpu.vector_store %arg12[%c0_2, %c0_3], %2 {strides = array<i32>} : memref<48x1280xf32, #tpu.memory_space<vmem>>, vector<48x1280xf32>,
    %c0_4 = arith.constant 0 : index
    %c0_5 = arith.constant 0 : index
    %c0_6 = arith.constant 0 : index
    %4 = vector.load %arg1[%c0_4, %c0_5, %c0_6] : memref<1x16x512xf32, #tpu.memory_space<vmem>>, vector<1x16x512xf32>
    %5 = vector.shape_cast %4 : vector<1x16x512xf32> to vector<16x512xf32>
    %c8 = arith.constant 8 : index
    %c128 = arith.constant 128 : index
    %6 = vector.load %arg11[%c8, %c128] : memref<32x768xf32, #tpu.memory_space<vmem>>, vector<16x512xf32>
    tpu.vector_store %arg11[%c8, %c128], %5 {strides = array<i32>} : memref<32x768xf32, #tpu.memory_space<vmem>>, vector<16x512xf32>,
    %cst_7 = arith.constant 0.000000e+00 : f32
    %7 = vector.broadcast %cst_7 : f32 to vector<16x512xf32>
    %c6 = arith.constant 6 : index
    %c64 = arith.constant 64 : index
    %8 = vector.load %arg11[%c6, %c64] : memref<32x768xf32, #tpu.memory_space<vmem>>, vector<20x512xf32>
    %c0_8 = arith.constant 0 : index
    %c0_9 = arith.constant 0 : index
    %9 = vector.load %arg2[%c0_8, %c0_9] : memref<25x512xf32, #tpu.memory_space<vmem>>, vector<5x512xf32>
    %10 = vector.extract_strided_slice %8 {offsets = [0, 0], sizes = [16, 512], strides = [1, 1]} : vector<20x512xf32> to vector<16x512xf32>
    %11 = vector.extract_strided_slice %9 {offsets = [0, 0], sizes = [1, 512], strides = [1, 1]} : vector<5x512xf32> to vector<1x512xf32>
    %12 = vector.shape_cast %11 : vector<1x512xf32> to vector<512xf32>
    %13 = vector.shape_cast %12 : vector<512xf32> to vector<1x512xf32>
    %14 = vector.broadcast %13 : vector<1x512xf32> to vector<16x512xf32>
    %15 = arith.mulf %10, %14 : vector<16x512xf32>
    %16 = arith.addf %7, %15 : vector<16x512xf32>
    %17 = vector.extract_strided_slice %8 {offsets = [1, 0], sizes = [16, 512], strides = [1, 1]} : vector<20x512xf32> to vector<16x512xf32>
    %18 = vector.extract_strided_slice %9 {offsets = [1, 0], sizes = [1, 512], strides = [1, 1]} : vector<5x512xf32> to vector<1x512xf32>
    %19 = vector.shape_cast %18 : vector<1x512xf32> to vector<512xf32>
    %20 = vector.shape_cast %19 : vector<512xf32> to vector<1x512xf32>
    %21 = vector.broadcast %20 : vector<1x512xf32> to vector<16x512xf32>
    %22 = arith.mulf %17, %21 : vector<16x512xf32>
    %23 = arith.addf %16, %22 : vector<16x512xf32>
    %24 = vector.extract_strided_slice %8 {offsets = [2, 0], sizes = [16, 512], strides = [1, 1]} : vector<20x512xf32> to vector<16x512xf32>
    %25 = vector.extract_strided_slice %9 {offsets = [2, 0], sizes = [1, 512], strides = [1, 1]} : vector<5x512xf32> to vector<1x512xf32>
    %26 = vector.shape_cast %25 : vector<1x512xf32> to vector<512xf32>
    %27 = vector.shape_cast %26 : vector<512xf32> to vector<1x512xf32>
    %28 = vector.broadcast %27 : vector<1x512xf32> to vector<16x512xf32>
    %29 = arith.mulf %24, %28 : vector<16x512xf32>
    %30 = arith.addf %23, %29 : vector<16x512xf32>
    %31 = vector.extract_strided_slice %8 {offsets = [3, 0], sizes = [16, 512], strides = [1, 1]} : vector<20x512xf32> to vector<16x512xf32>
    %32 = vector.extract_strided_slice %9 {offsets = [3, 0], sizes = [1, 512], strides = [1, 1]} : vector<5x512xf32> to vector<1x512xf32>
    %33 = vector.shape_cast %32 : vector<1x512xf32> to vector<512xf32>
    %34 = vector.shape_cast %33 : vector<512xf32> to vector<1x512xf32>
    %35 = vector.broadcast %34 : vector<1x512xf32> to vector<16x512xf32>
    %36 = arith.mulf %31, %35 : vector<16x512xf32>
    %37 = arith.addf %30, %36 : vector<16x512xf32>
    %38 = vector.extract_strided_slice %8 {offsets = [4, 0], sizes = [16, 512], strides = [1, 1]} : vector<20x512xf32> to vector<16x512xf32>
    %39 = vector.extract_strided_slice %9 {offsets = [4, 0], sizes = [1, 512], strides = [1, 1]} : vector<5x512xf32> to vector<1x512xf32>
    %40 = vector.shape_cast %39 : vector<1x512xf32> to vector<512xf32>
    %41 = vector.shape_cast %40 : vector<512xf32> to vector<1x512xf32>
    %42 = vector.broadcast %41 : vector<1x512xf32> to vector<16x512xf32>
    %43 = arith.mulf %38, %42 : vector<16x512xf32>
    %44 = arith.addf %37, %43 : vector<16x512xf32>
    %c6_10 = arith.constant 6 : index
    %c96 = arith.constant 96 : index
    %45 = vector.load %arg11[%c6_10, %c96] : memref<32x768xf32, #tpu.memory_space<vmem>>, vector<20x512xf32>
    %c5 = arith.constant 5 : index
    %c0_11 = arith.constant 0 : index
    %46 = vector.load %arg2[%c5, %c0_11] : memref<25x512xf32, #tpu.memory_space<vmem>>, vector<5x512xf32>
    %47 = vector.extract_strided_slice %45 {offsets = [0, 0], sizes = [16, 512], strides = [1, 1]} : vector<20x512xf32> to vector<16x512xf32>
    %48 = vector.extract_strided_slice %46 {offsets = [0, 0], sizes = [1, 512], strides = [1, 1]} : vector<5x512xf32> to vector<1x512xf32>
    %49 = vector.shape_cast %48 : vector<1x512xf32> to vector<512xf32>
    %50 = vector.shape_cast %49 : vector<512xf32> to vector<1x512xf32>
    %51 = vector.broadcast %50 : vector<1x512xf32> to vector<16x512xf32>
    %52 = arith.mulf %47, %51 : vector<16x512xf32>
    %53 = arith.addf %44, %52 : vector<16x512xf32>
    %54 = vector.extract_strided_slice %45 {offsets = [1, 0], sizes = [16, 512], strides = [1, 1]} : vector<20x512xf32> to vector<16x512xf32>
    %55 = vector.extract_strided_slice %46 {offsets = [1, 0], sizes = [1, 512], strides = [1, 1]} : vector<5x512xf32> to vector<1x512xf32>
    %56 = vector.shape_cast %55 : vector<1x512xf32> to vector<512xf32>
    %57 = vector.shape_cast %56 : vector<512xf32> to vector<1x512xf32>
    %58 = vector.broadcast %57 : vector<1x512xf32> to vector<16x512xf32>
    %59 = arith.mulf %54, %58 : vector<16x512xf32>
    %60 = arith.addf %53, %59 : vector<16x512xf32>
    %61 = vector.extract_strided_slice %45 {offsets = [2, 0], sizes = [16, 512], strides = [1, 1]} : vector<20x512xf32> to vector<16x512xf32>
    %62 = vector.extract_strided_slice %46 {offsets = [2, 0], sizes = [1, 512], strides = [1, 1]} : vector<5x512xf32> to vector<1x512xf32>
    %63 = vector.shape_cast %62 : vector<1x512xf32> to vector<512xf32>
    %64 = vector.shape_cast %63 : vector<512xf32> to vector<1x512xf32>
    %65 = vector.broadcast %64 : vector<1x512xf32> to vector<16x512xf32>
    %66 = arith.mulf %61, %65 : vector<16x512xf32>
    %67 = arith.addf %60, %66 : vector<16x512xf32>
    %68 = vector.extract_strided_slice %45 {offsets = [3, 0], sizes = [16, 512], strides = [1, 1]} : vector<20x512xf32> to vector<16x512xf32>
    %69 = vector.extract_strided_slice %46 {offsets = [3, 0], sizes = [1, 512], strides = [1, 1]} : vector<5x512xf32> to vector<1x512xf32>
    %70 = vector.shape_cast %69 : vector<1x512xf32> to vector<512xf32>
    %71 = vector.shape_cast %70 : vector<512xf32> to vector<1x512xf32>
    %72 = vector.broadcast %71 : vector<1x512xf32> to vector<16x512xf32>
    %73 = arith.mulf %68, %72 : vector<16x512xf32>
    %74 = arith.addf %67, %73 : vector<16x512xf32>
    %75 = vector.extract_strided_slice %45 {offsets = [4, 0], sizes = [16, 512], strides = [1, 1]} : vector<20x512xf32> to vector<16x512xf32>
    %76 = vector.extract_strided_slice %46 {offsets = [4, 0], sizes = [1, 512], strides = [1, 1]} : vector<5x512xf32> to vector<1x512xf32>
    %77 = vector.shape_cast %76 : vector<1x512xf32> to vector<512xf32>
    %78 = vector.shape_cast %77 : vector<512xf32> to vector<1x512xf32>
    %79 = vector.broadcast %78 : vector<1x512xf32> to vector<16x512xf32>
    %80 = arith.mulf %75, %79 : vector<16x512xf32>
    %81 = arith.addf %74, %80 : vector<16x512xf32>
    %c6_12 = arith.constant 6 : index
    %c128_13 = arith.constant 128 : index
    %82 = vector.load %arg11[%c6_12, %c128_13] : memref<32x768xf32, #tpu.memory_space<vmem>>, vector<20x512xf32>
    %c10 = arith.constant 10 : index
    %c0_14 = arith.constant 0 : index
    %83 = vector.load %arg2[%c10, %c0_14] : memref<25x512xf32, #tpu.memory_space<vmem>>, vector<5x512xf32>
    %84 = vector.extract_strided_slice %82 {offsets = [0, 0], sizes = [16, 512], strides = [1, 1]} : vector<20x512xf32> to vector<16x512xf32>
    %85 = vector.extract_strided_slice %83 {offsets = [0, 0], sizes = [1, 512], strides = [1, 1]} : vector<5x512xf32> to vector<1x512xf32>
    %86 = vector.shape_cast %85 : vector<1x512xf32> to vector<512xf32>
    %87 = vector.shape_cast %86 : vector<512xf32> to vector<1x512xf32>
    %88 = vector.broadcast %87 : vector<1x512xf32> to vector<16x512xf32>
    %89 = arith.mulf %84, %88 : vector<16x512xf32>
    %90 = arith.addf %81, %89 : vector<16x512xf32>
    %91 = vector.extract_strided_slice %82 {offsets = [1, 0], sizes = [16, 512], strides = [1, 1]} : vector<20x512xf32> to vector<16x512xf32>
    %92 = vector.extract_strided_slice %83 {offsets = [1, 0], sizes = [1, 512], strides = [1, 1]} : vector<5x512xf32> to vector<1x512xf32>
    %93 = vector.shape_cast %92 : vector<1x512xf32> to vector<512xf32>
    %94 = vector.shape_cast %93 : vector<512xf32> to vector<1x512xf32>
    %95 = vector.broadcast %94 : vector<1x512xf32> to vector<16x512xf32>
    %96 = arith.mulf %91, %95 : vector<16x512xf32>
    %97 = arith.addf %90, %96 : vector<16x512xf32>
    %98 = vector.extract_strided_slice %82 {offsets = [2, 0], sizes = [16, 512], strides = [1, 1]} : vector<20x512xf32> to vector<16x512xf32>
    %99 = vector.extract_strided_slice %83 {offsets = [2, 0], sizes = [1, 512], strides = [1, 1]} : vector<5x512xf32> to vector<1x512xf32>
    %100 = vector.shape_cast %99 : vector<1x512xf32> to vector<512xf32>
    %101 = vector.shape_cast %100 : vector<512xf32> to vector<1x512xf32>
    %102 = vector.broadcast %101 : vector<1x512xf32> to vector<16x512xf32>
    %103 = arith.mulf %98, %102 : vector<16x512xf32>
    %104 = arith.addf %97, %103 : vector<16x512xf32>
    %105 = vector.extract_strided_slice %82 {offsets = [3, 0], sizes = [16, 512], strides = [1, 1]} : vector<20x512xf32> to vector<16x512xf32>
    %106 = vector.extract_strided_slice %83 {offsets = [3, 0], sizes = [1, 512], strides = [1, 1]} : vector<5x512xf32> to vector<1x512xf32>
    %107 = vector.shape_cast %106 : vector<1x512xf32> to vector<512xf32>
    %108 = vector.shape_cast %107 : vector<512xf32> to vector<1x512xf32>
    %109 = vector.broadcast %108 : vector<1x512xf32> to vector<16x512xf32>
    %110 = arith.mulf %105, %109 : vector<16x512xf32>
    %111 = arith.addf %104, %110 : vector<16x512xf32>
    %112 = vector.extract_strided_slice %82 {offsets = [4, 0], sizes = [16, 512], strides = [1, 1]} : vector<20x512xf32> to vector<16x512xf32>
    %113 = vector.extract_strided_slice %83 {offsets = [4, 0], sizes = [1, 512], strides = [1, 1]} : vector<5x512xf32> to vector<1x512xf32>
    %114 = vector.shape_cast %113 : vector<1x512xf32> to vector<512xf32>
    %115 = vector.shape_cast %114 : vector<512xf32> to vector<1x512xf32>
    %116 = vector.broadcast %115 : vector<1x512xf32> to vector<16x512xf32>
    %117 = arith.mulf %112, %116 : vector<16x512xf32>
    %118 = arith.addf %111, %117 : vector<16x512xf32>
    %c6_15 = arith.constant 6 : index
    %c160 = arith.constant 160 : index
    %119 = vector.load %arg11[%c6_15, %c160] : memref<32x768xf32, #tpu.memory_space<vmem>>, vector<20x512xf32>
    %c15 = arith.constant 15 : index
    %c0_16 = arith.constant 0 : index
    %120 = vector.load %arg2[%c15, %c0_16] : memref<25x512xf32, #tpu.memory_space<vmem>>, vector<5x512xf32>
    %121 = vector.extract_strided_slice %119 {offsets = [0, 0], sizes = [16, 512], strides = [1, 1]} : vector<20x512xf32> to vector<16x512xf32>
    %122 = vector.extract_strided_slice %120 {offsets = [0, 0], sizes = [1, 512], strides = [1, 1]} : vector<5x512xf32> to vector<1x512xf32>
    %123 = vector.shape_cast %122 : vector<1x512xf32> to vector<512xf32>
    %124 = vector.shape_cast %123 : vector<512xf32> to vector<1x512xf32>
    %125 = vector.broadcast %124 : vector<1x512xf32> to vector<16x512xf32>
    %126 = arith.mulf %121, %125 : vector<16x512xf32>
    %127 = arith.addf %118, %126 : vector<16x512xf32>
    %128 = vector.extract_strided_slice %119 {offsets = [1, 0], sizes = [16, 512], strides = [1, 1]} : vector<20x512xf32> to vector<16x512xf32>
    %129 = vector.extract_strided_slice %120 {offsets = [1, 0], sizes = [1, 512], strides = [1, 1]} : vector<5x512xf32> to vector<1x512xf32>
    %130 = vector.shape_cast %129 : vector<1x512xf32> to vector<512xf32>
    %131 = vector.shape_cast %130 : vector<512xf32> to vector<1x512xf32>
    %132 = vector.broadcast %131 : vector<1x512xf32> to vector<16x512xf32>
    %133 = arith.mulf %128, %132 : vector<16x512xf32>
    %134 = arith.addf %127, %133 : vector<16x512xf32>
    %135 = vector.extract_strided_slice %119 {offsets = [2, 0], sizes = [16, 512], strides = [1, 1]} : vector<20x512xf32> to vector<16x512xf32>
    %136 = vector.extract_strided_slice %120 {offsets = [2, 0], sizes = [1, 512], strides = [1, 1]} : vector<5x512xf32> to vector<1x512xf32>
    %137 = vector.shape_cast %136 : vector<1x512xf32> to vector<512xf32>
    %138 = vector.shape_cast %137 : vector<512xf32> to vector<1x512xf32>
    %139 = vector.broadcast %138 : vector<1x512xf32> to vector<16x512xf32>
    %140 = arith.mulf %135, %139 : vector<16x512xf32>
    %141 = arith.addf %134, %140 : vector<16x512xf32>
    %142 = vector.extract_strided_slice %119 {offsets = [3, 0], sizes = [16, 512], strides = [1, 1]} : vector<20x512xf32> to vector<16x512xf32>
    %143 = vector.extract_strided_slice %120 {offsets = [3, 0], sizes = [1, 512], strides = [1, 1]} : vector<5x512xf32> to vector<1x512xf32>
    %144 = vector.shape_cast %143 : vector<1x512xf32> to vector<512xf32>
    %145 = vector.shape_cast %144 : vector<512xf32> to vector<1x512xf32>
    %146 = vector.broadcast %145 : vector<1x512xf32> to vector<16x512xf32>
    %147 = arith.mulf %142, %146 : vector<16x512xf32>
    %148 = arith.addf %141, %147 : vector<16x512xf32>
    %149 = vector.extract_strided_slice %119 {offsets = [4, 0], sizes = [16, 512], strides = [1, 1]} : vector<20x512xf32> to vector<16x512xf32>
    %150 = vector.extract_strided_slice %120 {offsets = [4, 0], sizes = [1, 512], strides = [1, 1]} : vector<5x512xf32> to vector<1x512xf32>
    %151 = vector.shape_cast %150 : vector<1x512xf32> to vector<512xf32>
    %152 = vector.shape_cast %151 : vector<512xf32> to vector<1x512xf32>
    %153 = vector.broadcast %152 : vector<1x512xf32> to vector<16x512xf32>
    %154 = arith.mulf %149, %153 : vector<16x512xf32>
    %155 = arith.addf %148, %154 : vector<16x512xf32>
    %c6_17 = arith.constant 6 : index
    %c192 = arith.constant 192 : index
    %156 = vector.load %arg11[%c6_17, %c192] : memref<32x768xf32, #tpu.memory_space<vmem>>, vector<20x512xf32>
    %c20 = arith.constant 20 : index
    %c0_18 = arith.constant 0 : index
    %157 = vector.load %arg2[%c20, %c0_18] : memref<25x512xf32, #tpu.memory_space<vmem>>, vector<5x512xf32>
    %158 = vector.extract_strided_slice %156 {offsets = [0, 0], sizes = [16, 512], strides = [1, 1]} : vector<20x512xf32> to vector<16x512xf32>
    %159 = vector.extract_strided_slice %157 {offsets = [0, 0], sizes = [1, 512], strides = [1, 1]} : vector<5x512xf32> to vector<1x512xf32>
    %160 = vector.shape_cast %159 : vector<1x512xf32> to vector<512xf32>
    %161 = vector.shape_cast %160 : vector<512xf32> to vector<1x512xf32>
    %162 = vector.broadcast %161 : vector<1x512xf32> to vector<16x512xf32>
    %163 = arith.mulf %158, %162 : vector<16x512xf32>
    %164 = arith.addf %155, %163 : vector<16x512xf32>
    %165 = vector.extract_strided_slice %156 {offsets = [1, 0], sizes = [16, 512], strides = [1, 1]} : vector<20x512xf32> to vector<16x512xf32>
    %166 = vector.extract_strided_slice %157 {offsets = [1, 0], sizes = [1, 512], strides = [1, 1]} : vector<5x512xf32> to vector<1x512xf32>
    %167 = vector.shape_cast %166 : vector<1x512xf32> to vector<512xf32>
    %168 = vector.shape_cast %167 : vector<512xf32> to vector<1x512xf32>
    %169 = vector.broadcast %168 : vector<1x512xf32> to vector<16x512xf32>
    %170 = arith.mulf %165, %169 : vector<16x512xf32>
    %171 = arith.addf %164, %170 : vector<16x512xf32>
    %172 = vector.extract_strided_slice %156 {offsets = [2, 0], sizes = [16, 512], strides = [1, 1]} : vector<20x512xf32> to vector<16x512xf32>
    %173 = vector.extract_strided_slice %157 {offsets = [2, 0], sizes = [1, 512], strides = [1, 1]} : vector<5x512xf32> to vector<1x512xf32>
    %174 = vector.shape_cast %173 : vector<1x512xf32> to vector<512xf32>
    %175 = vector.shape_cast %174 : vector<512xf32> to vector<1x512xf32>
    %176 = vector.broadcast %175 : vector<1x512xf32> to vector<16x512xf32>
    %177 = arith.mulf %172, %176 : vector<16x512xf32>
    %178 = arith.addf %171, %177 : vector<16x512xf32>
    %179 = vector.extract_strided_slice %156 {offsets = [3, 0], sizes = [16, 512], strides = [1, 1]} : vector<20x512xf32> to vector<16x512xf32>
    %180 = vector.extract_strided_slice %157 {offsets = [3, 0], sizes = [1, 512], strides = [1, 1]} : vector<5x512xf32> to vector<1x512xf32>
    %181 = vector.shape_cast %180 : vector<1x512xf32> to vector<512xf32>
    %182 = vector.shape_cast %181 : vector<512xf32> to vector<1x512xf32>
    %183 = vector.broadcast %182 : vector<1x512xf32> to vector<16x512xf32>
    %184 = arith.mulf %179, %183 : vector<16x512xf32>
    %185 = arith.addf %178, %184 : vector<16x512xf32>
    %186 = vector.extract_strided_slice %156 {offsets = [4, 0], sizes = [16, 512], strides = [1, 1]} : vector<20x512xf32> to vector<16x512xf32>
    %187 = vector.extract_strided_slice %157 {offsets = [4, 0], sizes = [1, 512], strides = [1, 1]} : vector<5x512xf32> to vector<1x512xf32>
    %188 = vector.shape_cast %187 : vector<1x512xf32> to vector<512xf32>
    %189 = vector.shape_cast %188 : vector<512xf32> to vector<1x512xf32>
    %190 = vector.broadcast %189 : vector<1x512xf32> to vector<16x512xf32>
    %191 = arith.mulf %186, %190 : vector<16x512xf32>
    %192 = arith.addf %185, %191 : vector<16x512xf32>
    %c0_19 = arith.constant 0 : index
    %c0_20 = arith.constant 0 : index
    %193 = vector.load %arg3[%c0_19, %c0_20] : memref<1x512xf32, #tpu.memory_space<vmem>>, vector<1x512xf32>
    %194 = vector.shape_cast %193 : vector<1x512xf32> to vector<512xf32>
    %195 = vector.shape_cast %194 : vector<512xf32> to vector<1x512xf32>
    %196 = vector.broadcast %195 : vector<1x512xf32> to vector<16x512xf32>
    %197 = arith.addf %192, %196 : vector<16x512xf32>
    %c16 = arith.constant 16 : index
    %c384 = arith.constant 384 : index
    %198 = vector.load %arg12[%c16, %c384] : memref<48x1280xf32, #tpu.memory_space<vmem>>, vector<16x512xf32>
    tpu.vector_store %arg12[%c16, %c384], %197 {strides = array<i32>} : memref<48x1280xf32, #tpu.memory_space<vmem>>, vector<16x512xf32>,
    %cst_21 = arith.constant 0.000000e+00 : f32
    %199 = vector.broadcast %cst_21 : f32 to vector<16x512xf32>
    %c7 = arith.constant 7 : index
    %c96_22 = arith.constant 96 : index
    %200 = vector.load %arg12[%c7, %c96_22] : memref<48x1280xf32, #tpu.memory_space<vmem>>, vector<34x512xf32>
    %c0_23 = arith.constant 0 : index
    %c0_24 = arith.constant 0 : index
    %201 = vector.load %arg4[%c0_23, %c0_24] : memref<49x512xf32, #tpu.memory_space<vmem>>, vector<7x512xf32>
    %202 = vector.extract_strided_slice %200 {offsets = [0, 0], sizes = [16, 512], strides = [1, 1]} : vector<34x512xf32> to vector<16x512xf32>
    %203 = vector.extract_strided_slice %201 {offsets = [0, 0], sizes = [1, 512], strides = [1, 1]} : vector<7x512xf32> to vector<1x512xf32>
    %204 = vector.shape_cast %203 : vector<1x512xf32> to vector<512xf32>
    %205 = vector.shape_cast %204 : vector<512xf32> to vector<1x512xf32>
    %206 = vector.broadcast %205 : vector<1x512xf32> to vector<16x512xf32>
    %207 = arith.mulf %202, %206 : vector<16x512xf32>
    %208 = arith.addf %199, %207 : vector<16x512xf32>
    %209 = vector.extract_strided_slice %200 {offsets = [3, 0], sizes = [16, 512], strides = [1, 1]} : vector<34x512xf32> to vector<16x512xf32>
    %210 = vector.extract_strided_slice %201 {offsets = [1, 0], sizes = [1, 512], strides = [1, 1]} : vector<7x512xf32> to vector<1x512xf32>
    %211 = vector.shape_cast %210 : vector<1x512xf32> to vector<512xf32>
    %212 = vector.shape_cast %211 : vector<512xf32> to vector<1x512xf32>
    %213 = vector.broadcast %212 : vector<1x512xf32> to vector<16x512xf32>
    %214 = arith.mulf %209, %213 : vector<16x512xf32>
    %215 = arith.addf %208, %214 : vector<16x512xf32>
    %216 = vector.extract_strided_slice %200 {offsets = [6, 0], sizes = [16, 512], strides = [1, 1]} : vector<34x512xf32> to vector<16x512xf32>
    %217 = vector.extract_strided_slice %201 {offsets = [2, 0], sizes = [1, 512], strides = [1, 1]} : vector<7x512xf32> to vector<1x512xf32>
    %218 = vector.shape_cast %217 : vector<1x512xf32> to vector<512xf32>
    %219 = vector.shape_cast %218 : vector<512xf32> to vector<1x512xf32>
    %220 = vector.broadcast %219 : vector<1x512xf32> to vector<16x512xf32>
    %221 = arith.mulf %216, %220 : vector<16x512xf32>
    %222 = arith.addf %215, %221 : vector<16x512xf32>
    %223 = vector.extract_strided_slice %200 {offsets = [9, 0], sizes = [16, 512], strides = [1, 1]} : vector<34x512xf32> to vector<16x512xf32>
    %224 = vector.extract_strided_slice %201 {offsets = [3, 0], sizes = [1, 512], strides = [1, 1]} : vector<7x512xf32> to vector<1x512xf32>
    %225 = vector.shape_cast %224 : vector<1x512xf32> to vector<512xf32>
    %226 = vector.shape_cast %225 : vector<512xf32> to vector<1x512xf32>
    %227 = vector.broadcast %226 : vector<1x512xf32> to vector<16x512xf32>
    %228 = arith.mulf %223, %227 : vector<16x512xf32>
    %229 = arith.addf %222, %228 : vector<16x512xf32>
    %230 = vector.extract_strided_slice %200 {offsets = [12, 0], sizes = [16, 512], strides = [1, 1]} : vector<34x512xf32> to vector<16x512xf32>
    %231 = vector.extract_strided_slice %201 {offsets = [4, 0], sizes = [1, 512], strides = [1, 1]} : vector<7x512xf32> to vector<1x512xf32>
    %232 = vector.shape_cast %231 : vector<1x512xf32> to vector<512xf32>
    %233 = vector.shape_cast %232 : vector<512xf32> to vector<1x512xf32>
    %234 = vector.broadcast %233 : vector<1x512xf32> to vector<16x512xf32>
    %235 = arith.mulf %230, %234 : vector<16x512xf32>
    %236 = arith.addf %229, %235 : vector<16x512xf32>
    %237 = vector.extract_strided_slice %200 {offsets = [15, 0], sizes = [16, 512], strides = [1, 1]} : vector<34x512xf32> to vector<16x512xf32>
    %238 = vector.extract_strided_slice %201 {offsets = [5, 0], sizes = [1, 512], strides = [1, 1]} : vector<7x512xf32> to vector<1x512xf32>
    %239 = vector.shape_cast %238 : vector<1x512xf32> to vector<512xf32>
    %240 = vector.shape_cast %239 : vector<512xf32> to vector<1x512xf32>
    %241 = vector.broadcast %240 : vector<1x512xf32> to vector<16x512xf32>
    %242 = arith.mulf %237, %241 : vector<16x512xf32>
    %243 = arith.addf %236, %242 : vector<16x512xf32>
    %244 = vector.extract_strided_slice %200 {offsets = [18, 0], sizes = [16, 512], strides = [1, 1]} : vector<34x512xf32> to vector<16x512xf32>
    %245 = vector.extract_strided_slice %201 {offsets = [6, 0], sizes = [1, 512], strides = [1, 1]} : vector<7x512xf32> to vector<1x512xf32>
    %246 = vector.shape_cast %245 : vector<1x512xf32> to vector<512xf32>
    %247 = vector.shape_cast %246 : vector<512xf32> to vector<1x512xf32>
    %248 = vector.broadcast %247 : vector<1x512xf32> to vector<16x512xf32>
    %249 = arith.mulf %244, %248 : vector<16x512xf32>
    %250 = arith.addf %243, %249 : vector<16x512xf32>
    %c7_25 = arith.constant 7 : index
    %c192_26 = arith.constant 192 : index
    %251 = vector.load %arg12[%c7_25, %c192_26] : memref<48x1280xf32, #tpu.memory_space<vmem>>, vector<34x512xf32>
    %c7_27 = arith.constant 7 : index
    %c0_28 = arith.constant 0 : index
    %252 = vector.load %arg4[%c7_27, %c0_28] : memref<49x512xf32, #tpu.memory_space<vmem>>, vector<7x512xf32>
    %253 = vector.extract_strided_slice %251 {offsets = [0, 0], sizes = [16, 512], strides = [1, 1]} : vector<34x512xf32> to vector<16x512xf32>
    %254 = vector.extract_strided_slice %252 {offsets = [0, 0], sizes = [1, 512], strides = [1, 1]} : vector<7x512xf32> to vector<1x512xf32>
    %255 = vector.shape_cast %254 : vector<1x512xf32> to vector<512xf32>
    %256 = vector.shape_cast %255 : vector<512xf32> to vector<1x512xf32>
    %257 = vector.broadcast %256 : vector<1x512xf32> to vector<16x512xf32>
    %258 = arith.mulf %253, %257 : vector<16x512xf32>
    %259 = arith.addf %250, %258 : vector<16x512xf32>
    %260 = vector.extract_strided_slice %251 {offsets = [3, 0], sizes = [16, 512], strides = [1, 1]} : vector<34x512xf32> to vector<16x512xf32>
    %261 = vector.extract_strided_slice %252 {offsets = [1, 0], sizes = [1, 512], strides = [1, 1]} : vector<7x512xf32> to vector<1x512xf32>
    %262 = vector.shape_cast %261 : vector<1x512xf32> to vector<512xf32>
    %263 = vector.shape_cast %262 : vector<512xf32> to vector<1x512xf32>
    %264 = vector.broadcast %263 : vector<1x512xf32> to vector<16x512xf32>
    %265 = arith.mulf %260, %264 : vector<16x512xf32>
    %266 = arith.addf %259, %265 : vector<16x512xf32>
    %267 = vector.extract_strided_slice %251 {offsets = [6, 0], sizes = [16, 512], strides = [1, 1]} : vector<34x512xf32> to vector<16x512xf32>
    %268 = vector.extract_strided_slice %252 {offsets = [2, 0], sizes = [1, 512], strides = [1, 1]} : vector<7x512xf32> to vector<1x512xf32>
    %269 = vector.shape_cast %268 : vector<1x512xf32> to vector<512xf32>
    %270 = vector.shape_cast %269 : vector<512xf32> to vector<1x512xf32>
    %271 = vector.broadcast %270 : vector<1x512xf32> to vector<16x512xf32>
    %272 = arith.mulf %267, %271 : vector<16x512xf32>
    %273 = arith.addf %266, %272 : vector<16x512xf32>
    %274 = vector.extract_strided_slice %251 {offsets = [9, 0], sizes = [16, 512], strides = [1, 1]} : vector<34x512xf32> to vector<16x512xf32>
    %275 = vector.extract_strided_slice %252 {offsets = [3, 0], sizes = [1, 512], strides = [1, 1]} : vector<7x512xf32> to vector<1x512xf32>
    %276 = vector.shape_cast %275 : vector<1x512xf32> to vector<512xf32>
    %277 = vector.shape_cast %276 : vector<512xf32> to vector<1x512xf32>
    %278 = vector.broadcast %277 : vector<1x512xf32> to vector<16x512xf32>
    %279 = arith.mulf %274, %278 : vector<16x512xf32>
    %280 = arith.addf %273, %279 : vector<16x512xf32>
    %281 = vector.extract_strided_slice %251 {offsets = [12, 0], sizes = [16, 512], strides = [1, 1]} : vector<34x512xf32> to vector<16x512xf32>
    %282 = vector.extract_strided_slice %252 {offsets = [4, 0], sizes = [1, 512], strides = [1, 1]} : vector<7x512xf32> to vector<1x512xf32>
    %283 = vector.shape_cast %282 : vector<1x512xf32> to vector<512xf32>
    %284 = vector.shape_cast %283 : vector<512xf32> to vector<1x512xf32>
    %285 = vector.broadcast %284 : vector<1x512xf32> to vector<16x512xf32>
    %286 = arith.mulf %281, %285 : vector<16x512xf32>
    %287 = arith.addf %280, %286 : vector<16x512xf32>
    %288 = vector.extract_strided_slice %251 {offsets = [15, 0], sizes = [16, 512], strides = [1, 1]} : vector<34x512xf32> to vector<16x512xf32>
    %289 = vector.extract_strided_slice %252 {offsets = [5, 0], sizes = [1, 512], strides = [1, 1]} : vector<7x512xf32> to vector<1x512xf32>
    %290 = vector.shape_cast %289 : vector<1x512xf32> to vector<512xf32>
    %291 = vector.shape_cast %290 : vector<512xf32> to vector<1x512xf32>
    %292 = vector.broadcast %291 : vector<1x512xf32> to vector<16x512xf32>
    %293 = arith.mulf %288, %292 : vector<16x512xf32>
    %294 = arith.addf %287, %293 : vector<16x512xf32>
    %295 = vector.extract_strided_slice %251 {offsets = [18, 0], sizes = [16, 512], strides = [1, 1]} : vector<34x512xf32> to vector<16x512xf32>
    %296 = vector.extract_strided_slice %252 {offsets = [6, 0], sizes = [1, 512], strides = [1, 1]} : vector<7x512xf32> to vector<1x512xf32>
    %297 = vector.shape_cast %296 : vector<1x512xf32> to vector<512xf32>
    %298 = vector.shape_cast %297 : vector<512xf32> to vector<1x512xf32>
    %299 = vector.broadcast %298 : vector<1x512xf32> to vector<16x512xf32>
    %300 = arith.mulf %295, %299 : vector<16x512xf32>
    %301 = arith.addf %294, %300 : vector<16x512xf32>
    %c7_29 = arith.constant 7 : index
    %c288 = arith.constant 288 : index
    %302 = vector.load %arg12[%c7_29, %c288] : memref<48x1280xf32, #tpu.memory_space<vmem>>, vector<34x512xf32>
    %c14 = arith.constant 14 : index
    %c0_30 = arith.constant 0 : index
    %303 = vector.load %arg4[%c14, %c0_30] : memref<49x512xf32, #tpu.memory_space<vmem>>, vector<7x512xf32>
    %304 = vector.extract_strided_slice %302 {offsets = [0, 0], sizes = [16, 512], strides = [1, 1]} : vector<34x512xf32> to vector<16x512xf32>
    %305 = vector.extract_strided_slice %303 {offsets = [0, 0], sizes = [1, 512], strides = [1, 1]} : vector<7x512xf32> to vector<1x512xf32>
    %306 = vector.shape_cast %305 : vector<1x512xf32> to vector<512xf32>
    %307 = vector.shape_cast %306 : vector<512xf32> to vector<1x512xf32>
    %308 = vector.broadcast %307 : vector<1x512xf32> to vector<16x512xf32>
    %309 = arith.mulf %304, %308 : vector<16x512xf32>
    %310 = arith.addf %301, %309 : vector<16x512xf32>
    %311 = vector.extract_strided_slice %302 {offsets = [3, 0], sizes = [16, 512], strides = [1, 1]} : vector<34x512xf32> to vector<16x512xf32>
    %312 = vector.extract_strided_slice %303 {offsets = [1, 0], sizes = [1, 512], strides = [1, 1]} : vector<7x512xf32> to vector<1x512xf32>
    %313 = vector.shape_cast %312 : vector<1x512xf32> to vector<512xf32>
    %314 = vector.shape_cast %313 : vector<512xf32> to vector<1x512xf32>
    %315 = vector.broadcast %314 : vector<1x512xf32> to vector<16x512xf32>
    %316 = arith.mulf %311, %315 : vector<16x512xf32>
    %317 = arith.addf %310, %316 : vector<16x512xf32>
    %318 = vector.extract_strided_slice %302 {offsets = [6, 0], sizes = [16, 512], strides = [1, 1]} : vector<34x512xf32> to vector<16x512xf32>
    %319 = vector.extract_strided_slice %303 {offsets = [2, 0], sizes = [1, 512], strides = [1, 1]} : vector<7x512xf32> to vector<1x512xf32>
    %320 = vector.shape_cast %319 : vector<1x512xf32> to vector<512xf32>
    %321 = vector.shape_cast %320 : vector<512xf32> to vector<1x512xf32>
    %322 = vector.broadcast %321 : vector<1x512xf32> to vector<16x512xf32>
    %323 = arith.mulf %318, %322 : vector<16x512xf32>
    %324 = arith.addf %317, %323 : vector<16x512xf32>
    %325 = vector.extract_strided_slice %302 {offsets = [9, 0], sizes = [16, 512], strides = [1, 1]} : vector<34x512xf32> to vector<16x512xf32>
    %326 = vector.extract_strided_slice %303 {offsets = [3, 0], sizes = [1, 512], strides = [1, 1]} : vector<7x512xf32> to vector<1x512xf32>
    %327 = vector.shape_cast %326 : vector<1x512xf32> to vector<512xf32>
    %328 = vector.shape_cast %327 : vector<512xf32> to vector<1x512xf32>
    %329 = vector.broadcast %328 : vector<1x512xf32> to vector<16x512xf32>
    %330 = arith.mulf %325, %329 : vector<16x512xf32>
    %331 = arith.addf %324, %330 : vector<16x512xf32>
    %332 = vector.extract_strided_slice %302 {offsets = [12, 0], sizes = [16, 512], strides = [1, 1]} : vector<34x512xf32> to vector<16x512xf32>
    %333 = vector.extract_strided_slice %303 {offsets = [4, 0], sizes = [1, 512], strides = [1, 1]} : vector<7x512xf32> to vector<1x512xf32>
    %334 = vector.shape_cast %333 : vector<1x512xf32> to vector<512xf32>
    %335 = vector.shape_cast %334 : vector<512xf32> to vector<1x512xf32>
    %336 = vector.broadcast %335 : vector<1x512xf32> to vector<16x512xf32>
    %337 = arith.mulf %332, %336 : vector<16x512xf32>
    %338 = arith.addf %331, %337 : vector<16x512xf32>
    %339 = vector.extract_strided_slice %302 {offsets = [15, 0], sizes = [16, 512], strides = [1, 1]} : vector<34x512xf32> to vector<16x512xf32>
    %340 = vector.extract_strided_slice %303 {offsets = [5, 0], sizes = [1, 512], strides = [1, 1]} : vector<7x512xf32> to vector<1x512xf32>
    %341 = vector.shape_cast %340 : vector<1x512xf32> to vector<512xf32>
    %342 = vector.shape_cast %341 : vector<512xf32> to vector<1x512xf32>
    %343 = vector.broadcast %342 : vector<1x512xf32> to vector<16x512xf32>
    %344 = arith.mulf %339, %343 : vector<16x512xf32>
    %345 = arith.addf %338, %344 : vector<16x512xf32>
    %346 = vector.extract_strided_slice %302 {offsets = [18, 0], sizes = [16, 512], strides = [1, 1]} : vector<34x512xf32> to vector<16x512xf32>
    %347 = vector.extract_strided_slice %303 {offsets = [6, 0], sizes = [1, 512], strides = [1, 1]} : vector<7x512xf32> to vector<1x512xf32>
    %348 = vector.shape_cast %347 : vector<1x512xf32> to vector<512xf32>
    %349 = vector.shape_cast %348 : vector<512xf32> to vector<1x512xf32>
    %350 = vector.broadcast %349 : vector<1x512xf32> to vector<16x512xf32>
    %351 = arith.mulf %346, %350 : vector<16x512xf32>
    %352 = arith.addf %345, %351 : vector<16x512xf32>
    %c7_31 = arith.constant 7 : index
    %c384_32 = arith.constant 384 : index
    %353 = vector.load %arg12[%c7_31, %c384_32] : memref<48x1280xf32, #tpu.memory_space<vmem>>, vector<34x512xf32>
    %c21 = arith.constant 21 : index
    %c0_33 = arith.constant 0 : index
    %354 = vector.load %arg4[%c21, %c0_33] : memref<49x512xf32, #tpu.memory_space<vmem>>, vector<7x512xf32>
    %355 = vector.extract_strided_slice %353 {offsets = [0, 0], sizes = [16, 512], strides = [1, 1]} : vector<34x512xf32> to vector<16x512xf32>
    %356 = vector.extract_strided_slice %354 {offsets = [0, 0], sizes = [1, 512], strides = [1, 1]} : vector<7x512xf32> to vector<1x512xf32>
    %357 = vector.shape_cast %356 : vector<1x512xf32> to vector<512xf32>
    %358 = vector.shape_cast %357 : vector<512xf32> to vector<1x512xf32>
    %359 = vector.broadcast %358 : vector<1x512xf32> to vector<16x512xf32>
    %360 = arith.mulf %355, %359 : vector<16x512xf32>
    %361 = arith.addf %352, %360 : vector<16x512xf32>
    %362 = vector.extract_strided_slice %353 {offsets = [3, 0], sizes = [16, 512], strides = [1, 1]} : vector<34x512xf32> to vector<16x512xf32>
    %363 = vector.extract_strided_slice %354 {offsets = [1, 0], sizes = [1, 512], strides = [1, 1]} : vector<7x512xf32> to vector<1x512xf32>
    %364 = vector.shape_cast %363 : vector<1x512xf32> to vector<512xf32>
    %365 = vector.shape_cast %364 : vector<512xf32> to vector<1x512xf32>
    %366 = vector.broadcast %365 : vector<1x512xf32> to vector<16x512xf32>
    %367 = arith.mulf %362, %366 : vector<16x512xf32>
    %368 = arith.addf %361, %367 : vector<16x512xf32>
    %369 = vector.extract_strided_slice %353 {offsets = [6, 0], sizes = [16, 512], strides = [1, 1]} : vector<34x512xf32> to vector<16x512xf32>
    %370 = vector.extract_strided_slice %354 {offsets = [2, 0], sizes = [1, 512], strides = [1, 1]} : vector<7x512xf32> to vector<1x512xf32>
    %371 = vector.shape_cast %370 : vector<1x512xf32> to vector<512xf32>
    %372 = vector.shape_cast %371 : vector<512xf32> to vector<1x512xf32>
    %373 = vector.broadcast %372 : vector<1x512xf32> to vector<16x512xf32>
    %374 = arith.mulf %369, %373 : vector<16x512xf32>
    %375 = arith.addf %368, %374 : vector<16x512xf32>
    %376 = vector.extract_strided_slice %353 {offsets = [9, 0], sizes = [16, 512], strides = [1, 1]} : vector<34x512xf32> to vector<16x512xf32>
    %377 = vector.extract_strided_slice %354 {offsets = [3, 0], sizes = [1, 512], strides = [1, 1]} : vector<7x512xf32> to vector<1x512xf32>
    %378 = vector.shape_cast %377 : vector<1x512xf32> to vector<512xf32>
    %379 = vector.shape_cast %378 : vector<512xf32> to vector<1x512xf32>
    %380 = vector.broadcast %379 : vector<1x512xf32> to vector<16x512xf32>
    %381 = arith.mulf %376, %380 : vector<16x512xf32>
    %382 = arith.addf %375, %381 : vector<16x512xf32>
    %383 = vector.extract_strided_slice %353 {offsets = [12, 0], sizes = [16, 512], strides = [1, 1]} : vector<34x512xf32> to vector<16x512xf32>
    %384 = vector.extract_strided_slice %354 {offsets = [4, 0], sizes = [1, 512], strides = [1, 1]} : vector<7x512xf32> to vector<1x512xf32>
    %385 = vector.shape_cast %384 : vector<1x512xf32> to vector<512xf32>
    %386 = vector.shape_cast %385 : vector<512xf32> to vector<1x512xf32>
    %387 = vector.broadcast %386 : vector<1x512xf32> to vector<16x512xf32>
    %388 = arith.mulf %383, %387 : vector<16x512xf32>
    %389 = arith.addf %382, %388 : vector<16x512xf32>
    %390 = vector.extract_strided_slice %353 {offsets = [15, 0], sizes = [16, 512], strides = [1, 1]} : vector<34x512xf32> to vector<16x512xf32>
    %391 = vector.extract_strided_slice %354 {offsets = [5, 0], sizes = [1, 512], strides = [1, 1]} : vector<7x512xf32> to vector<1x512xf32>
    %392 = vector.shape_cast %391 : vector<1x512xf32> to vector<512xf32>
    %393 = vector.shape_cast %392 : vector<512xf32> to vector<1x512xf32>
    %394 = vector.broadcast %393 : vector<1x512xf32> to vector<16x512xf32>
    %395 = arith.mulf %390, %394 : vector<16x512xf32>
    %396 = arith.addf %389, %395 : vector<16x512xf32>
    %397 = vector.extract_strided_slice %353 {offsets = [18, 0], sizes = [16, 512], strides = [1, 1]} : vector<34x512xf32> to vector<16x512xf32>
    %398 = vector.extract_strided_slice %354 {offsets = [6, 0], sizes = [1, 512], strides = [1, 1]} : vector<7x512xf32> to vector<1x512xf32>
    %399 = vector.shape_cast %398 : vector<1x512xf32> to vector<512xf32>
    %400 = vector.shape_cast %399 : vector<512xf32> to vector<1x512xf32>
    %401 = vector.broadcast %400 : vector<1x512xf32> to vector<16x512xf32>
    %402 = arith.mulf %397, %401 : vector<16x512xf32>
    %403 = arith.addf %396, %402 : vector<16x512xf32>
    %c7_34 = arith.constant 7 : index
    %c480 = arith.constant 480 : index
    %404 = vector.load %arg12[%c7_34, %c480] : memref<48x1280xf32, #tpu.memory_space<vmem>>, vector<34x512xf32>
    %c28 = arith.constant 28 : index
    %c0_35 = arith.constant 0 : index
    %405 = vector.load %arg4[%c28, %c0_35] : memref<49x512xf32, #tpu.memory_space<vmem>>, vector<7x512xf32>
    %406 = vector.extract_strided_slice %404 {offsets = [0, 0], sizes = [16, 512], strides = [1, 1]} : vector<34x512xf32> to vector<16x512xf32>
    %407 = vector.extract_strided_slice %405 {offsets = [0, 0], sizes = [1, 512], strides = [1, 1]} : vector<7x512xf32> to vector<1x512xf32>
    %408 = vector.shape_cast %407 : vector<1x512xf32> to vector<512xf32>
    %409 = vector.shape_cast %408 : vector<512xf32> to vector<1x512xf32>
    %410 = vector.broadcast %409 : vector<1x512xf32> to vector<16x512xf32>
    %411 = arith.mulf %406, %410 : vector<16x512xf32>
    %412 = arith.addf %403, %411 : vector<16x512xf32>
    %413 = vector.extract_strided_slice %404 {offsets = [3, 0], sizes = [16, 512], strides = [1, 1]} : vector<34x512xf32> to vector<16x512xf32>
    %414 = vector.extract_strided_slice %405 {offsets = [1, 0], sizes = [1, 512], strides = [1, 1]} : vector<7x512xf32> to vector<1x512xf32>
    %415 = vector.shape_cast %414 : vector<1x512xf32> to vector<512xf32>
    %416 = vector.shape_cast %415 : vector<512xf32> to vector<1x512xf32>
    %417 = vector.broadcast %416 : vector<1x512xf32> to vector<16x512xf32>
    %418 = arith.mulf %413, %417 : vector<16x512xf32>
    %419 = arith.addf %412, %418 : vector<16x512xf32>
    %420 = vector.extract_strided_slice %404 {offsets = [6, 0], sizes = [16, 512], strides = [1, 1]} : vector<34x512xf32> to vector<16x512xf32>
    %421 = vector.extract_strided_slice %405 {offsets = [2, 0], sizes = [1, 512], strides = [1, 1]} : vector<7x512xf32> to vector<1x512xf32>
    %422 = vector.shape_cast %421 : vector<1x512xf32> to vector<512xf32>
    %423 = vector.shape_cast %422 : vector<512xf32> to vector<1x512xf32>
    %424 = vector.broadcast %423 : vector<1x512xf32> to vector<16x512xf32>
    %425 = arith.mulf %420, %424 : vector<16x512xf32>
    %426 = arith.addf %419, %425 : vector<16x512xf32>
    %427 = vector.extract_strided_slice %404 {offsets = [9, 0], sizes = [16, 512], strides = [1, 1]} : vector<34x512xf32> to vector<16x512xf32>
    %428 = vector.extract_strided_slice %405 {offsets = [3, 0], sizes = [1, 512], strides = [1, 1]} : vector<7x512xf32> to vector<1x512xf32>
    %429 = vector.shape_cast %428 : vector<1x512xf32> to vector<512xf32>
    %430 = vector.shape_cast %429 : vector<512xf32> to vector<1x512xf32>
    %431 = vector.broadcast %430 : vector<1x512xf32> to vector<16x512xf32>
    %432 = arith.mulf %427, %431 : vector<16x512xf32>
    %433 = arith.addf %426, %432 : vector<16x512xf32>
    %434 = vector.extract_strided_slice %404 {offsets = [12, 0], sizes = [16, 512], strides = [1, 1]} : vector<34x512xf32> to vector<16x512xf32>
    %435 = vector.extract_strided_slice %405 {offsets = [4, 0], sizes = [1, 512], strides = [1, 1]} : vector<7x512xf32> to vector<1x512xf32>
    %436 = vector.shape_cast %435 : vector<1x512xf32> to vector<512xf32>
    %437 = vector.shape_cast %436 : vector<512xf32> to vector<1x512xf32>
    %438 = vector.broadcast %437 : vector<1x512xf32> to vector<16x512xf32>
    %439 = arith.mulf %434, %438 : vector<16x512xf32>
    %440 = arith.addf %433, %439 : vector<16x512xf32>
    %441 = vector.extract_strided_slice %404 {offsets = [15, 0], sizes = [16, 512], strides = [1, 1]} : vector<34x512xf32> to vector<16x512xf32>
    %442 = vector.extract_strided_slice %405 {offsets = [5, 0], sizes = [1, 512], strides = [1, 1]} : vector<7x512xf32> to vector<1x512xf32>
    %443 = vector.shape_cast %442 : vector<1x512xf32> to vector<512xf32>
    %444 = vector.shape_cast %443 : vector<512xf32> to vector<1x512xf32>
    %445 = vector.broadcast %444 : vector<1x512xf32> to vector<16x512xf32>
    %446 = arith.mulf %441, %445 : vector<16x512xf32>
    %447 = arith.addf %440, %446 : vector<16x512xf32>
    %448 = vector.extract_strided_slice %404 {offsets = [18, 0], sizes = [16, 512], strides = [1, 1]} : vector<34x512xf32> to vector<16x512xf32>
    %449 = vector.extract_strided_slice %405 {offsets = [6, 0], sizes = [1, 512], strides = [1, 1]} : vector<7x512xf32> to vector<1x512xf32>
    %450 = vector.shape_cast %449 : vector<1x512xf32> to vector<512xf32>
    %451 = vector.shape_cast %450 : vector<512xf32> to vector<1x512xf32>
    %452 = vector.broadcast %451 : vector<1x512xf32> to vector<16x512xf32>
    %453 = arith.mulf %448, %452 : vector<16x512xf32>
    %454 = arith.addf %447, %453 : vector<16x512xf32>
    %c7_36 = arith.constant 7 : index
    %c576 = arith.constant 576 : index
    %455 = vector.load %arg12[%c7_36, %c576] : memref<48x1280xf32, #tpu.memory_space<vmem>>, vector<34x512xf32>
    %c35 = arith.constant 35 : index
    %c0_37 = arith.constant 0 : index
    %456 = vector.load %arg4[%c35, %c0_37] : memref<49x512xf32, #tpu.memory_space<vmem>>, vector<7x512xf32>
    %457 = vector.extract_strided_slice %455 {offsets = [0, 0], sizes = [16, 512], strides = [1, 1]} : vector<34x512xf32> to vector<16x512xf32>
    %458 = vector.extract_strided_slice %456 {offsets = [0, 0], sizes = [1, 512], strides = [1, 1]} : vector<7x512xf32> to vector<1x512xf32>
    %459 = vector.shape_cast %458 : vector<1x512xf32> to vector<512xf32>
    %460 = vector.shape_cast %459 : vector<512xf32> to vector<1x512xf32>
    %461 = vector.broadcast %460 : vector<1x512xf32> to vector<16x512xf32>
    %462 = arith.mulf %457, %461 : vector<16x512xf32>
    %463 = arith.addf %454, %462 : vector<16x512xf32>
    %464 = vector.extract_strided_slice %455 {offsets = [3, 0], sizes = [16, 512], strides = [1, 1]} : vector<34x512xf32> to vector<16x512xf32>
    %465 = vector.extract_strided_slice %456 {offsets = [1, 0], sizes = [1, 512], strides = [1, 1]} : vector<7x512xf32> to vector<1x512xf32>
    %466 = vector.shape_cast %465 : vector<1x512xf32> to vector<512xf32>
    %467 = vector.shape_cast %466 : vector<512xf32> to vector<1x512xf32>
    %468 = vector.broadcast %467 : vector<1x512xf32> to vector<16x512xf32>
    %469 = arith.mulf %464, %468 : vector<16x512xf32>
    %470 = arith.addf %463, %469 : vector<16x512xf32>
    %471 = vector.extract_strided_slice %455 {offsets = [6, 0], sizes = [16, 512], strides = [1, 1]} : vector<34x512xf32> to vector<16x512xf32>
    %472 = vector.extract_strided_slice %456 {offsets = [2, 0], sizes = [1, 512], strides = [1, 1]} : vector<7x512xf32> to vector<1x512xf32>
    %473 = vector.shape_cast %472 : vector<1x512xf32> to vector<512xf32>
    %474 = vector.shape_cast %473 : vector<512xf32> to vector<1x512xf32>
    %475 = vector.broadcast %474 : vector<1x512xf32> to vector<16x512xf32>
    %476 = arith.mulf %471, %475 : vector<16x512xf32>
    %477 = arith.addf %470, %476 : vector<16x512xf32>
    %478 = vector.extract_strided_slice %455 {offsets = [9, 0], sizes = [16, 512], strides = [1, 1]} : vector<34x512xf32> to vector<16x512xf32>
    %479 = vector.extract_strided_slice %456 {offsets = [3, 0], sizes = [1, 512], strides = [1, 1]} : vector<7x512xf32> to vector<1x512xf32>
    %480 = vector.shape_cast %479 : vector<1x512xf32> to vector<512xf32>
    %481 = vector.shape_cast %480 : vector<512xf32> to vector<1x512xf32>
    %482 = vector.broadcast %481 : vector<1x512xf32> to vector<16x512xf32>
    %483 = arith.mulf %478, %482 : vector<16x512xf32>
    %484 = arith.addf %477, %483 : vector<16x512xf32>
    %485 = vector.extract_strided_slice %455 {offsets = [12, 0], sizes = [16, 512], strides = [1, 1]} : vector<34x512xf32> to vector<16x512xf32>
    %486 = vector.extract_strided_slice %456 {offsets = [4, 0], sizes = [1, 512], strides = [1, 1]} : vector<7x512xf32> to vector<1x512xf32>
    %487 = vector.shape_cast %486 : vector<1x512xf32> to vector<512xf32>
    %488 = vector.shape_cast %487 : vector<512xf32> to vector<1x512xf32>
    %489 = vector.broadcast %488 : vector<1x512xf32> to vector<16x512xf32>
    %490 = arith.mulf %485, %489 : vector<16x512xf32>
    %491 = arith.addf %484, %490 : vector<16x512xf32>
    %492 = vector.extract_strided_slice %455 {offsets = [15, 0], sizes = [16, 512], strides = [1, 1]} : vector<34x512xf32> to vector<16x512xf32>
    %493 = vector.extract_strided_slice %456 {offsets = [5, 0], sizes = [1, 512], strides = [1, 1]} : vector<7x512xf32> to vector<1x512xf32>
    %494 = vector.shape_cast %493 : vector<1x512xf32> to vector<512xf32>
    %495 = vector.shape_cast %494 : vector<512xf32> to vector<1x512xf32>
    %496 = vector.broadcast %495 : vector<1x512xf32> to vector<16x512xf32>
    %497 = arith.mulf %492, %496 : vector<16x512xf32>
    %498 = arith.addf %491, %497 : vector<16x512xf32>
    %499 = vector.extract_strided_slice %455 {offsets = [18, 0], sizes = [16, 512], strides = [1, 1]} : vector<34x512xf32> to vector<16x512xf32>
    %500 = vector.extract_strided_slice %456 {offsets = [6, 0], sizes = [1, 512], strides = [1, 1]} : vector<7x512xf32> to vector<1x512xf32>
    %501 = vector.shape_cast %500 : vector<1x512xf32> to vector<512xf32>
    %502 = vector.shape_cast %501 : vector<512xf32> to vector<1x512xf32>
    %503 = vector.broadcast %502 : vector<1x512xf32> to vector<16x512xf32>
    %504 = arith.mulf %499, %503 : vector<16x512xf32>
    %505 = arith.addf %498, %504 : vector<16x512xf32>
    %c7_38 = arith.constant 7 : index
    %c672 = arith.constant 672 : index
    %506 = vector.load %arg12[%c7_38, %c672] : memref<48x1280xf32, #tpu.memory_space<vmem>>, vector<34x512xf32>
    %c42 = arith.constant 42 : index
    %c0_39 = arith.constant 0 : index
    %507 = vector.load %arg4[%c42, %c0_39] : memref<49x512xf32, #tpu.memory_space<vmem>>, vector<7x512xf32>
    %508 = vector.extract_strided_slice %506 {offsets = [0, 0], sizes = [16, 512], strides = [1, 1]} : vector<34x512xf32> to vector<16x512xf32>
    %509 = vector.extract_strided_slice %507 {offsets = [0, 0], sizes = [1, 512], strides = [1, 1]} : vector<7x512xf32> to vector<1x512xf32>
    %510 = vector.shape_cast %509 : vector<1x512xf32> to vector<512xf32>
    %511 = vector.shape_cast %510 : vector<512xf32> to vector<1x512xf32>
    %512 = vector.broadcast %511 : vector<1x512xf32> to vector<16x512xf32>
    %513 = arith.mulf %508, %512 : vector<16x512xf32>
    %514 = arith.addf %505, %513 : vector<16x512xf32>
    %515 = vector.extract_strided_slice %506 {offsets = [3, 0], sizes = [16, 512], strides = [1, 1]} : vector<34x512xf32> to vector<16x512xf32>
    %516 = vector.extract_strided_slice %507 {offsets = [1, 0], sizes = [1, 512], strides = [1, 1]} : vector<7x512xf32> to vector<1x512xf32>
    %517 = vector.shape_cast %516 : vector<1x512xf32> to vector<512xf32>
    %518 = vector.shape_cast %517 : vector<512xf32> to vector<1x512xf32>
    %519 = vector.broadcast %518 : vector<1x512xf32> to vector<16x512xf32>
    %520 = arith.mulf %515, %519 : vector<16x512xf32>
    %521 = arith.addf %514, %520 : vector<16x512xf32>
    %522 = vector.extract_strided_slice %506 {offsets = [6, 0], sizes = [16, 512], strides = [1, 1]} : vector<34x512xf32> to vector<16x512xf32>
    %523 = vector.extract_strided_slice %507 {offsets = [2, 0], sizes = [1, 512], strides = [1, 1]} : vector<7x512xf32> to vector<1x512xf32>
    %524 = vector.shape_cast %523 : vector<1x512xf32> to vector<512xf32>
    %525 = vector.shape_cast %524 : vector<512xf32> to vector<1x512xf32>
    %526 = vector.broadcast %525 : vector<1x512xf32> to vector<16x512xf32>
    %527 = arith.mulf %522, %526 : vector<16x512xf32>
    %528 = arith.addf %521, %527 : vector<16x512xf32>
    %529 = vector.extract_strided_slice %506 {offsets = [9, 0], sizes = [16, 512], strides = [1, 1]} : vector<34x512xf32> to vector<16x512xf32>
    %530 = vector.extract_strided_slice %507 {offsets = [3, 0], sizes = [1, 512], strides = [1, 1]} : vector<7x512xf32> to vector<1x512xf32>
    %531 = vector.shape_cast %530 : vector<1x512xf32> to vector<512xf32>
    %532 = vector.shape_cast %531 : vector<512xf32> to vector<1x512xf32>
    %533 = vector.broadcast %532 : vector<1x512xf32> to vector<16x512xf32>
    %534 = arith.mulf %529, %533 : vector<16x512xf32>
    %535 = arith.addf %528, %534 : vector<16x512xf32>
    %536 = vector.extract_strided_slice %506 {offsets = [12, 0], sizes = [16, 512], strides = [1, 1]} : vector<34x512xf32> to vector<16x512xf32>
    %537 = vector.extract_strided_slice %507 {offsets = [4, 0], sizes = [1, 512], strides = [1, 1]} : vector<7x512xf32> to vector<1x512xf32>
    %538 = vector.shape_cast %537 : vector<1x512xf32> to vector<512xf32>
    %539 = vector.shape_cast %538 : vector<512xf32> to vector<1x512xf32>
    %540 = vector.broadcast %539 : vector<1x512xf32> to vector<16x512xf32>
    %541 = arith.mulf %536, %540 : vector<16x512xf32>
    %542 = arith.addf %535, %541 : vector<16x512xf32>
    %543 = vector.extract_strided_slice %506 {offsets = [15, 0], sizes = [16, 512], strides = [1, 1]} : vector<34x512xf32> to vector<16x512xf32>
    %544 = vector.extract_strided_slice %507 {offsets = [5, 0], sizes = [1, 512], strides = [1, 1]} : vector<7x512xf32> to vector<1x512xf32>
    %545 = vector.shape_cast %544 : vector<1x512xf32> to vector<512xf32>
    %546 = vector.shape_cast %545 : vector<512xf32> to vector<1x512xf32>
    %547 = vector.broadcast %546 : vector<1x512xf32> to vector<16x512xf32>
    %548 = arith.mulf %543, %547 : vector<16x512xf32>
    %549 = arith.addf %542, %548 : vector<16x512xf32>
    %550 = vector.extract_strided_slice %506 {offsets = [18, 0], sizes = [16, 512], strides = [1, 1]} : vector<34x512xf32> to vector<16x512xf32>
    %551 = vector.extract_strided_slice %507 {offsets = [6, 0], sizes = [1, 512], strides = [1, 1]} : vector<7x512xf32> to vector<1x512xf32>
    %552 = vector.shape_cast %551 : vector<1x512xf32> to vector<512xf32>
    %553 = vector.shape_cast %552 : vector<512xf32> to vector<1x512xf32>
    %554 = vector.broadcast %553 : vector<1x512xf32> to vector<16x512xf32>
    %555 = arith.mulf %550, %554 : vector<16x512xf32>
    %556 = arith.addf %549, %555 : vector<16x512xf32>
    %c0_40 = arith.constant 0 : index
    %c0_41 = arith.constant 0 : index
    %557 = vector.load %arg5[%c0_40, %c0_41] : memref<1x512xf32, #tpu.memory_space<vmem>>, vector<1x512xf32>
    %558 = vector.shape_cast %557 : vector<1x512xf32> to vector<512xf32>
    %559 = vector.shape_cast %558 : vector<512xf32> to vector<1x512xf32>
    %560 = vector.broadcast %559 : vector<1x512xf32> to vector<16x512xf32>
    %561 = arith.addf %556, %560 : vector<16x512xf32>
    %c0_42 = arith.constant 0 : index
    %c0_43 = arith.constant 0 : index
    %562 = vector.load %arg6[%c0_42, %c0_43] : memref<128x128xf32, #tpu.memory_space<vmem>>, vector<128x128xf32>
    %563 = vector.extract_strided_slice %561 {offsets = [0, 0], sizes = [16, 128], strides = [1, 1]} : vector<16x512xf32> to vector<16x128xf32>
    %cst_44 = arith.constant dense<0.000000e+00> : vector<16x128xf32>
    %564 = tpu.matmul %563, %562, %cst_44 {dimension_numbers = #tpu.dot_dimension_numbers<[1], [0], [0], [1], [0, 0, 1, 1], [], []>} : vector<16x128xf32>, vector<128x128xf32>, vector<16x128xf32> -> vector<16x128xf32>
    %565 = vector.extract_strided_slice %561 {offsets = [0, 128], sizes = [16, 128], strides = [1, 1]} : vector<16x512xf32> to vector<16x128xf32>
    %cst_45 = arith.constant dense<0.000000e+00> : vector<16x128xf32>
    %566 = tpu.matmul %565, %562, %cst_45 {dimension_numbers = #tpu.dot_dimension_numbers<[1], [0], [0], [1], [0, 0, 1, 1], [], []>} : vector<16x128xf32>, vector<128x128xf32>, vector<16x128xf32> -> vector<16x128xf32>
    %567 = vector.extract_strided_slice %561 {offsets = [0, 256], sizes = [16, 128], strides = [1, 1]} : vector<16x512xf32> to vector<16x128xf32>
    %cst_46 = arith.constant dense<0.000000e+00> : vector<16x128xf32>
    %568 = tpu.matmul %567, %562, %cst_46 {dimension_numbers = #tpu.dot_dimension_numbers<[1], [0], [0], [1], [0, 0, 1, 1], [], []>} : vector<16x128xf32>, vector<128x128xf32>, vector<16x128xf32> -> vector<16x128xf32>
    %569 = vector.extract_strided_slice %561 {offsets = [0, 384], sizes = [16, 128], strides = [1, 1]} : vector<16x512xf32> to vector<16x128xf32>
    %cst_47 = arith.constant dense<0.000000e+00> : vector<16x128xf32>
    %570 = tpu.matmul %569, %562, %cst_47 {dimension_numbers = #tpu.dot_dimension_numbers<[1], [0], [0], [1], [0, 0, 1, 1], [], []>} : vector<16x128xf32>, vector<128x128xf32>, vector<16x128xf32> -> vector<16x128xf32>
    %571 = tpu.concatenate %564, %566, %568, %570 in 1 : vector<16x128xf32>, vector<16x128xf32>, vector<16x128xf32>, vector<16x128xf32> -> vector<16x512xf32>
    %c0_48 = arith.constant 0 : index
    %c0_49 = arith.constant 0 : index
    %572 = vector.load %arg7[%c0_48, %c0_49] : memref<1x512xf32, #tpu.memory_space<vmem>>, vector<1x512xf32>
    %573 = vector.shape_cast %572 : vector<1x512xf32> to vector<512xf32>
    %574 = vector.shape_cast %573 : vector<512xf32> to vector<1x512xf32>
    %575 = vector.broadcast %574 : vector<1x512xf32> to vector<16x512xf32>
    %576 = arith.addf %571, %575 : vector<16x512xf32>
    %c0_50 = arith.constant 0 : index
    %c0_51 = arith.constant 0 : index
    %c0_52 = arith.constant 0 : index
    %577 = vector.load %arg1[%c0_50, %c0_51, %c0_52] : memref<1x16x512xf32, #tpu.memory_space<vmem>>, vector<1x16x512xf32>
    %578 = vector.shape_cast %577 : vector<1x16x512xf32> to vector<16x512xf32>
    %cst_53 = arith.constant dense<0.000000e+00> : vector<512xf32>
    %579 = vector.multi_reduction <add>, %578, %cst_53 [0] : vector<16x512xf32> to vector<512xf32>
    %580 = vector.shape_cast %579 : vector<512xf32> to vector<1x512xf32>
    %c0_54 = arith.constant 0 : index
    %c0_55 = arith.constant 0 : index
    %581 = vector.load %arg8[%c0_54, %c0_55] : memref<512x8xf32, #tpu.memory_space<vmem>>, vector<512x8xf32>
    %cst_56 = arith.constant dense<0.000000e+00> : vector<1x8xf32>
    %582 = tpu.matmul %580, %581, %cst_56 {dimension_numbers = #tpu.dot_dimension_numbers<[1], [0], [0], [1], [0, 0, 1, 1], [], []>} : vector<1x512xf32>, vector<512x8xf32>, vector<1x8xf32> -> vector<1x8xf32>
    %cst_57 = arith.constant 0.000000e+00 : f32
    %583 = vector.broadcast %cst_57 : f32 to vector<1x8xf32>
    %584 = arith.maximumf %582, %583 : vector<1x8xf32>
    %c0_58 = arith.constant 0 : index
    %c0_59 = arith.constant 0 : index
    %585 = vector.load %arg9[%c0_58, %c0_59] : memref<8x512xf32, #tpu.memory_space<vmem>>, vector<8x512xf32>
    %cst_60 = arith.constant dense<0.000000e+00> : vector<1x512xf32>
    %586 = tpu.matmul %584, %585, %cst_60 {dimension_numbers = #tpu.dot_dimension_numbers<[1], [0], [0], [1], [0, 0, 1, 1], [], []>} : vector<1x8xf32>, vector<8x512xf32>, vector<1x512xf32> -> vector<1x512xf32>
    %cst_61 = arith.constant 0.000000e+00 : f32
    %587 = vector.broadcast %cst_61 : f32 to vector<1x512xf32>
    %588 = arith.subf %587, %586 : vector<1x512xf32>
    %589 = math.exp %588 : vector<1x512xf32>
    %cst_62 = arith.constant 1.000000e+00 : f32
    %590 = vector.broadcast %cst_62 : f32 to vector<1x512xf32>
    %591 = arith.addf %590, %589 : vector<1x512xf32>
    %cst_63 = arith.constant 1.000000e+00 : f32
    %592 = vector.broadcast %cst_63 : f32 to vector<1x512xf32>
    %593 = arith.divf %592, %591 : vector<1x512xf32>
    %594 = vector.broadcast %593 : vector<1x512xf32> to vector<16x512xf32>
    %595 = arith.mulf %594, %576 : vector<16x512xf32>
    %c0_64 = arith.constant 0 : index
    %c0_65 = arith.constant 0 : index
    %c0_66 = arith.constant 0 : index
    %596 = vector.load %arg1[%c0_64, %c0_65, %c0_66] : memref<1x16x512xf32, #tpu.memory_space<vmem>>, vector<1x16x512xf32>
    %597 = vector.shape_cast %596 : vector<1x16x512xf32> to vector<16x512xf32>
    %598 = arith.mulf %595, %597 : vector<16x512xf32>
    %c0_67 = arith.constant 0 : index
    %c0_68 = arith.constant 0 : index
    %c0_69 = arith.constant 0 : index
    %599 = vector.load %arg10[%c0_67, %c0_68, %c0_69] : memref<1x16x512xf32, #tpu.memory_space<vmem>>, vector<1x16x512xf32>
    %600 = vector.shape_cast %599 : vector<1x16x512xf32> to vector<16x512xf32>
    %601 = vector.shape_cast %598 : vector<16x512xf32> to vector<1x16x512xf32>
    tpu.vector_store %arg10[%c0_67, %c0_68, %c0_69], %601 {strides = array<i32>} : memref<1x16x512xf32, #tpu.memory_space<vmem>>, vector<1x16x512xf32>,
    return
  }
  func.func @transform_0(%arg0: i32) -> (i32, i32, i32) {
    %c0_i32 = arith.constant 0 : i32
    %c0_i32_0 = arith.constant 0 : i32
    %c0_i32_1 = arith.constant 0 : i32
    return %arg0, %c0_i32, %c0_i32_0 : i32, i32, i32
  }
  func.func @transform_1(%arg0: i32) -> (i32, i32) {
    %c0_i32 = arith.constant 0 : i32
    %c0_i32_0 = arith.constant 0 : i32
    %c0_i32_1 = arith.constant 0 : i32
    return %c0_i32, %c0_i32_0 : i32, i32
  }
  func.func @transform_2(%arg0: i32) -> (i32, i32) {
    %c0_i32 = arith.constant 0 : i32
    %c0_i32_0 = arith.constant 0 : i32
    %c0_i32_1 = arith.constant 0 : i32
    return %c0_i32, %c0_i32_0 : i32, i32
  }
  func.func @transform_3(%arg0: i32) -> (i32, i32) {
    %c0_i32 = arith.constant 0 : i32
    %c0_i32_0 = arith.constant 0 : i32
    %c0_i32_1 = arith.constant 0 : i32
    return %c0_i32, %c0_i32_0 : i32, i32
  }
  func.func @transform_4(%arg0: i32) -> (i32, i32) {
    %c0_i32 = arith.constant 0 : i32
    %c0_i32_0 = arith.constant 0 : i32
    %c0_i32_1 = arith.constant 0 : i32
    return %c0_i32, %c0_i32_0 : i32, i32
  }
  func.func @transform_5(%arg0: i32) -> (i32, i32) {
    %c0_i32 = arith.constant 0 : i32
    %c0_i32_0 = arith.constant 0 : i32
    %c0_i32_1 = arith.constant 0 : i32
    return %c0_i32, %c0_i32_0 : i32, i32
  }
  func.func @transform_6(%arg0: i32) -> (i32, i32) {
    %c0_i32 = arith.constant 0 : i32
    %c0_i32_0 = arith.constant 0 : i32
    %c0_i32_1 = arith.constant 0 : i32
    return %c0_i32, %c0_i32_0 : i32, i32
  }
  func.func @transform_7(%arg0: i32) -> (i32, i32) {
    %c0_i32 = arith.constant 0 : i32
    %c0_i32_0 = arith.constant 0 : i32
    %c0_i32_1 = arith.constant 0 : i32
    return %c0_i32, %c0_i32_0 : i32, i32
  }
  func.func @transform_8(%arg0: i32) -> (i32, i32) {
    %c0_i32 = arith.constant 0 : i32
    %c0_i32_0 = arith.constant 0 : i32
    %c0_i32_1 = arith.constant 0 : i32
    return %c0_i32, %c0_i32_0 : i32, i32
  }
  func.func @transform_9(%arg0: i32) -> (i32, i32, i32) {
    %c0_i32 = arith.constant 0 : i32
    %c0_i32_0 = arith.constant 0 : i32
    %c0_i32_1 = arith.constant 0 : i32
    return %arg0, %c0_i32, %c0_i32_0 : i32, i32, i32
  }
}

</mosaic_0001>

<llo_original>
// kernel: tpu_custom_call.1
$region0: #{tpu_custom_call.1}
  #allocation0 [shape = 'u32[]', space=smem, size = 0x4, offset = 0x4, fixed_abs, tag = 'smem constant byte address 0x4 - core index']
  #allocation1 [shape = 'u32[144,128]{1,0:T(1,128)}', space=vmem, size = 0x12000, scoped, tag = 'internal scratch']
  #allocation2 [shape = 'f32[32,768]{1,0:T(8,128)}', space=vmem, size = 0x18000, scoped, tag = 'scratch operand']
  #allocation3 [shape = 'f32[48,1280]{1,0:T(8,128)}', space=vmem, size = 0x3c000, scoped, tag = 'scratch operand']
  %s0 = inlined_call_operand.vmem [shape: f32[2,16,512], index: 0, kind: input, shape index: {}]
  %s1 = inlined_call_operand.vmem [shape: f32[25,512], index: 1, kind: input, shape index: {}]
  %s2 = inlined_call_operand.vmem [shape: f32[1,512], index: 2, kind: input, shape index: {}]
  %s3 = inlined_call_operand.vmem [shape: f32[49,512], index: 3, kind: input, shape index: {}]
  %s4 = inlined_call_operand.vmem [shape: f32[1,512], index: 4, kind: input, shape index: {}]
  %s5 = inlined_call_operand.hbm [shape: f32[128,128], index: 5, kind: input, shape index: {}]
  %s6 = inlined_call_operand.vmem [shape: f32[1,512], index: 6, kind: input, shape index: {}]
  %s7 = inlined_call_operand.vmem [shape: f32[512,8], index: 7, kind: input, shape index: {}]
  %s8 = inlined_call_operand.vmem [shape: f32[8,512], index: 8, kind: input, shape index: {}]
  %s9 = inlined_call_operand.hbm [shape: f32[2,16,512], index: 9, kind: output, shape index: {}]
  %s10 = sld [smem:[#allocation0]]
  $region73: #{tpu_custom_call.1} parent=0
    _
  %s12 = ssub.s32 1, %s10
  %s13 = scalar_select 0, %s12, %s10
  $region1: #{tpu_custom_call.1} parent=0
    #allocation4 [shape = 'u8[65536]{0}', space=vmem, size = 0x10000, scoped, tag = 'input window, operand 5, single buffered']
    #allocation5 [shape = 's32[2]{0}', space=sflag, size = 0x8, scoped, tag = 'scoped memory for tpu_custom_call.1']
    #allocation6 [shape = 's32[2]{0}', space=sflag, size = 0x8, scoped, tag = 'scoped memory for tpu_custom_call.1']
    #allocation7 [shape = 'u8[65536]{0}', space=vmem, size = 0x10000, scoped, tag = 'output window, operand 0']
    %14 = vsyncpa [#allocation5], 0
    %15 = vsyncpa [#allocation6], 0
    %s16 = scalar_lea.sflag [#allocation6], 1
    %17 = vsyncpa %s16, 0
    loop: start=0, step=1, limit=4
    $region2: #{tpu_custom_call.1} parent=1 // loop_pre_header
      _
    $region3: #{tpu_custom_call.1} parent=1 // loop_header
      %s19 = sphi 0, %s23
      %p20 = scmp.ge.s32.totalorder %s19, 4
      %s29 = sphi 0, %s31
      %s32 = sphi 0, %s29
      %s33 = sphi 0, %s32
      %s49 = sphi 0, %s33
      %s53 = sphi 0, %s53
      %s55 = sphi 0, %s53
      %s56 = sphi 0, %s55
      %s70 = sphi 0, %s56
      %s74 = sphi 0, %s74
      %s76 = sphi 0, %s74
      %s77 = sphi 0, %s76
      %s91 = sphi 0, %s77
      %s95 = sphi 0, %s95
      %s97 = sphi 0, %s95
      %s98 = sphi 0, %s97
      %s112 = sphi 0, %s98
      %s116 = sphi 0, %s116
      %s118 = sphi 0, %s116
      %s119 = sphi 0, %s118
      %s133 = sphi 0, %s119
      %s137 = sphi 0, %s137
      %s139 = sphi 0, %s137
      %s140 = sphi 0, %s139
      %s154 = sphi 0, %s140
      %s158 = sphi 0, %s158
      %s160 = sphi 0, %s158
      %s161 = sphi 0, %s160
      %s175 = sphi 0, %s161
      %s179 = sphi 0, %s179
      %s181 = sphi 0, %s179
      %s182 = sphi 0, %s181
      %s196 = sphi 0, %s182
      %s200 = sphi 0, %s200
      %s202 = sphi 0, %s200
      %s203 = sphi 0, %s202
      %s217 = sphi 0, %s203
      %s223 = sphi 0, %s225
      %s226 = sphi 0, %s223
      %s227 = sphi 0, %s226
      %s243 = sphi 0, %s227
    $region4: #{tpu_custom_call.1} parent=1 // loop_header_branch
      %22 = sbr.rel (%p20) target = $region8
    $region5: #{tpu_custom_call.1} parent=1 // loop_body
      %s24 = ssub.s32 %s19, 1
      %s25 = ssub.s32 %s19, 2
      %s26 = sadd.s32 %s19, 1
      %s27 = ssub.s32 %s19, %s26
      %p28 = scmp.eq.s32.totalorder %s27, 0
      %s30 = sadd.s32 %s29, 1
      %s31 = scalar_select %p28, %s29, %s30
      %p34 = pneg %p28
      %p35 = scmp.eq.s32.totalorder %s19, 1
      %p36 = por %p34, %p35
      %p37 = scmp.ne.s32.totalorder %s29, %s32
      %p38 = scmp.eq.s32.totalorder %s19, 0
      %p39 = por %p37, %p38
      %p40 = scmp.ne.s32.totalorder %s29, %s32
      %p41 = scmp.eq.s32.totalorder %s24, 1
      %p42 = por %p40, %p41
      %p43 = scmp.ne.s32.totalorder %s32, %s33
      %p44 = scmp.eq.s32.totalorder %s24, 0
      %p45 = por %p43, %p44
      %p46 = scmp.ne.s32.totalorder %s32, %s33
      %p47 = scmp.eq.s32.totalorder %s25, 1
      %p48 = por %p46, %p47
      %p50 = scmp.ne.s32.totalorder %s33, %s49
      %p51 = scmp.eq.s32.totalorder %s25, 0
      %p52 = por %p50, %p51
      %s54 = sadd.s32 %s53, 1
      %p57 = scmp.eq.s32.totalorder %s19, 1
      %p58 = scmp.ne.s32.totalorder %s53, %s55
      %p59 = scmp.eq.s32.totalorder %s19, 0
      %p60 = por %p58, %p59
      %p61 = scmp.ne.s32.totalorder %s53, %s55
      %p62 = scmp.eq.s32.totalorder %s24, 1
      %p63 = por %p61, %p62
      %p64 = scmp.ne.s32.totalorder %s55, %s56
      %p65 = scmp.eq.s32.totalorder %s24, 0
      %p66 = por %p64, %p65
      %p67 = scmp.ne.s32.totalorder %s55, %s56
      %p68 = scmp.eq.s32.totalorder %s25, 1
      %p69 = por %p67, %p68
      %p71 = scmp.ne.s32.totalorder %s56, %s70
      %p72 = scmp.eq.s32.totalorder %s25, 0
      %p73 = por %p71, %p72
      %s75 = sadd.s32 %s74, 1
      %p78 = scmp.eq.s32.totalorder %s19, 1
      %p79 = scmp.ne.s32.totalorder %s74, %s76
      %p80 = scmp.eq.s32.totalorder %s19, 0
      %p81 = por %p79, %p80
      %p82 = scmp.ne.s32.totalorder %s74, %s76
      %p83 = scmp.eq.s32.totalorder %s24, 1
      %p84 = por %p82, %p83
      %p85 = scmp.ne.s32.totalorder %s76, %s77
      %p86 = scmp.eq.s32.totalorder %s24, 0
      %p87 = por %p85, %p86
      %p88 = scmp.ne.s32.totalorder %s76, %s77
      %p89 = scmp.eq.s32.totalorder %s25, 1
      %p90 = por %p88, %p89
      %p92 = scmp.ne.s32.totalorder %s77, %s91
      %p93 = scmp.eq.s32.totalorder %s25, 0
      %p94 = por %p92, %p93
      %s96 = sadd.s32 %s95, 1
      %p99 = scmp.eq.s32.totalorder %s19, 1
      %p100 = scmp.ne.s32.totalorder %s95, %s97
      %p101 = scmp.eq.s32.totalorder %s19, 0
      %p102 = por %p100, %p101
      %p103 = scmp.ne.s32.totalorder %s95, %s97
      %p104 = scmp.eq.s32.totalorder %s24, 1
      %p105 = por %p103, %p104
      %p106 = scmp.ne.s32.totalorder %s97, %s98
      %p107 = scmp.eq.s32.totalorder %s24, 0
      %p108 = por %p106, %p107
      %p109 = scmp.ne.s32.totalorder %s97, %s98
      %p110 = scmp.eq.s32.totalorder %s25, 1
      %p111 = por %p109, %p110
      %p113 = scmp.ne.s32.totalorder %s98, %s112
      %p114 = scmp.eq.s32.totalorder %s25, 0
      %p115 = por %p113, %p114
      %s117 = sadd.s32 %s116, 1
      %p120 = scmp.eq.s32.totalorder %s19, 1
      %p121 = scmp.ne.s32.totalorder %s116, %s118
      %p122 = scmp.eq.s32.totalorder %s19, 0
      %p123 = por %p121, %p122
      %p124 = scmp.ne.s32.totalorder %s116, %s118
      %p125 = scmp.eq.s32.totalorder %s24, 1
      %p126 = por %p124, %p125
      %p127 = scmp.ne.s32.totalorder %s118, %s119
      %p128 = scmp.eq.s32.totalorder %s24, 0
      %p129 = por %p127, %p128
      %p130 = scmp.ne.s32.totalorder %s118, %s119
      %p131 = scmp.eq.s32.totalorder %s25, 1
      %p132 = por %p130, %p131
      %p134 = scmp.ne.s32.totalorder %s119, %s133
      %p135 = scmp.eq.s32.totalorder %s25, 0
      %p136 = por %p134, %p135
      %s138 = sadd.s32 %s137, 1
      %p141 = scmp.eq.s32.totalorder %s19, 1
      %p142 = scmp.ne.s32.totalorder %s137, %s139
      %p143 = scmp.eq.s32.totalorder %s19, 0
      %p144 = por %p142, %p143
      %p145 = scmp.ne.s32.totalorder %s137, %s139
      %p146 = scmp.eq.s32.totalorder %s24, 1
      %p147 = por %p145, %p146
      %p148 = scmp.ne.s32.totalorder %s139, %s140
      %p149 = scmp.eq.s32.totalorder %s24, 0
      %p150 = por %p148, %p149
      %p151 = scmp.ne.s32.totalorder %s139, %s140
      %p152 = scmp.eq.s32.totalorder %s25, 1
      %p153 = por %p151, %p152
      %p155 = scmp.ne.s32.totalorder %s140, %s154
      %p156 = scmp.eq.s32.totalorder %s25, 0
      %p157 = por %p155, %p156
      %s159 = sadd.s32 %s158, 1
      %p162 = scmp.eq.s32.totalorder %s19, 1
      %p163 = scmp.ne.s32.totalorder %s158, %s160
      %p164 = scmp.eq.s32.totalorder %s19, 0
      %p165 = por %p163, %p164
      %p166 = scmp.ne.s32.totalorder %s158, %s160
      %p167 = scmp.eq.s32.totalorder %s24, 1
      %p168 = por %p166, %p167
      %p169 = scmp.ne.s32.totalorder %s160, %s161
      %p170 = scmp.eq.s32.totalorder %s24, 0
      %p171 = por %p169, %p170
      %p172 = scmp.ne.s32.totalorder %s160, %s161
      %p173 = scmp.eq.s32.totalorder %s25, 1
      %p174 = por %p172, %p173
      %p176 = scmp.ne.s32.totalorder %s161, %s175
      %p177 = scmp.eq.s32.totalorder %s25, 0
      %p178 = por %p176, %p177
      %s180 = sadd.s32 %s179, 1
      %p183 = scmp.eq.s32.totalorder %s19, 1
      %p184 = scmp.ne.s32.totalorder %s179, %s181
      %p185 = scmp.eq.s32.totalorder %s19, 0
      %p186 = por %p184, %p185
      %p187 = scmp.ne.s32.totalorder %s179, %s181
      %p188 = scmp.eq.s32.totalorder %s24, 1
      %p189 = por %p187, %p188
      %p190 = scmp.ne.s32.totalorder %s181, %s182
      %p191 = scmp.eq.s32.totalorder %s24, 0
      %p192 = por %p190, %p191
      %p193 = scmp.ne.s32.totalorder %s181, %s182
      %p194 = scmp.eq.s32.totalorder %s25, 1
      %p195 = por %p193, %p194
      %p197 = scmp.ne.s32.totalorder %s182, %s196
      %p198 = scmp.eq.s32.totalorder %s25, 0
      %p199 = por %p197, %p198
      %s201 = sadd.s32 %s200, 1
      %p204 = scmp.eq.s32.totalorder %s19, 1
      %p205 = scmp.ne.s32.totalorder %s200, %s202
      %p206 = scmp.eq.s32.totalorder %s19, 0
      %p207 = por %p205, %p206
      %p208 = scmp.ne.s32.totalorder %s200, %s202
      %p209 = scmp.eq.s32.totalorder %s24, 1
      %p210 = por %p208, %p209
      %p211 = scmp.ne.s32.totalorder %s202, %s203
      %p212 = scmp.eq.s32.totalorder %s24, 0
      %p213 = por %p211, %p212
      %p214 = scmp.ne.s32.totalorder %s202, %s203
      %p215 = scmp.eq.s32.totalorder %s25, 1
      %p216 = por %p214, %p215
      %p218 = scmp.ne.s32.totalorder %s203, %s217
      %p219 = scmp.eq.s32.totalorder %s25, 0
      %p220 = por %p218, %p219
      %s221 = ssub.s32 %s19, %s26
      %p222 = scmp.eq.s32.totalorder %s221, 0
      %s224 = sadd.s32 %s223, 1
      %s225 = scalar_select %p222, %s223, %s224
      %p228 = pneg %p222
      %p229 = scmp.eq.s32.totalorder %s19, 1
      %p230 = por %p228, %p229
      %p231 = scmp.ne.s32.totalorder %s223, %s226
      %p232 = scmp.eq.s32.totalorder %s19, 0
      %p233 = por %p231, %p232
      %p234 = scmp.ne.s32.totalorder %s223, %s226
      %p235 = scmp.eq.s32.totalorder %s24, 1
      %p236 = por %p234, %p235
      %p237 = scmp.ne.s32.totalorder %s226, %s227
      %p238 = scmp.eq.s32.totalorder %s24, 0
      %p239 = por %p237, %p238
      %p240 = scmp.ne.s32.totalorder %s226, %s227
      %p241 = scmp.eq.s32.totalorder %s25, 1
      %p242 = por %p240, %p241
      %p244 = scmp.ne.s32.totalorder %s227, %s243
      %p245 = scmp.eq.s32.totalorder %s25, 0
      %p246 = por %p244, %p245
      %p247 = scmp.le.s32.totalorder 1, %s19
      %p248 = scmp.lt.s32.totalorder %s19, 3
      %p249 = pnand %p247, %p248
      %p250 = pneg %p249
      // Predicated region
      $region9: #{tpu_custom_call.1} parent=5 // pred_check
        _
      $region10: #{tpu_custom_call.1} parent=5 // pred_check_branch
        %252 = sbr.rel (%p249) target = $region12
      $region11: #{tpu_custom_call.1} parent=5 // pred_region
        %s253 = ssub.s32 %s19, 1
        // Predicated region
        $region13: #{tpu_custom_call.1} parent=11 // pred_check
          %p254 = pneg %p66
        $region14: #{tpu_custom_call.1} parent=11 // pred_check_branch
          %256 = sbr.rel (%p254) target = $region16
        $region15: #{tpu_custom_call.1} parent=11 // pred_region
          _
        $region16: #{tpu_custom_call.1} parent=11 // pred_fallthru
          _
        // Predicated region
        $region17: #{tpu_custom_call.1} parent=11 // pred_check
          %p257 = pneg %p87
        $region18: #{tpu_custom_call.1} parent=11 // pred_check_branch
          %259 = sbr.rel (%p257) target = $region20
        $region19: #{tpu_custom_call.1} parent=11 // pred_region
          _
        $region20: #{tpu_custom_call.1} parent=11 // pred_fallthru
          _
        // Predicated region
        $region21: #{tpu_custom_call.1} parent=11 // pred_check
          %p260 = pneg %p108
        $region22: #{tpu_custom_call.1} parent=11 // pred_check_branch
          %262 = sbr.rel (%p260) target = $region24
        $region23: #{tpu_custom_call.1} parent=11 // pred_region
          _
        $region24: #{tpu_custom_call.1} parent=11 // pred_fallthru
          _
        // Predicated region
        $region25: #{tpu_custom_call.1} parent=11 // pred_check
          %p263 = pneg %p129
        $region26: #{tpu_custom_call.1} parent=11 // pred_check_branch
          %265 = sbr.rel (%p263) target = $region28
        $region27: #{tpu_custom_call.1} parent=11 // pred_region
          _
        $region28: #{tpu_custom_call.1} parent=11 // pred_fallthru
          _
        // Predicated region
        $region29: #{tpu_custom_call.1} parent=11 // pred_check
          %p266 = pneg %p150
        $region30: #{tpu_custom_call.1} parent=11 // pred_check_branch
          %268 = sbr.rel (%p266) target = $region32
        $region31: #{tpu_custom_call.1} parent=11 // pred_region
          %s270 = ssub.s32 2048, 2048
          %271 = vsyncadd [#allocation5], %s270
          %s272 = sshll.u32 [#allocation4], 4
          %s273 = int_to_ptr.vmem [resolvable:$true] %s272
          %278 = dma.hbm_to_vmem [thread:$0]  %s5, 2048, %s273, [#allocation5], 128, 128, 8
        $region32: #{tpu_custom_call.1} parent=11 // pred_fallthru
          _
        // Predicated region
        $region33: #{tpu_custom_call.1} parent=11 // pred_check
          %p279 = pneg %p171
        $region34: #{tpu_custom_call.1} parent=11 // pred_check_branch
          %281 = sbr.rel (%p279) target = $region36
        $region35: #{tpu_custom_call.1} parent=11 // pred_region
          _
        $region36: #{tpu_custom_call.1} parent=11 // pred_fallthru
          _
        // Predicated region
        $region37: #{tpu_custom_call.1} parent=11 // pred_check
          %p282 = pneg %p192
        $region38: #{tpu_custom_call.1} parent=11 // pred_check_branch
          %284 = sbr.rel (%p282) target = $region40
        $region39: #{tpu_custom_call.1} parent=11 // pred_region
          _
        $region40: #{tpu_custom_call.1} parent=11 // pred_fallthru
          _
        // Predicated region
        $region41: #{tpu_custom_call.1} parent=11 // pred_check
          %p285 = pneg %p213
        $region42: #{tpu_custom_call.1} parent=11 // pred_check_branch
          %287 = sbr.rel (%p285) target = $region44
        $region43: #{tpu_custom_call.1} parent=11 // pred_region
          _
        $region44: #{tpu_custom_call.1} parent=11 // pred_fallthru
          _
      $region12: #{tpu_custom_call.1} parent=5 // pred_fallthru
        _
      %p288 = scmp.lt.s32.totalorder %s19, 2
      // Predicated region
      $region45: #{tpu_custom_call.1} parent=5 // pred_check
        %p289 = pneg %p288
      $region46: #{tpu_custom_call.1} parent=5 // pred_check_branch
        %291 = sbr.rel (%p289) target = $region48
      $region47: #{tpu_custom_call.1} parent=5 // pred_region
        // Predicated region
        $region49: #{tpu_custom_call.1} parent=47 // pred_check
          %p292 = pneg %p39
        $region50: #{tpu_custom_call.1} parent=47 // pred_check_branch
          %294 = sbr.rel (%p292) target = $region52
        $region51: #{tpu_custom_call.1} parent=47 // pred_region
          %p295 = scmp.lt.s32.totalorder %s19, 1
          %s296 = scalar_select %p295, %s19, 1
          %s297 = smul.addr %s296, 8
          %s298 = smul.addr %s297, 8
          %s299 = scalar_lea.vmem %s0, %s298
        $region52: #{tpu_custom_call.1} parent=47 // pred_fallthru
          _
      $region48: #{tpu_custom_call.1} parent=5 // pred_fallthru
        _
      %p300 = scmp.le.s32.totalorder 1, %s19
      %p301 = scmp.lt.s32.totalorder %s19, 3
      %p302 = pnand %p300, %p301
      %p303 = pneg %p302
      // Predicated region
      $region53: #{tpu_custom_call.1} parent=5 // pred_check
        _
      $region54: #{tpu_custom_call.1} parent=5 // pred_check_branch
        %305 = sbr.rel (%p302) target = $region56
      $region55: #{tpu_custom_call.1} parent=5 // pred_region
        %s306 = ssub.s32 %s19, 1
        // Predicated region
        $region57: #{tpu_custom_call.1} parent=55 // pred_check
          %p307 = pneg %p150
        $region58: #{tpu_custom_call.1} parent=55 // pred_check_branch
          %309 = sbr.rel (%p307) target = $region60
        $region59: #{tpu_custom_call.1} parent=55 // pred_region
          %310 = dma.done [#allocation5], 2048
        $region60: #{tpu_custom_call.1} parent=55 // pred_fallthru
          _
        %p311 = scmp.lt.s32.totalorder %s24, 1
        %s312 = scalar_select %p311, %s24, 1
        %s313 = smul.addr %s312, 8
        %s314 = smul.addr %s313, 8
        %s315 = scalar_lea.vmem %s0, %s314
        %p316 = pneg %p45
        %p317 = pneg %p42
        %p318 = pneg %p66
        %p319 = pneg %p63
        %p320 = pneg %p87
        %p321 = pneg %p84
        %p322 = pneg %p108
        %p323 = pneg %p105
        %p324 = pneg %p129
        %p325 = pneg %p126
        %p326 = pneg %p150
        %p327 = pneg %p147
        %p328 = pneg %p171
        %p329 = pneg %p168
        %p330 = pneg %p192
        %p331 = pneg %p189
        %p332 = pneg %p213
        %p333 = pneg %p210
        %p334 = pneg %p239
        %p335 = pneg %p236
        %s336 = sand.u32 %s226, 1
        %s337 = scalar_lea.sflag [#allocation6], %s336
        %s338 = sand.u32 %s226, 1
        %s339 = smul.addr %s338, 64
        %s340 = scalar_lea.vmem [#allocation7], %s339
        %p341 = scmp.lt.s32.totalorder %s24, 1
        %s342 = scalar_select %p341, %s24, 1
        %s343 = smul.addr %s342, 8
        %s344 = smul.addr %s343, 8
        %s345 = scalar_lea.vmem %s0, %s344
        %346 = vst [vmem:[#allocation2] sm:$0xff] 0.0
        %347 = vst [vmem:[#allocation2 + $0x8] sm:$0xff] 0.0
        %348 = vst [vmem:[#allocation2 + $0x10] sm:$0xff] 0.0
        %349 = vst [vmem:[#allocation2 + $0x18] sm:$0xff] 0.0
        %350 = vst [vmem:[#allocation2 + $0x20] sm:$0xff] 0.0
        %351 = vst [vmem:[#allocation2 + $0x28] sm:$0xff] 0.0
        %352 = vst [vmem:[#allocation2 + $0x30] sm:$0xff] 0.0
        %353 = vst [vmem:[#allocation2 + $0x38] sm:$0xff] 0.0
        %354 = vst [vmem:[#allocation2 + $0x40] sm:$0xff] 0.0
        %355 = vst [vmem:[#allocation2 + $0x48] sm:$0xff] 0.0
        %356 = vst [vmem:[#allocation2 + $0x50] sm:$0xff] 0.0
        %357 = vst [vmem:[#allocation2 + $0x58] sm:$0xff] 0.0
        %358 = vst [vmem:[#allocation2 + $0x60] sm:$0xff] 0.0
        %359 = vst [vmem:[#allocation2 + $0x68] sm:$0xff] 0.0
        %360 = vst [vmem:[#allocation2 + $0x70] sm:$0xff] 0.0
        %361 = vst [vmem:[#allocation2 + $0x78] sm:$0xff] 0.0
        %362 = vst [vmem:[#allocation2 + $0x80] sm:$0xff] 0.0
        %363 = vst [vmem:[#allocation2 + $0x88] sm:$0xff] 0.0
        %364 = vst [vmem:[#allocation2 + $0x90] sm:$0xff] 0.0
        %365 = vst [vmem:[#allocation2 + $0x98] sm:$0xff] 0.0
        %366 = vst [vmem:[#allocation2 + $0xa0] sm:$0xff] 0.0
        %367 = vst [vmem:[#allocation2 + $0xa8] sm:$0xff] 0.0
        %368 = vst [vmem:[#allocation2 + $0xb0] sm:$0xff] 0.0
        %369 = vst [vmem:[#allocation2 + $0xb8] sm:$0xff] 0.0
        %370 = vst [vmem:[#allocation3] sm:$0xff] 0.0
        %371 = vst [vmem:[#allocation3 + $0x8] sm:$0xff] 0.0
        %372 = vst [vmem:[#allocation3 + $0x10] sm:$0xff] 0.0
        %373 = vst [vmem:[#allocation3 + $0x18] sm:$0xff] 0.0
        %374 = vst [vmem:[#allocation3 + $0x20] sm:$0xff] 0.0
        %375 = vst [vmem:[#allocation3 + $0x28] sm:$0xff] 0.0
        %376 = vst [vmem:[#allocation3 + $0x30] sm:$0xff] 0.0
        %377 = vst [vmem:[#allocation3 + $0x38] sm:$0xff] 0.0
        %378 = vst [vmem:[#allocation3 + $0x40] sm:$0xff] 0.0
        %379 = vst [vmem:[#allocation3 + $0x48] sm:$0xff] 0.0
        %380 = vst [vmem:[#allocation3 + $0x50] sm:$0xff] 0.0
        %381 = vst [vmem:[#allocation3 + $0x58] sm:$0xff] 0.0
        %382 = vst [vmem:[#allocation3 + $0x60] sm:$0xff] 0.0
        %383 = vst [vmem:[#allocation3 + $0x68] sm:$0xff] 0.0
        %384 = vst [vmem:[#allocation3 + $0x70] sm:$0xff] 0.0
        %385 = vst [vmem:[#allocation3 + $0x78] sm:$0xff] 0.0
        %386 = vst [vmem:[#allocation3 + $0x80] sm:$0xff] 0.0
        %387 = vst [vmem:[#allocation3 + $0x88] sm:$0xff] 0.0
        %388 = vst [vmem:[#allocation3 + $0x90] sm:$0xff] 0.0
        %389 = vst [vmem:[#allocation3 + $0x98] sm:$0xff] 0.0
        %390 = vst [vmem:[#allocation3 + $0xa0] sm:$0xff] 0.0
        %391 = vst [vmem:[#allocation3 + $0xa8] sm:$0xff] 0.0
        %392 = vst [vmem:[#allocation3 + $0xb0] sm:$0xff] 0.0
        %393 = vst [vmem:[#allocation3 + $0xb8] sm:$0xff] 0.0
        %394 = vst [vmem:[#allocation3 + $0xc0] sm:$0xff] 0.0
        %395 = vst [vmem:[#allocation3 + $0xc8] sm:$0xff] 0.0
        %396 = vst [vmem:[#allocation3 + $0xd0] sm:$0xff] 0.0
        %397 = vst [vmem:[#allocation3 + $0xd8] sm:$0xff] 0.0
        %398 = vst [vmem:[#allocation3 + $0xe0] sm:$0xff] 0.0
        %399 = vst [vmem:[#allocation3 + $0xe8] sm:$0xff] 0.0
        %400 = vst [vmem:[#allocation3 + $0xf0] sm:$0xff] 0.0
        %401 = vst [vmem:[#allocation3 + $0xf8] sm:$0xff] 0.0
        %402 = vst [vmem:[#allocation3 + $0x100] sm:$0xff] 0.0
        %403 = vst [vmem:[#allocation3 + $0x108] sm:$0xff] 0.0
        %404 = vst [vmem:[#allocation3 + $0x110] sm:$0xff] 0.0
        %405 = vst [vmem:[#allocation3 + $0x118] sm:$0xff] 0.0
        %406 = vst [vmem:[#allocation3 + $0x120] sm:$0xff] 0.0
        %407 = vst [vmem:[#allocation3 + $0x128] sm:$0xff] 0.0
        %408 = vst [vmem:[#allocation3 + $0x130] sm:$0xff] 0.0
        %409 = vst [vmem:[#allocation3 + $0x138] sm:$0xff] 0.0
        %410 = vst [vmem:[#allocation3 + $0x140] sm:$0xff] 0.0
        %411 = vst [vmem:[#allocation3 + $0x148] sm:$0xff] 0.0
        %412 = vst [vmem:[#allocation3 + $0x150] sm:$0xff] 0.0
        %413 = vst [vmem:[#allocation3 + $0x158] sm:$0xff] 0.0
        %414 = vst [vmem:[#allocation3 + $0x160] sm:$0xff] 0.0
        %415 = vst [vmem:[#allocation3 + $0x168] sm:$0xff] 0.0
        %416 = vst [vmem:[#allocation3 + $0x170] sm:$0xff] 0.0
        %417 = vst [vmem:[#allocation3 + $0x178] sm:$0xff] 0.0
        %418 = vst [vmem:[#allocation3 + $0x180] sm:$0xff] 0.0
        %419 = vst [vmem:[#allocation3 + $0x188] sm:$0xff] 0.0
        %420 = vst [vmem:[#allocation3 + $0x190] sm:$0xff] 0.0
        %421 = vst [vmem:[#allocation3 + $0x198] sm:$0xff] 0.0
        %422 = vst [vmem:[#allocation3 + $0x1a0] sm:$0xff] 0.0
        %423 = vst [vmem:[#allocation3 + $0x1a8] sm:$0xff] 0.0
        %424 = vst [vmem:[#allocation3 + $0x1b0] sm:$0xff] 0.0
        %425 = vst [vmem:[#allocation3 + $0x1b8] sm:$0xff] 0.0
        %426 = vst [vmem:[#allocation3 + $0x1c0] sm:$0xff] 0.0
        %427 = vst [vmem:[#allocation3 + $0x1c8] sm:$0xff] 0.0
        %428 = vst [vmem:[#allocation3 + $0x1d0] sm:$0xff] 0.0
        %429 = vst [vmem:[#allocation3 + $0x1d8] sm:$0xff] 0.0
        %v430 = vld [vmem:[%s345] sm:$0xff]
        %v431 = vld [vmem:[%s345 + $0x8] sm:$0xff]
        %v432 = vld [vmem:[%s345 + $0x10] sm:$0xff]
        %v433 = vld [vmem:[%s345 + $0x18] sm:$0xff]
        %v434 = vld [vmem:[%s345 + $0x20] sm:$0xff]
        %v435 = vld [vmem:[%s345 + $0x28] sm:$0xff]
        %v436 = vld [vmem:[%s345 + $0x30] sm:$0xff]
        %v437 = vld [vmem:[%s345 + $0x38] sm:$0xff]
        %438 = vst [vmem:[#allocation2 + $0x38] sm:$0xff] %v430
        %439 = vst [vmem:[#allocation2 + $0x40] sm:$0xff] %v431
        %440 = vst [vmem:[#allocation2 + $0x48] sm:$0xff] %v432
        %441 = vst [vmem:[#allocation2 + $0x50] sm:$0xff] %v433
        %442 = vst [vmem:[#allocation2 + $0x68] sm:$0xff] %v434
        %443 = vst [vmem:[#allocation2 + $0x70] sm:$0xff] %v435
        %444 = vst [vmem:[#allocation2 + $0x78] sm:$0xff] %v436
        %445 = vst [vmem:[#allocation2 + $0x80] sm:$0xff] %v437
        %v446 = vld [vmem:[#allocation2] sm:$0xc0]
        %v447 = vld [vmem:[#allocation2 + $0x8] sm:$0xc0]
        %v448 = vld [vmem:[#allocation2 + $0x10] sm:$0xc0]
        %v449 = vld [vmem:[#allocation2 + $0x18] sm:$0xc0]
        %v450 = vld [vmem:[#allocation2 + $0x20] sm:$0xc0]
        %v451 = vld [vmem:[#allocation2 + $0x30] sm:$0xff]
        %v452 = vld [vmem:[#allocation2 + $0x38] sm:$0xff]
        %v453 = vld [vmem:[#allocation2 + $0x40] sm:$0xff]
        %v454 = vld [vmem:[#allocation2 + $0x48] sm:$0xff]
        %v455 = vld [vmem:[#allocation2 + $0x50] sm:$0xff]
        %v456 = vld [vmem:[#allocation2 + $0x60] sm:$0xff]
        %v457 = vld [vmem:[#allocation2 + $0x68] sm:$0xff]
        %v458 = vld [vmem:[#allocation2 + $0x70] sm:$0xff]
        %v459 = vld [vmem:[#allocation2 + $0x78] sm:$0xff]
        %v460 = vld [vmem:[#allocation2 + $0x80] sm:$0xff]
        %v461 = vld [vmem:[#allocation2 + $0x90] sm:$0x3]
        %v462 = vld [vmem:[#allocation2 + $0x98] sm:$0x3]
        %v463 = vld [vmem:[#allocation2 + $0xa0] sm:$0x3]
        %v464 = vld [vmem:[#allocation2 + $0xa8] sm:$0x3]
        %v465 = vld [vmem:[#allocation2 + $0xb0] sm:$0x3]
        %v466 = vld [vmem:[%s1] sm:$0x1f]
        %v467 = vld [vmem:[%s1 + $0x8] sm:$0x1f]
        %v468 = vld [vmem:[%s1 + $0x10] sm:$0x1f]
        %v469 = vld [vmem:[%s1 + $0x18] sm:$0x1f]
        %v470 = vlaneseq
        %v471 = vshrl.u32 %v470, 7
        %v472 = vsub.s32 0, %v471
        %v473 = vrot.slane %v466, %v472
        %v474 = vlaneseq
        %v475 = vshrl.u32 %v474, 7
        %v476 = vsub.s32 0, %v475
        %v477 = vrot.slane %v467, %v476
        %v478 = vlaneseq
        %v479 = vshrl.u32 %v478, 7
        %v480 = vsub.s32 0, %v479
        %v481 = vrot.slane %v468, %v480
        %v482 = vlaneseq
        %v483 = vshrl.u32 %v482, 7
        %v484 = vsub.s32 0, %v483
        %v485 = vrot.slane %v469, %v484
        %490 = vrot.lane.b32.xlu0 %v473, 64
        %v491 = vpop.permute.xlu0 %490
        %492 = vrot.lane.b32.xlu0 %v477, 64
        %v493 = vpop.permute.xlu0 %492
        %494 = vrot.lane.b32.xlu0 %v481, 64
        %v495 = vpop.permute.xlu0 %494
        %496 = vrot.lane.b32.xlu0 %v485, 64
        %v497 = vpop.permute.xlu0 %496
        %vm498 = vcmask 523264
        %v499 = vsel %vm498, %v491, %v493
        %v500 = vsel %vm498, %v493, %v495
        %v501 = vsel %vm498, %v495, %v497
        %v507 = vmul.f32 %v446, %v491
        %v508 = vmul.f32 %v447, %v499
        %v509 = vmul.f32 %v448, %v500
        %v510 = vmul.f32 %v449, %v501
        %v511 = vmul.f32 %v450, %v497
        %v512 = vmul.f32 %v451, %v491
        %v513 = vmul.f32 %v452, %v499
        %v514 = vmul.f32 %v453, %v500
        %v515 = vmul.f32 %v454, %v501
        %v516 = vmul.f32 %v455, %v497
        %v517 = vmul.f32 %v456, %v491
        %v518 = vmul.f32 %v457, %v499
        %v519 = vmul.f32 %v458, %v500
        %v520 = vmul.f32 %v459, %v501
        %v521 = vmul.f32 %v460, %v497
        %v522 = vadd.f32 %v507, 0.0
        %v523 = vadd.f32 %v508, 0.0
        %v524 = vadd.f32 %v509, 0.0
        %v525 = vadd.f32 %v510, 0.0
        %v526 = vadd.f32 %v511, 0.0
        %v527 = vadd.f32 %v512, 0.0
        %v528 = vadd.f32 %v513, 0.0
        %v529 = vadd.f32 %v514, 0.0
        %v530 = vadd.f32 %v515, 0.0
        %v531 = vadd.f32 %v516, 0.0
        %v532 = vadd.f32 %v517, 0.0
        %v533 = vadd.f32 %v518, 0.0
        %v534 = vadd.f32 %v519, 0.0
        %v535 = vadd.f32 %v520, 0.0
        %v536 = vadd.f32 %v521, 0.0
        %v537 = vlaneseq
        %v538 = vshrl.u32 %v537, 7
        %v539 = vsub.s32 1, %v538
        %v540 = vrot.slane %v466, %v539
        %v541 = vlaneseq
        %v542 = vshrl.u32 %v541, 7
        %v543 = vsub.s32 1, %v542
        %v544 = vrot.slane %v467, %v543
        %v545 = vlaneseq
        %v546 = vshrl.u32 %v545, 7
        %v547 = vsub.s32 1, %v546
        %v548 = vrot.slane %v468, %v547
        %v549 = vlaneseq
        %v550 = vshrl.u32 %v549, 7
        %v551 = vsub.s32 1, %v550
        %v552 = vrot.slane %v469, %v551
        %557 = vrot.lane.b32.xlu0 %v540, 64
        %v558 = vpop.permute.xlu0 %557
        %559 = vrot.lane.b32.xlu0 %v544, 64
        %v560 = vpop.permute.xlu0 %559
        %561 = vrot.lane.b32.xlu0 %v548, 64
        %v562 = vpop.permute.xlu0 %561
        %563 = vrot.lane.b32.xlu0 %v552, 64
        %v564 = vpop.permute.xlu0 %563
        %v565 = vsel %vm498, %v558, %v560
        %v566 = vsel %vm498, %v560, %v562
        %v567 = vsel %vm498, %v562, %v564
        %v573 = vmul.f32 %v446, %v558
        %v574 = vmul.f32 %v447, %v565
        %v575 = vmul.f32 %v448, %v566
        %v576 = vmul.f32 %v449, %v567
        %v577 = vmul.f32 %v450, %v564
        %v578 = vmul.f32 %v451, %v558
        %v579 = vmul.f32 %v452, %v565
        %v580 = vmul.f32 %v453, %v566
        %v581 = vmul.f32 %v454, %v567
        %v582 = vmul.f32 %v455, %v564
        %v583 = vmul.f32 %v456, %v558
        %v584 = vmul.f32 %v457, %v565
        %v585 = vmul.f32 %v458, %v566
        %v586 = vmul.f32 %v459, %v567
        %v587 = vmul.f32 %v460, %v564
        %vm603 = vcmask 1046528
        %v604 = vrot.slane %v573, 1
        %v605 = vrot.slane %v578, 1
        %v606 = vsel %vm603, %v604, %v605
        %v607 = vrot.slane %v574, 1
        %v608 = vrot.slane %v579, 1
        %v609 = vsel %vm603, %v607, %v608
        %v610 = vrot.slane %v575, 1
        %v611 = vrot.slane %v580, 1
        %v612 = vsel %vm603, %v610, %v611
        %v613 = vrot.slane %v576, 1
        %v614 = vrot.slane %v581, 1
        %v615 = vsel %vm603, %v613, %v614
        %v616 = vrot.slane %v577, 1
        %v617 = vrot.slane %v582, 1
        %v618 = vsel %vm603, %v616, %v617
        %v619 = vrot.slane %v583, 1
        %v620 = vsel %vm603, %v605, %v619
        %v621 = vrot.slane %v584, 1
        %v622 = vsel %vm603, %v608, %v621
        %v623 = vrot.slane %v585, 1
        %v624 = vsel %vm603, %v611, %v623
        %v625 = vrot.slane %v586, 1
        %v626 = vsel %vm603, %v614, %v625
        %v627 = vrot.slane %v587, 1
        %v628 = vsel %vm603, %v617, %v627
        %v644 = vadd.f32 %v522, %v606
        %v645 = vadd.f32 %v523, %v609
        %v646 = vadd.f32 %v524, %v612
        %v647 = vadd.f32 %v525, %v615
        %v648 = vadd.f32 %v526, %v618
        %v649 = vadd.f32 %v527, %v620
        %v650 = vadd.f32 %v528, %v622
        %v651 = vadd.f32 %v529, %v624
        %v652 = vadd.f32 %v530, %v626
        %v653 = vadd.f32 %v531, %v628
        %v654 = vadd.f32 %v532, %v619
        %v655 = vadd.f32 %v533, %v621
        %v656 = vadd.f32 %v534, %v623
        %v657 = vadd.f32 %v535, %v625
        %v658 = vadd.f32 %v536, %v627
        %v659 = vlaneseq
        %v660 = vshrl.u32 %v659, 7
        %v661 = vsub.s32 2, %v660
        %v662 = vrot.slane %v466, %v661
        %v663 = vlaneseq
        %v664 = vshrl.u32 %v663, 7
        %v665 = vsub.s32 2, %v664
        %v666 = vrot.slane %v467, %v665
        %v667 = vlaneseq
        %v668 = vshrl.u32 %v667, 7
        %v669 = vsub.s32 2, %v668
        %v670 = vrot.slane %v468, %v669
        %v671 = vlaneseq
        %v672 = vshrl.u32 %v671, 7
        %v673 = vsub.s32 2, %v672
        %v674 = vrot.slane %v469, %v673
        %679 = vrot.lane.b32.xlu0 %v662, 64
        %v680 = vpop.permute.xlu0 %679
        %681 = vrot.lane.b32.xlu0 %v666, 64
        %v682 = vpop.permute.xlu0 %681
        %683 = vrot.lane.b32.xlu0 %v670, 64
        %v684 = vpop.permute.xlu0 %683
        %685 = vrot.lane.b32.xlu0 %v674, 64
        %v686 = vpop.permute.xlu0 %685
        %v687 = vsel %vm498, %v680, %v682
        %v688 = vsel %vm498, %v682, %v684
        %v689 = vsel %vm498, %v684, %v686
        %v695 = vmul.f32 %v451, %v680
        %v696 = vmul.f32 %v452, %v687
        %v697 = vmul.f32 %v453, %v688
        %v698 = vmul.f32 %v454, %v689
        %v699 = vmul.f32 %v455, %v686
        %v700 = vmul.f32 %v456, %v680
        %v701 = vmul.f32 %v457, %v687
        %v702 = vmul.f32 %v458, %v688
        %v703 = vmul.f32 %v459, %v689
        %v704 = vmul.f32 %v460, %v686
        %vm715 = vcmask 1045504
        %v716 = vrot.slane %v695, 2
        %v717 = vrot.slane %v696, 2
        %v718 = vrot.slane %v697, 2
        %v719 = vrot.slane %v698, 2
        %v720 = vrot.slane %v699, 2
        %v721 = vrot.slane %v700, 2
        %v722 = vsel %vm715, %v716, %v721
        %v723 = vrot.slane %v701, 2
        %v724 = vsel %vm715, %v717, %v723
        %v725 = vrot.slane %v702, 2
        %v726 = vsel %vm715, %v718, %v725
        %v727 = vrot.slane %v703, 2
        %v728 = vsel %vm715, %v719, %v727
        %v729 = vrot.slane %v704, 2
        %v730 = vsel %vm715, %v720, %v729
        %v746 = vadd.f32 %v644, %v716
        %v747 = vadd.f32 %v645, %v717
        %v748 = vadd.f32 %v646, %v718
        %v749 = vadd.f32 %v647, %v719
        %v750 = vadd.f32 %v648, %v720
        %v751 = vadd.f32 %v649, %v722
        %v752 = vadd.f32 %v650, %v724
        %v753 = vadd.f32 %v651, %v726
        %v754 = vadd.f32 %v652, %v728
        %v755 = vadd.f32 %v653, %v730
        %v756 = vadd.f32 %v654, %v721
        %v757 = vadd.f32 %v655, %v723
        %v758 = vadd.f32 %v656, %v725
        %v759 = vadd.f32 %v657, %v727
        %v760 = vadd.f32 %v658, %v729
        %v761 = vlaneseq
        %v762 = vshrl.u32 %v761, 7
        %v763 = vsub.s32 3, %v762
        %v764 = vrot.slane %v466, %v763
        %v765 = vlaneseq
        %v766 = vshrl.u32 %v765, 7
        %v767 = vsub.s32 3, %v766
        %v768 = vrot.slane %v467, %v767
        %v769 = vlaneseq
        %v770 = vshrl.u32 %v769, 7
        %v771 = vsub.s32 3, %v770
        %v772 = vrot.slane %v468, %v771
        %v773 = vlaneseq
        %v774 = vshrl.u32 %v773, 7
        %v775 = vsub.s32 3, %v774
        %v776 = vrot.slane %v469, %v775
        %781 = vrot.lane.b32.xlu0 %v764, 64
        %v782 = vpop.permute.xlu0 %781
        %783 = vrot.lane.b32.xlu0 %v768, 64
        %v784 = vpop.permute.xlu0 %783
        %785 = vrot.lane.b32.xlu0 %v772, 64
        %v786 = vpop.permute.xlu0 %785
        %787 = vrot.lane.b32.xlu0 %v776, 64
        %v788 = vpop.permute.xlu0 %787
        %v789 = vsel %vm498, %v782, %v784
        %v790 = vsel %vm498, %v784, %v786
        %v791 = vsel %vm498, %v786, %v788
        %v797 = vmul.f32 %v451, %v782
        %v798 = vmul.f32 %v452, %v789
        %v799 = vmul.f32 %v453, %v790
        %v800 = vmul.f32 %v454, %v791
        %v801 = vmul.f32 %v455, %v788
        %v802 = vmul.f32 %v456, %v782
        %v803 = vmul.f32 %v457, %v789
        %v804 = vmul.f32 %v458, %v790
        %v805 = vmul.f32 %v459, %v791
        %v806 = vmul.f32 %v460, %v788
        %v807 = vmul.f32 %v461, %v782
        %v808 = vmul.f32 %v462, %v789
        %v809 = vmul.f32 %v463, %v790
        %v810 = vmul.f32 %v464, %v791
        %v811 = vmul.f32 %v465, %v788
        %vm827 = vcmask 1044480
        %v828 = vrot.slane %v797, 3
        %v829 = vrot.slane %v798, 3
        %v830 = vrot.slane %v799, 3
        %v831 = vrot.slane %v800, 3
        %v832 = vrot.slane %v801, 3
        %v833 = vrot.slane %v802, 3
        %v834 = vsel %vm827, %v828, %v833
        %v835 = vrot.slane %v803, 3
        %v836 = vsel %vm827, %v829, %v835
        %v837 = vrot.slane %v804, 3
        %v838 = vsel %vm827, %v830, %v837
        %v839 = vrot.slane %v805, 3
        %v840 = vsel %vm827, %v831, %v839
        %v841 = vrot.slane %v806, 3
        %v842 = vsel %vm827, %v832, %v841
        %v843 = vrot.slane %v807, 3
        %v844 = vsel %vm827, %v833, %v843
        %v845 = vrot.slane %v808, 3
        %v846 = vsel %vm827, %v835, %v845
        %v847 = vrot.slane %v809, 3
        %v848 = vsel %vm827, %v837, %v847
        %v849 = vrot.slane %v810, 3
        %v850 = vsel %vm827, %v839, %v849
        %v851 = vrot.slane %v811, 3
        %v852 = vsel %vm827, %v841, %v851
        %v868 = vadd.f32 %v746, %v828
        %v869 = vadd.f32 %v747, %v829
        %v870 = vadd.f32 %v748, %v830
        %v871 = vadd.f32 %v749, %v831
        %v872 = vadd.f32 %v750, %v832
        %v873 = vadd.f32 %v751, %v834
        %v874 = vadd.f32 %v752, %v836
        %v875 = vadd.f32 %v753, %v838
        %v876 = vadd.f32 %v754, %v840
        %v877 = vadd.f32 %v755, %v842
        %v878 = vadd.f32 %v756, %v844
        %v879 = vadd.f32 %v757, %v846
        %v880 = vadd.f32 %v758, %v848
        %v881 = vadd.f32 %v759, %v850
        %v882 = vadd.f32 %v760, %v852
        %v883 = vlaneseq
        %v884 = vshrl.u32 %v883, 7
        %v885 = vsub.s32 4, %v884
        %v886 = vrot.slane %v466, %v885
        %v887 = vlaneseq
        %v888 = vshrl.u32 %v887, 7
        %v889 = vsub.s32 4, %v888
        %v890 = vrot.slane %v467, %v889
        %v891 = vlaneseq
        %v892 = vshrl.u32 %v891, 7
        %v893 = vsub.s32 4, %v892
        %v894 = vrot.slane %v468, %v893
        %v895 = vlaneseq
        %v896 = vshrl.u32 %v895, 7
        %v897 = vsub.s32 4, %v896
        %v898 = vrot.slane %v469, %v897
        %903 = vrot.lane.b32.xlu0 %v886, 64
        %v904 = vpop.permute.xlu0 %903
        %905 = vrot.lane.b32.xlu0 %v890, 64
        %v906 = vpop.permute.xlu0 %905
        %907 = vrot.lane.b32.xlu0 %v894, 64
        %v908 = vpop.permute.xlu0 %907
        %909 = vrot.lane.b32.xlu0 %v898, 64
        %v910 = vpop.permute.xlu0 %909
        %v911 = vsel %vm498, %v904, %v906
        %v912 = vsel %vm498, %v906, %v908
        %v913 = vsel %vm498, %v908, %v910
        %v919 = vmul.f32 %v451, %v904
        %v920 = vmul.f32 %v452, %v911
        %v921 = vmul.f32 %v453, %v912
        %v922 = vmul.f32 %v454, %v913
        %v923 = vmul.f32 %v455, %v910
        %v924 = vmul.f32 %v456, %v904
        %v925 = vmul.f32 %v457, %v911
        %v926 = vmul.f32 %v458, %v912
        %v927 = vmul.f32 %v459, %v913
        %v928 = vmul.f32 %v460, %v910
        %v929 = vmul.f32 %v461, %v904
        %v930 = vmul.f32 %v462, %v911
        %v931 = vmul.f32 %v463, %v912
        %v932 = vmul.f32 %v464, %v913
        %v933 = vmul.f32 %v465, %v910
        %vm949 = vcmask 1043456
        %v950 = vrot.slane %v919, 4
        %v951 = vrot.slane %v920, 4
        %v952 = vrot.slane %v921, 4
        %v953 = vrot.slane %v922, 4
        %v954 = vrot.slane %v923, 4
        %v955 = vrot.slane %v924, 4
        %v956 = vsel %vm949, %v950, %v955
        %v957 = vrot.slane %v925, 4
        %v958 = vsel %vm949, %v951, %v957
        %v959 = vrot.slane %v926, 4
        %v960 = vsel %vm949, %v952, %v959
        %v961 = vrot.slane %v927, 4
        %v962 = vsel %vm949, %v953, %v961
        %v963 = vrot.slane %v928, 4
        %v964 = vsel %vm949, %v954, %v963
        %v965 = vrot.slane %v929, 4
        %v966 = vsel %vm949, %v955, %v965
        %v967 = vrot.slane %v930, 4
        %v968 = vsel %vm949, %v957, %v967
        %v969 = vrot.slane %v931, 4
        %v970 = vsel %vm949, %v959, %v969
        %v971 = vrot.slane %v932, 4
        %v972 = vsel %vm949, %v961, %v971
        %v973 = vrot.slane %v933, 4
        %v974 = vsel %vm949, %v963, %v973
        %v990 = vadd.f32 %v868, %v950
        %v991 = vadd.f32 %v869, %v951
        %v992 = vadd.f32 %v870, %v952
        %v993 = vadd.f32 %v871, %v953
        %v994 = vadd.f32 %v872, %v954
        %v995 = vadd.f32 %v873, %v956
        %v996 = vadd.f32 %v874, %v958
        %v997 = vadd.f32 %v875, %v960
        %v998 = vadd.f32 %v876, %v962
        %v999 = vadd.f32 %v877, %v964
        %v1000 = vadd.f32 %v878, %v966
        %v1001 = vadd.f32 %v879, %v968
        %v1002 = vadd.f32 %v880, %v970
        %v1003 = vadd.f32 %v881, %v972
        %v1004 = vadd.f32 %v882, %v974
        %v1005 = vld [vmem:[%s1] sm:$0xe0]
        %v1006 = vld [vmem:[%s1 + $0x8] sm:$0xe0]
        %v1007 = vld [vmem:[%s1 + $0x10] sm:$0xe0]
        %v1008 = vld [vmem:[%s1 + $0x18] sm:$0xe0]
        %v1009 = vld [vmem:[%s1 + $0x20] sm:$0x3]
        %v1010 = vld [vmem:[%s1 + $0x28] sm:$0x3]
        %v1011 = vld [vmem:[%s1 + $0x30] sm:$0x3]
        %v1012 = vld [vmem:[%s1 + $0x38] sm:$0x3]
        %v1013 = vlaneseq
        %v1014 = vshrl.u32 %v1013, 7
        %v1015 = vsub.s32 5, %v1014
        %v1016 = vrot.slane %v1005, %v1015
        %v1017 = vlaneseq
        %v1018 = vshrl.u32 %v1017, 7
        %v1019 = vsub.s32 5, %v1018
        %v1020 = vrot.slane %v1006, %v1019
        %v1021 = vlaneseq
        %v1022 = vshrl.u32 %v1021, 7
        %v1023 = vsub.s32 5, %v1022
        %v1024 = vrot.slane %v1007, %v1023
        %v1025 = vlaneseq
        %v1026 = vshrl.u32 %v1025, 7
        %v1027 = vsub.s32 5, %v1026
        %v1028 = vrot.slane %v1008, %v1027
        %1033 = vrot.lane.b32.xlu0 %v1016, 96
        %v1034 = vpop.permute.xlu0 %1033
        %1035 = vrot.lane.b32.xlu0 %v1020, 96
        %v1036 = vpop.permute.xlu0 %1035
        %1037 = vrot.lane.b32.xlu0 %v1024, 96
        %v1038 = vpop.permute.xlu0 %1037
        %1039 = vrot.lane.b32.xlu0 %v1028, 96
        %v1040 = vpop.permute.xlu0 %1039
        %vm1041 = vcmask 785408
        %v1042 = vsel %vm1041, %v1034, %v1036
        %v1043 = vsel %vm1041, %v1036, %v1038
        %v1044 = vsel %vm1041, %v1038, %v1040
        %v1050 = vmul.f32 %v446, %v1034
        %v1051 = vmul.f32 %v447, %v1042
        %v1052 = vmul.f32 %v448, %v1043
        %v1053 = vmul.f32 %v449, %v1044
        %v1054 = vmul.f32 %v450, %v1040
        %v1055 = vmul.f32 %v451, %v1034
        %v1056 = vmul.f32 %v452, %v1042
        %v1057 = vmul.f32 %v453, %v1043
        %v1058 = vmul.f32 %v454, %v1044
        %v1059 = vmul.f32 %v455, %v1040
        %v1060 = vmul.f32 %v456, %v1034
        %v1061 = vmul.f32 %v457, %v1042
        %v1062 = vmul.f32 %v458, %v1043
        %v1063 = vmul.f32 %v459, %v1044
        %v1064 = vmul.f32 %v460, %v1040
        %1080 = vrot.lane.b32.xlu0 %v1050, 96
        %v1081 = vpop.permute.xlu0 %1080
        %1082 = vrot.lane.b32.xlu0 %v1051, 96
        %v1083 = vpop.permute.xlu0 %1082
        %1084 = vrot.lane.b32.xlu0 %v1052, 96
        %v1085 = vpop.permute.xlu0 %1084
        %1086 = vrot.lane.b32.xlu0 %v1053, 96
        %v1087 = vpop.permute.xlu0 %1086
        %1088 = vrot.lane.b32.xlu0 %v1054, 96
        %v1089 = vpop.permute.xlu0 %1088
        %1090 = vrot.lane.b32.xlu0 %v1055, 96
        %v1091 = vpop.permute.xlu0 %1090
        %1092 = vrot.lane.b32.xlu0 %v1056, 96
        %v1093 = vpop.permute.xlu0 %1092
        %1094 = vrot.lane.b32.xlu0 %v1057, 96
        %v1095 = vpop.permute.xlu0 %1094
        %1096 = vrot.lane.b32.xlu0 %v1058, 96
        %v1097 = vpop.permute.xlu0 %1096
        %1098 = vrot.lane.b32.xlu0 %v1059, 96
        %v1099 = vpop.permute.xlu0 %1098
        %1100 = vrot.lane.b32.xlu0 %v1060, 96
        %v1101 = vpop.permute.xlu0 %1100
        %1102 = vrot.lane.b32.xlu0 %v1061, 96
        %v1103 = vpop.permute.xlu0 %1102
        %1104 = vrot.lane.b32.xlu0 %v1062, 96
        %v1105 = vpop.permute.xlu0 %1104
        %1106 = vrot.lane.b32.xlu0 %v1063, 96
        %v1107 = vpop.permute.xlu0 %1106
        %1108 = vrot.lane.b32.xlu0 %v1064, 96
        %v1109 = vpop.permute.xlu0 %1108
        %v1110 = vsel %vm1041, %v1081, %v1083
        %v1111 = vsel %vm1041, %v1083, %v1085
        %v1112 = vsel %vm1041, %v1085, %v1087
        %v1113 = vsel %vm1041, %v1087, %v1089
        %v1114 = vsel %vm1041, %v1091, %v1093
        %v1115 = vsel %vm1041, %v1093, %v1095
        %v1116 = vsel %vm1041, %v1095, %v1097
        %v1117 = vsel %vm1041, %v1097, %v1099
        %v1118 = vsel %vm1041, %v1101, %v1103
        %v1119 = vsel %vm1041, %v1103, %v1105
        %v1120 = vsel %vm1041, %v1105, %v1107
        %v1121 = vsel %vm1041, %v1107, %v1109
        %v1137 = vadd.f32 %v990, %v1110
        %v1138 = vadd.f32 %v991, %v1111
        %v1139 = vadd.f32 %v992, %v1112
        %v1140 = vadd.f32 %v993, %v1113
        %v1141 = vadd.f32 %v994, %v1089
        %v1142 = vadd.f32 %v995, %v1114
        %v1143 = vadd.f32 %v996, %v1115
        %v1144 = vadd.f32 %v997, %v1116
        %v1145 = vadd.f32 %v998, %v1117
        %v1146 = vadd.f32 %v999, %v1099
        %v1147 = vadd.f32 %v1000, %v1118
        %v1148 = vadd.f32 %v1001, %v1119
        %v1149 = vadd.f32 %v1002, %v1120
        %v1150 = vadd.f32 %v1003, %v1121
        %v1151 = vadd.f32 %v1004, %v1109
        %v1152 = vlaneseq
        %v1153 = vshrl.u32 %v1152, 7
        %v1154 = vsub.s32 6, %v1153
        %v1155 = vrot.slane %v1005, %v1154
        %v1156 = vlaneseq
        %v1157 = vshrl.u32 %v1156, 7
        %v1158 = vsub.s32 6, %v1157
        %v1159 = vrot.slane %v1006, %v1158
        %v1160 = vlaneseq
        %v1161 = vshrl.u32 %v1160, 7
        %v1162 = vsub.s32 6, %v1161
        %v1163 = vrot.slane %v1007, %v1162
        %v1164 = vlaneseq
        %v1165 = vshrl.u32 %v1164, 7
        %v1166 = vsub.s32 6, %v1165
        %v1167 = vrot.slane %v1008, %v1166
        %1172 = vrot.lane.b32.xlu0 %v1155, 96
        %v1173 = vpop.permute.xlu0 %1172
        %1174 = vrot.lane.b32.xlu0 %v1159, 96
        %v1175 = vpop.permute.xlu0 %1174
        %1176 = vrot.lane.b32.xlu0 %v1163, 96
        %v1177 = vpop.permute.xlu0 %1176
        %1178 = vrot.lane.b32.xlu0 %v1167, 96
        %v1179 = vpop.permute.xlu0 %1178
        %v1180 = vsel %vm1041, %v1173, %v1175
        %v1181 = vsel %vm1041, %v1175, %v1177
        %v1182 = vsel %vm1041, %v1177, %v1179
        %v1188 = vmul.f32 %v446, %v1173
        %v1189 = vmul.f32 %v447, %v1180
        %v1190 = vmul.f32 %v448, %v1181
        %v1191 = vmul.f32 %v449, %v1182
        %v1192 = vmul.f32 %v450, %v1179
        %v1193 = vmul.f32 %v451, %v1173
        %v1194 = vmul.f32 %v452, %v1180
        %v1195 = vmul.f32 %v453, %v1181
        %v1196 = vmul.f32 %v454, %v1182
        %v1197 = vmul.f32 %v455, %v1179
        %v1198 = vmul.f32 %v456, %v1173
        %v1199 = vmul.f32 %v457, %v1180
        %v1200 = vmul.f32 %v458, %v1181
        %v1201 = vmul.f32 %v459, %v1182
        %v1202 = vmul.f32 %v460, %v1179
        %v1218 = vrot.slane %v1188, 1
        %v1219 = vrot.slane %v1193, 1
        %v1220 = vsel %vm603, %v1218, %v1219
        %v1221 = vrot.slane %v1189, 1
        %v1222 = vrot.slane %v1194, 1
        %v1223 = vsel %vm603, %v1221, %v1222
        %v1224 = vrot.slane %v1190, 1
        %v1225 = vrot.slane %v1195, 1
        %v1226 = vsel %vm603, %v1224, %v1225
        %v1227 = vrot.slane %v1191, 1
        %v1228 = vrot.slane %v1196, 1
        %v1229 = vsel %vm603, %v1227, %v1228
        %v1230 = vrot.slane %v1192, 1
        %v1231 = vrot.slane %v1197, 1
        %v1232 = vsel %vm603, %v1230, %v1231
        %v1233 = vrot.slane %v1198, 1
        %v1234 = vsel %vm603, %v1219, %v1233
        %v1235 = vrot.slane %v1199, 1
        %v1236 = vsel %vm603, %v1222, %v1235
        %v1237 = vrot.slane %v1200, 1
        %v1238 = vsel %vm603, %v1225, %v1237
        %v1239 = vrot.slane %v1201, 1
        %v1240 = vsel %vm603, %v1228, %v1239
        %v1241 = vrot.slane %v1202, 1
        %v1242 = vsel %vm603, %v1231, %v1241
        %1243 = vrot.lane.b32.xlu0 %v1220, 96
        %v1244 = vpop.permute.xlu0 %1243
        %1245 = vrot.lane.b32.xlu0 %v1223, 96
        %v1246 = vpop.permute.xlu0 %1245
        %1247 = vrot.lane.b32.xlu0 %v1226, 96
        %v1248 = vpop.permute.xlu0 %1247
        %1249 = vrot.lane.b32.xlu0 %v1229, 96
        %v1250 = vpop.permute.xlu0 %1249
        %1251 = vrot.lane.b32.xlu0 %v1232, 96
        %v1252 = vpop.permute.xlu0 %1251
        %1253 = vrot.lane.b32.xlu0 %v1234, 96
        %v1254 = vpop.permute.xlu0 %1253
        %1255 = vrot.lane.b32.xlu0 %v1236, 96
        %v1256 = vpop.permute.xlu0 %1255
        %1257 = vrot.lane.b32.xlu0 %v1238, 96
        %v1258 = vpop.permute.xlu0 %1257
        %1259 = vrot.lane.b32.xlu0 %v1240, 96
        %v1260 = vpop.permute.xlu0 %1259
        %1261 = vrot.lane.b32.xlu0 %v1242, 96
        %v1262 = vpop.permute.xlu0 %1261
        %1263 = vrot.lane.b32.xlu0 %v1233, 96
        %v1264 = vpop.permute.xlu0 %1263
        %1265 = vrot.lane.b32.xlu0 %v1235, 96
        %v1266 = vpop.permute.xlu0 %1265
        %1267 = vrot.lane.b32.xlu0 %v1237, 96
        %v1268 = vpop.permute.xlu0 %1267
        %1269 = vrot.lane.b32.xlu0 %v1239, 96
        %v1270 = vpop.permute.xlu0 %1269
        %1271 = vrot.lane.b32.xlu0 %v1241, 96
        %v1272 = vpop.permute.xlu0 %1271
        %v1273 = vsel %vm1041, %v1244, %v1246
        %v1274 = vsel %vm1041, %v1246, %v1248
        %v1275 = vsel %vm1041, %v1248, %v1250
        %v1276 = vsel %vm1041, %v1250, %v1252
        %v1277 = vsel %vm1041, %v1254, %v1256
        %v1278 = vsel %vm1041, %v1256, %v1258
        %v1279 = vsel %vm1041, %v1258, %v1260
        %v1280 = vsel %vm1041, %v1260, %v1262
        %v1281 = vsel %vm1041, %v1264, %v1266
        %v1282 = vsel %vm1041, %v1266, %v1268
        %v1283 = vsel %vm1041, %v1268, %v1270
        %v1284 = vsel %vm1041, %v1270, %v1272
        %v1300 = vadd.f32 %v1137, %v1273
        %v1301 = vadd.f32 %v1138, %v1274
        %v1302 = vadd.f32 %v1139, %v1275
        %v1303 = vadd.f32 %v1140, %v1276
        %v1304 = vadd.f32 %v1141, %v1252
        %v1305 = vadd.f32 %v1142, %v1277
        %v1306 = vadd.f32 %v1143, %v1278
        %v1307 = vadd.f32 %v1144, %v1279
        %v1308 = vadd.f32 %v1145, %v1280
        %v1309 = vadd.f32 %v1146, %v1262
        %v1310 = vadd.f32 %v1147, %v1281
        %v1311 = vadd.f32 %v1148, %v1282
        %v1312 = vadd.f32 %v1149, %v1283
        %v1313 = vadd.f32 %v1150, %v1284
        %v1314 = vadd.f32 %v1151, %v1272
        %v1315 = vlaneseq
        %v1316 = vshrl.u32 %v1315, 7
        %v1317 = vsub.s32 7, %v1316
        %v1318 = vrot.slane %v1005, %v1317
        %v1319 = vlaneseq
        %v1320 = vshrl.u32 %v1319, 7
        %v1321 = vsub.s32 7, %v1320
        %v1322 = vrot.slane %v1006, %v1321
        %v1323 = vlaneseq
        %v1324 = vshrl.u32 %v1323, 7
        %v1325 = vsub.s32 7, %v1324
        %v1326 = vrot.slane %v1007, %v1325
        %v1327 = vlaneseq
        %v1328 = vshrl.u32 %v1327, 7
        %v1329 = vsub.s32 7, %v1328
        %v1330 = vrot.slane %v1008, %v1329
        %1335 = vrot.lane.b32.xlu0 %v1318, 96
        %v1336 = vpop.permute.xlu0 %1335
        %1337 = vrot.lane.b32.xlu0 %v1322, 96
        %v1338 = vpop.permute.xlu0 %1337
        %1339 = vrot.lane.b32.xlu0 %v1326, 96
        %v1340 = vpop.permute.xlu0 %1339
        %1341 = vrot.lane.b32.xlu0 %v1330, 96
        %v1342 = vpop.permute.xlu0 %1341
        %v1343 = vsel %vm1041, %v1336, %v1338
        %v1344 = vsel %vm1041, %v1338, %v1340
        %v1345 = vsel %vm1041, %v1340, %v1342
        %v1351 = vmul.f32 %v451, %v1336
        %v1352 = vmul.f32 %v452, %v1343
        %v1353 = vmul.f32 %v453, %v1344
        %v1354 = vmul.f32 %v454, %v1345
        %v1355 = vmul.f32 %v455, %v1342
        %v1356 = vmul.f32 %v456, %v1336
        %v1357 = vmul.f32 %v457, %v1343
        %v1358 = vmul.f32 %v458, %v1344
        %v1359 = vmul.f32 %v459, %v1345
        %v1360 = vmul.f32 %v460, %v1342
        %v1371 = vrot.slane %v1351, 2
        %v1372 = vrot.slane %v1352, 2
        %v1373 = vrot.slane %v1353, 2
        %v1374 = vrot.slane %v1354, 2
        %v1375 = vrot.slane %v1355, 2
        %v1376 = vrot.slane %v1356, 2
        %v1377 = vsel %vm715, %v1371, %v1376
        %v1378 = vrot.slane %v1357, 2
        %v1379 = vsel %vm715, %v1372, %v1378
        %v1380 = vrot.slane %v1358, 2
        %v1381 = vsel %vm715, %v1373, %v1380
        %v1382 = vrot.slane %v1359, 2
        %v1383 = vsel %vm715, %v1374, %v1382
        %v1384 = vrot.slane %v1360, 2
        %v1385 = vsel %vm715, %v1375, %v1384
        %1386 = vrot.lane.b32.xlu0 %v1371, 96
        %v1387 = vpop.permute.xlu0 %1386
        %1388 = vrot.lane.b32.xlu0 %v1372, 96
        %v1389 = vpop.permute.xlu0 %1388
        %1390 = vrot.lane.b32.xlu0 %v1373, 96
        %v1391 = vpop.permute.xlu0 %1390
        %1392 = vrot.lane.b32.xlu0 %v1374, 96
        %v1393 = vpop.permute.xlu0 %1392
        %1394 = vrot.lane.b32.xlu0 %v1375, 96
        %v1395 = vpop.permute.xlu0 %1394
        %1396 = vrot.lane.b32.xlu0 %v1377, 96
        %v1397 = vpop.permute.xlu0 %1396
        %1398 = vrot.lane.b32.xlu0 %v1379, 96
        %v1399 = vpop.permute.xlu0 %1398
        %1400 = vrot.lane.b32.xlu0 %v1381, 96
        %v1401 = vpop.permute.xlu0 %1400
        %1402 = vrot.lane.b32.xlu0 %v1383, 96
        %v1403 = vpop.permute.xlu0 %1402
        %1404 = vrot.lane.b32.xlu0 %v1385, 96
        %v1405 = vpop.permute.xlu0 %1404
        %1406 = vrot.lane.b32.xlu0 %v1376, 96
        %v1407 = vpop.permute.xlu0 %1406
        %1408 = vrot.lane.b32.xlu0 %v1378, 96
        %v1409 = vpop.permute.xlu0 %1408
        %1410 = vrot.lane.b32.xlu0 %v1380, 96
        %v1411 = vpop.permute.xlu0 %1410
        %1412 = vrot.lane.b32.xlu0 %v1382, 96
        %v1413 = vpop.permute.xlu0 %1412
        %1414 = vrot.lane.b32.xlu0 %v1384, 96
        %v1415 = vpop.permute.xlu0 %1414
        %v1416 = vsel %vm1041, %v1387, %v1389
        %v1417 = vsel %vm1041, %v1389, %v1391
        %v1418 = vsel %vm1041, %v1391, %v1393
        %v1419 = vsel %vm1041, %v1393, %v1395
        %v1420 = vsel %vm1041, %v1397, %v1399
        %v1421 = vsel %vm1041, %v1399, %v1401
        %v1422 = vsel %vm1041, %v1401, %v1403
        %v1423 = vsel %vm1041, %v1403, %v1405
        %v1424 = vsel %vm1041, %v1407, %v1409
        %v1425 = vsel %vm1041, %v1409, %v1411
        %v1426 = vsel %vm1041, %v1411, %v1413
        %v1427 = vsel %vm1041, %v1413, %v1415
        %v1443 = vadd.f32 %v1300, %v1416
        %v1444 = vadd.f32 %v1301, %v1417
        %v1445 = vadd.f32 %v1302, %v1418
        %v1446 = vadd.f32 %v1303, %v1419
        %v1447 = vadd.f32 %v1304, %v1395
        %v1448 = vadd.f32 %v1305, %v1420
        %v1449 = vadd.f32 %v1306, %v1421
        %v1450 = vadd.f32 %v1307, %v1422
        %v1451 = vadd.f32 %v1308, %v1423
        %v1452 = vadd.f32 %v1309, %v1405
        %v1453 = vadd.f32 %v1310, %v1424
        %v1454 = vadd.f32 %v1311, %v1425
        %v1455 = vadd.f32 %v1312, %v1426
        %v1456 = vadd.f32 %v1313, %v1427
        %v1457 = vadd.f32 %v1314, %v1415
        %v1458 = vlaneseq
        %v1459 = vshrl.u32 %v1458, 7
        %v1460 = vsub.s32 0, %v1459
        %v1461 = vrot.slane %v1009, %v1460
        %v1462 = vlaneseq
        %v1463 = vshrl.u32 %v1462, 7
        %v1464 = vsub.s32 0, %v1463
        %v1465 = vrot.slane %v1010, %v1464
        %v1466 = vlaneseq
        %v1467 = vshrl.u32 %v1466, 7
        %v1468 = vsub.s32 0, %v1467
        %v1469 = vrot.slane %v1011, %v1468
        %v1470 = vlaneseq
        %v1471 = vshrl.u32 %v1470, 7
        %v1472 = vsub.s32 0, %v1471
        %v1473 = vrot.slane %v1012, %v1472
        %1478 = vrot.lane.b32.xlu0 %v1461, 96
        %v1479 = vpop.permute.xlu0 %1478
        %1480 = vrot.lane.b32.xlu0 %v1465, 96
        %v1481 = vpop.permute.xlu0 %1480
        %1482 = vrot.lane.b32.xlu0 %v1469, 96
        %v1483 = vpop.permute.xlu0 %1482
        %1484 = vrot.lane.b32.xlu0 %v1473, 96
        %v1485 = vpop.permute.xlu0 %1484
        %v1486 = vsel %vm1041, %v1479, %v1481
        %v1487 = vsel %vm1041, %v1481, %v1483
        %v1488 = vsel %vm1041, %v1483, %v1485
        %v1494 = vmul.f32 %v451, %v1479
        %v1495 = vmul.f32 %v452, %v1486
        %v1496 = vmul.f32 %v453, %v1487
        %v1497 = vmul.f32 %v454, %v1488
        %v1498 = vmul.f32 %v455, %v1485
        %v1499 = vmul.f32 %v456, %v1479
        %v1500 = vmul.f32 %v457, %v1486
        %v1501 = vmul.f32 %v458, %v1487
        %v1502 = vmul.f32 %v459, %v1488
        %v1503 = vmul.f32 %v460, %v1485
        %v1504 = vmul.f32 %v461, %v1479
        %v1505 = vmul.f32 %v462, %v1486
        %v1506 = vmul.f32 %v463, %v1487
        %v1507 = vmul.f32 %v464, %v1488
        %v1508 = vmul.f32 %v465, %v1485
        %v1524 = vrot.slane %v1494, 3
        %v1525 = vrot.slane %v1495, 3
        %v1526 = vrot.slane %v1496, 3
        %v1527 = vrot.slane %v1497, 3
        %v1528 = vrot.slane %v1498, 3
        %v1529 = vrot.slane %v1499, 3
        %v1530 = vsel %vm827, %v1524, %v1529
        %v1531 = vrot.slane %v1500, 3
        %v1532 = vsel %vm827, %v1525, %v1531
        %v1533 = vrot.slane %v1501, 3
        %v1534 = vsel %vm827, %v1526, %v1533
        %v1535 = vrot.slane %v1502, 3
        %v1536 = vsel %vm827, %v1527, %v1535
        %v1537 = vrot.slane %v1503, 3
        %v1538 = vsel %vm827, %v1528, %v1537
        %v1539 = vrot.slane %v1504, 3
        %v1540 = vsel %vm827, %v1529, %v1539
        %v1541 = vrot.slane %v1505, 3
        %v1542 = vsel %vm827, %v1531, %v1541
        %v1543 = vrot.slane %v1506, 3
        %v1544 = vsel %vm827, %v1533, %v1543
        %v1545 = vrot.slane %v1507, 3
        %v1546 = vsel %vm827, %v1535, %v1545
        %v1547 = vrot.slane %v1508, 3
        %v1548 = vsel %vm827, %v1537, %v1547
        %1549 = vrot.lane.b32.xlu0 %v1524, 96
        %v1550 = vpop.permute.xlu0 %1549
        %1551 = vrot.lane.b32.xlu0 %v1525, 96
        %v1552 = vpop.permute.xlu0 %1551
        %1553 = vrot.lane.b32.xlu0 %v1526, 96
        %v1554 = vpop.permute.xlu0 %1553
        %1555 = vrot.lane.b32.xlu0 %v1527, 96
        %v1556 = vpop.permute.xlu0 %1555
        %1557 = vrot.lane.b32.xlu0 %v1528, 96
        %v1558 = vpop.permute.xlu0 %1557
        %1559 = vrot.lane.b32.xlu0 %v1530, 96
        %v1560 = vpop.permute.xlu0 %1559
        %1561 = vrot.lane.b32.xlu0 %v1532, 96
        %v1562 = vpop.permute.xlu0 %1561
        %1563 = vrot.lane.b32.xlu0 %v1534, 96
        %v1564 = vpop.permute.xlu0 %1563
        %1565 = vrot.lane.b32.xlu0 %v1536, 96
        %v1566 = vpop.permute.xlu0 %1565
        %1567 = vrot.lane.b32.xlu0 %v1538, 96
        %v1568 = vpop.permute.xlu0 %1567
        %1569 = vrot.lane.b32.xlu0 %v1540, 96
        %v1570 = vpop.permute.xlu0 %1569
        %1571 = vrot.lane.b32.xlu0 %v1542, 96
        %v1572 = vpop.permute.xlu0 %1571
        %1573 = vrot.lane.b32.xlu0 %v1544, 96
        %v1574 = vpop.permute.xlu0 %1573
        %1575 = vrot.lane.b32.xlu0 %v1546, 96
        %v1576 = vpop.permute.xlu0 %1575
        %1577 = vrot.lane.b32.xlu0 %v1548, 96
        %v1578 = vpop.permute.xlu0 %1577
        %v1579 = vsel %vm1041, %v1550, %v1552
        %v1580 = vsel %vm1041, %v1552, %v1554
        %v1581 = vsel %vm1041, %v1554, %v1556
        %v1582 = vsel %vm1041, %v1556, %v1558
        %v1583 = vsel %vm1041, %v1560, %v1562
        %v1584 = vsel %vm1041, %v1562, %v1564
        %v1585 = vsel %vm1041, %v1564, %v1566
        %v1586 = vsel %vm1041, %v1566, %v1568
        %v1587 = vsel %vm1041, %v1570, %v1572
        %v1588 = vsel %vm1041, %v1572, %v1574
        %v1589 = vsel %vm1041, %v1574, %v1576
        %v1590 = vsel %vm1041, %v1576, %v1578
        %v1606 = vadd.f32 %v1443, %v1579
        %v1607 = vadd.f32 %v1444, %v1580
        %v1608 = vadd.f32 %v1445, %v1581
        %v1609 = vadd.f32 %v1446, %v1582
        %v1610 = vadd.f32 %v1447, %v1558
        %v1611 = vadd.f32 %v1448, %v1583
        %v1612 = vadd.f32 %v1449, %v1584
        %v1613 = vadd.f32 %v1450, %v1585
        %v1614 = vadd.f32 %v1451, %v1586
        %v1615 = vadd.f32 %v1452, %v1568
        %v1616 = vadd.f32 %v1453, %v1587
        %v1617 = vadd.f32 %v1454, %v1588
        %v1618 = vadd.f32 %v1455, %v1589
        %v1619 = vadd.f32 %v1456, %v1590
        %v1620 = vadd.f32 %v1457, %v1578
        %v1621 = vlaneseq
        %v1622 = vshrl.u32 %v1621, 7
        %v1623 = vsub.s32 1, %v1622
        %v1624 = vrot.slane %v1009, %v1623
        %v1625 = vlaneseq
        %v1626 = vshrl.u32 %v1625, 7
        %v1627 = vsub.s32 1, %v1626
        %v1628 = vrot.slane %v1010, %v1627
        %v1629 = vlaneseq
        %v1630 = vshrl.u32 %v1629, 7
        %v1631 = vsub.s32 1, %v1630
        %v1632 = vrot.slane %v1011, %v1631
        %v1633 = vlaneseq
        %v1634 = vshrl.u32 %v1633, 7
        %v1635 = vsub.s32 1, %v1634
        %v1636 = vrot.slane %v1012, %v1635
        %1641 = vrot.lane.b32.xlu0 %v1624, 96
        %v1642 = vpop.permute.xlu0 %1641
        %1643 = vrot.lane.b32.xlu0 %v1628, 96
        %v1644 = vpop.permute.xlu0 %1643
        %1645 = vrot.lane.b32.xlu0 %v1632, 96
        %v1646 = vpop.permute.xlu0 %1645
        %1647 = vrot.lane.b32.xlu0 %v1636, 96
        %v1648 = vpop.permute.xlu0 %1647
        %v1649 = vsel %vm1041, %v1642, %v1644
        %v1650 = vsel %vm1041, %v1644, %v1646
        %v1651 = vsel %vm1041, %v1646, %v1648
        %v1657 = vmul.f32 %v451, %v1642
        %v1658 = vmul.f32 %v452, %v1649
        %v1659 = vmul.f32 %v453, %v1650
        %v1660 = vmul.f32 %v454, %v1651
        %v1661 = vmul.f32 %v455, %v1648
        %v1662 = vmul.f32 %v456, %v1642
        %v1663 = vmul.f32 %v457, %v1649
        %v1664 = vmul.f32 %v458, %v1650
        %v1665 = vmul.f32 %v459, %v1651
        %v1666 = vmul.f32 %v460, %v1648
        %v1667 = vmul.f32 %v461, %v1642
        %v1668 = vmul.f32 %v462, %v1649
        %v1669 = vmul.f32 %v463, %v1650
        %v1670 = vmul.f32 %v464, %v1651
        %v1671 = vmul.f32 %v465, %v1648
        %v1687 = vrot.slane %v1657, 4
        %v1688 = vrot.slane %v1658, 4
        %v1689 = vrot.slane %v1659, 4
        %v1690 = vrot.slane %v1660, 4
        %v1691 = vrot.slane %v1661, 4
        %v1692 = vrot.slane %v1662, 4
        %v1693 = vsel %vm949, %v1687, %v1692
        %v1694 = vrot.slane %v1663, 4
        %v1695 = vsel %vm949, %v1688, %v1694
        %v1696 = vrot.slane %v1664, 4
        %v1697 = vsel %vm949, %v1689, %v1696
        %v1698 = vrot.slane %v1665, 4
        %v1699 = vsel %vm949, %v1690, %v1698
        %v1700 = vrot.slane %v1666, 4
        %v1701 = vsel %vm949, %v1691, %v1700
        %v1702 = vrot.slane %v1667, 4
        %v1703 = vsel %vm949, %v1692, %v1702
        %v1704 = vrot.slane %v1668, 4
        %v1705 = vsel %vm949, %v1694, %v1704
        %v1706 = vrot.slane %v1669, 4
        %v1707 = vsel %vm949, %v1696, %v1706
        %v1708 = vrot.slane %v1670, 4
        %v1709 = vsel %vm949, %v1698, %v1708
        %v1710 = vrot.slane %v1671, 4
        %v1711 = vsel %vm949, %v1700, %v1710
        %1712 = vrot.lane.b32.xlu0 %v1687, 96
        %v1713 = vpop.permute.xlu0 %1712
        %1714 = vrot.lane.b32.xlu0 %v1688, 96
        %v1715 = vpop.permute.xlu0 %1714
        %1716 = vrot.lane.b32.xlu0 %v1689, 96
        %v1717 = vpop.permute.xlu0 %1716
        %1718 = vrot.lane.b32.xlu0 %v1690, 96
        %v1719 = vpop.permute.xlu0 %1718
        %1720 = vrot.lane.b32.xlu0 %v1691, 96
        %v1721 = vpop.permute.xlu0 %1720
        %1722 = vrot.lane.b32.xlu0 %v1693, 96
        %v1723 = vpop.permute.xlu0 %1722
        %1724 = vrot.lane.b32.xlu0 %v1695, 96
        %v1725 = vpop.permute.xlu0 %1724
        %1726 = vrot.lane.b32.xlu0 %v1697, 96
        %v1727 = vpop.permute.xlu0 %1726
        %1728 = vrot.lane.b32.xlu0 %v1699, 96
        %v1729 = vpop.permute.xlu0 %1728
        %1730 = vrot.lane.b32.xlu0 %v1701, 96
        %v1731 = vpop.permute.xlu0 %1730
        %1732 = vrot.lane.b32.xlu0 %v1703, 96
        %v1733 = vpop.permute.xlu0 %1732
        %1734 = vrot.lane.b32.xlu0 %v1705, 96
        %v1735 = vpop.permute.xlu0 %1734
        %1736 = vrot.lane.b32.xlu0 %v1707, 96
        %v1737 = vpop.permute.xlu0 %1736
        %1738 = vrot.lane.b32.xlu0 %v1709, 96
        %v1739 = vpop.permute.xlu0 %1738
        %1740 = vrot.lane.b32.xlu0 %v1711, 96
        %v1741 = vpop.permute.xlu0 %1740
        %v1742 = vsel %vm1041, %v1713, %v1715
        %v1743 = vsel %vm1041, %v1715, %v1717
        %v1744 = vsel %vm1041, %v1717, %v1719
        %v1745 = vsel %vm1041, %v1719, %v1721
        %v1746 = vsel %vm1041, %v1723, %v1725
        %v1747 = vsel %vm1041, %v1725, %v1727
        %v1748 = vsel %vm1041, %v1727, %v1729
        %v1749 = vsel %vm1041, %v1729, %v1731
        %v1750 = vsel %vm1041, %v1733, %v1735
        %v1751 = vsel %vm1041, %v1735, %v1737
        %v1752 = vsel %vm1041, %v1737, %v1739
        %v1753 = vsel %vm1041, %v1739, %v1741
        %v1769 = vadd.f32 %v1606, %v1742
        %v1770 = vadd.f32 %v1607, %v1743
        %v1771 = vadd.f32 %v1608, %v1744
        %v1772 = vadd.f32 %v1609, %v1745
        %v1773 = vadd.f32 %v1610, %v1721
        %v1774 = vadd.f32 %v1611, %v1746
        %v1775 = vadd.f32 %v1612, %v1747
        %v1776 = vadd.f32 %v1613, %v1748
        %v1777 = vadd.f32 %v1614, %v1749
        %v1778 = vadd.f32 %v1615, %v1731
        %v1779 = vadd.f32 %v1616, %v1750
        %v1780 = vadd.f32 %v1617, %v1751
        %v1781 = vadd.f32 %v1618, %v1752
        %v1782 = vadd.f32 %v1619, %v1753
        %v1783 = vadd.f32 %v1620, %v1741
        %v1784 = vld [vmem:[%s1 + $0x20] sm:$0x7c]
        %v1785 = vld [vmem:[%s1 + $0x28] sm:$0x7c]
        %v1786 = vld [vmem:[%s1 + $0x30] sm:$0x7c]
        %v1787 = vld [vmem:[%s1 + $0x38] sm:$0x7c]
        %v1788 = vlaneseq
        %v1789 = vshrl.u32 %v1788, 7
        %v1790 = vsub.s32 2, %v1789
        %v1791 = vrot.slane %v1784, %v1790
        %v1792 = vlaneseq
        %v1793 = vshrl.u32 %v1792, 7
        %v1794 = vsub.s32 2, %v1793
        %v1795 = vrot.slane %v1785, %v1794
        %v1796 = vlaneseq
        %v1797 = vshrl.u32 %v1796, 7
        %v1798 = vsub.s32 2, %v1797
        %v1799 = vrot.slane %v1786, %v1798
        %v1800 = vlaneseq
        %v1801 = vshrl.u32 %v1800, 7
        %v1802 = vsub.s32 2, %v1801
        %v1803 = vrot.slane %v1787, %v1802
        %v1804 = vmul.f32 %v447, %v1791
        %v1805 = vmul.f32 %v448, %v1795
        %v1806 = vmul.f32 %v449, %v1799
        %v1807 = vmul.f32 %v450, %v1803
        %v1808 = vmul.f32 %v452, %v1791
        %v1809 = vmul.f32 %v453, %v1795
        %v1810 = vmul.f32 %v454, %v1799
        %v1811 = vmul.f32 %v455, %v1803
        %v1812 = vmul.f32 %v457, %v1791
        %v1813 = vmul.f32 %v458, %v1795
        %v1814 = vmul.f32 %v459, %v1799
        %v1815 = vmul.f32 %v460, %v1803
        %1828 = vrot.lane.b32.xlu0 %v1804, 64
        %v1829 = vpop.permute.xlu0 %1828
        %1830 = vrot.lane.b32.xlu0 %v1805, 64
        %v1831 = vpop.permute.xlu0 %1830
        %1832 = vrot.lane.b32.xlu0 %v1806, 64
        %v1833 = vpop.permute.xlu0 %1832
        %1834 = vrot.lane.b32.xlu0 %v1807, 64
        %v1835 = vpop.permute.xlu0 %1834
        %1836 = vrot.lane.b32.xlu0 %v1808, 64
        %v1837 = vpop.permute.xlu0 %1836
        %1838 = vrot.lane.b32.xlu0 %v1809, 64
        %v1839 = vpop.permute.xlu0 %1838
        %1840 = vrot.lane.b32.xlu0 %v1810, 64
        %v1841 = vpop.permute.xlu0 %1840
        %1842 = vrot.lane.b32.xlu0 %v1811, 64
        %v1843 = vpop.permute.xlu0 %1842
        %1844 = vrot.lane.b32.xlu0 %v1812, 64
        %v1845 = vpop.permute.xlu0 %1844
        %1846 = vrot.lane.b32.xlu0 %v1813, 64
        %v1847 = vpop.permute.xlu0 %1846
        %1848 = vrot.lane.b32.xlu0 %v1814, 64
        %v1849 = vpop.permute.xlu0 %1848
        %1850 = vrot.lane.b32.xlu0 %v1815, 64
        %v1851 = vpop.permute.xlu0 %1850
        %v1852 = vsel %vm498, %v1829, %v1831
        %v1853 = vsel %vm498, %v1831, %v1833
        %v1854 = vsel %vm498, %v1833, %v1835
        %v1855 = vsel %vm498, %v1837, %v1839
        %v1856 = vsel %vm498, %v1839, %v1841
        %v1857 = vsel %vm498, %v1841, %v1843
        %v1858 = vsel %vm498, %v1845, %v1847
        %v1859 = vsel %vm498, %v1847, %v1849
        %v1860 = vsel %vm498, %v1849, %v1851
        %v1876 = vadd.f32 %v1769, %v1829
        %v1877 = vadd.f32 %v1770, %v1852
        %v1878 = vadd.f32 %v1771, %v1853
        %v1879 = vadd.f32 %v1772, %v1854
        %v1880 = vadd.f32 %v1773, %v1835
        %v1881 = vadd.f32 %v1774, %v1837
        %v1882 = vadd.f32 %v1775, %v1855
        %v1883 = vadd.f32 %v1776, %v1856
        %v1884 = vadd.f32 %v1777, %v1857
        %v1885 = vadd.f32 %v1778, %v1843
        %v1886 = vadd.f32 %v1779, %v1845
        %v1887 = vadd.f32 %v1780, %v1858
        %v1888 = vadd.f32 %v1781, %v1859
        %v1889 = vadd.f32 %v1782, %v1860
        %v1890 = vadd.f32 %v1783, %v1851
        %v1891 = vlaneseq
        %v1892 = vshrl.u32 %v1891, 7
        %v1893 = vsub.s32 3, %v1892
        %v1894 = vrot.slane %v1784, %v1893
        %v1895 = vlaneseq
        %v1896 = vshrl.u32 %v1895, 7
        %v1897 = vsub.s32 3, %v1896
        %v1898 = vrot.slane %v1785, %v1897
        %v1899 = vlaneseq
        %v1900 = vshrl.u32 %v1899, 7
        %v1901 = vsub.s32 3, %v1900
        %v1902 = vrot.slane %v1786, %v1901
        %v1903 = vlaneseq
        %v1904 = vshrl.u32 %v1903, 7
        %v1905 = vsub.s32 3, %v1904
        %v1906 = vrot.slane %v1787, %v1905
        %v1907 = vmul.f32 %v447, %v1894
        %v1908 = vmul.f32 %v448, %v1898
        %v1909 = vmul.f32 %v449, %v1902
        %v1910 = vmul.f32 %v450, %v1906
        %v1911 = vmul.f32 %v452, %v1894
        %v1912 = vmul.f32 %v453, %v1898
        %v1913 = vmul.f32 %v454, %v1902
        %v1914 = vmul.f32 %v455, %v1906
        %v1915 = vmul.f32 %v457, %v1894
        %v1916 = vmul.f32 %v458, %v1898
        %v1917 = vmul.f32 %v459, %v1902
        %v1918 = vmul.f32 %v460, %v1906
        %v1931 = vrot.slane %v1907, 1
        %v1932 = vrot.slane %v1911, 1
        %v1933 = vsel %vm603, %v1931, %v1932
        %v1934 = vrot.slane %v1908, 1
        %v1935 = vrot.slane %v1912, 1
        %v1936 = vsel %vm603, %v1934, %v1935
        %v1937 = vrot.slane %v1909, 1
        %v1938 = vrot.slane %v1913, 1
        %v1939 = vsel %vm603, %v1937, %v1938
        %v1940 = vrot.slane %v1910, 1
        %v1941 = vrot.slane %v1914, 1
        %v1942 = vsel %vm603, %v1940, %v1941
        %v1943 = vrot.slane %v1915, 1
        %v1944 = vsel %vm603, %v1932, %v1943
        %v1945 = vrot.slane %v1916, 1
        %v1946 = vsel %vm603, %v1935, %v1945
        %v1947 = vrot.slane %v1917, 1
        %v1948 = vsel %vm603, %v1938, %v1947
        %v1949 = vrot.slane %v1918, 1
        %v1950 = vsel %vm603, %v1941, %v1949
        %1951 = vrot.lane.b32.xlu0 %v1933, 64
        %v1952 = vpop.permute.xlu0 %1951
        %1953 = vrot.lane.b32.xlu0 %v1936, 64
        %v1954 = vpop.permute.xlu0 %1953
        %1955 = vrot.lane.b32.xlu0 %v1939, 64
        %v1956 = vpop.permute.xlu0 %1955
        %1957 = vrot.lane.b32.xlu0 %v1942, 64
        %v1958 = vpop.permute.xlu0 %1957
        %1959 = vrot.lane.b32.xlu0 %v1944, 64
        %v1960 = vpop.permute.xlu0 %1959
        %1961 = vrot.lane.b32.xlu0 %v1946, 64
        %v1962 = vpop.permute.xlu0 %1961
        %1963 = vrot.lane.b32.xlu0 %v1948, 64
        %v1964 = vpop.permute.xlu0 %1963
        %1965 = vrot.lane.b32.xlu0 %v1950, 64
        %v1966 = vpop.permute.xlu0 %1965
        %1967 = vrot.lane.b32.xlu0 %v1943, 64
        %v1968 = vpop.permute.xlu0 %1967
        %1969 = vrot.lane.b32.xlu0 %v1945, 64
        %v1970 = vpop.permute.xlu0 %1969
        %1971 = vrot.lane.b32.xlu0 %v1947, 64
        %v1972 = vpop.permute.xlu0 %1971
        %1973 = vrot.lane.b32.xlu0 %v1949, 64
        %v1974 = vpop.permute.xlu0 %1973
        %v1975 = vsel %vm498, %v1952, %v1954
        %v1976 = vsel %vm498, %v1954, %v1956
        %v1977 = vsel %vm498, %v1956, %v1958
        %v1978 = vsel %vm498, %v1960, %v1962
        %v1979 = vsel %vm498, %v1962, %v1964
        %v1980 = vsel %vm498, %v1964, %v1966
        %v1981 = vsel %vm498, %v1968, %v1970
        %v1982 = vsel %vm498, %v1970, %v1972
        %v1983 = vsel %vm498, %v1972, %v1974
        %v1999 = vadd.f32 %v1876, %v1952
        %v2000 = vadd.f32 %v1877, %v1975
        %v2001 = vadd.f32 %v1878, %v1976
        %v2002 = vadd.f32 %v1879, %v1977
        %v2003 = vadd.f32 %v1880, %v1958
        %v2004 = vadd.f32 %v1881, %v1960
        %v2005 = vadd.f32 %v1882, %v1978
        %v2006 = vadd.f32 %v1883, %v1979
        %v2007 = vadd.f32 %v1884, %v1980
        %v2008 = vadd.f32 %v1885, %v1966
        %v2009 = vadd.f32 %v1886, %v1968
        %v2010 = vadd.f32 %v1887, %v1981
        %v2011 = vadd.f32 %v1888, %v1982
        %v2012 = vadd.f32 %v1889, %v1983
        %v2013 = vadd.f32 %v1890, %v1974
        %v2014 = vlaneseq
        %v2015 = vshrl.u32 %v2014, 7
        %v2016 = vsub.s32 4, %v2015
        %v2017 = vrot.slane %v1784, %v2016
        %v2018 = vlaneseq
        %v2019 = vshrl.u32 %v2018, 7
        %v2020 = vsub.s32 4, %v2019
        %v2021 = vrot.slane %v1785, %v2020
        %v2022 = vlaneseq
        %v2023 = vshrl.u32 %v2022, 7
        %v2024 = vsub.s32 4, %v2023
        %v2025 = vrot.slane %v1786, %v2024
        %v2026 = vlaneseq
        %v2027 = vshrl.u32 %v2026, 7
        %v2028 = vsub.s32 4, %v2027
        %v2029 = vrot.slane %v1787, %v2028
        %v2030 = vmul.f32 %v452, %v2017
        %v2031 = vmul.f32 %v453, %v2021
        %v2032 = vmul.f32 %v454, %v2025
        %v2033 = vmul.f32 %v455, %v2029
        %v2034 = vmul.f32 %v457, %v2017
        %v2035 = vmul.f32 %v458, %v2021
        %v2036 = vmul.f32 %v459, %v2025
        %v2037 = vmul.f32 %v460, %v2029
        %v2046 = vrot.slane %v2030, 2
        %v2047 = vrot.slane %v2031, 2
        %v2048 = vrot.slane %v2032, 2
        %v2049 = vrot.slane %v2033, 2
        %v2050 = vrot.slane %v2034, 2
        %v2051 = vsel %vm715, %v2046, %v2050
        %v2052 = vrot.slane %v2035, 2
        %v2053 = vsel %vm715, %v2047, %v2052
        %v2054 = vrot.slane %v2036, 2
        %v2055 = vsel %vm715, %v2048, %v2054
        %v2056 = vrot.slane %v2037, 2
        %v2057 = vsel %vm715, %v2049, %v2056
        %2058 = vrot.lane.b32.xlu0 %v2046, 64
        %v2059 = vpop.permute.xlu0 %2058
        %2060 = vrot.lane.b32.xlu0 %v2047, 64
        %v2061 = vpop.permute.xlu0 %2060
        %2062 = vrot.lane.b32.xlu0 %v2048, 64
        %v2063 = vpop.permute.xlu0 %2062
        %2064 = vrot.lane.b32.xlu0 %v2049, 64
        %v2065 = vpop.permute.xlu0 %2064
        %2066 = vrot.lane.b32.xlu0 %v2051, 64
        %v2067 = vpop.permute.xlu0 %2066
        %2068 = vrot.lane.b32.xlu0 %v2053, 64
        %v2069 = vpop.permute.xlu0 %2068
        %2070 = vrot.lane.b32.xlu0 %v2055, 64
        %v2071 = vpop.permute.xlu0 %2070
        %2072 = vrot.lane.b32.xlu0 %v2057, 64
        %v2073 = vpop.permute.xlu0 %2072
        %2074 = vrot.lane.b32.xlu0 %v2050, 64
        %v2075 = vpop.permute.xlu0 %2074
        %2076 = vrot.lane.b32.xlu0 %v2052, 64
        %v2077 = vpop.permute.xlu0 %2076
        %2078 = vrot.lane.b32.xlu0 %v2054, 64
        %v2079 = vpop.permute.xlu0 %2078
        %2080 = vrot.lane.b32.xlu0 %v2056, 64
        %v2081 = vpop.permute.xlu0 %2080
        %v2082 = vsel %vm498, %v2059, %v2061
        %v2083 = vsel %vm498, %v2061, %v2063
        %v2084 = vsel %vm498, %v2063, %v2065
        %v2085 = vsel %vm498, %v2067, %v2069
        %v2086 = vsel %vm498, %v2069, %v2071
        %v2087 = vsel %vm498, %v2071, %v2073
        %v2088 = vsel %vm498, %v2075, %v2077
        %v2089 = vsel %vm498, %v2077, %v2079
        %v2090 = vsel %vm498, %v2079, %v2081
        %v2106 = vadd.f32 %v1999, %v2059
        %v2107 = vadd.f32 %v2000, %v2082
        %v2108 = vadd.f32 %v2001, %v2083
        %v2109 = vadd.f32 %v2002, %v2084
        %v2110 = vadd.f32 %v2003, %v2065
        %v2111 = vadd.f32 %v2004, %v2067
        %v2112 = vadd.f32 %v2005, %v2085
        %v2113 = vadd.f32 %v2006, %v2086
        %v2114 = vadd.f32 %v2007, %v2087
        %v2115 = vadd.f32 %v2008, %v2073
        %v2116 = vadd.f32 %v2009, %v2075
        %v2117 = vadd.f32 %v2010, %v2088
        %v2118 = vadd.f32 %v2011, %v2089
        %v2119 = vadd.f32 %v2012, %v2090
        %v2120 = vadd.f32 %v2013, %v2081
        %v2121 = vlaneseq
        %v2122 = vshrl.u32 %v2121, 7
        %v2123 = vsub.s32 5, %v2122
        %v2124 = vrot.slane %v1784, %v2123
        %v2125 = vlaneseq
        %v2126 = vshrl.u32 %v2125, 7
        %v2127 = vsub.s32 5, %v2126
        %v2128 = vrot.slane %v1785, %v2127
        %v2129 = vlaneseq
        %v2130 = vshrl.u32 %v2129, 7
        %v2131 = vsub.s32 5, %v2130
        %v2132 = vrot.slane %v1786, %v2131
        %v2133 = vlaneseq
        %v2134 = vshrl.u32 %v2133, 7
        %v2135 = vsub.s32 5, %v2134
        %v2136 = vrot.slane %v1787, %v2135
        %v2137 = vmul.f32 %v452, %v2124
        %v2138 = vmul.f32 %v453, %v2128
        %v2139 = vmul.f32 %v454, %v2132
        %v2140 = vmul.f32 %v455, %v2136
        %v2141 = vmul.f32 %v457, %v2124
        %v2142 = vmul.f32 %v458, %v2128
        %v2143 = vmul.f32 %v459, %v2132
        %v2144 = vmul.f32 %v460, %v2136
        %v2145 = vmul.f32 %v462, %v2124
        %v2146 = vmul.f32 %v463, %v2128
        %v2147 = vmul.f32 %v464, %v2132
        %v2148 = vmul.f32 %v465, %v2136
        %v2161 = vrot.slane %v2137, 3
        %v2162 = vrot.slane %v2138, 3
        %v2163 = vrot.slane %v2139, 3
        %v2164 = vrot.slane %v2140, 3
        %v2165 = vrot.slane %v2141, 3
        %v2166 = vsel %vm827, %v2161, %v2165
        %v2167 = vrot.slane %v2142, 3
        %v2168 = vsel %vm827, %v2162, %v2167
        %v2169 = vrot.slane %v2143, 3
        %v2170 = vsel %vm827, %v2163, %v2169
        %v2171 = vrot.slane %v2144, 3
        %v2172 = vsel %vm827, %v2164, %v2171
        %v2173 = vrot.slane %v2145, 3
        %v2174 = vsel %vm827, %v2165, %v2173
        %v2175 = vrot.slane %v2146, 3
        %v2176 = vsel %vm827, %v2167, %v2175
        %v2177 = vrot.slane %v2147, 3
        %v2178 = vsel %vm827, %v2169, %v2177
        %v2179 = vrot.slane %v2148, 3
        %v2180 = vsel %vm827, %v2171, %v2179
        %2181 = vrot.lane.b32.xlu0 %v2161, 64
        %v2182 = vpop.permute.xlu0 %2181
        %2183 = vrot.lane.b32.xlu0 %v2162, 64
        %v2184 = vpop.permute.xlu0 %2183
        %2185 = vrot.lane.b32.xlu0 %v2163, 64
        %v2186 = vpop.permute.xlu0 %2185
        %2187 = vrot.lane.b32.xlu0 %v2164, 64
        %v2188 = vpop.permute.xlu0 %2187
        %2189 = vrot.lane.b32.xlu0 %v2166, 64
        %v2190 = vpop.permute.xlu0 %2189
        %2191 = vrot.lane.b32.xlu0 %v2168, 64
        %v2192 = vpop.permute.xlu0 %2191
        %2193 = vrot.lane.b32.xlu0 %v2170, 64
        %v2194 = vpop.permute.xlu0 %2193
        %2195 = vrot.lane.b32.xlu0 %v2172, 64
        %v2196 = vpop.permute.xlu0 %2195
        %2197 = vrot.lane.b32.xlu0 %v2174, 64
        %v2198 = vpop.permute.xlu0 %2197
        %2199 = vrot.lane.b32.xlu0 %v2176, 64
        %v2200 = vpop.permute.xlu0 %2199
        %2201 = vrot.lane.b32.xlu0 %v2178, 64
        %v2202 = vpop.permute.xlu0 %2201
        %2203 = vrot.lane.b32.xlu0 %v2180, 64
        %v2204 = vpop.permute.xlu0 %2203
        %v2205 = vsel %vm498, %v2182, %v2184
        %v2206 = vsel %vm498, %v2184, %v2186
        %v2207 = vsel %vm498, %v2186, %v2188
        %v2208 = vsel %vm498, %v2190, %v2192
        %v2209 = vsel %vm498, %v2192, %v2194
        %v2210 = vsel %vm498, %v2194, %v2196
        %v2211 = vsel %vm498, %v2198, %v2200
        %v2212 = vsel %vm498, %v2200, %v2202
        %v2213 = vsel %vm498, %v2202, %v2204
        %v2229 = vadd.f32 %v2106, %v2182
        %v2230 = vadd.f32 %v2107, %v2205
        %v2231 = vadd.f32 %v2108, %v2206
        %v2232 = vadd.f32 %v2109, %v2207
        %v2233 = vadd.f32 %v2110, %v2188
        %v2234 = vadd.f32 %v2111, %v2190
        %v2235 = vadd.f32 %v2112, %v2208
        %v2236 = vadd.f32 %v2113, %v2209
        %v2237 = vadd.f32 %v2114, %v2210
        %v2238 = vadd.f32 %v2115, %v2196
        %v2239 = vadd.f32 %v2116, %v2198
        %v2240 = vadd.f32 %v2117, %v2211
        %v2241 = vadd.f32 %v2118, %v2212
        %v2242 = vadd.f32 %v2119, %v2213
        %v2243 = vadd.f32 %v2120, %v2204
        %v2244 = vlaneseq
        %v2245 = vshrl.u32 %v2244, 7
        %v2246 = vsub.s32 6, %v2245
        %v2247 = vrot.slane %v1784, %v2246
        %v2248 = vlaneseq
        %v2249 = vshrl.u32 %v2248, 7
        %v2250 = vsub.s32 6, %v2249
        %v2251 = vrot.slane %v1785, %v2250
        %v2252 = vlaneseq
        %v2253 = vshrl.u32 %v2252, 7
        %v2254 = vsub.s32 6, %v2253
        %v2255 = vrot.slane %v1786, %v2254
        %v2256 = vlaneseq
        %v2257 = vshrl.u32 %v2256, 7
        %v2258 = vsub.s32 6, %v2257
        %v2259 = vrot.slane %v1787, %v2258
        %v2260 = vmul.f32 %v452, %v2247
        %v2261 = vmul.f32 %v453, %v2251
        %v2262 = vmul.f32 %v454, %v2255
        %v2263 = vmul.f32 %v455, %v2259
        %v2264 = vmul.f32 %v457, %v2247
        %v2265 = vmul.f32 %v458, %v2251
        %v2266 = vmul.f32 %v459, %v2255
        %v2267 = vmul.f32 %v460, %v2259
        %v2268 = vmul.f32 %v462, %v2247
        %v2269 = vmul.f32 %v463, %v2251
        %v2270 = vmul.f32 %v464, %v2255
        %v2271 = vmul.f32 %v465, %v2259
        %v2284 = vrot.slane %v2260, 4
        %v2285 = vrot.slane %v2261, 4
        %v2286 = vrot.slane %v2262, 4
        %v2287 = vrot.slane %v2263, 4
        %v2288 = vrot.slane %v2264, 4
        %v2289 = vsel %vm949, %v2284, %v2288
        %v2290 = vrot.slane %v2265, 4
        %v2291 = vsel %vm949, %v2285, %v2290
        %v2292 = vrot.slane %v2266, 4
        %v2293 = vsel %vm949, %v2286, %v2292
        %v2294 = vrot.slane %v2267, 4
        %v2295 = vsel %vm949, %v2287, %v2294
        %v2296 = vrot.slane %v2268, 4
        %v2297 = vsel %vm949, %v2288, %v2296
        %v2298 = vrot.slane %v2269, 4
        %v2299 = vsel %vm949, %v2290, %v2298
        %v2300 = vrot.slane %v2270, 4
        %v2301 = vsel %vm949, %v2292, %v2300
        %v2302 = vrot.slane %v2271, 4
        %v2303 = vsel %vm949, %v2294, %v2302
        %2304 = vrot.lane.b32.xlu0 %v2284, 64
        %v2305 = vpop.permute.xlu0 %2304
        %2306 = vrot.lane.b32.xlu0 %v2285, 64
        %v2307 = vpop.permute.xlu0 %2306
        %2308 = vrot.lane.b32.xlu0 %v2286, 64
        %v2309 = vpop.permute.xlu0 %2308
        %2310 = vrot.lane.b32.xlu0 %v2287, 64
        %v2311 = vpop.permute.xlu0 %2310
        %2312 = vrot.lane.b32.xlu0 %v2289, 64
        %v2313 = vpop.permute.xlu0 %2312
        %2314 = vrot.lane.b32.xlu0 %v2291, 64
        %v2315 = vpop.permute.xlu0 %2314
        %2316 = vrot.lane.b32.xlu0 %v2293, 64
        %v2317 = vpop.permute.xlu0 %2316
        %2318 = vrot.lane.b32.xlu0 %v2295, 64
        %v2319 = vpop.permute.xlu0 %2318
        %2320 = vrot.lane.b32.xlu0 %v2297, 64
        %v2321 = vpop.permute.xlu0 %2320
        %2322 = vrot.lane.b32.xlu0 %v2299, 64
        %v2323 = vpop.permute.xlu0 %2322
        %2324 = vrot.lane.b32.xlu0 %v2301, 64
        %v2325 = vpop.permute.xlu0 %2324
        %2326 = vrot.lane.b32.xlu0 %v2303, 64
        %v2327 = vpop.permute.xlu0 %2326
        %v2328 = vsel %vm498, %v2305, %v2307
        %v2329 = vsel %vm498, %v2307, %v2309
        %v2330 = vsel %vm498, %v2309, %v2311
        %v2331 = vsel %vm498, %v2313, %v2315
        %v2332 = vsel %vm498, %v2315, %v2317
        %v2333 = vsel %vm498, %v2317, %v2319
        %v2334 = vsel %vm498, %v2321, %v2323
        %v2335 = vsel %vm498, %v2323, %v2325
        %v2336 = vsel %vm498, %v2325, %v2327
        %v2352 = vadd.f32 %v2229, %v2305
        %v2353 = vadd.f32 %v2230, %v2328
        %v2354 = vadd.f32 %v2231, %v2329
        %v2355 = vadd.f32 %v2232, %v2330
        %v2356 = vadd.f32 %v2233, %v2311
        %v2357 = vadd.f32 %v2234, %v2313
        %v2358 = vadd.f32 %v2235, %v2331
        %v2359 = vadd.f32 %v2236, %v2332
        %v2360 = vadd.f32 %v2237, %v2333
        %v2361 = vadd.f32 %v2238, %v2319
        %v2362 = vadd.f32 %v2239, %v2321
        %v2363 = vadd.f32 %v2240, %v2334
        %v2364 = vadd.f32 %v2241, %v2335
        %v2365 = vadd.f32 %v2242, %v2336
        %v2366 = vadd.f32 %v2243, %v2327
        %v2367 = vld [vmem:[#allocation2 + $0x8] sm:$0xc0]
        %v2368 = vld [vmem:[#allocation2 + $0x10] sm:$0xc0]
        %v2369 = vld [vmem:[#allocation2 + $0x18] sm:$0xc0]
        %v2370 = vld [vmem:[#allocation2 + $0x20] sm:$0xc0]
        %v2371 = vld [vmem:[#allocation2 + $0x28] sm:$0xc0]
        %v2372 = vld [vmem:[#allocation2 + $0x38] sm:$0xff]
        %v2373 = vld [vmem:[#allocation2 + $0x40] sm:$0xff]
        %v2374 = vld [vmem:[#allocation2 + $0x48] sm:$0xff]
        %v2375 = vld [vmem:[#allocation2 + $0x50] sm:$0xff]
        %v2376 = vld [vmem:[#allocation2 + $0x58] sm:$0xff]
        %v2377 = vld [vmem:[#allocation2 + $0x68] sm:$0xff]
        %v2378 = vld [vmem:[#allocation2 + $0x70] sm:$0xff]
        %v2379 = vld [vmem:[#allocation2 + $0x78] sm:$0xff]
        %v2380 = vld [vmem:[#allocation2 + $0x80] sm:$0xff]
        %v2381 = vld [vmem:[#allocation2 + $0x88] sm:$0xff]
        %v2382 = vld [vmem:[#allocation2 + $0x98] sm:$0x3]
        %v2383 = vld [vmem:[#allocation2 + $0xa0] sm:$0x3]
        %v2384 = vld [vmem:[#allocation2 + $0xa8] sm:$0x3]
        %v2385 = vld [vmem:[#allocation2 + $0xb0] sm:$0x3]
        %v2386 = vld [vmem:[#allocation2 + $0xb8] sm:$0x3]
        %v2387 = vld [vmem:[%s1 + $0x20] sm:$0x80]
        %v2388 = vld [vmem:[%s1 + $0x28] sm:$0x80]
        %v2389 = vld [vmem:[%s1 + $0x30] sm:$0x80]
        %v2390 = vld [vmem:[%s1 + $0x38] sm:$0x80]
        %v2391 = vld [vmem:[%s1 + $0x40] sm:$0xf]
        %v2392 = vld [vmem:[%s1 + $0x48] sm:$0xf]
        %v2393 = vld [vmem:[%s1 + $0x50] sm:$0xf]
        %v2394 = vld [vmem:[%s1 + $0x58] sm:$0xf]
        %v2395 = vlaneseq
        %v2396 = vshrl.u32 %v2395, 7
        %v2397 = vsub.s32 7, %v2396
        %v2398 = vrot.slane %v2387, %v2397
        %v2399 = vlaneseq
        %v2400 = vshrl.u32 %v2399, 7
        %v2401 = vsub.s32 7, %v2400
        %v2402 = vrot.slane %v2388, %v2401
        %v2403 = vlaneseq
        %v2404 = vshrl.u32 %v2403, 7
        %v2405 = vsub.s32 7, %v2404
        %v2406 = vrot.slane %v2389, %v2405
        %v2407 = vlaneseq
        %v2408 = vshrl.u32 %v2407, 7
        %v2409 = vsub.s32 7, %v2408
        %v2410 = vrot.slane %v2390, %v2409
        %2415 = vrot.lane.b32.xlu0 %v2398, 32
        %v2416 = vpop.permute.xlu0 %2415
        %2417 = vrot.lane.b32.xlu0 %v2402, 32
        %v2418 = vpop.permute.xlu0 %2417
        %2419 = vrot.lane.b32.xlu0 %v2406, 32
        %v2420 = vpop.permute.xlu0 %2419
        %2421 = vrot.lane.b32.xlu0 %v2410, 32
        %v2422 = vpop.permute.xlu0 %2421
        %vm2423 = vcmask 261120
        %v2424 = vsel %vm2423, %v2416, %v2418
        %v2425 = vsel %vm2423, %v2418, %v2420
        %v2426 = vsel %vm2423, %v2420, %v2422
        %v2432 = vmul.f32 %v2367, %v2416
        %v2433 = vmul.f32 %v2368, %v2424
        %v2434 = vmul.f32 %v2369, %v2425
        %v2435 = vmul.f32 %v2370, %v2426
        %v2436 = vmul.f32 %v2371, %v2422
        %v2437 = vmul.f32 %v2372, %v2416
        %v2438 = vmul.f32 %v2373, %v2424
        %v2439 = vmul.f32 %v2374, %v2425
        %v2440 = vmul.f32 %v2375, %v2426
        %v2441 = vmul.f32 %v2376, %v2422
        %v2442 = vmul.f32 %v2377, %v2416
        %v2443 = vmul.f32 %v2378, %v2424
        %v2444 = vmul.f32 %v2379, %v2425
        %v2445 = vmul.f32 %v2380, %v2426
        %v2446 = vmul.f32 %v2381, %v2422
        %2462 = vrot.lane.b32.xlu0 %v2432, 32
        %v2463 = vpop.permute.xlu0 %2462
        %2464 = vrot.lane.b32.xlu0 %v2433, 32
        %v2465 = vpop.permute.xlu0 %2464
        %2466 = vrot.lane.b32.xlu0 %v2434, 32
        %v2467 = vpop.permute.xlu0 %2466
        %2468 = vrot.lane.b32.xlu0 %v2435, 32
        %v2469 = vpop.permute.xlu0 %2468
        %2470 = vrot.lane.b32.xlu0 %v2436, 32
        %v2471 = vpop.permute.xlu0 %2470
        %2472 = vrot.lane.b32.xlu0 %v2437, 32
        %v2473 = vpop.permute.xlu0 %2472
        %2474 = vrot.lane.b32.xlu0 %v2438, 32
        %v2475 = vpop.permute.xlu0 %2474
        %2476 = vrot.lane.b32.xlu0 %v2439, 32
        %v2477 = vpop.permute.xlu0 %2476
        %2478 = vrot.lane.b32.xlu0 %v2440, 32
        %v2479 = vpop.permute.xlu0 %2478
        %2480 = vrot.lane.b32.xlu0 %v2441, 32
        %v2481 = vpop.permute.xlu0 %2480
        %2482 = vrot.lane.b32.xlu0 %v2442, 32
        %v2483 = vpop.permute.xlu0 %2482
        %2484 = vrot.lane.b32.xlu0 %v2443, 32
        %v2485 = vpop.permute.xlu0 %2484
        %2486 = vrot.lane.b32.xlu0 %v2444, 32
        %v2487 = vpop.permute.xlu0 %2486
        %2488 = vrot.lane.b32.xlu0 %v2445, 32
        %v2489 = vpop.permute.xlu0 %2488
        %2490 = vrot.lane.b32.xlu0 %v2446, 32
        %v2491 = vpop.permute.xlu0 %2490
        %v2492 = vsel %vm2423, %v2463, %v2465
        %v2493 = vsel %vm2423, %v2465, %v2467
        %v2494 = vsel %vm2423, %v2467, %v2469
        %v2495 = vsel %vm2423, %v2469, %v2471
        %v2496 = vsel %vm2423, %v2473, %v2475
        %v2497 = vsel %vm2423, %v2475, %v2477
        %v2498 = vsel %vm2423, %v2477, %v2479
        %v2499 = vsel %vm2423, %v2479, %v2481
        %v2500 = vsel %vm2423, %v2483, %v2485
        %v2501 = vsel %vm2423, %v2485, %v2487
        %v2502 = vsel %vm2423, %v2487, %v2489
        %v2503 = vsel %vm2423, %v2489, %v2491
        %v2519 = vadd.f32 %v2352, %v2463
        %v2520 = vadd.f32 %v2353, %v2492
        %v2521 = vadd.f32 %v2354, %v2493
        %v2522 = vadd.f32 %v2355, %v2494
        %v2523 = vadd.f32 %v2356, %v2495
        %v2524 = vadd.f32 %v2357, %v2473
        %v2525 = vadd.f32 %v2358, %v2496
        %v2526 = vadd.f32 %v2359, %v2497
        %v2527 = vadd.f32 %v2360, %v2498
        %v2528 = vadd.f32 %v2361, %v2499
        %v2529 = vadd.f32 %v2362, %v2483
        %v2530 = vadd.f32 %v2363, %v2500
        %v2531 = vadd.f32 %v2364, %v2501
        %v2532 = vadd.f32 %v2365, %v2502
        %v2533 = vadd.f32 %v2366, %v2503
        %v2534 = vlaneseq
        %v2535 = vshrl.u32 %v2534, 7
        %v2536 = vsub.s32 0, %v2535
        %v2537 = vrot.slane %v2391, %v2536
        %v2538 = vlaneseq
        %v2539 = vshrl.u32 %v2538, 7
        %v2540 = vsub.s32 0, %v2539
        %v2541 = vrot.slane %v2392, %v2540
        %v2542 = vlaneseq
        %v2543 = vshrl.u32 %v2542, 7
        %v2544 = vsub.s32 0, %v2543
        %v2545 = vrot.slane %v2393, %v2544
        %v2546 = vlaneseq
        %v2547 = vshrl.u32 %v2546, 7
        %v2548 = vsub.s32 0, %v2547
        %v2549 = vrot.slane %v2394, %v2548
        %2554 = vrot.lane.b32.xlu0 %v2537, 32
        %v2555 = vpop.permute.xlu0 %2554
        %2556 = vrot.lane.b32.xlu0 %v2541, 32
        %v2557 = vpop.permute.xlu0 %2556
        %2558 = vrot.lane.b32.xlu0 %v2545, 32
        %v2559 = vpop.permute.xlu0 %2558
        %2560 = vrot.lane.b32.xlu0 %v2549, 32
        %v2561 = vpop.permute.xlu0 %2560
        %v2562 = vsel %vm2423, %v2555, %v2557
        %v2563 = vsel %vm2423, %v2557, %v2559
        %v2564 = vsel %vm2423, %v2559, %v2561
        %v2570 = vmul.f32 %v2367, %v2555
        %v2571 = vmul.f32 %v2368, %v2562
        %v2572 = vmul.f32 %v2369, %v2563
        %v2573 = vmul.f32 %v2370, %v2564
        %v2574 = vmul.f32 %v2371, %v2561
        %v2575 = vmul.f32 %v2372, %v2555
        %v2576 = vmul.f32 %v2373, %v2562
        %v2577 = vmul.f32 %v2374, %v2563
        %v2578 = vmul.f32 %v2375, %v2564
        %v2579 = vmul.f32 %v2376, %v2561
        %v2580 = vmul.f32 %v2377, %v2555
        %v2581 = vmul.f32 %v2378, %v2562
        %v2582 = vmul.f32 %v2379, %v2563
        %v2583 = vmul.f32 %v2380, %v2564
        %v2584 = vmul.f32 %v2381, %v2561
        %v2600 = vrot.slane %v2570, 1
        %v2601 = vrot.slane %v2575, 1
        %v2602 = vsel %vm603, %v2600, %v2601
        %v2603 = vrot.slane %v2571, 1
        %v2604 = vrot.slane %v2576, 1
        %v2605 = vsel %vm603, %v2603, %v2604
        %v2606 = vrot.slane %v2572, 1
        %v2607 = vrot.slane %v2577, 1
        %v2608 = vsel %vm603, %v2606, %v2607
        %v2609 = vrot.slane %v2573, 1
        %v2610 = vrot.slane %v2578, 1
        %v2611 = vsel %vm603, %v2609, %v2610
        %v2612 = vrot.slane %v2574, 1
        %v2613 = vrot.slane %v2579, 1
        %v2614 = vsel %vm603, %v2612, %v2613
        %v2615 = vrot.slane %v2580, 1
        %v2616 = vsel %vm603, %v2601, %v2615
        %v2617 = vrot.slane %v2581, 1
        %v2618 = vsel %vm603, %v2604, %v2617
        %v2619 = vrot.slane %v2582, 1
        %v2620 = vsel %vm603, %v2607, %v2619
        %v2621 = vrot.slane %v2583, 1
        %v2622 = vsel %vm603, %v2610, %v2621
        %v2623 = vrot.slane %v2584, 1
        %v2624 = vsel %vm603, %v2613, %v2623
        %2625 = vrot.lane.b32.xlu0 %v2602, 32
        %v2626 = vpop.permute.xlu0 %2625
        %2627 = vrot.lane.b32.xlu0 %v2605, 32
        %v2628 = vpop.permute.xlu0 %2627
        %2629 = vrot.lane.b32.xlu0 %v2608, 32
        %v2630 = vpop.permute.xlu0 %2629
        %2631 = vrot.lane.b32.xlu0 %v2611, 32
        %v2632 = vpop.permute.xlu0 %2631
        %2633 = vrot.lane.b32.xlu0 %v2614, 32
        %v2634 = vpop.permute.xlu0 %2633
        %2635 = vrot.lane.b32.xlu0 %v2616, 32
        %v2636 = vpop.permute.xlu0 %2635
        %2637 = vrot.lane.b32.xlu0 %v2618, 32
        %v2638 = vpop.permute.xlu0 %2637
        %2639 = vrot.lane.b32.xlu0 %v2620, 32
        %v2640 = vpop.permute.xlu0 %2639
        %2641 = vrot.lane.b32.xlu0 %v2622, 32
        %v2642 = vpop.permute.xlu0 %2641
        %2643 = vrot.lane.b32.xlu0 %v2624, 32
        %v2644 = vpop.permute.xlu0 %2643
        %2645 = vrot.lane.b32.xlu0 %v2615, 32
        %v2646 = vpop.permute.xlu0 %2645
        %2647 = vrot.lane.b32.xlu0 %v2617, 32
        %v2648 = vpop.permute.xlu0 %2647
        %2649 = vrot.lane.b32.xlu0 %v2619, 32
        %v2650 = vpop.permute.xlu0 %2649
        %2651 = vrot.lane.b32.xlu0 %v2621, 32
        %v2652 = vpop.permute.xlu0 %2651
        %2653 = vrot.lane.b32.xlu0 %v2623, 32
        %v2654 = vpop.permute.xlu0 %2653
        %v2655 = vsel %vm2423, %v2626, %v2628
        %v2656 = vsel %vm2423, %v2628, %v2630
        %v2657 = vsel %vm2423, %v2630, %v2632
        %v2658 = vsel %vm2423, %v2632, %v2634
        %v2659 = vsel %vm2423, %v2636, %v2638
        %v2660 = vsel %vm2423, %v2638, %v2640
        %v2661 = vsel %vm2423, %v2640, %v2642
        %v2662 = vsel %vm2423, %v2642, %v2644
        %v2663 = vsel %vm2423, %v2646, %v2648
        %v2664 = vsel %vm2423, %v2648, %v2650
        %v2665 = vsel %vm2423, %v2650, %v2652
        %v2666 = vsel %vm2423, %v2652, %v2654
        %v2682 = vadd.f32 %v2519, %v2626
        %v2683 = vadd.f32 %v2520, %v2655
        %v2684 = vadd.f32 %v2521, %v2656
        %v2685 = vadd.f32 %v2522, %v2657
        %v2686 = vadd.f32 %v2523, %v2658
        %v2687 = vadd.f32 %v2524, %v2636
        %v2688 = vadd.f32 %v2525, %v2659
        %v2689 = vadd.f32 %v2526, %v2660
        %v2690 = vadd.f32 %v2527, %v2661
        %v2691 = vadd.f32 %v2528, %v2662
        %v2692 = vadd.f32 %v2529, %v2646
        %v2693 = vadd.f32 %v2530, %v2663
        %v2694 = vadd.f32 %v2531, %v2664
        %v2695 = vadd.f32 %v2532, %v2665
        %v2696 = vadd.f32 %v2533, %v2666
        %v2697 = vlaneseq
        %v2698 = vshrl.u32 %v2697, 7
        %v2699 = vsub.s32 1, %v2698
        %v2700 = vrot.slane %v2391, %v2699
        %v2701 = vlaneseq
        %v2702 = vshrl.u32 %v2701, 7
        %v2703 = vsub.s32 1, %v2702
        %v2704 = vrot.slane %v2392, %v2703
        %v2705 = vlaneseq
        %v2706 = vshrl.u32 %v2705, 7
        %v2707 = vsub.s32 1, %v2706
        %v2708 = vrot.slane %v2393, %v2707
        %v2709 = vlaneseq
        %v2710 = vshrl.u32 %v2709, 7
        %v2711 = vsub.s32 1, %v2710
        %v2712 = vrot.slane %v2394, %v2711
        %2717 = vrot.lane.b32.xlu0 %v2700, 32
        %v2718 = vpop.permute.xlu0 %2717
        %2719 = vrot.lane.b32.xlu0 %v2704, 32
        %v2720 = vpop.permute.xlu0 %2719
        %2721 = vrot.lane.b32.xlu0 %v2708, 32
        %v2722 = vpop.permute.xlu0 %2721
        %2723 = vrot.lane.b32.xlu0 %v2712, 32
        %v2724 = vpop.permute.xlu0 %2723
        %v2725 = vsel %vm2423, %v2718, %v2720
        %v2726 = vsel %vm2423, %v2720, %v2722
        %v2727 = vsel %vm2423, %v2722, %v2724
        %v2733 = vmul.f32 %v2372, %v2718
        %v2734 = vmul.f32 %v2373, %v2725
        %v2735 = vmul.f32 %v2374, %v2726
        %v2736 = vmul.f32 %v2375, %v2727
        %v2737 = vmul.f32 %v2376, %v2724
        %v2738 = vmul.f32 %v2377, %v2718
        %v2739 = vmul.f32 %v2378, %v2725
        %v2740 = vmul.f32 %v2379, %v2726
        %v2741 = vmul.f32 %v2380, %v2727
        %v2742 = vmul.f32 %v2381, %v2724
        %v2753 = vrot.slane %v2733, 2
        %v2754 = vrot.slane %v2734, 2
        %v2755 = vrot.slane %v2735, 2
        %v2756 = vrot.slane %v2736, 2
        %v2757 = vrot.slane %v2737, 2
        %v2758 = vrot.slane %v2738, 2
        %v2759 = vsel %vm715, %v2753, %v2758
        %v2760 = vrot.slane %v2739, 2
        %v2761 = vsel %vm715, %v2754, %v2760
        %v2762 = vrot.slane %v2740, 2
        %v2763 = vsel %vm715, %v2755, %v2762
        %v2764 = vrot.slane %v2741, 2
        %v2765 = vsel %vm715, %v2756, %v2764
        %v2766 = vrot.slane %v2742, 2
        %v2767 = vsel %vm715, %v2757, %v2766
        %2768 = vrot.lane.b32.xlu0 %v2753, 32
        %v2769 = vpop.permute.xlu0 %2768
        %2770 = vrot.lane.b32.xlu0 %v2754, 32
        %v2771 = vpop.permute.xlu0 %2770
        %2772 = vrot.lane.b32.xlu0 %v2755, 32
        %v2773 = vpop.permute.xlu0 %2772
        %2774 = vrot.lane.b32.xlu0 %v2756, 32
        %v2775 = vpop.permute.xlu0 %2774
        %2776 = vrot.lane.b32.xlu0 %v2757, 32
        %v2777 = vpop.permute.xlu0 %2776
        %2778 = vrot.lane.b32.xlu0 %v2759, 32
        %v2779 = vpop.permute.xlu0 %2778
        %2780 = vrot.lane.b32.xlu0 %v2761, 32
        %v2781 = vpop.permute.xlu0 %2780
        %2782 = vrot.lane.b32.xlu0 %v2763, 32
        %v2783 = vpop.permute.xlu0 %2782
        %2784 = vrot.lane.b32.xlu0 %v2765, 32
        %v2785 = vpop.permute.xlu0 %2784
        %2786 = vrot.lane.b32.xlu0 %v2767, 32
        %v2787 = vpop.permute.xlu0 %2786
        %2788 = vrot.lane.b32.xlu0 %v2758, 32
        %v2789 = vpop.permute.xlu0 %2788
        %2790 = vrot.lane.b32.xlu0 %v2760, 32
        %v2791 = vpop.permute.xlu0 %2790
        %2792 = vrot.lane.b32.xlu0 %v2762, 32
        %v2793 = vpop.permute.xlu0 %2792
        %2794 = vrot.lane.b32.xlu0 %v2764, 32
        %v2795 = vpop.permute.xlu0 %2794
        %2796 = vrot.lane.b32.xlu0 %v2766, 32
        %v2797 = vpop.permute.xlu0 %2796
        %v2798 = vsel %vm2423, %v2769, %v2771
        %v2799 = vsel %vm2423, %v2771, %v2773
        %v2800 = vsel %vm2423, %v2773, %v2775
        %v2801 = vsel %vm2423, %v2775, %v2777
        %v2802 = vsel %vm2423, %v2779, %v2781
        %v2803 = vsel %vm2423, %v2781, %v2783
        %v2804 = vsel %vm2423, %v2783, %v2785
        %v2805 = vsel %vm2423, %v2785, %v2787
        %v2806 = vsel %vm2423, %v2789, %v2791
        %v2807 = vsel %vm2423, %v2791, %v2793
        %v2808 = vsel %vm2423, %v2793, %v2795
        %v2809 = vsel %vm2423, %v2795, %v2797
        %v2825 = vadd.f32 %v2682, %v2769
        %v2826 = vadd.f32 %v2683, %v2798
        %v2827 = vadd.f32 %v2684, %v2799
        %v2828 = vadd.f32 %v2685, %v2800
        %v2829 = vadd.f32 %v2686, %v2801
        %v2830 = vadd.f32 %v2687, %v2779
        %v2831 = vadd.f32 %v2688, %v2802
        %v2832 = vadd.f32 %v2689, %v2803
        %v2833 = vadd.f32 %v2690, %v2804
        %v2834 = vadd.f32 %v2691, %v2805
        %v2835 = vadd.f32 %v2692, %v2789
        %v2836 = vadd.f32 %v2693, %v2806
        %v2837 = vadd.f32 %v2694, %v2807
        %v2838 = vadd.f32 %v2695, %v2808
        %v2839 = vadd.f32 %v2696, %v2809
        %v2840 = vlaneseq
        %v2841 = vshrl.u32 %v2840, 7
        %v2842 = vsub.s32 2, %v2841
        %v2843 = vrot.slane %v2391, %v2842
        %v2844 = vlaneseq
        %v2845 = vshrl.u32 %v2844, 7
        %v2846 = vsub.s32 2, %v2845
        %v2847 = vrot.slane %v2392, %v2846
        %v2848 = vlaneseq
        %v2849 = vshrl.u32 %v2848, 7
        %v2850 = vsub.s32 2, %v2849
        %v2851 = vrot.slane %v2393, %v2850
        %v2852 = vlaneseq
        %v2853 = vshrl.u32 %v2852, 7
        %v2854 = vsub.s32 2, %v2853
        %v2855 = vrot.slane %v2394, %v2854
        %2860 = vrot.lane.b32.xlu0 %v2843, 32
        %v2861 = vpop.permute.xlu0 %2860
        %2862 = vrot.lane.b32.xlu0 %v2847, 32
        %v2863 = vpop.permute.xlu0 %2862
        %2864 = vrot.lane.b32.xlu0 %v2851, 32
        %v2865 = vpop.permute.xlu0 %2864
        %2866 = vrot.lane.b32.xlu0 %v2855, 32
        %v2867 = vpop.permute.xlu0 %2866
        %v2868 = vsel %vm2423, %v2861, %v2863
        %v2869 = vsel %vm2423, %v2863, %v2865
        %v2870 = vsel %vm2423, %v2865, %v2867
        %v2876 = vmul.f32 %v2372, %v2861
        %v2877 = vmul.f32 %v2373, %v2868
        %v2878 = vmul.f32 %v2374, %v2869
        %v2879 = vmul.f32 %v2375, %v2870
        %v2880 = vmul.f32 %v2376, %v2867
        %v2881 = vmul.f32 %v2377, %v2861
        %v2882 = vmul.f32 %v2378, %v2868
        %v2883 = vmul.f32 %v2379, %v2869
        %v2884 = vmul.f32 %v2380, %v2870
        %v2885 = vmul.f32 %v2381, %v2867
        %v2886 = vmul.f32 %v2382, %v2861
        %v2887 = vmul.f32 %v2383, %v2868
        %v2888 = vmul.f32 %v2384, %v2869
        %v2889 = vmul.f32 %v2385, %v2870
        %v2890 = vmul.f32 %v2386, %v2867
        %v2906 = vrot.slane %v2876, 3
        %v2907 = vrot.slane %v2877, 3
        %v2908 = vrot.slane %v2878, 3
        %v2909 = vrot.slane %v2879, 3
        %v2910 = vrot.slane %v2880, 3
        %v2911 = vrot.slane %v2881, 3
        %v2912 = vsel %vm827, %v2906, %v2911
        %v2913 = vrot.slane %v2882, 3
        %v2914 = vsel %vm827, %v2907, %v2913
        %v2915 = vrot.slane %v2883, 3
        %v2916 = vsel %vm827, %v2908, %v2915
        %v2917 = vrot.slane %v2884, 3
        %v2918 = vsel %vm827, %v2909, %v2917
        %v2919 = vrot.slane %v2885, 3
        %v2920 = vsel %vm827, %v2910, %v2919
        %v2921 = vrot.slane %v2886, 3
        %v2922 = vsel %vm827, %v2911, %v2921
        %v2923 = vrot.slane %v2887, 3
        %v2924 = vsel %vm827, %v2913, %v2923
        %v2925 = vrot.slane %v2888, 3
        %v2926 = vsel %vm827, %v2915, %v2925
        %v2927 = vrot.slane %v2889, 3
        %v2928 = vsel %vm827, %v2917, %v2927
        %v2929 = vrot.slane %v2890, 3
        %v2930 = vsel %vm827, %v2919, %v2929
        %2931 = vrot.lane.b32.xlu0 %v2906, 32
        %v2932 = vpop.permute.xlu0 %2931
        %2933 = vrot.lane.b32.xlu0 %v2907, 32
        %v2934 = vpop.permute.xlu0 %2933
        %2935 = vrot.lane.b32.xlu0 %v2908, 32
        %v2936 = vpop.permute.xlu0 %2935
        %2937 = vrot.lane.b32.xlu0 %v2909, 32
        %v2938 = vpop.permute.xlu0 %2937
        %2939 = vrot.lane.b32.xlu0 %v2910, 32
        %v2940 = vpop.permute.xlu0 %2939
        %2941 = vrot.lane.b32.xlu0 %v2912, 32
        %v2942 = vpop.permute.xlu0 %2941
        %2943 = vrot.lane.b32.xlu0 %v2914, 32
        %v2944 = vpop.permute.xlu0 %2943
        %2945 = vrot.lane.b32.xlu0 %v2916, 32
        %v2946 = vpop.permute.xlu0 %2945
        %2947 = vrot.lane.b32.xlu0 %v2918, 32
        %v2948 = vpop.permute.xlu0 %2947
        %2949 = vrot.lane.b32.xlu0 %v2920, 32
        %v2950 = vpop.permute.xlu0 %2949
        %2951 = vrot.lane.b32.xlu0 %v2922, 32
        %v2952 = vpop.permute.xlu0 %2951
        %2953 = vrot.lane.b32.xlu0 %v2924, 32
        %v2954 = vpop.permute.xlu0 %2953
        %2955 = vrot.lane.b32.xlu0 %v2926, 32
        %v2956 = vpop.permute.xlu0 %2955
        %2957 = vrot.lane.b32.xlu0 %v2928, 32
        %v2958 = vpop.permute.xlu0 %2957
        %2959 = vrot.lane.b32.xlu0 %v2930, 32
        %v2960 = vpop.permute.xlu0 %2959
        %v2961 = vsel %vm2423, %v2932, %v2934
        %v2962 = vsel %vm2423, %v2934, %v2936
        %v2963 = vsel %vm2423, %v2936, %v2938
        %v2964 = vsel %vm2423, %v2938, %v2940
        %v2965 = vsel %vm2423, %v2942, %v2944
        %v2966 = vsel %vm2423, %v2944, %v2946
        %v2967 = vsel %vm2423, %v2946, %v2948
        %v2968 = vsel %vm2423, %v2948, %v2950
        %v2969 = vsel %vm2423, %v2952, %v2954
        %v2970 = vsel %vm2423, %v2954, %v2956
        %v2971 = vsel %vm2423, %v2956, %v2958
        %v2972 = vsel %vm2423, %v2958, %v2960
        %v2988 = vadd.f32 %v2825, %v2932
        %v2989 = vadd.f32 %v2826, %v2961
        %v2990 = vadd.f32 %v2827, %v2962
        %v2991 = vadd.f32 %v2828, %v2963
        %v2992 = vadd.f32 %v2829, %v2964
        %v2993 = vadd.f32 %v2830, %v2942
        %v2994 = vadd.f32 %v2831, %v2965
        %v2995 = vadd.f32 %v2832, %v2966
        %v2996 = vadd.f32 %v2833, %v2967
        %v2997 = vadd.f32 %v2834, %v2968
        %v2998 = vadd.f32 %v2835, %v2952
        %v2999 = vadd.f32 %v2836, %v2969
        %v3000 = vadd.f32 %v2837, %v2970
        %v3001 = vadd.f32 %v2838, %v2971
        %v3002 = vadd.f32 %v2839, %v2972
        %v3003 = vlaneseq
        %v3004 = vshrl.u32 %v3003, 7
        %v3005 = vsub.s32 3, %v3004
        %v3006 = vrot.slane %v2391, %v3005
        %v3007 = vlaneseq
        %v3008 = vshrl.u32 %v3007, 7
        %v3009 = vsub.s32 3, %v3008
        %v3010 = vrot.slane %v2392, %v3009
        %v3011 = vlaneseq
        %v3012 = vshrl.u32 %v3011, 7
        %v3013 = vsub.s32 3, %v3012
        %v3014 = vrot.slane %v2393, %v3013
        %v3015 = vlaneseq
        %v3016 = vshrl.u32 %v3015, 7
        %v3017 = vsub.s32 3, %v3016
        %v3018 = vrot.slane %v2394, %v3017
        %3023 = vrot.lane.b32.xlu0 %v3006, 32
        %v3024 = vpop.permute.xlu0 %3023
        %3025 = vrot.lane.b32.xlu0 %v3010, 32
        %v3026 = vpop.permute.xlu0 %3025
        %3027 = vrot.lane.b32.xlu0 %v3014, 32
        %v3028 = vpop.permute.xlu0 %3027
        %3029 = vrot.lane.b32.xlu0 %v3018, 32
        %v3030 = vpop.permute.xlu0 %3029
        %v3031 = vsel %vm2423, %v3024, %v3026
        %v3032 = vsel %vm2423, %v3026, %v3028
        %v3033 = vsel %vm2423, %v3028, %v3030
        %v3039 = vmul.f32 %v2372, %v3024
        %v3040 = vmul.f32 %v2373, %v3031
        %v3041 = vmul.f32 %v2374, %v3032
        %v3042 = vmul.f32 %v2375, %v3033
        %v3043 = vmul.f32 %v2376, %v3030
        %v3044 = vmul.f32 %v2377, %v3024
        %v3045 = vmul.f32 %v2378, %v3031
        %v3046 = vmul.f32 %v2379, %v3032
        %v3047 = vmul.f32 %v2380, %v3033
        %v3048 = vmul.f32 %v2381, %v3030
        %v3049 = vmul.f32 %v2382, %v3024
        %v3050 = vmul.f32 %v2383, %v3031
        %v3051 = vmul.f32 %v2384, %v3032
        %v3052 = vmul.f32 %v2385, %v3033
        %v3053 = vmul.f32 %v2386, %v3030
        %v3069 = vrot.slane %v3039, 4
        %v3070 = vrot.slane %v3040, 4
        %v3071 = vrot.slane %v3041, 4
        %v3072 = vrot.slane %v3042, 4
        %v3073 = vrot.slane %v3043, 4
        %v3074 = vrot.slane %v3044, 4
        %v3075 = vsel %vm949, %v3069, %v3074
        %v3076 = vrot.slane %v3045, 4
        %v3077 = vsel %vm949, %v3070, %v3076
        %v3078 = vrot.slane %v3046, 4
        %v3079 = vsel %vm949, %v3071, %v3078
        %v3080 = vrot.slane %v3047, 4
        %v3081 = vsel %vm949, %v3072, %v3080
        %v3082 = vrot.slane %v3048, 4
        %v3083 = vsel %vm949, %v3073, %v3082
        %v3084 = vrot.slane %v3049, 4
        %v3085 = vsel %vm949, %v3074, %v3084
        %v3086 = vrot.slane %v3050, 4
        %v3087 = vsel %vm949, %v3076, %v3086
        %v3088 = vrot.slane %v3051, 4
        %v3089 = vsel %vm949, %v3078, %v3088
        %v3090 = vrot.slane %v3052, 4
        %v3091 = vsel %vm949, %v3080, %v3090
        %v3092 = vrot.slane %v3053, 4
        %v3093 = vsel %vm949, %v3082, %v3092
        %3094 = vrot.lane.b32.xlu0 %v3069, 32
        %v3095 = vpop.permute.xlu0 %3094
        %3096 = vrot.lane.b32.xlu0 %v3070, 32
        %v3097 = vpop.permute.xlu0 %3096
        %3098 = vrot.lane.b32.xlu0 %v3071, 32
        %v3099 = vpop.permute.xlu0 %3098
        %3100 = vrot.lane.b32.xlu0 %v3072, 32
        %v3101 = vpop.permute.xlu0 %3100
        %3102 = vrot.lane.b32.xlu0 %v3073, 32
        %v3103 = vpop.permute.xlu0 %3102
        %3104 = vrot.lane.b32.xlu0 %v3075, 32
        %v3105 = vpop.permute.xlu0 %3104
        %3106 = vrot.lane.b32.xlu0 %v3077, 32
        %v3107 = vpop.permute.xlu0 %3106
        %3108 = vrot.lane.b32.xlu0 %v3079, 32
        %v3109 = vpop.permute.xlu0 %3108
        %3110 = vrot.lane.b32.xlu0 %v3081, 32
        %v3111 = vpop.permute.xlu0 %3110
        %3112 = vrot.lane.b32.xlu0 %v3083, 32
        %v3113 = vpop.permute.xlu0 %3112
        %3114 = vrot.lane.b32.xlu0 %v3085, 32
        %v3115 = vpop.permute.xlu0 %3114
        %3116 = vrot.lane.b32.xlu0 %v3087, 32
        %v3117 = vpop.permute.xlu0 %3116
        %3118 = vrot.lane.b32.xlu0 %v3089, 32
        %v3119 = vpop.permute.xlu0 %3118
        %3120 = vrot.lane.b32.xlu0 %v3091, 32
        %v3121 = vpop.permute.xlu0 %3120
        %3122 = vrot.lane.b32.xlu0 %v3093, 32
        %v3123 = vpop.permute.xlu0 %3122
        %v3124 = vsel %vm2423, %v3095, %v3097
        %v3125 = vsel %vm2423, %v3097, %v3099
        %v3126 = vsel %vm2423, %v3099, %v3101
        %v3127 = vsel %vm2423, %v3101, %v3103
        %v3128 = vsel %vm2423, %v3105, %v3107
        %v3129 = vsel %vm2423, %v3107, %v3109
        %v3130 = vsel %vm2423, %v3109, %v3111
        %v3131 = vsel %vm2423, %v3111, %v3113
        %v3132 = vsel %vm2423, %v3115, %v3117
        %v3133 = vsel %vm2423, %v3117, %v3119
        %v3134 = vsel %vm2423, %v3119, %v3121
        %v3135 = vsel %vm2423, %v3121, %v3123
        %v3151 = vadd.f32 %v2988, %v3095
        %v3152 = vadd.f32 %v2989, %v3124
        %v3153 = vadd.f32 %v2990, %v3125
        %v3154 = vadd.f32 %v2991, %v3126
        %v3155 = vadd.f32 %v2992, %v3127
        %v3156 = vadd.f32 %v2993, %v3105
        %v3157 = vadd.f32 %v2994, %v3128
        %v3158 = vadd.f32 %v2995, %v3129
        %v3159 = vadd.f32 %v2996, %v3130
        %v3160 = vadd.f32 %v2997, %v3131
        %v3161 = vadd.f32 %v2998, %v3115
        %v3162 = vadd.f32 %v2999, %v3132
        %v3163 = vadd.f32 %v3000, %v3133
        %v3164 = vadd.f32 %v3001, %v3134
        %v3165 = vadd.f32 %v3002, %v3135
        %v3166 = vld [vmem:[%s1 + $0x40] sm:$0xf0]
        %v3167 = vld [vmem:[%s1 + $0x48] sm:$0xf0]
        %v3168 = vld [vmem:[%s1 + $0x50] sm:$0xf0]
        %v3169 = vld [vmem:[%s1 + $0x58] sm:$0xf0]
        %v3170 = vld [vmem:[%s1 + $0x60] sm:$0x1]
        %v3171 = vld [vmem:[%s1 + $0x68] sm:$0x1]
        %v3172 = vld [vmem:[%s1 + $0x70] sm:$0x1]
        %v3173 = vld [vmem:[%s1 + $0x78] sm:$0x1]
        %v3174 = vlaneseq
        %v3175 = vshrl.u32 %v3174, 7
        %v3176 = vsub.s32 4, %v3175
        %v3177 = vrot.slane %v3166, %v3176
        %v3178 = vlaneseq
        %v3179 = vshrl.u32 %v3178, 7
        %v3180 = vsub.s32 4, %v3179
        %v3181 = vrot.slane %v3167, %v3180
        %v3182 = vlaneseq
        %v3183 = vshrl.u32 %v3182, 7
        %v3184 = vsub.s32 4, %v3183
        %v3185 = vrot.slane %v3168, %v3184
        %v3186 = vlaneseq
        %v3187 = vshrl.u32 %v3186, 7
        %v3188 = vsub.s32 4, %v3187
        %v3189 = vrot.slane %v3169, %v3188
        %3194 = vrot.lane.b32.xlu0 %v3177, 64
        %v3195 = vpop.permute.xlu0 %3194
        %3196 = vrot.lane.b32.xlu0 %v3181, 64
        %v3197 = vpop.permute.xlu0 %3196
        %3198 = vrot.lane.b32.xlu0 %v3185, 64
        %v3199 = vpop.permute.xlu0 %3198
        %3200 = vrot.lane.b32.xlu0 %v3189, 64
        %v3201 = vpop.permute.xlu0 %3200
        %v3202 = vsel %vm498, %v3195, %v3197
        %v3203 = vsel %vm498, %v3197, %v3199
        %v3204 = vsel %vm498, %v3199, %v3201
        %v3210 = vmul.f32 %v2367, %v3195
        %v3211 = vmul.f32 %v2368, %v3202
        %v3212 = vmul.f32 %v2369, %v3203
        %v3213 = vmul.f32 %v2370, %v3204
        %v3214 = vmul.f32 %v2371, %v3201
        %v3215 = vmul.f32 %v2372, %v3195
        %v3216 = vmul.f32 %v2373, %v3202
        %v3217 = vmul.f32 %v2374, %v3203
        %v3218 = vmul.f32 %v2375, %v3204
        %v3219 = vmul.f32 %v2376, %v3201
        %v3220 = vmul.f32 %v2377, %v3195
        %v3221 = vmul.f32 %v2378, %v3202
        %v3222 = vmul.f32 %v2379, %v3203
        %v3223 = vmul.f32 %v2380, %v3204
        %v3224 = vmul.f32 %v2381, %v3201
        %v3225 = vadd.f32 %v3151, %v3210
        %v3226 = vadd.f32 %v3152, %v3211
        %v3227 = vadd.f32 %v3153, %v3212
        %v3228 = vadd.f32 %v3154, %v3213
        %v3229 = vadd.f32 %v3155, %v3214
        %v3230 = vadd.f32 %v3156, %v3215
        %v3231 = vadd.f32 %v3157, %v3216
        %v3232 = vadd.f32 %v3158, %v3217
        %v3233 = vadd.f32 %v3159, %v3218
        %v3234 = vadd.f32 %v3160, %v3219
        %v3235 = vadd.f32 %v3161, %v3220
        %v3236 = vadd.f32 %v3162, %v3221
        %v3237 = vadd.f32 %v3163, %v3222
        %v3238 = vadd.f32 %v3164, %v3223
        %v3239 = vadd.f32 %v3165, %v3224
        %v3240 = vlaneseq
        %v3241 = vshrl.u32 %v3240, 7
        %v3242 = vsub.s32 5, %v3241
        %v3243 = vrot.slane %v3166, %v3242
        %v3244 = vlaneseq
        %v3245 = vshrl.u32 %v3244, 7
        %v3246 = vsub.s32 5, %v3245
        %v3247 = vrot.slane %v3167, %v3246
        %v3248 = vlaneseq
        %v3249 = vshrl.u32 %v3248, 7
        %v3250 = vsub.s32 5, %v3249
        %v3251 = vrot.slane %v3168, %v3250
        %v3252 = vlaneseq
        %v3253 = vshrl.u32 %v3252, 7
        %v3254 = vsub.s32 5, %v3253
        %v3255 = vrot.slane %v3169, %v3254
        %3260 = vrot.lane.b32.xlu0 %v3243, 64
        %v3261 = vpop.permute.xlu0 %3260
        %3262 = vrot.lane.b32.xlu0 %v3247, 64
        %v3263 = vpop.permute.xlu0 %3262
        %3264 = vrot.lane.b32.xlu0 %v3251, 64
        %v3265 = vpop.permute.xlu0 %3264
        %3266 = vrot.lane.b32.xlu0 %v3255, 64
        %v3267 = vpop.permute.xlu0 %3266
        %v3268 = vsel %vm498, %v3261, %v3263
        %v3269 = vsel %vm498, %v3263, %v3265
        %v3270 = vsel %vm498, %v3265, %v3267
        %v3276 = vmul.f32 %v2367, %v3261
        %v3277 = vmul.f32 %v2368, %v3268
        %v3278 = vmul.f32 %v2369, %v3269
        %v3279 = vmul.f32 %v2370, %v3270
        %v3280 = vmul.f32 %v2371, %v3267
        %v3281 = vmul.f32 %v2372, %v3261
        %v3282 = vmul.f32 %v2373, %v3268
        %v3283 = vmul.f32 %v2374, %v3269
        %v3284 = vmul.f32 %v2375, %v3270
        %v3285 = vmul.f32 %v2376, %v3267
        %v3286 = vmul.f32 %v2377, %v3261
        %v3287 = vmul.f32 %v2378, %v3268
        %v3288 = vmul.f32 %v2379, %v3269
        %v3289 = vmul.f32 %v2380, %v3270
        %v3290 = vmul.f32 %v2381, %v3267
        %v3306 = vrot.slane %v3276, 1
        %v3307 = vrot.slane %v3281, 1
        %v3308 = vsel %vm603, %v3306, %v3307
        %v3309 = vrot.slane %v3277, 1
        %v3310 = vrot.slane %v3282, 1
        %v3311 = vsel %vm603, %v3309, %v3310
        %v3312 = vrot.slane %v3278, 1
        %v3313 = vrot.slane %v3283, 1
        %v3314 = vsel %vm603, %v3312, %v3313
        %v3315 = vrot.slane %v3279, 1
        %v3316 = vrot.slane %v3284, 1
        %v3317 = vsel %vm603, %v3315, %v3316
        %v3318 = vrot.slane %v3280, 1
        %v3319 = vrot.slane %v3285, 1
        %v3320 = vsel %vm603, %v3318, %v3319
        %v3321 = vrot.slane %v3286, 1
        %v3322 = vsel %vm603, %v3307, %v3321
        %v3323 = vrot.slane %v3287, 1
        %v3324 = vsel %vm603, %v3310, %v3323
        %v3325 = vrot.slane %v3288, 1
        %v3326 = vsel %vm603, %v3313, %v3325
        %v3327 = vrot.slane %v3289, 1
        %v3328 = vsel %vm603, %v3316, %v3327
        %v3329 = vrot.slane %v3290, 1
        %v3330 = vsel %vm603, %v3319, %v3329
        %v3346 = vadd.f32 %v3225, %v3308
        %v3347 = vadd.f32 %v3226, %v3311
        %v3348 = vadd.f32 %v3227, %v3314
        %v3349 = vadd.f32 %v3228, %v3317
        %v3350 = vadd.f32 %v3229, %v3320
        %v3351 = vadd.f32 %v3230, %v3322
        %v3352 = vadd.f32 %v3231, %v3324
        %v3353 = vadd.f32 %v3232, %v3326
        %v3354 = vadd.f32 %v3233, %v3328
        %v3355 = vadd.f32 %v3234, %v3330
        %v3356 = vadd.f32 %v3235, %v3321
        %v3357 = vadd.f32 %v3236, %v3323
        %v3358 = vadd.f32 %v3237, %v3325
        %v3359 = vadd.f32 %v3238, %v3327
        %v3360 = vadd.f32 %v3239, %v3329
        %v3361 = vlaneseq
        %v3362 = vshrl.u32 %v3361, 7
        %v3363 = vsub.s32 6, %v3362
        %v3364 = vrot.slane %v3166, %v3363
        %v3365 = vlaneseq
        %v3366 = vshrl.u32 %v3365, 7
        %v3367 = vsub.s32 6, %v3366
        %v3368 = vrot.slane %v3167, %v3367
        %v3369 = vlaneseq
        %v3370 = vshrl.u32 %v3369, 7
        %v3371 = vsub.s32 6, %v3370
        %v3372 = vrot.slane %v3168, %v3371
        %v3373 = vlaneseq
        %v3374 = vshrl.u32 %v3373, 7
        %v3375 = vsub.s32 6, %v3374
        %v3376 = vrot.slane %v3169, %v3375
        %3381 = vrot.lane.b32.xlu0 %v3364, 64
        %v3382 = vpop.permute.xlu0 %3381
        %3383 = vrot.lane.b32.xlu0 %v3368, 64
        %v3384 = vpop.permute.xlu0 %3383
        %3385 = vrot.lane.b32.xlu0 %v3372, 64
        %v3386 = vpop.permute.xlu0 %3385
        %3387 = vrot.lane.b32.xlu0 %v3376, 64
        %v3388 = vpop.permute.xlu0 %3387
        %v3389 = vsel %vm498, %v3382, %v3384
        %v3390 = vsel %vm498, %v3384, %v3386
        %v3391 = vsel %vm498, %v3386, %v3388
        %v3397 = vmul.f32 %v2372, %v3382
        %v3398 = vmul.f32 %v2373, %v3389
        %v3399 = vmul.f32 %v2374, %v3390
        %v3400 = vmul.f32 %v2375, %v3391
        %v3401 = vmul.f32 %v2376, %v3388
        %v3402 = vmul.f32 %v2377, %v3382
        %v3403 = vmul.f32 %v2378, %v3389
        %v3404 = vmul.f32 %v2379, %v3390
        %v3405 = vmul.f32 %v2380, %v3391
        %v3406 = vmul.f32 %v2381, %v3388
        %v3417 = vrot.slane %v3397, 2
        %v3418 = vrot.slane %v3398, 2
        %v3419 = vrot.slane %v3399, 2
        %v3420 = vrot.slane %v3400, 2
        %v3421 = vrot.slane %v3401, 2
        %v3422 = vrot.slane %v3402, 2
        %v3423 = vsel %vm715, %v3417, %v3422
        %v3424 = vrot.slane %v3403, 2
        %v3425 = vsel %vm715, %v3418, %v3424
        %v3426 = vrot.slane %v3404, 2
        %v3427 = vsel %vm715, %v3419, %v3426
        %v3428 = vrot.slane %v3405, 2
        %v3429 = vsel %vm715, %v3420, %v3428
        %v3430 = vrot.slane %v3406, 2
        %v3431 = vsel %vm715, %v3421, %v3430
        %v3447 = vadd.f32 %v3346, %v3417
        %v3448 = vadd.f32 %v3347, %v3418
        %v3449 = vadd.f32 %v3348, %v3419
        %v3450 = vadd.f32 %v3349, %v3420
        %v3451 = vadd.f32 %v3350, %v3421
        %v3452 = vadd.f32 %v3351, %v3423
        %v3453 = vadd.f32 %v3352, %v3425
        %v3454 = vadd.f32 %v3353, %v3427
        %v3455 = vadd.f32 %v3354, %v3429
        %v3456 = vadd.f32 %v3355, %v3431
        %v3457 = vadd.f32 %v3356, %v3422
        %v3458 = vadd.f32 %v3357, %v3424
        %v3459 = vadd.f32 %v3358, %v3426
        %v3460 = vadd.f32 %v3359, %v3428
        %v3461 = vadd.f32 %v3360, %v3430
        %v3462 = vlaneseq
        %v3463 = vshrl.u32 %v3462, 7
        %v3464 = vsub.s32 7, %v3463
        %v3465 = vrot.slane %v3166, %v3464
        %v3466 = vlaneseq
        %v3467 = vshrl.u32 %v3466, 7
        %v3468 = vsub.s32 7, %v3467
        %v3469 = vrot.slane %v3167, %v3468
        %v3470 = vlaneseq
        %v3471 = vshrl.u32 %v3470, 7
        %v3472 = vsub.s32 7, %v3471
        %v3473 = vrot.slane %v3168, %v3472
        %v3474 = vlaneseq
        %v3475 = vshrl.u32 %v3474, 7
        %v3476 = vsub.s32 7, %v3475
        %v3477 = vrot.slane %v3169, %v3476
        %3482 = vrot.lane.b32.xlu0 %v3465, 64
        %v3483 = vpop.permute.xlu0 %3482
        %3484 = vrot.lane.b32.xlu0 %v3469, 64
        %v3485 = vpop.permute.xlu0 %3484
        %3486 = vrot.lane.b32.xlu0 %v3473, 64
        %v3487 = vpop.permute.xlu0 %3486
        %3488 = vrot.lane.b32.xlu0 %v3477, 64
        %v3489 = vpop.permute.xlu0 %3488
        %v3490 = vsel %vm498, %v3483, %v3485
        %v3491 = vsel %vm498, %v3485, %v3487
        %v3492 = vsel %vm498, %v3487, %v3489
        %v3498 = vmul.f32 %v2372, %v3483
        %v3499 = vmul.f32 %v2373, %v3490
        %v3500 = vmul.f32 %v2374, %v3491
        %v3501 = vmul.f32 %v2375, %v3492
        %v3502 = vmul.f32 %v2376, %v3489
        %v3503 = vmul.f32 %v2377, %v3483
        %v3504 = vmul.f32 %v2378, %v3490
        %v3505 = vmul.f32 %v2379, %v3491
        %v3506 = vmul.f32 %v2380, %v3492
        %v3507 = vmul.f32 %v2381, %v3489
        %v3508 = vmul.f32 %v2382, %v3483
        %v3509 = vmul.f32 %v2383, %v3490
        %v3510 = vmul.f32 %v2384, %v3491
        %v3511 = vmul.f32 %v2385, %v3492
        %v3512 = vmul.f32 %v2386, %v3489
        %v3528 = vrot.slane %v3498, 3
        %v3529 = vrot.slane %v3499, 3
        %v3530 = vrot.slane %v3500, 3
        %v3531 = vrot.slane %v3501, 3
        %v3532 = vrot.slane %v3502, 3
        %v3533 = vrot.slane %v3503, 3
        %v3534 = vsel %vm827, %v3528, %v3533
        %v3535 = vrot.slane %v3504, 3
        %v3536 = vsel %vm827, %v3529, %v3535
        %v3537 = vrot.slane %v3505, 3
        %v3538 = vsel %vm827, %v3530, %v3537
        %v3539 = vrot.slane %v3506, 3
        %v3540 = vsel %vm827, %v3531, %v3539
        %v3541 = vrot.slane %v3507, 3
        %v3542 = vsel %vm827, %v3532, %v3541
        %v3543 = vrot.slane %v3508, 3
        %v3544 = vsel %vm827, %v3533, %v3543
        %v3545 = vrot.slane %v3509, 3
        %v3546 = vsel %vm827, %v3535, %v3545
        %v3547 = vrot.slane %v3510, 3
        %v3548 = vsel %vm827, %v3537, %v3547
        %v3549 = vrot.slane %v3511, 3
        %v3550 = vsel %vm827, %v3539, %v3549
        %v3551 = vrot.slane %v3512, 3
        %v3552 = vsel %vm827, %v3541, %v3551
        %v3568 = vadd.f32 %v3447, %v3528
        %v3569 = vadd.f32 %v3448, %v3529
        %v3570 = vadd.f32 %v3449, %v3530
        %v3571 = vadd.f32 %v3450, %v3531
        %v3572 = vadd.f32 %v3451, %v3532
        %v3573 = vadd.f32 %v3452, %v3534
        %v3574 = vadd.f32 %v3453, %v3536
        %v3575 = vadd.f32 %v3454, %v3538
        %v3576 = vadd.f32 %v3455, %v3540
        %v3577 = vadd.f32 %v3456, %v3542
        %v3578 = vadd.f32 %v3457, %v3544
        %v3579 = vadd.f32 %v3458, %v3546
        %v3580 = vadd.f32 %v3459, %v3548
        %v3581 = vadd.f32 %v3460, %v3550
        %v3582 = vadd.f32 %v3461, %v3552
        %v3583 = vlaneseq
        %v3584 = vshrl.u32 %v3583, 7
        %v3585 = vsub.s32 0, %v3584
        %v3586 = vrot.slane %v3170, %v3585
        %v3587 = vlaneseq
        %v3588 = vshrl.u32 %v3587, 7
        %v3589 = vsub.s32 0, %v3588
        %v3590 = vrot.slane %v3171, %v3589
        %v3591 = vlaneseq
        %v3592 = vshrl.u32 %v3591, 7
        %v3593 = vsub.s32 0, %v3592
        %v3594 = vrot.slane %v3172, %v3593
        %v3595 = vlaneseq
        %v3596 = vshrl.u32 %v3595, 7
        %v3597 = vsub.s32 0, %v3596
        %v3598 = vrot.slane %v3173, %v3597
        %3603 = vrot.lane.b32.xlu0 %v3586, 64
        %v3604 = vpop.permute.xlu0 %3603
        %3605 = vrot.lane.b32.xlu0 %v3590, 64
        %v3606 = vpop.permute.xlu0 %3605
        %3607 = vrot.lane.b32.xlu0 %v3594, 64
        %v3608 = vpop.permute.xlu0 %3607
        %3609 = vrot.lane.b32.xlu0 %v3598, 64
        %v3610 = vpop.permute.xlu0 %3609
        %v3611 = vsel %vm498, %v3604, %v3606
        %v3612 = vsel %vm498, %v3606, %v3608
        %v3613 = vsel %vm498, %v3608, %v3610
        %v3619 = vmul.f32 %v2372, %v3604
        %v3620 = vmul.f32 %v2373, %v3611
        %v3621 = vmul.f32 %v2374, %v3612
        %v3622 = vmul.f32 %v2375, %v3613
        %v3623 = vmul.f32 %v2376, %v3610
        %v3624 = vmul.f32 %v2377, %v3604
        %v3625 = vmul.f32 %v2378, %v3611
        %v3626 = vmul.f32 %v2379, %v3612
        %v3627 = vmul.f32 %v2380, %v3613
        %v3628 = vmul.f32 %v2381, %v3610
        %v3629 = vmul.f32 %v2382, %v3604
        %v3630 = vmul.f32 %v2383, %v3611
        %v3631 = vmul.f32 %v2384, %v3612
        %v3632 = vmul.f32 %v2385, %v3613
        %v3633 = vmul.f32 %v2386, %v3610
        %v3649 = vrot.slane %v3619, 4
        %v3650 = vrot.slane %v3620, 4
        %v3651 = vrot.slane %v3621, 4
        %v3652 = vrot.slane %v3622, 4
        %v3653 = vrot.slane %v3623, 4
        %v3654 = vrot.slane %v3624, 4
        %v3655 = vsel %vm949, %v3649, %v3654
        %v3656 = vrot.slane %v3625, 4
        %v3657 = vsel %vm949, %v3650, %v3656
        %v3658 = vrot.slane %v3626, 4
        %v3659 = vsel %vm949, %v3651, %v3658
        %v3660 = vrot.slane %v3627, 4
        %v3661 = vsel %vm949, %v3652, %v3660
        %v3662 = vrot.slane %v3628, 4
        %v3663 = vsel %vm949, %v3653, %v3662
        %v3664 = vrot.slane %v3629, 4
        %v3665 = vsel %vm949, %v3654, %v3664
        %v3666 = vrot.slane %v3630, 4
        %v3667 = vsel %vm949, %v3656, %v3666
        %v3668 = vrot.slane %v3631, 4
        %v3669 = vsel %vm949, %v3658, %v3668
        %v3670 = vrot.slane %v3632, 4
        %v3671 = vsel %vm949, %v3660, %v3670
        %v3672 = vrot.slane %v3633, 4
        %v3673 = vsel %vm949, %v3662, %v3672
        %v3689 = vadd.f32 %v3568, %v3649
        %v3690 = vadd.f32 %v3569, %v3650
        %v3691 = vadd.f32 %v3570, %v3651
        %v3692 = vadd.f32 %v3571, %v3652
        %v3693 = vadd.f32 %v3572, %v3653
        %v3694 = vadd.f32 %v3573, %v3655
        %v3695 = vadd.f32 %v3574, %v3657
        %v3696 = vadd.f32 %v3575, %v3659
        %v3697 = vadd.f32 %v3576, %v3661
        %v3698 = vadd.f32 %v3577, %v3663
        %v3699 = vadd.f32 %v3578, %v3665
        %v3700 = vadd.f32 %v3579, %v3667
        %v3701 = vadd.f32 %v3580, %v3669
        %v3702 = vadd.f32 %v3581, %v3671
        %v3703 = vadd.f32 %v3582, %v3673
        %v3704 = vld [vmem:[%s2] sm:$0xf]
        %v3706 = vlaneseq
        %v3707 = vshrl.u32 %v3706, 7
        %v3708 = vsub.s32 0, %v3707
        %v3709 = vrot.slane %v3704, %v3708
        %v3710 = vlaneseq
        %v3711 = vshrl.u32 %v3710, 7
        %v3712 = vsub.s32 1, %v3711
        %v3713 = vrot.slane %v3704, %v3712
        %v3714 = vlaneseq
        %v3715 = vshrl.u32 %v3714, 7
        %v3716 = vsub.s32 2, %v3715
        %v3717 = vrot.slane %v3704, %v3716
        %v3718 = vlaneseq
        %v3719 = vshrl.u32 %v3718, 7
        %v3720 = vsub.s32 3, %v3719
        %v3721 = vrot.slane %v3704, %v3720
        %3722 = vrot.lane.b32.xlu0 %v3709, 64
        %v3723 = vpop.permute.xlu0 %3722
        %3724 = vrot.lane.b32.xlu0 %v3713, 64
        %v3725 = vpop.permute.xlu0 %3724
        %3726 = vrot.lane.b32.xlu0 %v3717, 64
        %v3727 = vpop.permute.xlu0 %3726
        %3728 = vrot.lane.b32.xlu0 %v3721, 64
        %v3729 = vpop.permute.xlu0 %3728
        %v3730 = vsel %vm498, %v3723, %v3725
        %v3731 = vsel %vm498, %v3725, %v3727
        %v3732 = vsel %vm498, %v3727, %v3729
        %v3738 = vadd.f32 %v3689, %v3723
        %v3739 = vadd.f32 %v3690, %v3730
        %v3740 = vadd.f32 %v3691, %v3731
        %v3741 = vadd.f32 %v3692, %v3732
        %v3742 = vadd.f32 %v3693, %v3729
        %v3743 = vadd.f32 %v3694, %v3723
        %v3744 = vadd.f32 %v3695, %v3730
        %v3745 = vadd.f32 %v3696, %v3731
        %v3746 = vadd.f32 %v3697, %v3732
        %v3747 = vadd.f32 %v3698, %v3729
        %v3748 = vadd.f32 %v3699, %v3723
        %v3749 = vadd.f32 %v3700, %v3730
        %v3750 = vadd.f32 %v3701, %v3731
        %v3751 = vadd.f32 %v3702, %v3732
        %v3752 = vadd.f32 %v3703, %v3729
        %vm3768 = vcmask 1041408
        %v3769 = vrot.slane %v3738, 6
        %v3770 = vrot.slane %v3743, 6
        %v3771 = vsel %vm3768, %v3769, %v3770
        %v3772 = vrot.slane %v3739, 6
        %v3773 = vrot.slane %v3744, 6
        %v3774 = vsel %vm3768, %v3772, %v3773
        %v3775 = vrot.slane %v3740, 6
        %v3776 = vrot.slane %v3745, 6
        %v3777 = vsel %vm3768, %v3775, %v3776
        %v3778 = vrot.slane %v3741, 6
        %v3779 = vrot.slane %v3746, 6
        %v3780 = vsel %vm3768, %v3778, %v3779
        %v3781 = vrot.slane %v3742, 6
        %v3782 = vrot.slane %v3747, 6
        %v3783 = vsel %vm3768, %v3781, %v3782
        %v3784 = vrot.slane %v3748, 6
        %v3785 = vsel %vm3768, %v3770, %v3784
        %v3786 = vrot.slane %v3749, 6
        %v3787 = vsel %vm3768, %v3773, %v3786
        %v3788 = vrot.slane %v3750, 6
        %v3789 = vsel %vm3768, %v3776, %v3788
        %v3790 = vrot.slane %v3751, 6
        %v3791 = vsel %vm3768, %v3779, %v3790
        %v3792 = vrot.slane %v3752, 6
        %v3793 = vsel %vm3768, %v3782, %v3792
        %3794 = vrot.lane.b32.xlu0 %v3771, 64
        %v3795 = vpop.permute.xlu0 %3794
        %3796 = vrot.lane.b32.xlu0 %v3774, 64
        %v3797 = vpop.permute.xlu0 %3796
        %3798 = vrot.lane.b32.xlu0 %v3777, 64
        %v3799 = vpop.permute.xlu0 %3798
        %3800 = vrot.lane.b32.xlu0 %v3780, 64
        %v3801 = vpop.permute.xlu0 %3800
        %3802 = vrot.lane.b32.xlu0 %v3783, 64
        %v3803 = vpop.permute.xlu0 %3802
        %3804 = vrot.lane.b32.xlu0 %v3785, 64
        %v3805 = vpop.permute.xlu0 %3804
        %3806 = vrot.lane.b32.xlu0 %v3787, 64
        %v3807 = vpop.permute.xlu0 %3806
        %3808 = vrot.lane.b32.xlu0 %v3789, 64
        %v3809 = vpop.permute.xlu0 %3808
        %3810 = vrot.lane.b32.xlu0 %v3791, 64
        %v3811 = vpop.permute.xlu0 %3810
        %3812 = vrot.lane.b32.xlu0 %v3793, 64
        %v3813 = vpop.permute.xlu0 %3812
        %v3814 = vsel %vm498, %v3795, %v3797
        %v3815 = vsel %vm498, %v3797, %v3799
        %v3816 = vsel %vm498, %v3799, %v3801
        %v3817 = vsel %vm498, %v3801, %v3803
        %v3818 = vsel %vm498, %v3805, %v3807
        %v3819 = vsel %vm498, %v3807, %v3809
        %v3820 = vsel %vm498, %v3809, %v3811
        %v3821 = vsel %vm498, %v3811, %v3813
        %3830 = vst [vmem:[#allocation3 + $0xb8] sm:$0xff] %v3814
        %3831 = vst [vmem:[#allocation3 + $0xc0] sm:$0xff] %v3815
        %3832 = vst [vmem:[#allocation3 + $0xc8] sm:$0xff] %v3816
        %3833 = vst [vmem:[#allocation3 + $0xd0] sm:$0xff] %v3817
        %3834 = vst [vmem:[#allocation3 + $0x108] sm:$0xff] %v3818
        %3835 = vst [vmem:[#allocation3 + $0x110] sm:$0xff] %v3819
        %3836 = vst [vmem:[#allocation3 + $0x118] sm:$0xff] %v3820
        %3837 = vst [vmem:[#allocation3 + $0x120] sm:$0xff] %v3821
        %v3838 = vld [vmem:[#allocation3] sm:$0x80]
        %v3839 = vld [vmem:[#allocation3 + $0x8] sm:$0x80]
        %v3840 = vld [vmem:[#allocation3 + $0x10] sm:$0x80]
        %v3841 = vld [vmem:[#allocation3 + $0x18] sm:$0x80]
        %v3842 = vld [vmem:[#allocation3 + $0x20] sm:$0x80]
        %v3843 = vld [vmem:[#allocation3 + $0x50] sm:$0xff]
        %v3844 = vld [vmem:[#allocation3 + $0x58] sm:$0xff]
        %v3845 = vld [vmem:[#allocation3 + $0x60] sm:$0xff]
        %v3846 = vld [vmem:[#allocation3 + $0x68] sm:$0xff]
        %v3847 = vld [vmem:[#allocation3 + $0x70] sm:$0xff]
        %v3848 = vld [vmem:[#allocation3 + $0xa0] sm:$0xff]
        %v3849 = vld [vmem:[#allocation3 + $0xa8] sm:$0xff]
        %v3850 = vld [vmem:[#allocation3 + $0xb0] sm:$0xff]
        %v3851 = vld [vmem:[#allocation3 + $0xb8] sm:$0xff]
        %v3852 = vld [vmem:[#allocation3 + $0xc0] sm:$0xff]
        %v3853 = vld [vmem:[#allocation3 + $0xf0] sm:$0xff]
        %v3854 = vld [vmem:[#allocation3 + $0xf8] sm:$0xff]
        %v3855 = vld [vmem:[#allocation3 + $0x100] sm:$0xff]
        %v3856 = vld [vmem:[#allocation3 + $0x108] sm:$0xff]
        %v3857 = vld [vmem:[#allocation3 + $0x110] sm:$0xff]
        %v3858 = vld [vmem:[#allocation3 + $0x140] sm:$0xff]
        %v3859 = vld [vmem:[#allocation3 + $0x148] sm:$0xff]
        %v3860 = vld [vmem:[#allocation3 + $0x150] sm:$0xff]
        %v3861 = vld [vmem:[#allocation3 + $0x158] sm:$0xff]
        %v3862 = vld [vmem:[#allocation3 + $0x160] sm:$0xff]
        %v3863 = vld [vmem:[#allocation3 + $0x190] sm:$0x1]
        %v3864 = vld [vmem:[#allocation3 + $0x198] sm:$0x1]
        %v3865 = vld [vmem:[#allocation3 + $0x1a0] sm:$0x1]
        %v3866 = vld [vmem:[#allocation3 + $0x1a8] sm:$0x1]
        %v3867 = vld [vmem:[#allocation3 + $0x1b0] sm:$0x1]
        %v3868 = vld [vmem:[%s3] sm:$0x7f]
        %v3869 = vld [vmem:[%s3 + $0x8] sm:$0x7f]
        %v3870 = vld [vmem:[%s3 + $0x10] sm:$0x7f]
        %v3871 = vld [vmem:[%s3 + $0x18] sm:$0x7f]
        %v3872 = vlaneseq
        %v3873 = vshrl.u32 %v3872, 7
        %v3874 = vsub.s32 0, %v3873
        %v3875 = vrot.slane %v3868, %v3874
        %v3876 = vlaneseq
        %v3877 = vshrl.u32 %v3876, 7
        %v3878 = vsub.s32 0, %v3877
        %v3879 = vrot.slane %v3869, %v3878
        %v3880 = vlaneseq
        %v3881 = vshrl.u32 %v3880, 7
        %v3882 = vsub.s32 0, %v3881
        %v3883 = vrot.slane %v3870, %v3882
        %v3884 = vlaneseq
        %v3885 = vshrl.u32 %v3884, 7
        %v3886 = vsub.s32 0, %v3885
        %v3887 = vrot.slane %v3871, %v3886
        %3892 = vrot.lane.b32.xlu0 %v3875, 96
        %v3893 = vpop.permute.xlu0 %3892
        %3894 = vrot.lane.b32.xlu0 %v3879, 96
        %v3895 = vpop.permute.xlu0 %3894
        %3896 = vrot.lane.b32.xlu0 %v3883, 96
        %v3897 = vpop.permute.xlu0 %3896
        %3898 = vrot.lane.b32.xlu0 %v3887, 96
        %v3899 = vpop.permute.xlu0 %3898
        %v3900 = vsel %vm1041, %v3893, %v3895
        %v3901 = vsel %vm1041, %v3895, %v3897
        %v3902 = vsel %vm1041, %v3897, %v3899
        %v3908 = vmul.f32 %v3838, %v3893
        %v3909 = vmul.f32 %v3839, %v3900
        %v3910 = vmul.f32 %v3840, %v3901
        %v3911 = vmul.f32 %v3841, %v3902
        %v3912 = vmul.f32 %v3842, %v3899
        %v3913 = vmul.f32 %v3843, %v3893
        %v3914 = vmul.f32 %v3844, %v3900
        %v3915 = vmul.f32 %v3845, %v3901
        %v3916 = vmul.f32 %v3846, %v3902
        %v3917 = vmul.f32 %v3847, %v3899
        %v3918 = vmul.f32 %v3848, %v3893
        %v3919 = vmul.f32 %v3849, %v3900
        %v3920 = vmul.f32 %v3850, %v3901
        %v3921 = vmul.f32 %v3851, %v3902
        %v3922 = vmul.f32 %v3852, %v3899
        %v3923 = vadd.f32 %v3908, 0.0
        %v3924 = vadd.f32 %v3909, 0.0
        %v3925 = vadd.f32 %v3910, 0.0
        %v3926 = vadd.f32 %v3911, 0.0
        %v3927 = vadd.f32 %v3912, 0.0
        %v3928 = vadd.f32 %v3913, 0.0
        %v3929 = vadd.f32 %v3914, 0.0
        %v3930 = vadd.f32 %v3915, 0.0
        %v3931 = vadd.f32 %v3916, 0.0
        %v3932 = vadd.f32 %v3917, 0.0
        %v3933 = vadd.f32 %v3918, 0.0
        %v3934 = vadd.f32 %v3919, 0.0
        %v3935 = vadd.f32 %v3920, 0.0
        %v3936 = vadd.f32 %v3921, 0.0
        %v3937 = vadd.f32 %v3922, 0.0
        %v3938 = vlaneseq
        %v3939 = vshrl.u32 %v3938, 7
        %v3940 = vsub.s32 1, %v3939
        %v3941 = vrot.slane %v3868, %v3940
        %v3942 = vlaneseq
        %v3943 = vshrl.u32 %v3942, 7
        %v3944 = vsub.s32 1, %v3943
        %v3945 = vrot.slane %v3869, %v3944
        %v3946 = vlaneseq
        %v3947 = vshrl.u32 %v3946, 7
        %v3948 = vsub.s32 1, %v3947
        %v3949 = vrot.slane %v3870, %v3948
        %v3950 = vlaneseq
        %v3951 = vshrl.u32 %v3950, 7
        %v3952 = vsub.s32 1, %v3951
        %v3953 = vrot.slane %v3871, %v3952
        %3958 = vrot.lane.b32.xlu0 %v3941, 96
        %v3959 = vpop.permute.xlu0 %3958
        %3960 = vrot.lane.b32.xlu0 %v3945, 96
        %v3961 = vpop.permute.xlu0 %3960
        %3962 = vrot.lane.b32.xlu0 %v3949, 96
        %v3963 = vpop.permute.xlu0 %3962
        %3964 = vrot.lane.b32.xlu0 %v3953, 96
        %v3965 = vpop.permute.xlu0 %3964
        %v3966 = vsel %vm1041, %v3959, %v3961
        %v3967 = vsel %vm1041, %v3961, %v3963
        %v3968 = vsel %vm1041, %v3963, %v3965
        %v3974 = vmul.f32 %v3843, %v3959
        %v3975 = vmul.f32 %v3844, %v3966
        %v3976 = vmul.f32 %v3845, %v3967
        %v3977 = vmul.f32 %v3846, %v3968
        %v3978 = vmul.f32 %v3847, %v3965
        %v3979 = vmul.f32 %v3848, %v3959
        %v3980 = vmul.f32 %v3849, %v3966
        %v3981 = vmul.f32 %v3850, %v3967
        %v3982 = vmul.f32 %v3851, %v3968
        %v3983 = vmul.f32 %v3852, %v3965
        %v3984 = vmul.f32 %v3853, %v3959
        %v3985 = vmul.f32 %v3854, %v3966
        %v3986 = vmul.f32 %v3855, %v3967
        %v3987 = vmul.f32 %v3856, %v3968
        %v3988 = vmul.f32 %v3857, %v3965
        %v4004 = vrot.slane %v3974, 3
        %v4005 = vrot.slane %v3975, 3
        %v4006 = vrot.slane %v3976, 3
        %v4007 = vrot.slane %v3977, 3
        %v4008 = vrot.slane %v3978, 3
        %v4009 = vrot.slane %v3979, 3
        %v4010 = vsel %vm827, %v4004, %v4009
        %v4011 = vrot.slane %v3980, 3
        %v4012 = vsel %vm827, %v4005, %v4011
        %v4013 = vrot.slane %v3981, 3
        %v4014 = vsel %vm827, %v4006, %v4013
        %v4015 = vrot.slane %v3982, 3
        %v4016 = vsel %vm827, %v4007, %v4015
        %v4017 = vrot.slane %v3983, 3
        %v4018 = vsel %vm827, %v4008, %v4017
        %v4019 = vrot.slane %v3984, 3
        %v4020 = vsel %vm827, %v4009, %v4019
        %v4021 = vrot.slane %v3985, 3
        %v4022 = vsel %vm827, %v4011, %v4021
        %v4023 = vrot.slane %v3986, 3
        %v4024 = vsel %vm827, %v4013, %v4023
        %v4025 = vrot.slane %v3987, 3
        %v4026 = vsel %vm827, %v4015, %v4025
        %v4027 = vrot.slane %v3988, 3
        %v4028 = vsel %vm827, %v4017, %v4027
        %v4044 = vadd.f32 %v3923, %v4004
        %v4045 = vadd.f32 %v3924, %v4005
        %v4046 = vadd.f32 %v3925, %v4006
        %v4047 = vadd.f32 %v3926, %v4007
        %v4048 = vadd.f32 %v3927, %v4008
        %v4049 = vadd.f32 %v3928, %v4010
        %v4050 = vadd.f32 %v3929, %v4012
        %v4051 = vadd.f32 %v3930, %v4014
        %v4052 = vadd.f32 %v3931, %v4016
        %v4053 = vadd.f32 %v3932, %v4018
        %v4054 = vadd.f32 %v3933, %v4020
        %v4055 = vadd.f32 %v3934, %v4022
        %v4056 = vadd.f32 %v3935, %v4024
        %v4057 = vadd.f32 %v3936, %v4026
        %v4058 = vadd.f32 %v3937, %v4028
        %v4059 = vlaneseq
        %v4060 = vshrl.u32 %v4059, 7
        %v4061 = vsub.s32 2, %v4060
        %v4062 = vrot.slane %v3868, %v4061
        %v4063 = vlaneseq
        %v4064 = vshrl.u32 %v4063, 7
        %v4065 = vsub.s32 2, %v4064
        %v4066 = vrot.slane %v3869, %v4065
        %v4067 = vlaneseq
        %v4068 = vshrl.u32 %v4067, 7
        %v4069 = vsub.s32 2, %v4068
        %v4070 = vrot.slane %v3870, %v4069
        %v4071 = vlaneseq
        %v4072 = vshrl.u32 %v4071, 7
        %v4073 = vsub.s32 2, %v4072
        %v4074 = vrot.slane %v3871, %v4073
        %4079 = vrot.lane.b32.xlu0 %v4062, 96
        %v4080 = vpop.permute.xlu0 %4079
        %4081 = vrot.lane.b32.xlu0 %v4066, 96
        %v4082 = vpop.permute.xlu0 %4081
        %4083 = vrot.lane.b32.xlu0 %v4070, 96
        %v4084 = vpop.permute.xlu0 %4083
        %4085 = vrot.lane.b32.xlu0 %v4074, 96
        %v4086 = vpop.permute.xlu0 %4085
        %v4087 = vsel %vm1041, %v4080, %v4082
        %v4088 = vsel %vm1041, %v4082, %v4084
        %v4089 = vsel %vm1041, %v4084, %v4086
        %v4095 = vmul.f32 %v3843, %v4080
        %v4096 = vmul.f32 %v3844, %v4087
        %v4097 = vmul.f32 %v3845, %v4088
        %v4098 = vmul.f32 %v3846, %v4089
        %v4099 = vmul.f32 %v3847, %v4086
        %v4100 = vmul.f32 %v3848, %v4080
        %v4101 = vmul.f32 %v3849, %v4087
        %v4102 = vmul.f32 %v3850, %v4088
        %v4103 = vmul.f32 %v3851, %v4089
        %v4104 = vmul.f32 %v3852, %v4086
        %v4105 = vmul.f32 %v3853, %v4080
        %v4106 = vmul.f32 %v3854, %v4087
        %v4107 = vmul.f32 %v3855, %v4088
        %v4108 = vmul.f32 %v3856, %v4089
        %v4109 = vmul.f32 %v3857, %v4086
        %v4125 = vrot.slane %v4095, 6
        %v4126 = vrot.slane %v4096, 6
        %v4127 = vrot.slane %v4097, 6
        %v4128 = vrot.slane %v4098, 6
        %v4129 = vrot.slane %v4099, 6
        %v4130 = vrot.slane %v4100, 6
        %v4131 = vsel %vm3768, %v4125, %v4130
        %v4132 = vrot.slane %v4101, 6
        %v4133 = vsel %vm3768, %v4126, %v4132
        %v4134 = vrot.slane %v4102, 6
        %v4135 = vsel %vm3768, %v4127, %v4134
        %v4136 = vrot.slane %v4103, 6
        %v4137 = vsel %vm3768, %v4128, %v4136
        %v4138 = vrot.slane %v4104, 6
        %v4139 = vsel %vm3768, %v4129, %v4138
        %v4140 = vrot.slane %v4105, 6
        %v4141 = vsel %vm3768, %v4130, %v4140
        %v4142 = vrot.slane %v4106, 6
        %v4143 = vsel %vm3768, %v4132, %v4142
        %v4144 = vrot.slane %v4107, 6
        %v4145 = vsel %vm3768, %v4134, %v4144
        %v4146 = vrot.slane %v4108, 6
        %v4147 = vsel %vm3768, %v4136, %v4146
        %v4148 = vrot.slane %v4109, 6
        %v4149 = vsel %vm3768, %v4138, %v4148
        %v4165 = vadd.f32 %v4044, %v4125
        %v4166 = vadd.f32 %v4045, %v4126
        %v4167 = vadd.f32 %v4046, %v4127
        %v4168 = vadd.f32 %v4047, %v4128
        %v4169 = vadd.f32 %v4048, %v4129
        %v4170 = vadd.f32 %v4049, %v4131
        %v4171 = vadd.f32 %v4050, %v4133
        %v4172 = vadd.f32 %v4051, %v4135
        %v4173 = vadd.f32 %v4052, %v4137
        %v4174 = vadd.f32 %v4053, %v4139
        %v4175 = vadd.f32 %v4054, %v4141
        %v4176 = vadd.f32 %v4055, %v4143
        %v4177 = vadd.f32 %v4056, %v4145
        %v4178 = vadd.f32 %v4057, %v4147
        %v4179 = vadd.f32 %v4058, %v4149
        %v4180 = vlaneseq
        %v4181 = vshrl.u32 %v4180, 7
        %v4182 = vsub.s32 3, %v4181
        %v4183 = vrot.slane %v3868, %v4182
        %v4184 = vlaneseq
        %v4185 = vshrl.u32 %v4184, 7
        %v4186 = vsub.s32 3, %v4185
        %v4187 = vrot.slane %v3869, %v4186
        %v4188 = vlaneseq
        %v4189 = vshrl.u32 %v4188, 7
        %v4190 = vsub.s32 3, %v4189
        %v4191 = vrot.slane %v3870, %v4190
        %v4192 = vlaneseq
        %v4193 = vshrl.u32 %v4192, 7
        %v4194 = vsub.s32 3, %v4193
        %v4195 = vrot.slane %v3871, %v4194
        %4200 = vrot.lane.b32.xlu0 %v4183, 96
        %v4201 = vpop.permute.xlu0 %4200
        %4202 = vrot.lane.b32.xlu0 %v4187, 96
        %v4203 = vpop.permute.xlu0 %4202
        %4204 = vrot.lane.b32.xlu0 %v4191, 96
        %v4205 = vpop.permute.xlu0 %4204
        %4206 = vrot.lane.b32.xlu0 %v4195, 96
        %v4207 = vpop.permute.xlu0 %4206
        %v4208 = vsel %vm1041, %v4201, %v4203
        %v4209 = vsel %vm1041, %v4203, %v4205
        %v4210 = vsel %vm1041, %v4205, %v4207
        %v4216 = vmul.f32 %v3848, %v4201
        %v4217 = vmul.f32 %v3849, %v4208
        %v4218 = vmul.f32 %v3850, %v4209
        %v4219 = vmul.f32 %v3851, %v4210
        %v4220 = vmul.f32 %v3852, %v4207
        %v4221 = vmul.f32 %v3853, %v4201
        %v4222 = vmul.f32 %v3854, %v4208
        %v4223 = vmul.f32 %v3855, %v4209
        %v4224 = vmul.f32 %v3856, %v4210
        %v4225 = vmul.f32 %v3857, %v4207
        %v4236 = vrot.slane %v4216, 1
        %v4237 = vrot.slane %v4217, 1
        %v4238 = vrot.slane %v4218, 1
        %v4239 = vrot.slane %v4219, 1
        %v4240 = vrot.slane %v4220, 1
        %v4241 = vrot.slane %v4221, 1
        %v4242 = vsel %vm603, %v4236, %v4241
        %v4243 = vrot.slane %v4222, 1
        %v4244 = vsel %vm603, %v4237, %v4243
        %v4245 = vrot.slane %v4223, 1
        %v4246 = vsel %vm603, %v4238, %v4245
        %v4247 = vrot.slane %v4224, 1
        %v4248 = vsel %vm603, %v4239, %v4247
        %v4249 = vrot.slane %v4225, 1
        %v4250 = vsel %vm603, %v4240, %v4249
        %v4266 = vadd.f32 %v4165, %v4236
        %v4267 = vadd.f32 %v4166, %v4237
        %v4268 = vadd.f32 %v4167, %v4238
        %v4269 = vadd.f32 %v4168, %v4239
        %v4270 = vadd.f32 %v4169, %v4240
        %v4271 = vadd.f32 %v4170, %v4242
        %v4272 = vadd.f32 %v4171, %v4244
        %v4273 = vadd.f32 %v4172, %v4246
        %v4274 = vadd.f32 %v4173, %v4248
        %v4275 = vadd.f32 %v4174, %v4250
        %v4276 = vadd.f32 %v4175, %v4241
        %v4277 = vadd.f32 %v4176, %v4243
        %v4278 = vadd.f32 %v4177, %v4245
        %v4279 = vadd.f32 %v4178, %v4247
        %v4280 = vadd.f32 %v4179, %v4249
        %v4281 = vlaneseq
        %v4282 = vshrl.u32 %v4281, 7
        %v4283 = vsub.s32 4, %v4282
        %v4284 = vrot.slane %v3868, %v4283
        %v4285 = vlaneseq
        %v4286 = vshrl.u32 %v4285, 7
        %v4287 = vsub.s32 4, %v4286
        %v4288 = vrot.slane %v3869, %v4287
        %v4289 = vlaneseq
        %v4290 = vshrl.u32 %v4289, 7
        %v4291 = vsub.s32 4, %v4290
        %v4292 = vrot.slane %v3870, %v4291
        %v4293 = vlaneseq
        %v4294 = vshrl.u32 %v4293, 7
        %v4295 = vsub.s32 4, %v4294
        %v4296 = vrot.slane %v3871, %v4295
        %4301 = vrot.lane.b32.xlu0 %v4284, 96
        %v4302 = vpop.permute.xlu0 %4301
        %4303 = vrot.lane.b32.xlu0 %v4288, 96
        %v4304 = vpop.permute.xlu0 %4303
        %4305 = vrot.lane.b32.xlu0 %v4292, 96
        %v4306 = vpop.permute.xlu0 %4305
        %4307 = vrot.lane.b32.xlu0 %v4296, 96
        %v4308 = vpop.permute.xlu0 %4307
        %v4309 = vsel %vm1041, %v4302, %v4304
        %v4310 = vsel %vm1041, %v4304, %v4306
        %v4311 = vsel %vm1041, %v4306, %v4308
        %v4317 = vmul.f32 %v3848, %v4302
        %v4318 = vmul.f32 %v3849, %v4309
        %v4319 = vmul.f32 %v3850, %v4310
        %v4320 = vmul.f32 %v3851, %v4311
        %v4321 = vmul.f32 %v3852, %v4308
        %v4322 = vmul.f32 %v3853, %v4302
        %v4323 = vmul.f32 %v3854, %v4309
        %v4324 = vmul.f32 %v3855, %v4310
        %v4325 = vmul.f32 %v3856, %v4311
        %v4326 = vmul.f32 %v3857, %v4308
        %v4327 = vmul.f32 %v3858, %v4302
        %v4328 = vmul.f32 %v3859, %v4309
        %v4329 = vmul.f32 %v3860, %v4310
        %v4330 = vmul.f32 %v3861, %v4311
        %v4331 = vmul.f32 %v3862, %v4308
        %v4347 = vrot.slane %v4317, 4
        %v4348 = vrot.slane %v4318, 4
        %v4349 = vrot.slane %v4319, 4
        %v4350 = vrot.slane %v4320, 4
        %v4351 = vrot.slane %v4321, 4
        %v4352 = vrot.slane %v4322, 4
        %v4353 = vsel %vm949, %v4347, %v4352
        %v4354 = vrot.slane %v4323, 4
        %v4355 = vsel %vm949, %v4348, %v4354
        %v4356 = vrot.slane %v4324, 4
        %v4357 = vsel %vm949, %v4349, %v4356
        %v4358 = vrot.slane %v4325, 4
        %v4359 = vsel %vm949, %v4350, %v4358
        %v4360 = vrot.slane %v4326, 4
        %v4361 = vsel %vm949, %v4351, %v4360
        %v4362 = vrot.slane %v4327, 4
        %v4363 = vsel %vm949, %v4352, %v4362
        %v4364 = vrot.slane %v4328, 4
        %v4365 = vsel %vm949, %v4354, %v4364
        %v4366 = vrot.slane %v4329, 4
        %v4367 = vsel %vm949, %v4356, %v4366
        %v4368 = vrot.slane %v4330, 4
        %v4369 = vsel %vm949, %v4358, %v4368
        %v4370 = vrot.slane %v4331, 4
        %v4371 = vsel %vm949, %v4360, %v4370
        %v4387 = vadd.f32 %v4266, %v4347
        %v4388 = vadd.f32 %v4267, %v4348
        %v4389 = vadd.f32 %v4268, %v4349
        %v4390 = vadd.f32 %v4269, %v4350
        %v4391 = vadd.f32 %v4270, %v4351
        %v4392 = vadd.f32 %v4271, %v4353
        %v4393 = vadd.f32 %v4272, %v4355
        %v4394 = vadd.f32 %v4273, %v4357
        %v4395 = vadd.f32 %v4274, %v4359
        %v4396 = vadd.f32 %v4275, %v4361
        %v4397 = vadd.f32 %v4276, %v4363
        %v4398 = vadd.f32 %v4277, %v4365
        %v4399 = vadd.f32 %v4278, %v4367
        %v4400 = vadd.f32 %v4279, %v4369
        %v4401 = vadd.f32 %v4280, %v4371
        %v4402 = vlaneseq
        %v4403 = vshrl.u32 %v4402, 7
        %v4404 = vsub.s32 5, %v4403
        %v4405 = vrot.slane %v3868, %v4404
        %v4406 = vlaneseq
        %v4407 = vshrl.u32 %v4406, 7
        %v4408 = vsub.s32 5, %v4407
        %v4409 = vrot.slane %v3869, %v4408
        %v4410 = vlaneseq
        %v4411 = vshrl.u32 %v4410, 7
        %v4412 = vsub.s32 5, %v4411
        %v4413 = vrot.slane %v3870, %v4412
        %v4414 = vlaneseq
        %v4415 = vshrl.u32 %v4414, 7
        %v4416 = vsub.s32 5, %v4415
        %v4417 = vrot.slane %v3871, %v4416
        %4422 = vrot.lane.b32.xlu0 %v4405, 96
        %v4423 = vpop.permute.xlu0 %4422
        %4424 = vrot.lane.b32.xlu0 %v4409, 96
        %v4425 = vpop.permute.xlu0 %4424
        %4426 = vrot.lane.b32.xlu0 %v4413, 96
        %v4427 = vpop.permute.xlu0 %4426
        %4428 = vrot.lane.b32.xlu0 %v4417, 96
        %v4429 = vpop.permute.xlu0 %4428
        %v4430 = vsel %vm1041, %v4423, %v4425
        %v4431 = vsel %vm1041, %v4425, %v4427
        %v4432 = vsel %vm1041, %v4427, %v4429
        %v4438 = vmul.f32 %v3848, %v4423
        %v4439 = vmul.f32 %v3849, %v4430
        %v4440 = vmul.f32 %v3850, %v4431
        %v4441 = vmul.f32 %v3851, %v4432
        %v4442 = vmul.f32 %v3852, %v4429
        %v4443 = vmul.f32 %v3853, %v4423
        %v4444 = vmul.f32 %v3854, %v4430
        %v4445 = vmul.f32 %v3855, %v4431
        %v4446 = vmul.f32 %v3856, %v4432
        %v4447 = vmul.f32 %v3857, %v4429
        %v4448 = vmul.f32 %v3858, %v4423
        %v4449 = vmul.f32 %v3859, %v4430
        %v4450 = vmul.f32 %v3860, %v4431
        %v4451 = vmul.f32 %v3861, %v4432
        %v4452 = vmul.f32 %v3862, %v4429
        %vm4468 = vcmask 1040384
        %v4469 = vrot.slane %v4438, 7
        %v4470 = vrot.slane %v4439, 7
        %v4471 = vrot.slane %v4440, 7
        %v4472 = vrot.slane %v4441, 7
        %v4473 = vrot.slane %v4442, 7
        %v4474 = vrot.slane %v4443, 7
        %v4475 = vsel %vm4468, %v4469, %v4474
        %v4476 = vrot.slane %v4444, 7
        %v4477 = vsel %vm4468, %v4470, %v4476
        %v4478 = vrot.slane %v4445, 7
        %v4479 = vsel %vm4468, %v4471, %v4478
        %v4480 = vrot.slane %v4446, 7
        %v4481 = vsel %vm4468, %v4472, %v4480
        %v4482 = vrot.slane %v4447, 7
        %v4483 = vsel %vm4468, %v4473, %v4482
        %v4484 = vrot.slane %v4448, 7
        %v4485 = vsel %vm4468, %v4474, %v4484
        %v4486 = vrot.slane %v4449, 7
        %v4487 = vsel %vm4468, %v4476, %v4486
        %v4488 = vrot.slane %v4450, 7
        %v4489 = vsel %vm4468, %v4478, %v4488
        %v4490 = vrot.slane %v4451, 7
        %v4491 = vsel %vm4468, %v4480, %v4490
        %v4492 = vrot.slane %v4452, 7
        %v4493 = vsel %vm4468, %v4482, %v4492
        %v4509 = vadd.f32 %v4387, %v4469
        %v4510 = vadd.f32 %v4388, %v4470
        %v4511 = vadd.f32 %v4389, %v4471
        %v4512 = vadd.f32 %v4390, %v4472
        %v4513 = vadd.f32 %v4391, %v4473
        %v4514 = vadd.f32 %v4392, %v4475
        %v4515 = vadd.f32 %v4393, %v4477
        %v4516 = vadd.f32 %v4394, %v4479
        %v4517 = vadd.f32 %v4395, %v4481
        %v4518 = vadd.f32 %v4396, %v4483
        %v4519 = vadd.f32 %v4397, %v4485
        %v4520 = vadd.f32 %v4398, %v4487
        %v4521 = vadd.f32 %v4399, %v4489
        %v4522 = vadd.f32 %v4400, %v4491
        %v4523 = vadd.f32 %v4401, %v4493
        %v4524 = vlaneseq
        %v4525 = vshrl.u32 %v4524, 7
        %v4526 = vsub.s32 6, %v4525
        %v4527 = vrot.slane %v3868, %v4526
        %v4528 = vlaneseq
        %v4529 = vshrl.u32 %v4528, 7
        %v4530 = vsub.s32 6, %v4529
        %v4531 = vrot.slane %v3869, %v4530
        %v4532 = vlaneseq
        %v4533 = vshrl.u32 %v4532, 7
        %v4534 = vsub.s32 6, %v4533
        %v4535 = vrot.slane %v3870, %v4534
        %v4536 = vlaneseq
        %v4537 = vshrl.u32 %v4536, 7
        %v4538 = vsub.s32 6, %v4537
        %v4539 = vrot.slane %v3871, %v4538
        %4544 = vrot.lane.b32.xlu0 %v4527, 96
        %v4545 = vpop.permute.xlu0 %4544
        %4546 = vrot.lane.b32.xlu0 %v4531, 96
        %v4547 = vpop.permute.xlu0 %4546
        %4548 = vrot.lane.b32.xlu0 %v4535, 96
        %v4549 = vpop.permute.xlu0 %4548
        %4550 = vrot.lane.b32.xlu0 %v4539, 96
        %v4551 = vpop.permute.xlu0 %4550
        %v4552 = vsel %vm1041, %v4545, %v4547
        %v4553 = vsel %vm1041, %v4547, %v4549
        %v4554 = vsel %vm1041, %v4549, %v4551
        %v4560 = vmul.f32 %v3853, %v4545
        %v4561 = vmul.f32 %v3854, %v4552
        %v4562 = vmul.f32 %v3855, %v4553
        %v4563 = vmul.f32 %v3856, %v4554
        %v4564 = vmul.f32 %v3857, %v4551
        %v4565 = vmul.f32 %v3858, %v4545
        %v4566 = vmul.f32 %v3859, %v4552
        %v4567 = vmul.f32 %v3860, %v4553
        %v4568 = vmul.f32 %v3861, %v4554
        %v4569 = vmul.f32 %v3862, %v4551
        %v4570 = vmul.f32 %v3863, %v4545
        %v4571 = vmul.f32 %v3864, %v4552
        %v4572 = vmul.f32 %v3865, %v4553
        %v4573 = vmul.f32 %v3866, %v4554
        %v4574 = vmul.f32 %v3867, %v4551
        %v4590 = vrot.slane %v4560, 2
        %v4591 = vrot.slane %v4561, 2
        %v4592 = vrot.slane %v4562, 2
        %v4593 = vrot.slane %v4563, 2
        %v4594 = vrot.slane %v4564, 2
        %v4595 = vrot.slane %v4565, 2
        %v4596 = vsel %vm715, %v4590, %v4595
        %v4597 = vrot.slane %v4566, 2
        %v4598 = vsel %vm715, %v4591, %v4597
        %v4599 = vrot.slane %v4567, 2
        %v4600 = vsel %vm715, %v4592, %v4599
        %v4601 = vrot.slane %v4568, 2
        %v4602 = vsel %vm715, %v4593, %v4601
        %v4603 = vrot.slane %v4569, 2
        %v4604 = vsel %vm715, %v4594, %v4603
        %v4605 = vrot.slane %v4570, 2
        %v4606 = vsel %vm715, %v4595, %v4605
        %v4607 = vrot.slane %v4571, 2
        %v4608 = vsel %vm715, %v4597, %v4607
        %v4609 = vrot.slane %v4572, 2
        %v4610 = vsel %vm715, %v4599, %v4609
        %v4611 = vrot.slane %v4573, 2
        %v4612 = vsel %vm715, %v4601, %v4611
        %v4613 = vrot.slane %v4574, 2
        %v4614 = vsel %vm715, %v4603, %v4613
        %v4630 = vadd.f32 %v4509, %v4590
        %v4631 = vadd.f32 %v4510, %v4591
        %v4632 = vadd.f32 %v4511, %v4592
        %v4633 = vadd.f32 %v4512, %v4593
        %v4634 = vadd.f32 %v4513, %v4594
        %v4635 = vadd.f32 %v4514, %v4596
        %v4636 = vadd.f32 %v4515, %v4598
        %v4637 = vadd.f32 %v4516, %v4600
        %v4638 = vadd.f32 %v4517, %v4602
        %v4639 = vadd.f32 %v4518, %v4604
        %v4640 = vadd.f32 %v4519, %v4606
        %v4641 = vadd.f32 %v4520, %v4608
        %v4642 = vadd.f32 %v4521, %v4610
        %v4643 = vadd.f32 %v4522, %v4612
        %v4644 = vadd.f32 %v4523, %v4614
        %v4645 = vld [vmem:[#allocation3 + $0x28] sm:$0x80]
        %v4646 = vld [vmem:[#allocation3 + $0x78] sm:$0xff]
        %v4647 = vld [vmem:[#allocation3 + $0xc8] sm:$0xff]
        %v4648 = vld [vmem:[#allocation3 + $0x118] sm:$0xff]
        %v4649 = vld [vmem:[#allocation3 + $0x168] sm:$0xff]
        %v4650 = vld [vmem:[#allocation3 + $0x1b8] sm:$0x1]
        %v4651 = vld [vmem:[%s3] sm:$0x80]
        %v4652 = vld [vmem:[%s3 + $0x8] sm:$0x80]
        %v4653 = vld [vmem:[%s3 + $0x10] sm:$0x80]
        %v4654 = vld [vmem:[%s3 + $0x18] sm:$0x80]
        %v4655 = vld [vmem:[%s3 + $0x20] sm:$0x3f]
        %v4656 = vld [vmem:[%s3 + $0x28] sm:$0x3f]
        %v4657 = vld [vmem:[%s3 + $0x30] sm:$0x3f]
        %v4658 = vld [vmem:[%s3 + $0x38] sm:$0x3f]
        %v4659 = vlaneseq
        %v4660 = vshrl.u32 %v4659, 7
        %v4661 = vsub.s32 7, %v4660
        %v4662 = vrot.slane %v4651, %v4661
        %v4663 = vlaneseq
        %v4664 = vshrl.u32 %v4663, 7
        %v4665 = vsub.s32 7, %v4664
        %v4666 = vrot.slane %v4652, %v4665
        %v4667 = vlaneseq
        %v4668 = vshrl.u32 %v4667, 7
        %v4669 = vsub.s32 7, %v4668
        %v4670 = vrot.slane %v4653, %v4669
        %v4671 = vlaneseq
        %v4672 = vshrl.u32 %v4671, 7
        %v4673 = vsub.s32 7, %v4672
        %v4674 = vrot.slane %v4654, %v4673
        %4679 = vrot.lane.b32.xlu0 %v4662, 64
        %v4680 = vpop.permute.xlu0 %4679
        %4681 = vrot.lane.b32.xlu0 %v4666, 64
        %v4682 = vpop.permute.xlu0 %4681
        %4683 = vrot.lane.b32.xlu0 %v4670, 64
        %v4684 = vpop.permute.xlu0 %4683
        %4685 = vrot.lane.b32.xlu0 %v4674, 64
        %v4686 = vpop.permute.xlu0 %4685
        %v4687 = vsel %vm498, %v4680, %v4682
        %v4688 = vsel %vm498, %v4682, %v4684
        %v4689 = vsel %vm498, %v4684, %v4686
        %v4695 = vmul.f32 %v3839, %v4680
        %v4696 = vmul.f32 %v3840, %v4687
        %v4697 = vmul.f32 %v3841, %v4688
        %v4698 = vmul.f32 %v3842, %v4689
        %v4699 = vmul.f32 %v4645, %v4686
        %v4700 = vmul.f32 %v3844, %v4680
        %v4701 = vmul.f32 %v3845, %v4687
        %v4702 = vmul.f32 %v3846, %v4688
        %v4703 = vmul.f32 %v3847, %v4689
        %v4704 = vmul.f32 %v4646, %v4686
        %v4705 = vmul.f32 %v3849, %v4680
        %v4706 = vmul.f32 %v3850, %v4687
        %v4707 = vmul.f32 %v3851, %v4688
        %v4708 = vmul.f32 %v3852, %v4689
        %v4709 = vmul.f32 %v4647, %v4686
        %4725 = vrot.lane.b32.xlu0 %v4695, 32
        %v4726 = vpop.permute.xlu0 %4725
        %4727 = vrot.lane.b32.xlu0 %v4696, 32
        %v4728 = vpop.permute.xlu0 %4727
        %4729 = vrot.lane.b32.xlu0 %v4697, 32
        %v4730 = vpop.permute.xlu0 %4729
        %4731 = vrot.lane.b32.xlu0 %v4698, 32
        %v4732 = vpop.permute.xlu0 %4731
        %4733 = vrot.lane.b32.xlu0 %v4699, 32
        %v4734 = vpop.permute.xlu0 %4733
        %4735 = vrot.lane.b32.xlu0 %v4700, 32
        %v4736 = vpop.permute.xlu0 %4735
        %4737 = vrot.lane.b32.xlu0 %v4701, 32
        %v4738 = vpop.permute.xlu0 %4737
        %4739 = vrot.lane.b32.xlu0 %v4702, 32
        %v4740 = vpop.permute.xlu0 %4739
        %4741 = vrot.lane.b32.xlu0 %v4703, 32
        %v4742 = vpop.permute.xlu0 %4741
        %4743 = vrot.lane.b32.xlu0 %v4704, 32
        %v4744 = vpop.permute.xlu0 %4743
        %4745 = vrot.lane.b32.xlu0 %v4705, 32
        %v4746 = vpop.permute.xlu0 %4745
        %4747 = vrot.lane.b32.xlu0 %v4706, 32
        %v4748 = vpop.permute.xlu0 %4747
        %4749 = vrot.lane.b32.xlu0 %v4707, 32
        %v4750 = vpop.permute.xlu0 %4749
        %4751 = vrot.lane.b32.xlu0 %v4708, 32
        %v4752 = vpop.permute.xlu0 %4751
        %4753 = vrot.lane.b32.xlu0 %v4709, 32
        %v4754 = vpop.permute.xlu0 %4753
        %v4755 = vsel %vm2423, %v4726, %v4728
        %v4756 = vsel %vm2423, %v4728, %v4730
        %v4757 = vsel %vm2423, %v4730, %v4732
        %v4758 = vsel %vm2423, %v4732, %v4734
        %v4759 = vsel %vm2423, %v4736, %v4738
        %v4760 = vsel %vm2423, %v4738, %v4740
        %v4761 = vsel %vm2423, %v4740, %v4742
        %v4762 = vsel %vm2423, %v4742, %v4744
        %v4763 = vsel %vm2423, %v4746, %v4748
        %v4764 = vsel %vm2423, %v4748, %v4750
        %v4765 = vsel %vm2423, %v4750, %v4752
        %v4766 = vsel %vm2423, %v4752, %v4754
        %v4782 = vadd.f32 %v4630, %v4726
        %v4783 = vadd.f32 %v4631, %v4755
        %v4784 = vadd.f32 %v4632, %v4756
        %v4785 = vadd.f32 %v4633, %v4757
        %v4786 = vadd.f32 %v4634, %v4758
        %v4787 = vadd.f32 %v4635, %v4736
        %v4788 = vadd.f32 %v4636, %v4759
        %v4789 = vadd.f32 %v4637, %v4760
        %v4790 = vadd.f32 %v4638, %v4761
        %v4791 = vadd.f32 %v4639, %v4762
        %v4792 = vadd.f32 %v4640, %v4746
        %v4793 = vadd.f32 %v4641, %v4763
        %v4794 = vadd.f32 %v4642, %v4764
        %v4795 = vadd.f32 %v4643, %v4765
        %v4796 = vadd.f32 %v4644, %v4766
        %v4797 = vlaneseq
        %v4798 = vshrl.u32 %v4797, 7
        %v4799 = vsub.s32 0, %v4798
        %v4800 = vrot.slane %v4655, %v4799
        %v4801 = vlaneseq
        %v4802 = vshrl.u32 %v4801, 7
        %v4803 = vsub.s32 0, %v4802
        %v4804 = vrot.slane %v4656, %v4803
        %v4805 = vlaneseq
        %v4806 = vshrl.u32 %v4805, 7
        %v4807 = vsub.s32 0, %v4806
        %v4808 = vrot.slane %v4657, %v4807
        %v4809 = vlaneseq
        %v4810 = vshrl.u32 %v4809, 7
        %v4811 = vsub.s32 0, %v4810
        %v4812 = vrot.slane %v4658, %v4811
        %4817 = vrot.lane.b32.xlu0 %v4800, 64
        %v4818 = vpop.permute.xlu0 %4817
        %4819 = vrot.lane.b32.xlu0 %v4804, 64
        %v4820 = vpop.permute.xlu0 %4819
        %4821 = vrot.lane.b32.xlu0 %v4808, 64
        %v4822 = vpop.permute.xlu0 %4821
        %4823 = vrot.lane.b32.xlu0 %v4812, 64
        %v4824 = vpop.permute.xlu0 %4823
        %v4825 = vsel %vm498, %v4818, %v4820
        %v4826 = vsel %vm498, %v4820, %v4822
        %v4827 = vsel %vm498, %v4822, %v4824
        %v4833 = vmul.f32 %v3844, %v4818
        %v4834 = vmul.f32 %v3845, %v4825
        %v4835 = vmul.f32 %v3846, %v4826
        %v4836 = vmul.f32 %v3847, %v4827
        %v4837 = vmul.f32 %v4646, %v4824
        %v4838 = vmul.f32 %v3849, %v4818
        %v4839 = vmul.f32 %v3850, %v4825
        %v4840 = vmul.f32 %v3851, %v4826
        %v4841 = vmul.f32 %v3852, %v4827
        %v4842 = vmul.f32 %v4647, %v4824
        %v4843 = vmul.f32 %v3854, %v4818
        %v4844 = vmul.f32 %v3855, %v4825
        %v4845 = vmul.f32 %v3856, %v4826
        %v4846 = vmul.f32 %v3857, %v4827
        %v4847 = vmul.f32 %v4648, %v4824
        %v4863 = vrot.slane %v4833, 3
        %v4864 = vrot.slane %v4834, 3
        %v4865 = vrot.slane %v4835, 3
        %v4866 = vrot.slane %v4836, 3
        %v4867 = vrot.slane %v4837, 3
        %v4868 = vrot.slane %v4838, 3
        %v4869 = vsel %vm827, %v4863, %v4868
        %v4870 = vrot.slane %v4839, 3
        %v4871 = vsel %vm827, %v4864, %v4870
        %v4872 = vrot.slane %v4840, 3
        %v4873 = vsel %vm827, %v4865, %v4872
        %v4874 = vrot.slane %v4841, 3
        %v4875 = vsel %vm827, %v4866, %v4874
        %v4876 = vrot.slane %v4842, 3
        %v4877 = vsel %vm827, %v4867, %v4876
        %v4878 = vrot.slane %v4843, 3
        %v4879 = vsel %vm827, %v4868, %v4878
        %v4880 = vrot.slane %v4844, 3
        %v4881 = vsel %vm827, %v4870, %v4880
        %v4882 = vrot.slane %v4845, 3
        %v4883 = vsel %vm827, %v4872, %v4882
        %v4884 = vrot.slane %v4846, 3
        %v4885 = vsel %vm827, %v4874, %v4884
        %v4886 = vrot.slane %v4847, 3
        %v4887 = vsel %vm827, %v4876, %v4886
        %4888 = vrot.lane.b32.xlu0 %v4863, 32
        %v4889 = vpop.permute.xlu0 %4888
        %4890 = vrot.lane.b32.xlu0 %v4864, 32
        %v4891 = vpop.permute.xlu0 %4890
        %4892 = vrot.lane.b32.xlu0 %v4865, 32
        %v4893 = vpop.permute.xlu0 %4892
        %4894 = vrot.lane.b32.xlu0 %v4866, 32
        %v4895 = vpop.permute.xlu0 %4894
        %4896 = vrot.lane.b32.xlu0 %v4867, 32
        %v4897 = vpop.permute.xlu0 %4896
        %4898 = vrot.lane.b32.xlu0 %v4869, 32
        %v4899 = vpop.permute.xlu0 %4898
        %4900 = vrot.lane.b32.xlu0 %v4871, 32
        %v4901 = vpop.permute.xlu0 %4900
        %4902 = vrot.lane.b32.xlu0 %v4873, 32
        %v4903 = vpop.permute.xlu0 %4902
        %4904 = vrot.lane.b32.xlu0 %v4875, 32
        %v4905 = vpop.permute.xlu0 %4904
        %4906 = vrot.lane.b32.xlu0 %v4877, 32
        %v4907 = vpop.permute.xlu0 %4906
        %4908 = vrot.lane.b32.xlu0 %v4879, 32
        %v4909 = vpop.permute.xlu0 %4908
        %4910 = vrot.lane.b32.xlu0 %v4881, 32
        %v4911 = vpop.permute.xlu0 %4910
        %4912 = vrot.lane.b32.xlu0 %v4883, 32
        %v4913 = vpop.permute.xlu0 %4912
        %4914 = vrot.lane.b32.xlu0 %v4885, 32
        %v4915 = vpop.permute.xlu0 %4914
        %4916 = vrot.lane.b32.xlu0 %v4887, 32
        %v4917 = vpop.permute.xlu0 %4916
        %v4918 = vsel %vm2423, %v4889, %v4891
        %v4919 = vsel %vm2423, %v4891, %v4893
        %v4920 = vsel %vm2423, %v4893, %v4895
        %v4921 = vsel %vm2423, %v4895, %v4897
        %v4922 = vsel %vm2423, %v4899, %v4901
        %v4923 = vsel %vm2423, %v4901, %v4903
        %v4924 = vsel %vm2423, %v4903, %v4905
        %v4925 = vsel %vm2423, %v4905, %v4907
        %v4926 = vsel %vm2423, %v4909, %v4911
        %v4927 = vsel %vm2423, %v4911, %v4913
        %v4928 = vsel %vm2423, %v4913, %v4915
        %v4929 = vsel %vm2423, %v4915, %v4917
        %v4945 = vadd.f32 %v4782, %v4889
        %v4946 = vadd.f32 %v4783, %v4918
        %v4947 = vadd.f32 %v4784, %v4919
        %v4948 = vadd.f32 %v4785, %v4920
        %v4949 = vadd.f32 %v4786, %v4921
        %v4950 = vadd.f32 %v4787, %v4899
        %v4951 = vadd.f32 %v4788, %v4922
        %v4952 = vadd.f32 %v4789, %v4923
        %v4953 = vadd.f32 %v4790, %v4924
        %v4954 = vadd.f32 %v4791, %v4925
        %v4955 = vadd.f32 %v4792, %v4909
        %v4956 = vadd.f32 %v4793, %v4926
        %v4957 = vadd.f32 %v4794, %v4927
        %v4958 = vadd.f32 %v4795, %v4928
        %v4959 = vadd.f32 %v4796, %v4929
        %v4960 = vlaneseq
        %v4961 = vshrl.u32 %v4960, 7
        %v4962 = vsub.s32 1, %v4961
        %v4963 = vrot.slane %v4655, %v4962
        %v4964 = vlaneseq
        %v4965 = vshrl.u32 %v4964, 7
        %v4966 = vsub.s32 1, %v4965
        %v4967 = vrot.slane %v4656, %v4966
        %v4968 = vlaneseq
        %v4969 = vshrl.u32 %v4968, 7
        %v4970 = vsub.s32 1, %v4969
        %v4971 = vrot.slane %v4657, %v4970
        %v4972 = vlaneseq
        %v4973 = vshrl.u32 %v4972, 7
        %v4974 = vsub.s32 1, %v4973
        %v4975 = vrot.slane %v4658, %v4974
        %4980 = vrot.lane.b32.xlu0 %v4963, 64
        %v4981 = vpop.permute.xlu0 %4980
        %4982 = vrot.lane.b32.xlu0 %v4967, 64
        %v4983 = vpop.permute.xlu0 %4982
        %4984 = vrot.lane.b32.xlu0 %v4971, 64
        %v4985 = vpop.permute.xlu0 %4984
        %4986 = vrot.lane.b32.xlu0 %v4975, 64
        %v4987 = vpop.permute.xlu0 %4986
        %v4988 = vsel %vm498, %v4981, %v4983
        %v4989 = vsel %vm498, %v4983, %v4985
        %v4990 = vsel %vm498, %v4985, %v4987
        %v4996 = vmul.f32 %v3844, %v4981
        %v4997 = vmul.f32 %v3845, %v4988
        %v4998 = vmul.f32 %v3846, %v4989
        %v4999 = vmul.f32 %v3847, %v4990
        %v5000 = vmul.f32 %v4646, %v4987
        %v5001 = vmul.f32 %v3849, %v4981
        %v5002 = vmul.f32 %v3850, %v4988
        %v5003 = vmul.f32 %v3851, %v4989
        %v5004 = vmul.f32 %v3852, %v4990
        %v5005 = vmul.f32 %v4647, %v4987
        %v5006 = vmul.f32 %v3854, %v4981
        %v5007 = vmul.f32 %v3855, %v4988
        %v5008 = vmul.f32 %v3856, %v4989
        %v5009 = vmul.f32 %v3857, %v4990
        %v5010 = vmul.f32 %v4648, %v4987
        %v5026 = vrot.slane %v4996, 6
        %v5027 = vrot.slane %v4997, 6
        %v5028 = vrot.slane %v4998, 6
        %v5029 = vrot.slane %v4999, 6
        %v5030 = vrot.slane %v5000, 6
        %v5031 = vrot.slane %v5001, 6
        %v5032 = vsel %vm3768, %v5026, %v5031
        %v5033 = vrot.slane %v5002, 6
        %v5034 = vsel %vm3768, %v5027, %v5033
        %v5035 = vrot.slane %v5003, 6
        %v5036 = vsel %vm3768, %v5028, %v5035
        %v5037 = vrot.slane %v5004, 6
        %v5038 = vsel %vm3768, %v5029, %v5037
        %v5039 = vrot.slane %v5005, 6
        %v5040 = vsel %vm3768, %v5030, %v5039
        %v5041 = vrot.slane %v5006, 6
        %v5042 = vsel %vm3768, %v5031, %v5041
        %v5043 = vrot.slane %v5007, 6
        %v5044 = vsel %vm3768, %v5033, %v5043
        %v5045 = vrot.slane %v5008, 6
        %v5046 = vsel %vm3768, %v5035, %v5045
        %v5047 = vrot.slane %v5009, 6
        %v5048 = vsel %vm3768, %v5037, %v5047
        %v5049 = vrot.slane %v5010, 6
        %v5050 = vsel %vm3768, %v5039, %v5049
        %5051 = vrot.lane.b32.xlu0 %v5026, 32
        %v5052 = vpop.permute.xlu0 %5051
        %5053 = vrot.lane.b32.xlu0 %v5027, 32
        %v5054 = vpop.permute.xlu0 %5053
        %5055 = vrot.lane.b32.xlu0 %v5028, 32
        %v5056 = vpop.permute.xlu0 %5055
        %5057 = vrot.lane.b32.xlu0 %v5029, 32
        %v5058 = vpop.permute.xlu0 %5057
        %5059 = vrot.lane.b32.xlu0 %v5030, 32
        %v5060 = vpop.permute.xlu0 %5059
        %5061 = vrot.lane.b32.xlu0 %v5032, 32
        %v5062 = vpop.permute.xlu0 %5061
        %5063 = vrot.lane.b32.xlu0 %v5034, 32
        %v5064 = vpop.permute.xlu0 %5063
        %5065 = vrot.lane.b32.xlu0 %v5036, 32
        %v5066 = vpop.permute.xlu0 %5065
        %5067 = vrot.lane.b32.xlu0 %v5038, 32
        %v5068 = vpop.permute.xlu0 %5067
        %5069 = vrot.lane.b32.xlu0 %v5040, 32
        %v5070 = vpop.permute.xlu0 %5069
        %5071 = vrot.lane.b32.xlu0 %v5042, 32
        %v5072 = vpop.permute.xlu0 %5071
        %5073 = vrot.lane.b32.xlu0 %v5044, 32
        %v5074 = vpop.permute.xlu0 %5073
        %5075 = vrot.lane.b32.xlu0 %v5046, 32
        %v5076 = vpop.permute.xlu0 %5075
        %5077 = vrot.lane.b32.xlu0 %v5048, 32
        %v5078 = vpop.permute.xlu0 %5077
        %5079 = vrot.lane.b32.xlu0 %v5050, 32
        %v5080 = vpop.permute.xlu0 %5079
        %v5081 = vsel %vm2423, %v5052, %v5054
        %v5082 = vsel %vm2423, %v5054, %v5056
        %v5083 = vsel %vm2423, %v5056, %v5058
        %v5084 = vsel %vm2423, %v5058, %v5060
        %v5085 = vsel %vm2423, %v5062, %v5064
        %v5086 = vsel %vm2423, %v5064, %v5066
        %v5087 = vsel %vm2423, %v5066, %v5068
        %v5088 = vsel %vm2423, %v5068, %v5070
        %v5089 = vsel %vm2423, %v5072, %v5074
        %v5090 = vsel %vm2423, %v5074, %v5076
        %v5091 = vsel %vm2423, %v5076, %v5078
        %v5092 = vsel %vm2423, %v5078, %v5080
        %v5108 = vadd.f32 %v4945, %v5052
        %v5109 = vadd.f32 %v4946, %v5081
        %v5110 = vadd.f32 %v4947, %v5082
        %v5111 = vadd.f32 %v4948, %v5083
        %v5112 = vadd.f32 %v4949, %v5084
        %v5113 = vadd.f32 %v4950, %v5062
        %v5114 = vadd.f32 %v4951, %v5085
        %v5115 = vadd.f32 %v4952, %v5086
        %v5116 = vadd.f32 %v4953, %v5087
        %v5117 = vadd.f32 %v4954, %v5088
        %v5118 = vadd.f32 %v4955, %v5072
        %v5119 = vadd.f32 %v4956, %v5089
        %v5120 = vadd.f32 %v4957, %v5090
        %v5121 = vadd.f32 %v4958, %v5091
        %v5122 = vadd.f32 %v4959, %v5092
        %v5123 = vlaneseq
        %v5124 = vshrl.u32 %v5123, 7
        %v5125 = vsub.s32 2, %v5124
        %v5126 = vrot.slane %v4655, %v5125
        %v5127 = vlaneseq
        %v5128 = vshrl.u32 %v5127, 7
        %v5129 = vsub.s32 2, %v5128
        %v5130 = vrot.slane %v4656, %v5129
        %v5131 = vlaneseq
        %v5132 = vshrl.u32 %v5131, 7
        %v5133 = vsub.s32 2, %v5132
        %v5134 = vrot.slane %v4657, %v5133
        %v5135 = vlaneseq
        %v5136 = vshrl.u32 %v5135, 7
        %v5137 = vsub.s32 2, %v5136
        %v5138 = vrot.slane %v4658, %v5137
        %5143 = vrot.lane.b32.xlu0 %v5126, 64
        %v5144 = vpop.permute.xlu0 %5143
        %5145 = vrot.lane.b32.xlu0 %v5130, 64
        %v5146 = vpop.permute.xlu0 %5145
        %5147 = vrot.lane.b32.xlu0 %v5134, 64
        %v5148 = vpop.permute.xlu0 %5147
        %5149 = vrot.lane.b32.xlu0 %v5138, 64
        %v5150 = vpop.permute.xlu0 %5149
        %v5151 = vsel %vm498, %v5144, %v5146
        %v5152 = vsel %vm498, %v5146, %v5148
        %v5153 = vsel %vm498, %v5148, %v5150
        %v5159 = vmul.f32 %v3849, %v5144
        %v5160 = vmul.f32 %v3850, %v5151
        %v5161 = vmul.f32 %v3851, %v5152
        %v5162 = vmul.f32 %v3852, %v5153
        %v5163 = vmul.f32 %v4647, %v5150
        %v5164 = vmul.f32 %v3854, %v5144
        %v5165 = vmul.f32 %v3855, %v5151
        %v5166 = vmul.f32 %v3856, %v5152
        %v5167 = vmul.f32 %v3857, %v5153
        %v5168 = vmul.f32 %v4648, %v5150
        %v5179 = vrot.slane %v5159, 1
        %v5180 = vrot.slane %v5160, 1
        %v5181 = vrot.slane %v5161, 1
        %v5182 = vrot.slane %v5162, 1
        %v5183 = vrot.slane %v5163, 1
        %v5184 = vrot.slane %v5164, 1
        %v5185 = vsel %vm603, %v5179, %v5184
        %v5186 = vrot.slane %v5165, 1
        %v5187 = vsel %vm603, %v5180, %v5186
        %v5188 = vrot.slane %v5166, 1
        %v5189 = vsel %vm603, %v5181, %v5188
        %v5190 = vrot.slane %v5167, 1
        %v5191 = vsel %vm603, %v5182, %v5190
        %v5192 = vrot.slane %v5168, 1
        %v5193 = vsel %vm603, %v5183, %v5192
        %5194 = vrot.lane.b32.xlu0 %v5179, 32
        %v5195 = vpop.permute.xlu0 %5194
        %5196 = vrot.lane.b32.xlu0 %v5180, 32
        %v5197 = vpop.permute.xlu0 %5196
        %5198 = vrot.lane.b32.xlu0 %v5181, 32
        %v5199 = vpop.permute.xlu0 %5198
        %5200 = vrot.lane.b32.xlu0 %v5182, 32
        %v5201 = vpop.permute.xlu0 %5200
        %5202 = vrot.lane.b32.xlu0 %v5183, 32
        %v5203 = vpop.permute.xlu0 %5202
        %5204 = vrot.lane.b32.xlu0 %v5185, 32
        %v5205 = vpop.permute.xlu0 %5204
        %5206 = vrot.lane.b32.xlu0 %v5187, 32
        %v5207 = vpop.permute.xlu0 %5206
        %5208 = vrot.lane.b32.xlu0 %v5189, 32
        %v5209 = vpop.permute.xlu0 %5208
        %5210 = vrot.lane.b32.xlu0 %v5191, 32
        %v5211 = vpop.permute.xlu0 %5210
        %5212 = vrot.lane.b32.xlu0 %v5193, 32
        %v5213 = vpop.permute.xlu0 %5212
        %5214 = vrot.lane.b32.xlu0 %v5184, 32
        %v5215 = vpop.permute.xlu0 %5214
        %5216 = vrot.lane.b32.xlu0 %v5186, 32
        %v5217 = vpop.permute.xlu0 %5216
        %5218 = vrot.lane.b32.xlu0 %v5188, 32
        %v5219 = vpop.permute.xlu0 %5218
        %5220 = vrot.lane.b32.xlu0 %v5190, 32
        %v5221 = vpop.permute.xlu0 %5220
        %5222 = vrot.lane.b32.xlu0 %v5192, 32
        %v5223 = vpop.permute.xlu0 %5222
        %v5224 = vsel %vm2423, %v5195, %v5197
        %v5225 = vsel %vm2423, %v5197, %v5199
        %v5226 = vsel %vm2423, %v5199, %v5201
        %v5227 = vsel %vm2423, %v5201, %v5203
        %v5228 = vsel %vm2423, %v5205, %v5207
        %v5229 = vsel %vm2423, %v5207, %v5209
        %v5230 = vsel %vm2423, %v5209, %v5211
        %v5231 = vsel %vm2423, %v5211, %v5213
        %v5232 = vsel %vm2423, %v5215, %v5217
        %v5233 = vsel %vm2423, %v5217, %v5219
        %v5234 = vsel %vm2423, %v5219, %v5221
        %v5235 = vsel %vm2423, %v5221, %v5223
        %v5251 = vadd.f32 %v5108, %v5195
        %v5252 = vadd.f32 %v5109, %v5224
        %v5253 = vadd.f32 %v5110, %v5225
        %v5254 = vadd.f32 %v5111, %v5226
        %v5255 = vadd.f32 %v5112, %v5227
        %v5256 = vadd.f32 %v5113, %v5205
        %v5257 = vadd.f32 %v5114, %v5228
        %v5258 = vadd.f32 %v5115, %v5229
        %v5259 = vadd.f32 %v5116, %v5230
        %v5260 = vadd.f32 %v5117, %v5231
        %v5261 = vadd.f32 %v5118, %v5215
        %v5262 = vadd.f32 %v5119, %v5232
        %v5263 = vadd.f32 %v5120, %v5233
        %v5264 = vadd.f32 %v5121, %v5234
        %v5265 = vadd.f32 %v5122, %v5235
        %v5266 = vlaneseq
        %v5267 = vshrl.u32 %v5266, 7
        %v5268 = vsub.s32 3, %v5267
        %v5269 = vrot.slane %v4655, %v5268
        %v5270 = vlaneseq
        %v5271 = vshrl.u32 %v5270, 7
        %v5272 = vsub.s32 3, %v5271
        %v5273 = vrot.slane %v4656, %v5272
        %v5274 = vlaneseq
        %v5275 = vshrl.u32 %v5274, 7
        %v5276 = vsub.s32 3, %v5275
        %v5277 = vrot.slane %v4657, %v5276
        %v5278 = vlaneseq
        %v5279 = vshrl.u32 %v5278, 7
        %v5280 = vsub.s32 3, %v5279
        %v5281 = vrot.slane %v4658, %v5280
        %5286 = vrot.lane.b32.xlu0 %v5269, 64
        %v5287 = vpop.permute.xlu0 %5286
        %5288 = vrot.lane.b32.xlu0 %v5273, 64
        %v5289 = vpop.permute.xlu0 %5288
        %5290 = vrot.lane.b32.xlu0 %v5277, 64
        %v5291 = vpop.permute.xlu0 %5290
        %5292 = vrot.lane.b32.xlu0 %v5281, 64
        %v5293 = vpop.permute.xlu0 %5292
        %v5294 = vsel %vm498, %v5287, %v5289
        %v5295 = vsel %vm498, %v5289, %v5291
        %v5296 = vsel %vm498, %v5291, %v5293
        %v5302 = vmul.f32 %v3849, %v5287
        %v5303 = vmul.f32 %v3850, %v5294
        %v5304 = vmul.f32 %v3851, %v5295
        %v5305 = vmul.f32 %v3852, %v5296
        %v5306 = vmul.f32 %v4647, %v5293
        %v5307 = vmul.f32 %v3854, %v5287
        %v5308 = vmul.f32 %v3855, %v5294
        %v5309 = vmul.f32 %v3856, %v5295
        %v5310 = vmul.f32 %v3857, %v5296
        %v5311 = vmul.f32 %v4648, %v5293
        %v5312 = vmul.f32 %v3859, %v5287
        %v5313 = vmul.f32 %v3860, %v5294
        %v5314 = vmul.f32 %v3861, %v5295
        %v5315 = vmul.f32 %v3862, %v5296
        %v5316 = vmul.f32 %v4649, %v5293
        %v5332 = vrot.slane %v5302, 4
        %v5333 = vrot.slane %v5303, 4
        %v5334 = vrot.slane %v5304, 4
        %v5335 = vrot.slane %v5305, 4
        %v5336 = vrot.slane %v5306, 4
        %v5337 = vrot.slane %v5307, 4
        %v5338 = vsel %vm949, %v5332, %v5337
        %v5339 = vrot.slane %v5308, 4
        %v5340 = vsel %vm949, %v5333, %v5339
        %v5341 = vrot.slane %v5309, 4
        %v5342 = vsel %vm949, %v5334, %v5341
        %v5343 = vrot.slane %v5310, 4
        %v5344 = vsel %vm949, %v5335, %v5343
        %v5345 = vrot.slane %v5311, 4
        %v5346 = vsel %vm949, %v5336, %v5345
        %v5347 = vrot.slane %v5312, 4
        %v5348 = vsel %vm949, %v5337, %v5347
        %v5349 = vrot.slane %v5313, 4
        %v5350 = vsel %vm949, %v5339, %v5349
        %v5351 = vrot.slane %v5314, 4
        %v5352 = vsel %vm949, %v5341, %v5351
        %v5353 = vrot.slane %v5315, 4
        %v5354 = vsel %vm949, %v5343, %v5353
        %v5355 = vrot.slane %v5316, 4
        %v5356 = vsel %vm949, %v5345, %v5355
        %5357 = vrot.lane.b32.xlu0 %v5332, 32
        %v5358 = vpop.permute.xlu0 %5357
        %5359 = vrot.lane.b32.xlu0 %v5333, 32
        %v5360 = vpop.permute.xlu0 %5359
        %5361 = vrot.lane.b32.xlu0 %v5334, 32
        %v5362 = vpop.permute.xlu0 %5361
        %5363 = vrot.lane.b32.xlu0 %v5335, 32
        %v5364 = vpop.permute.xlu0 %5363
        %5365 = vrot.lane.b32.xlu0 %v5336, 32
        %v5366 = vpop.permute.xlu0 %5365
        %5367 = vrot.lane.b32.xlu0 %v5338, 32
        %v5368 = vpop.permute.xlu0 %5367
        %5369 = vrot.lane.b32.xlu0 %v5340, 32
        %v5370 = vpop.permute.xlu0 %5369
        %5371 = vrot.lane.b32.xlu0 %v5342, 32
        %v5372 = vpop.permute.xlu0 %5371
        %5373 = vrot.lane.b32.xlu0 %v5344, 32
        %v5374 = vpop.permute.xlu0 %5373
        %5375 = vrot.lane.b32.xlu0 %v5346, 32
        %v5376 = vpop.permute.xlu0 %5375
        %5377 = vrot.lane.b32.xlu0 %v5348, 32
        %v5378 = vpop.permute.xlu0 %5377
        %5379 = vrot.lane.b32.xlu0 %v5350, 32
        %v5380 = vpop.permute.xlu0 %5379
        %5381 = vrot.lane.b32.xlu0 %v5352, 32
        %v5382 = vpop.permute.xlu0 %5381
        %5383 = vrot.lane.b32.xlu0 %v5354, 32
        %v5384 = vpop.permute.xlu0 %5383
        %5385 = vrot.lane.b32.xlu0 %v5356, 32
        %v5386 = vpop.permute.xlu0 %5385
        %v5387 = vsel %vm2423, %v5358, %v5360
        %v5388 = vsel %vm2423, %v5360, %v5362
        %v5389 = vsel %vm2423, %v5362, %v5364
        %v5390 = vsel %vm2423, %v5364, %v5366
        %v5391 = vsel %vm2423, %v5368, %v5370
        %v5392 = vsel %vm2423, %v5370, %v5372
        %v5393 = vsel %vm2423, %v5372, %v5374
        %v5394 = vsel %vm2423, %v5374, %v5376
        %v5395 = vsel %vm2423, %v5378, %v5380
        %v5396 = vsel %vm2423, %v5380, %v5382
        %v5397 = vsel %vm2423, %v5382, %v5384
        %v5398 = vsel %vm2423, %v5384, %v5386
        %v5414 = vadd.f32 %v5251, %v5358
        %v5415 = vadd.f32 %v5252, %v5387
        %v5416 = vadd.f32 %v5253, %v5388
        %v5417 = vadd.f32 %v5254, %v5389
        %v5418 = vadd.f32 %v5255, %v5390
        %v5419 = vadd.f32 %v5256, %v5368
        %v5420 = vadd.f32 %v5257, %v5391
        %v5421 = vadd.f32 %v5258, %v5392
        %v5422 = vadd.f32 %v5259, %v5393
        %v5423 = vadd.f32 %v5260, %v5394
        %v5424 = vadd.f32 %v5261, %v5378
        %v5425 = vadd.f32 %v5262, %v5395
        %v5426 = vadd.f32 %v5263, %v5396
        %v5427 = vadd.f32 %v5264, %v5397
        %v5428 = vadd.f32 %v5265, %v5398
        %v5429 = vlaneseq
        %v5430 = vshrl.u32 %v5429, 7
        %v5431 = vsub.s32 4, %v5430
        %v5432 = vrot.slane %v4655, %v5431
        %v5433 = vlaneseq
        %v5434 = vshrl.u32 %v5433, 7
        %v5435 = vsub.s32 4, %v5434
        %v5436 = vrot.slane %v4656, %v5435
        %v5437 = vlaneseq
        %v5438 = vshrl.u32 %v5437, 7
        %v5439 = vsub.s32 4, %v5438
        %v5440 = vrot.slane %v4657, %v5439
        %v5441 = vlaneseq
        %v5442 = vshrl.u32 %v5441, 7
        %v5443 = vsub.s32 4, %v5442
        %v5444 = vrot.slane %v4658, %v5443
        %5449 = vrot.lane.b32.xlu0 %v5432, 64
        %v5450 = vpop.permute.xlu0 %5449
        %5451 = vrot.lane.b32.xlu0 %v5436, 64
        %v5452 = vpop.permute.xlu0 %5451
        %5453 = vrot.lane.b32.xlu0 %v5440, 64
        %v5454 = vpop.permute.xlu0 %5453
        %5455 = vrot.lane.b32.xlu0 %v5444, 64
        %v5456 = vpop.permute.xlu0 %5455
        %v5457 = vsel %vm498, %v5450, %v5452
        %v5458 = vsel %vm498, %v5452, %v5454
        %v5459 = vsel %vm498, %v5454, %v5456
        %v5465 = vmul.f32 %v3849, %v5450
        %v5466 = vmul.f32 %v3850, %v5457
        %v5467 = vmul.f32 %v3851, %v5458
        %v5468 = vmul.f32 %v3852, %v5459
        %v5469 = vmul.f32 %v4647, %v5456
        %v5470 = vmul.f32 %v3854, %v5450
        %v5471 = vmul.f32 %v3855, %v5457
        %v5472 = vmul.f32 %v3856, %v5458
        %v5473 = vmul.f32 %v3857, %v5459
        %v5474 = vmul.f32 %v4648, %v5456
        %v5475 = vmul.f32 %v3859, %v5450
        %v5476 = vmul.f32 %v3860, %v5457
        %v5477 = vmul.f32 %v3861, %v5458
        %v5478 = vmul.f32 %v3862, %v5459
        %v5479 = vmul.f32 %v4649, %v5456
        %v5495 = vrot.slane %v5465, 7
        %v5496 = vrot.slane %v5466, 7
        %v5497 = vrot.slane %v5467, 7
        %v5498 = vrot.slane %v5468, 7
        %v5499 = vrot.slane %v5469, 7
        %v5500 = vrot.slane %v5470, 7
        %v5501 = vsel %vm4468, %v5495, %v5500
        %v5502 = vrot.slane %v5471, 7
        %v5503 = vsel %vm4468, %v5496, %v5502
        %v5504 = vrot.slane %v5472, 7
        %v5505 = vsel %vm4468, %v5497, %v5504
        %v5506 = vrot.slane %v5473, 7
        %v5507 = vsel %vm4468, %v5498, %v5506
        %v5508 = vrot.slane %v5474, 7
        %v5509 = vsel %vm4468, %v5499, %v5508
        %v5510 = vrot.slane %v5475, 7
        %v5511 = vsel %vm4468, %v5500, %v5510
        %v5512 = vrot.slane %v5476, 7
        %v5513 = vsel %vm4468, %v5502, %v5512
        %v5514 = vrot.slane %v5477, 7
        %v5515 = vsel %vm4468, %v5504, %v5514
        %v5516 = vrot.slane %v5478, 7
        %v5517 = vsel %vm4468, %v5506, %v5516
        %v5518 = vrot.slane %v5479, 7
        %v5519 = vsel %vm4468, %v5508, %v5518
        %5520 = vrot.lane.b32.xlu0 %v5495, 32
        %v5521 = vpop.permute.xlu0 %5520
        %5522 = vrot.lane.b32.xlu0 %v5496, 32
        %v5523 = vpop.permute.xlu0 %5522
        %5524 = vrot.lane.b32.xlu0 %v5497, 32
        %v5525 = vpop.permute.xlu0 %5524
        %5526 = vrot.lane.b32.xlu0 %v5498, 32
        %v5527 = vpop.permute.xlu0 %5526
        %5528 = vrot.lane.b32.xlu0 %v5499, 32
        %v5529 = vpop.permute.xlu0 %5528
        %5530 = vrot.lane.b32.xlu0 %v5501, 32
        %v5531 = vpop.permute.xlu0 %5530
        %5532 = vrot.lane.b32.xlu0 %v5503, 32
        %v5533 = vpop.permute.xlu0 %5532
        %5534 = vrot.lane.b32.xlu0 %v5505, 32
        %v5535 = vpop.permute.xlu0 %5534
        %5536 = vrot.lane.b32.xlu0 %v5507, 32
        %v5537 = vpop.permute.xlu0 %5536
        %5538 = vrot.lane.b32.xlu0 %v5509, 32
        %v5539 = vpop.permute.xlu0 %5538
        %5540 = vrot.lane.b32.xlu0 %v5511, 32
        %v5541 = vpop.permute.xlu0 %5540
        %5542 = vrot.lane.b32.xlu0 %v5513, 32
        %v5543 = vpop.permute.xlu0 %5542
        %5544 = vrot.lane.b32.xlu0 %v5515, 32
        %v5545 = vpop.permute.xlu0 %5544
        %5546 = vrot.lane.b32.xlu0 %v5517, 32
        %v5547 = vpop.permute.xlu0 %5546
        %5548 = vrot.lane.b32.xlu0 %v5519, 32
        %v5549 = vpop.permute.xlu0 %5548
        %v5550 = vsel %vm2423, %v5521, %v5523
        %v5551 = vsel %vm2423, %v5523, %v5525
        %v5552 = vsel %vm2423, %v5525, %v5527
        %v5553 = vsel %vm2423, %v5527, %v5529
        %v5554 = vsel %vm2423, %v5531, %v5533
        %v5555 = vsel %vm2423, %v5533, %v5535
        %v5556 = vsel %vm2423, %v5535, %v5537
        %v5557 = vsel %vm2423, %v5537, %v5539
        %v5558 = vsel %vm2423, %v5541, %v5543
        %v5559 = vsel %vm2423, %v5543, %v5545
        %v5560 = vsel %vm2423, %v5545, %v5547
        %v5561 = vsel %vm2423, %v5547, %v5549
        %v5577 = vadd.f32 %v5414, %v5521
        %v5578 = vadd.f32 %v5415, %v5550
        %v5579 = vadd.f32 %v5416, %v5551
        %v5580 = vadd.f32 %v5417, %v5552
        %v5581 = vadd.f32 %v5418, %v5553
        %v5582 = vadd.f32 %v5419, %v5531
        %v5583 = vadd.f32 %v5420, %v5554
        %v5584 = vadd.f32 %v5421, %v5555
        %v5585 = vadd.f32 %v5422, %v5556
        %v5586 = vadd.f32 %v5423, %v5557
        %v5587 = vadd.f32 %v5424, %v5541
        %v5588 = vadd.f32 %v5425, %v5558
        %v5589 = vadd.f32 %v5426, %v5559
        %v5590 = vadd.f32 %v5427, %v5560
        %v5591 = vadd.f32 %v5428, %v5561
        %v5592 = vlaneseq
        %v5593 = vshrl.u32 %v5592, 7
        %v5594 = vsub.s32 5, %v5593
        %v5595 = vrot.slane %v4655, %v5594
        %v5596 = vlaneseq
        %v5597 = vshrl.u32 %v5596, 7
        %v5598 = vsub.s32 5, %v5597
        %v5599 = vrot.slane %v4656, %v5598
        %v5600 = vlaneseq
        %v5601 = vshrl.u32 %v5600, 7
        %v5602 = vsub.s32 5, %v5601
        %v5603 = vrot.slane %v4657, %v5602
        %v5604 = vlaneseq
        %v5605 = vshrl.u32 %v5604, 7
        %v5606 = vsub.s32 5, %v5605
        %v5607 = vrot.slane %v4658, %v5606
        %5612 = vrot.lane.b32.xlu0 %v5595, 64
        %v5613 = vpop.permute.xlu0 %5612
        %5614 = vrot.lane.b32.xlu0 %v5599, 64
        %v5615 = vpop.permute.xlu0 %5614
        %5616 = vrot.lane.b32.xlu0 %v5603, 64
        %v5617 = vpop.permute.xlu0 %5616
        %5618 = vrot.lane.b32.xlu0 %v5607, 64
        %v5619 = vpop.permute.xlu0 %5618
        %v5620 = vsel %vm498, %v5613, %v5615
        %v5621 = vsel %vm498, %v5615, %v5617
        %v5622 = vsel %vm498, %v5617, %v5619
        %v5628 = vmul.f32 %v3854, %v5613
        %v5629 = vmul.f32 %v3855, %v5620
        %v5630 = vmul.f32 %v3856, %v5621
        %v5631 = vmul.f32 %v3857, %v5622
        %v5632 = vmul.f32 %v4648, %v5619
        %v5633 = vmul.f32 %v3859, %v5613
        %v5634 = vmul.f32 %v3860, %v5620
        %v5635 = vmul.f32 %v3861, %v5621
        %v5636 = vmul.f32 %v3862, %v5622
        %v5637 = vmul.f32 %v4649, %v5619
        %v5638 = vmul.f32 %v3864, %v5613
        %v5639 = vmul.f32 %v3865, %v5620
        %v5640 = vmul.f32 %v3866, %v5621
        %v5641 = vmul.f32 %v3867, %v5622
        %v5642 = vmul.f32 %v4650, %v5619
        %v5658 = vrot.slane %v5628, 2
        %v5659 = vrot.slane %v5629, 2
        %v5660 = vrot.slane %v5630, 2
        %v5661 = vrot.slane %v5631, 2
        %v5662 = vrot.slane %v5632, 2
        %v5663 = vrot.slane %v5633, 2
        %v5664 = vsel %vm715, %v5658, %v5663
        %v5665 = vrot.slane %v5634, 2
        %v5666 = vsel %vm715, %v5659, %v5665
        %v5667 = vrot.slane %v5635, 2
        %v5668 = vsel %vm715, %v5660, %v5667
        %v5669 = vrot.slane %v5636, 2
        %v5670 = vsel %vm715, %v5661, %v5669
        %v5671 = vrot.slane %v5637, 2
        %v5672 = vsel %vm715, %v5662, %v5671
        %v5673 = vrot.slane %v5638, 2
        %v5674 = vsel %vm715, %v5663, %v5673
        %v5675 = vrot.slane %v5639, 2
        %v5676 = vsel %vm715, %v5665, %v5675
        %v5677 = vrot.slane %v5640, 2
        %v5678 = vsel %vm715, %v5667, %v5677
        %v5679 = vrot.slane %v5641, 2
        %v5680 = vsel %vm715, %v5669, %v5679
        %v5681 = vrot.slane %v5642, 2
        %v5682 = vsel %vm715, %v5671, %v5681
        %5683 = vrot.lane.b32.xlu0 %v5658, 32
        %v5684 = vpop.permute.xlu0 %5683
        %5685 = vrot.lane.b32.xlu0 %v5659, 32
        %v5686 = vpop.permute.xlu0 %5685
        %5687 = vrot.lane.b32.xlu0 %v5660, 32
        %v5688 = vpop.permute.xlu0 %5687
        %5689 = vrot.lane.b32.xlu0 %v5661, 32
        %v5690 = vpop.permute.xlu0 %5689
        %5691 = vrot.lane.b32.xlu0 %v5662, 32
        %v5692 = vpop.permute.xlu0 %5691
        %5693 = vrot.lane.b32.xlu0 %v5664, 32
        %v5694 = vpop.permute.xlu0 %5693
        %5695 = vrot.lane.b32.xlu0 %v5666, 32
        %v5696 = vpop.permute.xlu0 %5695
        %5697 = vrot.lane.b32.xlu0 %v5668, 32
        %v5698 = vpop.permute.xlu0 %5697
        %5699 = vrot.lane.b32.xlu0 %v5670, 32
        %v5700 = vpop.permute.xlu0 %5699
        %5701 = vrot.lane.b32.xlu0 %v5672, 32
        %v5702 = vpop.permute.xlu0 %5701
        %5703 = vrot.lane.b32.xlu0 %v5674, 32
        %v5704 = vpop.permute.xlu0 %5703
        %5705 = vrot.lane.b32.xlu0 %v5676, 32
        %v5706 = vpop.permute.xlu0 %5705
        %5707 = vrot.lane.b32.xlu0 %v5678, 32
        %v5708 = vpop.permute.xlu0 %5707
        %5709 = vrot.lane.b32.xlu0 %v5680, 32
        %v5710 = vpop.permute.xlu0 %5709
        %5711 = vrot.lane.b32.xlu0 %v5682, 32
        %v5712 = vpop.permute.xlu0 %5711
        %v5713 = vsel %vm2423, %v5684, %v5686
        %v5714 = vsel %vm2423, %v5686, %v5688
        %v5715 = vsel %vm2423, %v5688, %v5690
        %v5716 = vsel %vm2423, %v5690, %v5692
        %v5717 = vsel %vm2423, %v5694, %v5696
        %v5718 = vsel %vm2423, %v5696, %v5698
        %v5719 = vsel %vm2423, %v5698, %v5700
        %v5720 = vsel %vm2423, %v5700, %v5702
        %v5721 = vsel %vm2423, %v5704, %v5706
        %v5722 = vsel %vm2423, %v5706, %v5708
        %v5723 = vsel %vm2423, %v5708, %v5710
        %v5724 = vsel %vm2423, %v5710, %v5712
        %v5740 = vadd.f32 %v5577, %v5684
        %v5741 = vadd.f32 %v5578, %v5713
        %v5742 = vadd.f32 %v5579, %v5714
        %v5743 = vadd.f32 %v5580, %v5715
        %v5744 = vadd.f32 %v5581, %v5716
        %v5745 = vadd.f32 %v5582, %v5694
        %v5746 = vadd.f32 %v5583, %v5717
        %v5747 = vadd.f32 %v5584, %v5718
        %v5748 = vadd.f32 %v5585, %v5719
        %v5749 = vadd.f32 %v5586, %v5720
        %v5750 = vadd.f32 %v5587, %v5704
        %v5751 = vadd.f32 %v5588, %v5721
        %v5752 = vadd.f32 %v5589, %v5722
        %v5753 = vadd.f32 %v5590, %v5723
        %v5754 = vadd.f32 %v5591, %v5724
        %v5755 = vld [vmem:[#allocation3 + $0x30] sm:$0x80]
        %v5756 = vld [vmem:[#allocation3 + $0x80] sm:$0xff]
        %v5757 = vld [vmem:[#allocation3 + $0xd0] sm:$0xff]
        %v5758 = vld [vmem:[#allocation3 + $0x120] sm:$0xff]
        %v5759 = vld [vmem:[#allocation3 + $0x170] sm:$0xff]
        %v5760 = vld [vmem:[#allocation3 + $0x1c0] sm:$0x1]
        %v5761 = vld [vmem:[%s3 + $0x20] sm:$0xc0]
        %v5762 = vld [vmem:[%s3 + $0x28] sm:$0xc0]
        %v5763 = vld [vmem:[%s3 + $0x30] sm:$0xc0]
        %v5764 = vld [vmem:[%s3 + $0x38] sm:$0xc0]
        %v5765 = vld [vmem:[%s3 + $0x40] sm:$0x1f]
        %v5766 = vld [vmem:[%s3 + $0x48] sm:$0x1f]
        %v5767 = vld [vmem:[%s3 + $0x50] sm:$0x1f]
        %v5768 = vld [vmem:[%s3 + $0x58] sm:$0x1f]
        %v5769 = vlaneseq
        %v5770 = vshrl.u32 %v5769, 7
        %v5771 = vsub.s32 6, %v5770
        %v5772 = vrot.slane %v5761, %v5771
        %v5773 = vlaneseq
        %v5774 = vshrl.u32 %v5773, 7
        %v5775 = vsub.s32 6, %v5774
        %v5776 = vrot.slane %v5762, %v5775
        %v5777 = vlaneseq
        %v5778 = vshrl.u32 %v5777, 7
        %v5779 = vsub.s32 6, %v5778
        %v5780 = vrot.slane %v5763, %v5779
        %v5781 = vlaneseq
        %v5782 = vshrl.u32 %v5781, 7
        %v5783 = vsub.s32 6, %v5782
        %v5784 = vrot.slane %v5764, %v5783
        %5789 = vrot.lane.b32.xlu0 %v5772, 32
        %v5790 = vpop.permute.xlu0 %5789
        %5791 = vrot.lane.b32.xlu0 %v5776, 32
        %v5792 = vpop.permute.xlu0 %5791
        %5793 = vrot.lane.b32.xlu0 %v5780, 32
        %v5794 = vpop.permute.xlu0 %5793
        %5795 = vrot.lane.b32.xlu0 %v5784, 32
        %v5796 = vpop.permute.xlu0 %5795
        %v5797 = vsel %vm2423, %v5790, %v5792
        %v5798 = vsel %vm2423, %v5792, %v5794
        %v5799 = vsel %vm2423, %v5794, %v5796
        %v5805 = vmul.f32 %v3840, %v5790
        %v5806 = vmul.f32 %v3841, %v5797
        %v5807 = vmul.f32 %v3842, %v5798
        %v5808 = vmul.f32 %v4645, %v5799
        %v5809 = vmul.f32 %v5755, %v5796
        %v5810 = vmul.f32 %v3845, %v5790
        %v5811 = vmul.f32 %v3846, %v5797
        %v5812 = vmul.f32 %v3847, %v5798
        %v5813 = vmul.f32 %v4646, %v5799
        %v5814 = vmul.f32 %v5756, %v5796
        %v5815 = vmul.f32 %v3850, %v5790
        %v5816 = vmul.f32 %v3851, %v5797
        %v5817 = vmul.f32 %v3852, %v5798
        %v5818 = vmul.f32 %v4647, %v5799
        %v5819 = vmul.f32 %v5757, %v5796
        %5835 = vrot.lane.b32.xlu0 %v5805, 64
        %v5836 = vpop.permute.xlu0 %5835
        %5837 = vrot.lane.b32.xlu0 %v5806, 64
        %v5838 = vpop.permute.xlu0 %5837
        %5839 = vrot.lane.b32.xlu0 %v5807, 64
        %v5840 = vpop.permute.xlu0 %5839
        %5841 = vrot.lane.b32.xlu0 %v5808, 64
        %v5842 = vpop.permute.xlu0 %5841
        %5843 = vrot.lane.b32.xlu0 %v5809, 64
        %v5844 = vpop.permute.xlu0 %5843
        %5845 = vrot.lane.b32.xlu0 %v5810, 64
        %v5846 = vpop.permute.xlu0 %5845
        %5847 = vrot.lane.b32.xlu0 %v5811, 64
        %v5848 = vpop.permute.xlu0 %5847
        %5849 = vrot.lane.b32.xlu0 %v5812, 64
        %v5850 = vpop.permute.xlu0 %5849
        %5851 = vrot.lane.b32.xlu0 %v5813, 64
        %v5852 = vpop.permute.xlu0 %5851
        %5853 = vrot.lane.b32.xlu0 %v5814, 64
        %v5854 = vpop.permute.xlu0 %5853
        %5855 = vrot.lane.b32.xlu0 %v5815, 64
        %v5856 = vpop.permute.xlu0 %5855
        %5857 = vrot.lane.b32.xlu0 %v5816, 64
        %v5858 = vpop.permute.xlu0 %5857
        %5859 = vrot.lane.b32.xlu0 %v5817, 64
        %v5860 = vpop.permute.xlu0 %5859
        %5861 = vrot.lane.b32.xlu0 %v5818, 64
        %v5862 = vpop.permute.xlu0 %5861
        %5863 = vrot.lane.b32.xlu0 %v5819, 64
        %v5864 = vpop.permute.xlu0 %5863
        %v5865 = vsel %vm498, %v5836, %v5838
        %v5866 = vsel %vm498, %v5838, %v5840
        %v5867 = vsel %vm498, %v5840, %v5842
        %v5868 = vsel %vm498, %v5842, %v5844
        %v5869 = vsel %vm498, %v5846, %v5848
        %v5870 = vsel %vm498, %v5848, %v5850
        %v5871 = vsel %vm498, %v5850, %v5852
        %v5872 = vsel %vm498, %v5852, %v5854
        %v5873 = vsel %vm498, %v5856, %v5858
        %v5874 = vsel %vm498, %v5858, %v5860
        %v5875 = vsel %vm498, %v5860, %v5862
        %v5876 = vsel %vm498, %v5862, %v5864
        %v5892 = vadd.f32 %v5740, %v5836
        %v5893 = vadd.f32 %v5741, %v5865
        %v5894 = vadd.f32 %v5742, %v5866
        %v5895 = vadd.f32 %v5743, %v5867
        %v5896 = vadd.f32 %v5744, %v5868
        %v5897 = vadd.f32 %v5745, %v5846
        %v5898 = vadd.f32 %v5746, %v5869
        %v5899 = vadd.f32 %v5747, %v5870
        %v5900 = vadd.f32 %v5748, %v5871
        %v5901 = vadd.f32 %v5749, %v5872
        %v5902 = vadd.f32 %v5750, %v5856
        %v5903 = vadd.f32 %v5751, %v5873
        %v5904 = vadd.f32 %v5752, %v5874
        %v5905 = vadd.f32 %v5753, %v5875
        %v5906 = vadd.f32 %v5754, %v5876
        %v5907 = vlaneseq
        %v5908 = vshrl.u32 %v5907, 7
        %v5909 = vsub.s32 7, %v5908
        %v5910 = vrot.slane %v5761, %v5909
        %v5911 = vlaneseq
        %v5912 = vshrl.u32 %v5911, 7
        %v5913 = vsub.s32 7, %v5912
        %v5914 = vrot.slane %v5762, %v5913
        %v5915 = vlaneseq
        %v5916 = vshrl.u32 %v5915, 7
        %v5917 = vsub.s32 7, %v5916
        %v5918 = vrot.slane %v5763, %v5917
        %v5919 = vlaneseq
        %v5920 = vshrl.u32 %v5919, 7
        %v5921 = vsub.s32 7, %v5920
        %v5922 = vrot.slane %v5764, %v5921
        %5927 = vrot.lane.b32.xlu0 %v5910, 32
        %v5928 = vpop.permute.xlu0 %5927
        %5929 = vrot.lane.b32.xlu0 %v5914, 32
        %v5930 = vpop.permute.xlu0 %5929
        %5931 = vrot.lane.b32.xlu0 %v5918, 32
        %v5932 = vpop.permute.xlu0 %5931
        %5933 = vrot.lane.b32.xlu0 %v5922, 32
        %v5934 = vpop.permute.xlu0 %5933
        %v5935 = vsel %vm2423, %v5928, %v5930
        %v5936 = vsel %vm2423, %v5930, %v5932
        %v5937 = vsel %vm2423, %v5932, %v5934
        %v5943 = vmul.f32 %v3845, %v5928
        %v5944 = vmul.f32 %v3846, %v5935
        %v5945 = vmul.f32 %v3847, %v5936
        %v5946 = vmul.f32 %v4646, %v5937
        %v5947 = vmul.f32 %v5756, %v5934
        %v5948 = vmul.f32 %v3850, %v5928
        %v5949 = vmul.f32 %v3851, %v5935
        %v5950 = vmul.f32 %v3852, %v5936
        %v5951 = vmul.f32 %v4647, %v5937
        %v5952 = vmul.f32 %v5757, %v5934
        %v5953 = vmul.f32 %v3855, %v5928
        %v5954 = vmul.f32 %v3856, %v5935
        %v5955 = vmul.f32 %v3857, %v5936
        %v5956 = vmul.f32 %v4648, %v5937
        %v5957 = vmul.f32 %v5758, %v5934
        %v5973 = vrot.slane %v5943, 3
        %v5974 = vrot.slane %v5944, 3
        %v5975 = vrot.slane %v5945, 3
        %v5976 = vrot.slane %v5946, 3
        %v5977 = vrot.slane %v5947, 3
        %v5978 = vrot.slane %v5948, 3
        %v5979 = vsel %vm827, %v5973, %v5978
        %v5980 = vrot.slane %v5949, 3
        %v5981 = vsel %vm827, %v5974, %v5980
        %v5982 = vrot.slane %v5950, 3
        %v5983 = vsel %vm827, %v5975, %v5982
        %v5984 = vrot.slane %v5951, 3
        %v5985 = vsel %vm827, %v5976, %v5984
        %v5986 = vrot.slane %v5952, 3
        %v5987 = vsel %vm827, %v5977, %v5986
        %v5988 = vrot.slane %v5953, 3
        %v5989 = vsel %vm827, %v5978, %v5988
        %v5990 = vrot.slane %v5954, 3
        %v5991 = vsel %vm827, %v5980, %v5990
        %v5992 = vrot.slane %v5955, 3
        %v5993 = vsel %vm827, %v5982, %v5992
        %v5994 = vrot.slane %v5956, 3
        %v5995 = vsel %vm827, %v5984, %v5994
        %v5996 = vrot.slane %v5957, 3
        %v5997 = vsel %vm827, %v5986, %v5996
        %5998 = vrot.lane.b32.xlu0 %v5973, 64
        %v5999 = vpop.permute.xlu0 %5998
        %6000 = vrot.lane.b32.xlu0 %v5974, 64
        %v6001 = vpop.permute.xlu0 %6000
        %6002 = vrot.lane.b32.xlu0 %v5975, 64
        %v6003 = vpop.permute.xlu0 %6002
        %6004 = vrot.lane.b32.xlu0 %v5976, 64
        %v6005 = vpop.permute.xlu0 %6004
        %6006 = vrot.lane.b32.xlu0 %v5977, 64
        %v6007 = vpop.permute.xlu0 %6006
        %6008 = vrot.lane.b32.xlu0 %v5979, 64
        %v6009 = vpop.permute.xlu0 %6008
        %6010 = vrot.lane.b32.xlu0 %v5981, 64
        %v6011 = vpop.permute.xlu0 %6010
        %6012 = vrot.lane.b32.xlu0 %v5983, 64
        %v6013 = vpop.permute.xlu0 %6012
        %6014 = vrot.lane.b32.xlu0 %v5985, 64
        %v6015 = vpop.permute.xlu0 %6014
        %6016 = vrot.lane.b32.xlu0 %v5987, 64
        %v6017 = vpop.permute.xlu0 %6016
        %6018 = vrot.lane.b32.xlu0 %v5989, 64
        %v6019 = vpop.permute.xlu0 %6018
        %6020 = vrot.lane.b32.xlu0 %v5991, 64
        %v6021 = vpop.permute.xlu0 %6020
        %6022 = vrot.lane.b32.xlu0 %v5993, 64
        %v6023 = vpop.permute.xlu0 %6022
        %6024 = vrot.lane.b32.xlu0 %v5995, 64
        %v6025 = vpop.permute.xlu0 %6024
        %6026 = vrot.lane.b32.xlu0 %v5997, 64
        %v6027 = vpop.permute.xlu0 %6026
        %v6028 = vsel %vm498, %v5999, %v6001
        %v6029 = vsel %vm498, %v6001, %v6003
        %v6030 = vsel %vm498, %v6003, %v6005
        %v6031 = vsel %vm498, %v6005, %v6007
        %v6032 = vsel %vm498, %v6009, %v6011
        %v6033 = vsel %vm498, %v6011, %v6013
        %v6034 = vsel %vm498, %v6013, %v6015
        %v6035 = vsel %vm498, %v6015, %v6017
        %v6036 = vsel %vm498, %v6019, %v6021
        %v6037 = vsel %vm498, %v6021, %v6023
        %v6038 = vsel %vm498, %v6023, %v6025
        %v6039 = vsel %vm498, %v6025, %v6027
        %v6055 = vadd.f32 %v5892, %v5999
        %v6056 = vadd.f32 %v5893, %v6028
        %v6057 = vadd.f32 %v5894, %v6029
        %v6058 = vadd.f32 %v5895, %v6030
        %v6059 = vadd.f32 %v5896, %v6031
        %v6060 = vadd.f32 %v5897, %v6009
        %v6061 = vadd.f32 %v5898, %v6032
        %v6062 = vadd.f32 %v5899, %v6033
        %v6063 = vadd.f32 %v5900, %v6034
        %v6064 = vadd.f32 %v5901, %v6035
        %v6065 = vadd.f32 %v5902, %v6019
        %v6066 = vadd.f32 %v5903, %v6036
        %v6067 = vadd.f32 %v5904, %v6037
        %v6068 = vadd.f32 %v5905, %v6038
        %v6069 = vadd.f32 %v5906, %v6039
        %v6070 = vlaneseq
        %v6071 = vshrl.u32 %v6070, 7
        %v6072 = vsub.s32 0, %v6071
        %v6073 = vrot.slane %v5765, %v6072
        %v6074 = vlaneseq
        %v6075 = vshrl.u32 %v6074, 7
        %v6076 = vsub.s32 0, %v6075
        %v6077 = vrot.slane %v5766, %v6076
        %v6078 = vlaneseq
        %v6079 = vshrl.u32 %v6078, 7
        %v6080 = vsub.s32 0, %v6079
        %v6081 = vrot.slane %v5767, %v6080
        %v6082 = vlaneseq
        %v6083 = vshrl.u32 %v6082, 7
        %v6084 = vsub.s32 0, %v6083
        %v6085 = vrot.slane %v5768, %v6084
        %6090 = vrot.lane.b32.xlu0 %v6073, 32
        %v6091 = vpop.permute.xlu0 %6090
        %6092 = vrot.lane.b32.xlu0 %v6077, 32
        %v6093 = vpop.permute.xlu0 %6092
        %6094 = vrot.lane.b32.xlu0 %v6081, 32
        %v6095 = vpop.permute.xlu0 %6094
        %6096 = vrot.lane.b32.xlu0 %v6085, 32
        %v6097 = vpop.permute.xlu0 %6096
        %v6098 = vsel %vm2423, %v6091, %v6093
        %v6099 = vsel %vm2423, %v6093, %v6095
        %v6100 = vsel %vm2423, %v6095, %v6097
        %v6106 = vmul.f32 %v3845, %v6091
        %v6107 = vmul.f32 %v3846, %v6098
        %v6108 = vmul.f32 %v3847, %v6099
        %v6109 = vmul.f32 %v4646, %v6100
        %v6110 = vmul.f32 %v5756, %v6097
        %v6111 = vmul.f32 %v3850, %v6091
        %v6112 = vmul.f32 %v3851, %v6098
        %v6113 = vmul.f32 %v3852, %v6099
        %v6114 = vmul.f32 %v4647, %v6100
        %v6115 = vmul.f32 %v5757, %v6097
        %v6116 = vmul.f32 %v3855, %v6091
        %v6117 = vmul.f32 %v3856, %v6098
        %v6118 = vmul.f32 %v3857, %v6099
        %v6119 = vmul.f32 %v4648, %v6100
        %v6120 = vmul.f32 %v5758, %v6097
        %v6136 = vrot.slane %v6106, 6
        %v6137 = vrot.slane %v6107, 6
        %v6138 = vrot.slane %v6108, 6
        %v6139 = vrot.slane %v6109, 6
        %v6140 = vrot.slane %v6110, 6
        %v6141 = vrot.slane %v6111, 6
        %v6142 = vsel %vm3768, %v6136, %v6141
        %v6143 = vrot.slane %v6112, 6
        %v6144 = vsel %vm3768, %v6137, %v6143
        %v6145 = vrot.slane %v6113, 6
        %v6146 = vsel %vm3768, %v6138, %v6145
        %v6147 = vrot.slane %v6114, 6
        %v6148 = vsel %vm3768, %v6139, %v6147
        %v6149 = vrot.slane %v6115, 6
        %v6150 = vsel %vm3768, %v6140, %v6149
        %v6151 = vrot.slane %v6116, 6
        %v6152 = vsel %vm3768, %v6141, %v6151
        %v6153 = vrot.slane %v6117, 6
        %v6154 = vsel %vm3768, %v6143, %v6153
        %v6155 = vrot.slane %v6118, 6
        %v6156 = vsel %vm3768, %v6145, %v6155
        %v6157 = vrot.slane %v6119, 6
        %v6158 = vsel %vm3768, %v6147, %v6157
        %v6159 = vrot.slane %v6120, 6
        %v6160 = vsel %vm3768, %v6149, %v6159
        %6161 = vrot.lane.b32.xlu0 %v6136, 64
        %v6162 = vpop.permute.xlu0 %6161
        %6163 = vrot.lane.b32.xlu0 %v6137, 64
        %v6164 = vpop.permute.xlu0 %6163
        %6165 = vrot.lane.b32.xlu0 %v6138, 64
        %v6166 = vpop.permute.xlu0 %6165
        %6167 = vrot.lane.b32.xlu0 %v6139, 64
        %v6168 = vpop.permute.xlu0 %6167
        %6169 = vrot.lane.b32.xlu0 %v6140, 64
        %v6170 = vpop.permute.xlu0 %6169
        %6171 = vrot.lane.b32.xlu0 %v6142, 64
        %v6172 = vpop.permute.xlu0 %6171
        %6173 = vrot.lane.b32.xlu0 %v6144, 64
        %v6174 = vpop.permute.xlu0 %6173
        %6175 = vrot.lane.b32.xlu0 %v6146, 64
        %v6176 = vpop.permute.xlu0 %6175
        %6177 = vrot.lane.b32.xlu0 %v6148, 64
        %v6178 = vpop.permute.xlu0 %6177
        %6179 = vrot.lane.b32.xlu0 %v6150, 64
        %v6180 = vpop.permute.xlu0 %6179
        %6181 = vrot.lane.b32.xlu0 %v6152, 64
        %v6182 = vpop.permute.xlu0 %6181
        %6183 = vrot.lane.b32.xlu0 %v6154, 64
        %v6184 = vpop.permute.xlu0 %6183
        %6185 = vrot.lane.b32.xlu0 %v6156, 64
        %v6186 = vpop.permute.xlu0 %6185
        %6187 = vrot.lane.b32.xlu0 %v6158, 64
        %v6188 = vpop.permute.xlu0 %6187
        %6189 = vrot.lane.b32.xlu0 %v6160, 64
        %v6190 = vpop.permute.xlu0 %6189
        %v6191 = vsel %vm498, %v6162, %v6164
        %v6192 = vsel %vm498, %v6164, %v6166
        %v6193 = vsel %vm498, %v6166, %v6168
        %v6194 = vsel %vm498, %v6168, %v6170
        %v6195 = vsel %vm498, %v6172, %v6174
        %v6196 = vsel %vm498, %v6174, %v6176
        %v6197 = vsel %vm498, %v6176, %v6178
        %v6198 = vsel %vm498, %v6178, %v6180
        %v6199 = vsel %vm498, %v6182, %v6184
        %v6200 = vsel %vm498, %v6184, %v6186
        %v6201 = vsel %vm498, %v6186, %v6188
        %v6202 = vsel %vm498, %v6188, %v6190
        %v6218 = vadd.f32 %v6055, %v6162
        %v6219 = vadd.f32 %v6056, %v6191
        %v6220 = vadd.f32 %v6057, %v6192
        %v6221 = vadd.f32 %v6058, %v6193
        %v6222 = vadd.f32 %v6059, %v6194
        %v6223 = vadd.f32 %v6060, %v6172
        %v6224 = vadd.f32 %v6061, %v6195
        %v6225 = vadd.f32 %v6062, %v6196
        %v6226 = vadd.f32 %v6063, %v6197
        %v6227 = vadd.f32 %v6064, %v6198
        %v6228 = vadd.f32 %v6065, %v6182
        %v6229 = vadd.f32 %v6066, %v6199
        %v6230 = vadd.f32 %v6067, %v6200
        %v6231 = vadd.f32 %v6068, %v6201
        %v6232 = vadd.f32 %v6069, %v6202
        %v6233 = vlaneseq
        %v6234 = vshrl.u32 %v6233, 7
        %v6235 = vsub.s32 1, %v6234
        %v6236 = vrot.slane %v5765, %v6235
        %v6237 = vlaneseq
        %v6238 = vshrl.u32 %v6237, 7
        %v6239 = vsub.s32 1, %v6238
        %v6240 = vrot.slane %v5766, %v6239
        %v6241 = vlaneseq
        %v6242 = vshrl.u32 %v6241, 7
        %v6243 = vsub.s32 1, %v6242
        %v6244 = vrot.slane %v5767, %v6243
        %v6245 = vlaneseq
        %v6246 = vshrl.u32 %v6245, 7
        %v6247 = vsub.s32 1, %v6246
        %v6248 = vrot.slane %v5768, %v6247
        %6253 = vrot.lane.b32.xlu0 %v6236, 32
        %v6254 = vpop.permute.xlu0 %6253
        %6255 = vrot.lane.b32.xlu0 %v6240, 32
        %v6256 = vpop.permute.xlu0 %6255
        %6257 = vrot.lane.b32.xlu0 %v6244, 32
        %v6258 = vpop.permute.xlu0 %6257
        %6259 = vrot.lane.b32.xlu0 %v6248, 32
        %v6260 = vpop.permute.xlu0 %6259
        %v6261 = vsel %vm2423, %v6254, %v6256
        %v6262 = vsel %vm2423, %v6256, %v6258
        %v6263 = vsel %vm2423, %v6258, %v6260
        %v6269 = vmul.f32 %v3850, %v6254
        %v6270 = vmul.f32 %v3851, %v6261
        %v6271 = vmul.f32 %v3852, %v6262
        %v6272 = vmul.f32 %v4647, %v6263
        %v6273 = vmul.f32 %v5757, %v6260
        %v6274 = vmul.f32 %v3855, %v6254
        %v6275 = vmul.f32 %v3856, %v6261
        %v6276 = vmul.f32 %v3857, %v6262
        %v6277 = vmul.f32 %v4648, %v6263
        %v6278 = vmul.f32 %v5758, %v6260
        %v6289 = vrot.slane %v6269, 1
        %v6290 = vrot.slane %v6270, 1
        %v6291 = vrot.slane %v6271, 1
        %v6292 = vrot.slane %v6272, 1
        %v6293 = vrot.slane %v6273, 1
        %v6294 = vrot.slane %v6274, 1
        %v6295 = vsel %vm603, %v6289, %v6294
        %v6296 = vrot.slane %v6275, 1
        %v6297 = vsel %vm603, %v6290, %v6296
        %v6298 = vrot.slane %v6276, 1
        %v6299 = vsel %vm603, %v6291, %v6298
        %v6300 = vrot.slane %v6277, 1
        %v6301 = vsel %vm603, %v6292, %v6300
        %v6302 = vrot.slane %v6278, 1
        %v6303 = vsel %vm603, %v6293, %v6302
        %6304 = vrot.lane.b32.xlu0 %v6289, 64
        %v6305 = vpop.permute.xlu0 %6304
        %6306 = vrot.lane.b32.xlu0 %v6290, 64
        %v6307 = vpop.permute.xlu0 %6306
        %6308 = vrot.lane.b32.xlu0 %v6291, 64
        %v6309 = vpop.permute.xlu0 %6308
        %6310 = vrot.lane.b32.xlu0 %v6292, 64
        %v6311 = vpop.permute.xlu0 %6310
        %6312 = vrot.lane.b32.xlu0 %v6293, 64
        %v6313 = vpop.permute.xlu0 %6312
        %6314 = vrot.lane.b32.xlu0 %v6295, 64
        %v6315 = vpop.permute.xlu0 %6314
        %6316 = vrot.lane.b32.xlu0 %v6297, 64
        %v6317 = vpop.permute.xlu0 %6316
        %6318 = vrot.lane.b32.xlu0 %v6299, 64
        %v6319 = vpop.permute.xlu0 %6318
        %6320 = vrot.lane.b32.xlu0 %v6301, 64
        %v6321 = vpop.permute.xlu0 %6320
        %6322 = vrot.lane.b32.xlu0 %v6303, 64
        %v6323 = vpop.permute.xlu0 %6322
        %6324 = vrot.lane.b32.xlu0 %v6294, 64
        %v6325 = vpop.permute.xlu0 %6324
        %6326 = vrot.lane.b32.xlu0 %v6296, 64
        %v6327 = vpop.permute.xlu0 %6326
        %6328 = vrot.lane.b32.xlu0 %v6298, 64
        %v6329 = vpop.permute.xlu0 %6328
        %6330 = vrot.lane.b32.xlu0 %v6300, 64
        %v6331 = vpop.permute.xlu0 %6330
        %6332 = vrot.lane.b32.xlu0 %v6302, 64
        %v6333 = vpop.permute.xlu0 %6332
        %v6334 = vsel %vm498, %v6305, %v6307
        %v6335 = vsel %vm498, %v6307, %v6309
        %v6336 = vsel %vm498, %v6309, %v6311
        %v6337 = vsel %vm498, %v6311, %v6313
        %v6338 = vsel %vm498, %v6315, %v6317
        %v6339 = vsel %vm498, %v6317, %v6319
        %v6340 = vsel %vm498, %v6319, %v6321
        %v6341 = vsel %vm498, %v6321, %v6323
        %v6342 = vsel %vm498, %v6325, %v6327
        %v6343 = vsel %vm498, %v6327, %v6329
        %v6344 = vsel %vm498, %v6329, %v6331
        %v6345 = vsel %vm498, %v6331, %v6333
        %v6361 = vadd.f32 %v6218, %v6305
        %v6362 = vadd.f32 %v6219, %v6334
        %v6363 = vadd.f32 %v6220, %v6335
        %v6364 = vadd.f32 %v6221, %v6336
        %v6365 = vadd.f32 %v6222, %v6337
        %v6366 = vadd.f32 %v6223, %v6315
        %v6367 = vadd.f32 %v6224, %v6338
        %v6368 = vadd.f32 %v6225, %v6339
        %v6369 = vadd.f32 %v6226, %v6340
        %v6370 = vadd.f32 %v6227, %v6341
        %v6371 = vadd.f32 %v6228, %v6325
        %v6372 = vadd.f32 %v6229, %v6342
        %v6373 = vadd.f32 %v6230, %v6343
        %v6374 = vadd.f32 %v6231, %v6344
        %v6375 = vadd.f32 %v6232, %v6345
        %v6376 = vlaneseq
        %v6377 = vshrl.u32 %v6376, 7
        %v6378 = vsub.s32 2, %v6377
        %v6379 = vrot.slane %v5765, %v6378
        %v6380 = vlaneseq
        %v6381 = vshrl.u32 %v6380, 7
        %v6382 = vsub.s32 2, %v6381
        %v6383 = vrot.slane %v5766, %v6382
        %v6384 = vlaneseq
        %v6385 = vshrl.u32 %v6384, 7
        %v6386 = vsub.s32 2, %v6385
        %v6387 = vrot.slane %v5767, %v6386
        %v6388 = vlaneseq
        %v6389 = vshrl.u32 %v6388, 7
        %v6390 = vsub.s32 2, %v6389
        %v6391 = vrot.slane %v5768, %v6390
        %6396 = vrot.lane.b32.xlu0 %v6379, 32
        %v6397 = vpop.permute.xlu0 %6396
        %6398 = vrot.lane.b32.xlu0 %v6383, 32
        %v6399 = vpop.permute.xlu0 %6398
        %6400 = vrot.lane.b32.xlu0 %v6387, 32
        %v6401 = vpop.permute.xlu0 %6400
        %6402 = vrot.lane.b32.xlu0 %v6391, 32
        %v6403 = vpop.permute.xlu0 %6402
        %v6404 = vsel %vm2423, %v6397, %v6399
        %v6405 = vsel %vm2423, %v6399, %v6401
        %v6406 = vsel %vm2423, %v6401, %v6403
        %v6412 = vmul.f32 %v3850, %v6397
        %v6413 = vmul.f32 %v3851, %v6404
        %v6414 = vmul.f32 %v3852, %v6405
        %v6415 = vmul.f32 %v4647, %v6406
        %v6416 = vmul.f32 %v5757, %v6403
        %v6417 = vmul.f32 %v3855, %v6397
        %v6418 = vmul.f32 %v3856, %v6404
        %v6419 = vmul.f32 %v3857, %v6405
        %v6420 = vmul.f32 %v4648, %v6406
        %v6421 = vmul.f32 %v5758, %v6403
        %v6422 = vmul.f32 %v3860, %v6397
        %v6423 = vmul.f32 %v3861, %v6404
        %v6424 = vmul.f32 %v3862, %v6405
        %v6425 = vmul.f32 %v4649, %v6406
        %v6426 = vmul.f32 %v5759, %v6403
        %v6442 = vrot.slane %v6412, 4
        %v6443 = vrot.slane %v6413, 4
        %v6444 = vrot.slane %v6414, 4
        %v6445 = vrot.slane %v6415, 4
        %v6446 = vrot.slane %v6416, 4
        %v6447 = vrot.slane %v6417, 4
        %v6448 = vsel %vm949, %v6442, %v6447
        %v6449 = vrot.slane %v6418, 4
        %v6450 = vsel %vm949, %v6443, %v6449
        %v6451 = vrot.slane %v6419, 4
        %v6452 = vsel %vm949, %v6444, %v6451
        %v6453 = vrot.slane %v6420, 4
        %v6454 = vsel %vm949, %v6445, %v6453
        %v6455 = vrot.slane %v6421, 4
        %v6456 = vsel %vm949, %v6446, %v6455
        %v6457 = vrot.slane %v6422, 4
        %v6458 = vsel %vm949, %v6447, %v6457
        %v6459 = vrot.slane %v6423, 4
        %v6460 = vsel %vm949, %v6449, %v6459
        %v6461 = vrot.slane %v6424, 4
        %v6462 = vsel %vm949, %v6451, %v6461
        %v6463 = vrot.slane %v6425, 4
        %v6464 = vsel %vm949, %v6453, %v6463
        %v6465 = vrot.slane %v6426, 4
        %v6466 = vsel %vm949, %v6455, %v6465
        %6467 = vrot.lane.b32.xlu0 %v6442, 64
        %v6468 = vpop.permute.xlu0 %6467
        %6469 = vrot.lane.b32.xlu0 %v6443, 64
        %v6470 = vpop.permute.xlu0 %6469
        %6471 = vrot.lane.b32.xlu0 %v6444, 64
        %v6472 = vpop.permute.xlu0 %6471
        %6473 = vrot.lane.b32.xlu0 %v6445, 64
        %v6474 = vpop.permute.xlu0 %6473
        %6475 = vrot.lane.b32.xlu0 %v6446, 64
        %v6476 = vpop.permute.xlu0 %6475
        %6477 = vrot.lane.b32.xlu0 %v6448, 64
        %v6478 = vpop.permute.xlu0 %6477
        %6479 = vrot.lane.b32.xlu0 %v6450, 64
        %v6480 = vpop.permute.xlu0 %6479
        %6481 = vrot.lane.b32.xlu0 %v6452, 64
        %v6482 = vpop.permute.xlu0 %6481
        %6483 = vrot.lane.b32.xlu0 %v6454, 64
        %v6484 = vpop.permute.xlu0 %6483
        %6485 = vrot.lane.b32.xlu0 %v6456, 64
        %v6486 = vpop.permute.xlu0 %6485
        %6487 = vrot.lane.b32.xlu0 %v6458, 64
        %v6488 = vpop.permute.xlu0 %6487
        %6489 = vrot.lane.b32.xlu0 %v6460, 64
        %v6490 = vpop.permute.xlu0 %6489
        %6491 = vrot.lane.b32.xlu0 %v6462, 64
        %v6492 = vpop.permute.xlu0 %6491
        %6493 = vrot.lane.b32.xlu0 %v6464, 64
        %v6494 = vpop.permute.xlu0 %6493
        %6495 = vrot.lane.b32.xlu0 %v6466, 64
        %v6496 = vpop.permute.xlu0 %6495
        %v6497 = vsel %vm498, %v6468, %v6470
        %v6498 = vsel %vm498, %v6470, %v6472
        %v6499 = vsel %vm498, %v6472, %v6474
        %v6500 = vsel %vm498, %v6474, %v6476
        %v6501 = vsel %vm498, %v6478, %v6480
        %v6502 = vsel %vm498, %v6480, %v6482
        %v6503 = vsel %vm498, %v6482, %v6484
        %v6504 = vsel %vm498, %v6484, %v6486
        %v6505 = vsel %vm498, %v6488, %v6490
        %v6506 = vsel %vm498, %v6490, %v6492
        %v6507 = vsel %vm498, %v6492, %v6494
        %v6508 = vsel %vm498, %v6494, %v6496
        %v6524 = vadd.f32 %v6361, %v6468
        %v6525 = vadd.f32 %v6362, %v6497
        %v6526 = vadd.f32 %v6363, %v6498
        %v6527 = vadd.f32 %v6364, %v6499
        %v6528 = vadd.f32 %v6365, %v6500
        %v6529 = vadd.f32 %v6366, %v6478
        %v6530 = vadd.f32 %v6367, %v6501
        %v6531 = vadd.f32 %v6368, %v6502
        %v6532 = vadd.f32 %v6369, %v6503
        %v6533 = vadd.f32 %v6370, %v6504
        %v6534 = vadd.f32 %v6371, %v6488
        %v6535 = vadd.f32 %v6372, %v6505
        %v6536 = vadd.f32 %v6373, %v6506
        %v6537 = vadd.f32 %v6374, %v6507
        %v6538 = vadd.f32 %v6375, %v6508
        %v6539 = vlaneseq
        %v6540 = vshrl.u32 %v6539, 7
        %v6541 = vsub.s32 3, %v6540
        %v6542 = vrot.slane %v5765, %v6541
        %v6543 = vlaneseq
        %v6544 = vshrl.u32 %v6543, 7
        %v6545 = vsub.s32 3, %v6544
        %v6546 = vrot.slane %v5766, %v6545
        %v6547 = vlaneseq
        %v6548 = vshrl.u32 %v6547, 7
        %v6549 = vsub.s32 3, %v6548
        %v6550 = vrot.slane %v5767, %v6549
        %v6551 = vlaneseq
        %v6552 = vshrl.u32 %v6551, 7
        %v6553 = vsub.s32 3, %v6552
        %v6554 = vrot.slane %v5768, %v6553
        %6559 = vrot.lane.b32.xlu0 %v6542, 32
        %v6560 = vpop.permute.xlu0 %6559
        %6561 = vrot.lane.b32.xlu0 %v6546, 32
        %v6562 = vpop.permute.xlu0 %6561
        %6563 = vrot.lane.b32.xlu0 %v6550, 32
        %v6564 = vpop.permute.xlu0 %6563
        %6565 = vrot.lane.b32.xlu0 %v6554, 32
        %v6566 = vpop.permute.xlu0 %6565
        %v6567 = vsel %vm2423, %v6560, %v6562
        %v6568 = vsel %vm2423, %v6562, %v6564
        %v6569 = vsel %vm2423, %v6564, %v6566
        %v6575 = vmul.f32 %v3850, %v6560
        %v6576 = vmul.f32 %v3851, %v6567
        %v6577 = vmul.f32 %v3852, %v6568
        %v6578 = vmul.f32 %v4647, %v6569
        %v6579 = vmul.f32 %v5757, %v6566
        %v6580 = vmul.f32 %v3855, %v6560
        %v6581 = vmul.f32 %v3856, %v6567
        %v6582 = vmul.f32 %v3857, %v6568
        %v6583 = vmul.f32 %v4648, %v6569
        %v6584 = vmul.f32 %v5758, %v6566
        %v6585 = vmul.f32 %v3860, %v6560
        %v6586 = vmul.f32 %v3861, %v6567
        %v6587 = vmul.f32 %v3862, %v6568
        %v6588 = vmul.f32 %v4649, %v6569
        %v6589 = vmul.f32 %v5759, %v6566
        %v6605 = vrot.slane %v6575, 7
        %v6606 = vrot.slane %v6576, 7
        %v6607 = vrot.slane %v6577, 7
        %v6608 = vrot.slane %v6578, 7
        %v6609 = vrot.slane %v6579, 7
        %v6610 = vrot.slane %v6580, 7
        %v6611 = vsel %vm4468, %v6605, %v6610
        %v6612 = vrot.slane %v6581, 7
        %v6613 = vsel %vm4468, %v6606, %v6612
        %v6614 = vrot.slane %v6582, 7
        %v6615 = vsel %vm4468, %v6607, %v6614
        %v6616 = vrot.slane %v6583, 7
        %v6617 = vsel %vm4468, %v6608, %v6616
        %v6618 = vrot.slane %v6584, 7
        %v6619 = vsel %vm4468, %v6609, %v6618
        %v6620 = vrot.slane %v6585, 7
        %v6621 = vsel %vm4468, %v6610, %v6620
        %v6622 = vrot.slane %v6586, 7
        %v6623 = vsel %vm4468, %v6612, %v6622
        %v6624 = vrot.slane %v6587, 7
        %v6625 = vsel %vm4468, %v6614, %v6624
        %v6626 = vrot.slane %v6588, 7
        %v6627 = vsel %vm4468, %v6616, %v6626
        %v6628 = vrot.slane %v6589, 7
        %v6629 = vsel %vm4468, %v6618, %v6628
        %6630 = vrot.lane.b32.xlu0 %v6605, 64
        %v6631 = vpop.permute.xlu0 %6630
        %6632 = vrot.lane.b32.xlu0 %v6606, 64
        %v6633 = vpop.permute.xlu0 %6632
        %6634 = vrot.lane.b32.xlu0 %v6607, 64
        %v6635 = vpop.permute.xlu0 %6634
        %6636 = vrot.lane.b32.xlu0 %v6608, 64
        %v6637 = vpop.permute.xlu0 %6636
        %6638 = vrot.lane.b32.xlu0 %v6609, 64
        %v6639 = vpop.permute.xlu0 %6638
        %6640 = vrot.lane.b32.xlu0 %v6611, 64
        %v6641 = vpop.permute.xlu0 %6640
        %6642 = vrot.lane.b32.xlu0 %v6613, 64
        %v6643 = vpop.permute.xlu0 %6642
        %6644 = vrot.lane.b32.xlu0 %v6615, 64
        %v6645 = vpop.permute.xlu0 %6644
        %6646 = vrot.lane.b32.xlu0 %v6617, 64
        %v6647 = vpop.permute.xlu0 %6646
        %6648 = vrot.lane.b32.xlu0 %v6619, 64
        %v6649 = vpop.permute.xlu0 %6648
        %6650 = vrot.lane.b32.xlu0 %v6621, 64
        %v6651 = vpop.permute.xlu0 %6650
        %6652 = vrot.lane.b32.xlu0 %v6623, 64
        %v6653 = vpop.permute.xlu0 %6652
        %6654 = vrot.lane.b32.xlu0 %v6625, 64
        %v6655 = vpop.permute.xlu0 %6654
        %6656 = vrot.lane.b32.xlu0 %v6627, 64
        %v6657 = vpop.permute.xlu0 %6656
        %6658 = vrot.lane.b32.xlu0 %v6629, 64
        %v6659 = vpop.permute.xlu0 %6658
        %v6660 = vsel %vm498, %v6631, %v6633
        %v6661 = vsel %vm498, %v6633, %v6635
        %v6662 = vsel %vm498, %v6635, %v6637
        %v6663 = vsel %vm498, %v6637, %v6639
        %v6664 = vsel %vm498, %v6641, %v6643
        %v6665 = vsel %vm498, %v6643, %v6645
        %v6666 = vsel %vm498, %v6645, %v6647
        %v6667 = vsel %vm498, %v6647, %v6649
        %v6668 = vsel %vm498, %v6651, %v6653
        %v6669 = vsel %vm498, %v6653, %v6655
        %v6670 = vsel %vm498, %v6655, %v6657
        %v6671 = vsel %vm498, %v6657, %v6659
        %v6687 = vadd.f32 %v6524, %v6631
        %v6688 = vadd.f32 %v6525, %v6660
        %v6689 = vadd.f32 %v6526, %v6661
        %v6690 = vadd.f32 %v6527, %v6662
        %v6691 = vadd.f32 %v6528, %v6663
        %v6692 = vadd.f32 %v6529, %v6641
        %v6693 = vadd.f32 %v6530, %v6664
        %v6694 = vadd.f32 %v6531, %v6665
        %v6695 = vadd.f32 %v6532, %v6666
        %v6696 = vadd.f32 %v6533, %v6667
        %v6697 = vadd.f32 %v6534, %v6651
        %v6698 = vadd.f32 %v6535, %v6668
        %v6699 = vadd.f32 %v6536, %v6669
        %v6700 = vadd.f32 %v6537, %v6670
        %v6701 = vadd.f32 %v6538, %v6671
        %v6702 = vlaneseq
        %v6703 = vshrl.u32 %v6702, 7
        %v6704 = vsub.s32 4, %v6703
        %v6705 = vrot.slane %v5765, %v6704
        %v6706 = vlaneseq
        %v6707 = vshrl.u32 %v6706, 7
        %v6708 = vsub.s32 4, %v6707
        %v6709 = vrot.slane %v5766, %v6708
        %v6710 = vlaneseq
        %v6711 = vshrl.u32 %v6710, 7
        %v6712 = vsub.s32 4, %v6711
        %v6713 = vrot.slane %v5767, %v6712
        %v6714 = vlaneseq
        %v6715 = vshrl.u32 %v6714, 7
        %v6716 = vsub.s32 4, %v6715
        %v6717 = vrot.slane %v5768, %v6716
        %6722 = vrot.lane.b32.xlu0 %v6705, 32
        %v6723 = vpop.permute.xlu0 %6722
        %6724 = vrot.lane.b32.xlu0 %v6709, 32
        %v6725 = vpop.permute.xlu0 %6724
        %6726 = vrot.lane.b32.xlu0 %v6713, 32
        %v6727 = vpop.permute.xlu0 %6726
        %6728 = vrot.lane.b32.xlu0 %v6717, 32
        %v6729 = vpop.permute.xlu0 %6728
        %v6730 = vsel %vm2423, %v6723, %v6725
        %v6731 = vsel %vm2423, %v6725, %v6727
        %v6732 = vsel %vm2423, %v6727, %v6729
        %v6738 = vmul.f32 %v3855, %v6723
        %v6739 = vmul.f32 %v3856, %v6730
        %v6740 = vmul.f32 %v3857, %v6731
        %v6741 = vmul.f32 %v4648, %v6732
        %v6742 = vmul.f32 %v5758, %v6729
        %v6743 = vmul.f32 %v3860, %v6723
        %v6744 = vmul.f32 %v3861, %v6730
        %v6745 = vmul.f32 %v3862, %v6731
        %v6746 = vmul.f32 %v4649, %v6732
        %v6747 = vmul.f32 %v5759, %v6729
        %v6748 = vmul.f32 %v3865, %v6723
        %v6749 = vmul.f32 %v3866, %v6730
        %v6750 = vmul.f32 %v3867, %v6731
        %v6751 = vmul.f32 %v4650, %v6732
        %v6752 = vmul.f32 %v5760, %v6729
        %v6768 = vrot.slane %v6738, 2
        %v6769 = vrot.slane %v6739, 2
        %v6770 = vrot.slane %v6740, 2
        %v6771 = vrot.slane %v6741, 2
        %v6772 = vrot.slane %v6742, 2
        %v6773 = vrot.slane %v6743, 2
        %v6774 = vsel %vm715, %v6768, %v6773
        %v6775 = vrot.slane %v6744, 2
        %v6776 = vsel %vm715, %v6769, %v6775
        %v6777 = vrot.slane %v6745, 2
        %v6778 = vsel %vm715, %v6770, %v6777
        %v6779 = vrot.slane %v6746, 2
        %v6780 = vsel %vm715, %v6771, %v6779
        %v6781 = vrot.slane %v6747, 2
        %v6782 = vsel %vm715, %v6772, %v6781
        %v6783 = vrot.slane %v6748, 2
        %v6784 = vsel %vm715, %v6773, %v6783
        %v6785 = vrot.slane %v6749, 2
        %v6786 = vsel %vm715, %v6775, %v6785
        %v6787 = vrot.slane %v6750, 2
        %v6788 = vsel %vm715, %v6777, %v6787
        %v6789 = vrot.slane %v6751, 2
        %v6790 = vsel %vm715, %v6779, %v6789
        %v6791 = vrot.slane %v6752, 2
        %v6792 = vsel %vm715, %v6781, %v6791
        %6793 = vrot.lane.b32.xlu0 %v6768, 64
        %v6794 = vpop.permute.xlu0 %6793
        %6795 = vrot.lane.b32.xlu0 %v6769, 64
        %v6796 = vpop.permute.xlu0 %6795
        %6797 = vrot.lane.b32.xlu0 %v6770, 64
        %v6798 = vpop.permute.xlu0 %6797
        %6799 = vrot.lane.b32.xlu0 %v6771, 64
        %v6800 = vpop.permute.xlu0 %6799
        %6801 = vrot.lane.b32.xlu0 %v6772, 64
        %v6802 = vpop.permute.xlu0 %6801
        %6803 = vrot.lane.b32.xlu0 %v6774, 64
        %v6804 = vpop.permute.xlu0 %6803
        %6805 = vrot.lane.b32.xlu0 %v6776, 64
        %v6806 = vpop.permute.xlu0 %6805
        %6807 = vrot.lane.b32.xlu0 %v6778, 64
        %v6808 = vpop.permute.xlu0 %6807
        %6809 = vrot.lane.b32.xlu0 %v6780, 64
        %v6810 = vpop.permute.xlu0 %6809
        %6811 = vrot.lane.b32.xlu0 %v6782, 64
        %v6812 = vpop.permute.xlu0 %6811
        %6813 = vrot.lane.b32.xlu0 %v6784, 64
        %v6814 = vpop.permute.xlu0 %6813
        %6815 = vrot.lane.b32.xlu0 %v6786, 64
        %v6816 = vpop.permute.xlu0 %6815
        %6817 = vrot.lane.b32.xlu0 %v6788, 64
        %v6818 = vpop.permute.xlu0 %6817
        %6819 = vrot.lane.b32.xlu0 %v6790, 64
        %v6820 = vpop.permute.xlu0 %6819
        %6821 = vrot.lane.b32.xlu0 %v6792, 64
        %v6822 = vpop.permute.xlu0 %6821
        %v6823 = vsel %vm498, %v6794, %v6796
        %v6824 = vsel %vm498, %v6796, %v6798
        %v6825 = vsel %vm498, %v6798, %v6800
        %v6826 = vsel %vm498, %v6800, %v6802
        %v6827 = vsel %vm498, %v6804, %v6806
        %v6828 = vsel %vm498, %v6806, %v6808
        %v6829 = vsel %vm498, %v6808, %v6810
        %v6830 = vsel %vm498, %v6810, %v6812
        %v6831 = vsel %vm498, %v6814, %v6816
        %v6832 = vsel %vm498, %v6816, %v6818
        %v6833 = vsel %vm498, %v6818, %v6820
        %v6834 = vsel %vm498, %v6820, %v6822
        %v6850 = vadd.f32 %v6687, %v6794
        %v6851 = vadd.f32 %v6688, %v6823
        %v6852 = vadd.f32 %v6689, %v6824
        %v6853 = vadd.f32 %v6690, %v6825
        %v6854 = vadd.f32 %v6691, %v6826
        %v6855 = vadd.f32 %v6692, %v6804
        %v6856 = vadd.f32 %v6693, %v6827
        %v6857 = vadd.f32 %v6694, %v6828
        %v6858 = vadd.f32 %v6695, %v6829
        %v6859 = vadd.f32 %v6696, %v6830
        %v6860 = vadd.f32 %v6697, %v6814
        %v6861 = vadd.f32 %v6698, %v6831
        %v6862 = vadd.f32 %v6699, %v6832
        %v6863 = vadd.f32 %v6700, %v6833
        %v6864 = vadd.f32 %v6701, %v6834
        %v6865 = vld [vmem:[%s3 + $0x40] sm:$0xe0]
        %v6866 = vld [vmem:[%s3 + $0x48] sm:$0xe0]
        %v6867 = vld [vmem:[%s3 + $0x50] sm:$0xe0]
        %v6868 = vld [vmem:[%s3 + $0x58] sm:$0xe0]
        %v6869 = vld [vmem:[%s3 + $0x60] sm:$0xf]
        %v6870 = vld [vmem:[%s3 + $0x68] sm:$0xf]
        %v6871 = vld [vmem:[%s3 + $0x70] sm:$0xf]
        %v6872 = vld [vmem:[%s3 + $0x78] sm:$0xf]
        %v6873 = vlaneseq
        %v6874 = vshrl.u32 %v6873, 7
        %v6875 = vsub.s32 5, %v6874
        %v6876 = vrot.slane %v6865, %v6875
        %v6877 = vlaneseq
        %v6878 = vshrl.u32 %v6877, 7
        %v6879 = vsub.s32 5, %v6878
        %v6880 = vrot.slane %v6866, %v6879
        %v6881 = vlaneseq
        %v6882 = vshrl.u32 %v6881, 7
        %v6883 = vsub.s32 5, %v6882
        %v6884 = vrot.slane %v6867, %v6883
        %v6885 = vlaneseq
        %v6886 = vshrl.u32 %v6885, 7
        %v6887 = vsub.s32 5, %v6886
        %v6888 = vrot.slane %v6868, %v6887
        %v6889 = vmul.f32 %v3841, %v6876
        %v6890 = vmul.f32 %v3842, %v6880
        %v6891 = vmul.f32 %v4645, %v6884
        %v6892 = vmul.f32 %v5755, %v6888
        %v6893 = vmul.f32 %v3846, %v6876
        %v6894 = vmul.f32 %v3847, %v6880
        %v6895 = vmul.f32 %v4646, %v6884
        %v6896 = vmul.f32 %v5756, %v6888
        %v6897 = vmul.f32 %v3851, %v6876
        %v6898 = vmul.f32 %v3852, %v6880
        %v6899 = vmul.f32 %v4647, %v6884
        %v6900 = vmul.f32 %v5757, %v6888
        %6913 = vrot.lane.b32.xlu0 %v6889, 96
        %v6914 = vpop.permute.xlu0 %6913
        %6915 = vrot.lane.b32.xlu0 %v6890, 96
        %v6916 = vpop.permute.xlu0 %6915
        %6917 = vrot.lane.b32.xlu0 %v6891, 96
        %v6918 = vpop.permute.xlu0 %6917
        %6919 = vrot.lane.b32.xlu0 %v6892, 96
        %v6920 = vpop.permute.xlu0 %6919
        %6921 = vrot.lane.b32.xlu0 %v6893, 96
        %v6922 = vpop.permute.xlu0 %6921
        %6923 = vrot.lane.b32.xlu0 %v6894, 96
        %v6924 = vpop.permute.xlu0 %6923
        %6925 = vrot.lane.b32.xlu0 %v6895, 96
        %v6926 = vpop.permute.xlu0 %6925
        %6927 = vrot.lane.b32.xlu0 %v6896, 96
        %v6928 = vpop.permute.xlu0 %6927
        %6929 = vrot.lane.b32.xlu0 %v6897, 96
        %v6930 = vpop.permute.xlu0 %6929
        %6931 = vrot.lane.b32.xlu0 %v6898, 96
        %v6932 = vpop.permute.xlu0 %6931
        %6933 = vrot.lane.b32.xlu0 %v6899, 96
        %v6934 = vpop.permute.xlu0 %6933
        %6935 = vrot.lane.b32.xlu0 %v6900, 96
        %v6936 = vpop.permute.xlu0 %6935
        %v6937 = vsel %vm1041, %v6914, %v6916
        %v6938 = vsel %vm1041, %v6916, %v6918
        %v6939 = vsel %vm1041, %v6918, %v6920
        %v6940 = vsel %vm1041, %v6922, %v6924
        %v6941 = vsel %vm1041, %v6924, %v6926
        %v6942 = vsel %vm1041, %v6926, %v6928
        %v6943 = vsel %vm1041, %v6930, %v6932
        %v6944 = vsel %vm1041, %v6932, %v6934
        %v6945 = vsel %vm1041, %v6934, %v6936
        %v6961 = vadd.f32 %v6850, %v6914
        %v6962 = vadd.f32 %v6851, %v6937
        %v6963 = vadd.f32 %v6852, %v6938
        %v6964 = vadd.f32 %v6853, %v6939
        %v6965 = vadd.f32 %v6854, %v6920
        %v6966 = vadd.f32 %v6855, %v6922
        %v6967 = vadd.f32 %v6856, %v6940
        %v6968 = vadd.f32 %v6857, %v6941
        %v6969 = vadd.f32 %v6858, %v6942
        %v6970 = vadd.f32 %v6859, %v6928
        %v6971 = vadd.f32 %v6860, %v6930
        %v6972 = vadd.f32 %v6861, %v6943
        %v6973 = vadd.f32 %v6862, %v6944
        %v6974 = vadd.f32 %v6863, %v6945
        %v6975 = vadd.f32 %v6864, %v6936
        %v6976 = vlaneseq
        %v6977 = vshrl.u32 %v6976, 7
        %v6978 = vsub.s32 6, %v6977
        %v6979 = vrot.slane %v6865, %v6978
        %v6980 = vlaneseq
        %v6981 = vshrl.u32 %v6980, 7
        %v6982 = vsub.s32 6, %v6981
        %v6983 = vrot.slane %v6866, %v6982
        %v6984 = vlaneseq
        %v6985 = vshrl.u32 %v6984, 7
        %v6986 = vsub.s32 6, %v6985
        %v6987 = vrot.slane %v6867, %v6986
        %v6988 = vlaneseq
        %v6989 = vshrl.u32 %v6988, 7
        %v6990 = vsub.s32 6, %v6989
        %v6991 = vrot.slane %v6868, %v6990
        %v6992 = vmul.f32 %v3846, %v6979
        %v6993 = vmul.f32 %v3847, %v6983
        %v6994 = vmul.f32 %v4646, %v6987
        %v6995 = vmul.f32 %v5756, %v6991
        %v6996 = vmul.f32 %v3851, %v6979
        %v6997 = vmul.f32 %v3852, %v6983
        %v6998 = vmul.f32 %v4647, %v6987
        %v6999 = vmul.f32 %v5757, %v6991
        %v7000 = vmul.f32 %v3856, %v6979
        %v7001 = vmul.f32 %v3857, %v6983
        %v7002 = vmul.f32 %v4648, %v6987
        %v7003 = vmul.f32 %v5758, %v6991
        %v7016 = vrot.slane %v6992, 3
        %v7017 = vrot.slane %v6993, 3
        %v7018 = vrot.slane %v6994, 3
        %v7019 = vrot.slane %v6995, 3
        %v7020 = vrot.slane %v6996, 3
        %v7021 = vsel %vm827, %v7016, %v7020
        %v7022 = vrot.slane %v6997, 3
        %v7023 = vsel %vm827, %v7017, %v7022
        %v7024 = vrot.slane %v6998, 3
        %v7025 = vsel %vm827, %v7018, %v7024
        %v7026 = vrot.slane %v6999, 3
        %v7027 = vsel %vm827, %v7019, %v7026
        %v7028 = vrot.slane %v7000, 3
        %v7029 = vsel %vm827, %v7020, %v7028
        %v7030 = vrot.slane %v7001, 3
        %v7031 = vsel %vm827, %v7022, %v7030
        %v7032 = vrot.slane %v7002, 3
        %v7033 = vsel %vm827, %v7024, %v7032
        %v7034 = vrot.slane %v7003, 3
        %v7035 = vsel %vm827, %v7026, %v7034
        %7036 = vrot.lane.b32.xlu0 %v7016, 96
        %v7037 = vpop.permute.xlu0 %7036
        %7038 = vrot.lane.b32.xlu0 %v7017, 96
        %v7039 = vpop.permute.xlu0 %7038
        %7040 = vrot.lane.b32.xlu0 %v7018, 96
        %v7041 = vpop.permute.xlu0 %7040
        %7042 = vrot.lane.b32.xlu0 %v7019, 96
        %v7043 = vpop.permute.xlu0 %7042
        %7044 = vrot.lane.b32.xlu0 %v7021, 96
        %v7045 = vpop.permute.xlu0 %7044
        %7046 = vrot.lane.b32.xlu0 %v7023, 96
        %v7047 = vpop.permute.xlu0 %7046
        %7048 = vrot.lane.b32.xlu0 %v7025, 96
        %v7049 = vpop.permute.xlu0 %7048
        %7050 = vrot.lane.b32.xlu0 %v7027, 96
        %v7051 = vpop.permute.xlu0 %7050
        %7052 = vrot.lane.b32.xlu0 %v7029, 96
        %v7053 = vpop.permute.xlu0 %7052
        %7054 = vrot.lane.b32.xlu0 %v7031, 96
        %v7055 = vpop.permute.xlu0 %7054
        %7056 = vrot.lane.b32.xlu0 %v7033, 96
        %v7057 = vpop.permute.xlu0 %7056
        %7058 = vrot.lane.b32.xlu0 %v7035, 96
        %v7059 = vpop.permute.xlu0 %7058
        %v7060 = vsel %vm1041, %v7037, %v7039
        %v7061 = vsel %vm1041, %v7039, %v7041
        %v7062 = vsel %vm1041, %v7041, %v7043
        %v7063 = vsel %vm1041, %v7045, %v7047
        %v7064 = vsel %vm1041, %v7047, %v7049
        %v7065 = vsel %vm1041, %v7049, %v7051
        %v7066 = vsel %vm1041, %v7053, %v7055
        %v7067 = vsel %vm1041, %v7055, %v7057
        %v7068 = vsel %vm1041, %v7057, %v7059
        %v7084 = vadd.f32 %v6961, %v7037
        %v7085 = vadd.f32 %v6962, %v7060
        %v7086 = vadd.f32 %v6963, %v7061
        %v7087 = vadd.f32 %v6964, %v7062
        %v7088 = vadd.f32 %v6965, %v7043
        %v7089 = vadd.f32 %v6966, %v7045
        %v7090 = vadd.f32 %v6967, %v7063
        %v7091 = vadd.f32 %v6968, %v7064
        %v7092 = vadd.f32 %v6969, %v7065
        %v7093 = vadd.f32 %v6970, %v7051
        %v7094 = vadd.f32 %v6971, %v7053
        %v7095 = vadd.f32 %v6972, %v7066
        %v7096 = vadd.f32 %v6973, %v7067
        %v7097 = vadd.f32 %v6974, %v7068
        %v7098 = vadd.f32 %v6975, %v7059
        %v7099 = vlaneseq
        %v7100 = vshrl.u32 %v7099, 7
        %v7101 = vsub.s32 7, %v7100
        %v7102 = vrot.slane %v6865, %v7101
        %v7103 = vlaneseq
        %v7104 = vshrl.u32 %v7103, 7
        %v7105 = vsub.s32 7, %v7104
        %v7106 = vrot.slane %v6866, %v7105
        %v7107 = vlaneseq
        %v7108 = vshrl.u32 %v7107, 7
        %v7109 = vsub.s32 7, %v7108
        %v7110 = vrot.slane %v6867, %v7109
        %v7111 = vlaneseq
        %v7112 = vshrl.u32 %v7111, 7
        %v7113 = vsub.s32 7, %v7112
        %v7114 = vrot.slane %v6868, %v7113
        %v7115 = vmul.f32 %v3846, %v7102
        %v7116 = vmul.f32 %v3847, %v7106
        %v7117 = vmul.f32 %v4646, %v7110
        %v7118 = vmul.f32 %v5756, %v7114
        %v7119 = vmul.f32 %v3851, %v7102
        %v7120 = vmul.f32 %v3852, %v7106
        %v7121 = vmul.f32 %v4647, %v7110
        %v7122 = vmul.f32 %v5757, %v7114
        %v7123 = vmul.f32 %v3856, %v7102
        %v7124 = vmul.f32 %v3857, %v7106
        %v7125 = vmul.f32 %v4648, %v7110
        %v7126 = vmul.f32 %v5758, %v7114
        %v7139 = vrot.slane %v7115, 6
        %v7140 = vrot.slane %v7116, 6
        %v7141 = vrot.slane %v7117, 6
        %v7142 = vrot.slane %v7118, 6
        %v7143 = vrot.slane %v7119, 6
        %v7144 = vsel %vm3768, %v7139, %v7143
        %v7145 = vrot.slane %v7120, 6
        %v7146 = vsel %vm3768, %v7140, %v7145
        %v7147 = vrot.slane %v7121, 6
        %v7148 = vsel %vm3768, %v7141, %v7147
        %v7149 = vrot.slane %v7122, 6
        %v7150 = vsel %vm3768, %v7142, %v7149
        %v7151 = vrot.slane %v7123, 6
        %v7152 = vsel %vm3768, %v7143, %v7151
        %v7153 = vrot.slane %v7124, 6
        %v7154 = vsel %vm3768, %v7145, %v7153
        %v7155 = vrot.slane %v7125, 6
        %v7156 = vsel %vm3768, %v7147, %v7155
        %v7157 = vrot.slane %v7126, 6
        %v7158 = vsel %vm3768, %v7149, %v7157
        %7159 = vrot.lane.b32.xlu0 %v7139, 96
        %v7160 = vpop.permute.xlu0 %7159
        %7161 = vrot.lane.b32.xlu0 %v7140, 96
        %v7162 = vpop.permute.xlu0 %7161
        %7163 = vrot.lane.b32.xlu0 %v7141, 96
        %v7164 = vpop.permute.xlu0 %7163
        %7165 = vrot.lane.b32.xlu0 %v7142, 96
        %v7166 = vpop.permute.xlu0 %7165
        %7167 = vrot.lane.b32.xlu0 %v7144, 96
        %v7168 = vpop.permute.xlu0 %7167
        %7169 = vrot.lane.b32.xlu0 %v7146, 96
        %v7170 = vpop.permute.xlu0 %7169
        %7171 = vrot.lane.b32.xlu0 %v7148, 96
        %v7172 = vpop.permute.xlu0 %7171
        %7173 = vrot.lane.b32.xlu0 %v7150, 96
        %v7174 = vpop.permute.xlu0 %7173
        %7175 = vrot.lane.b32.xlu0 %v7152, 96
        %v7176 = vpop.permute.xlu0 %7175
        %7177 = vrot.lane.b32.xlu0 %v7154, 96
        %v7178 = vpop.permute.xlu0 %7177
        %7179 = vrot.lane.b32.xlu0 %v7156, 96
        %v7180 = vpop.permute.xlu0 %7179
        %7181 = vrot.lane.b32.xlu0 %v7158, 96
        %v7182 = vpop.permute.xlu0 %7181
        %v7183 = vsel %vm1041, %v7160, %v7162
        %v7184 = vsel %vm1041, %v7162, %v7164
        %v7185 = vsel %vm1041, %v7164, %v7166
        %v7186 = vsel %vm1041, %v7168, %v7170
        %v7187 = vsel %vm1041, %v7170, %v7172
        %v7188 = vsel %vm1041, %v7172, %v7174
        %v7189 = vsel %vm1041, %v7176, %v7178
        %v7190 = vsel %vm1041, %v7178, %v7180
        %v7191 = vsel %vm1041, %v7180, %v7182
        %v7207 = vadd.f32 %v7084, %v7160
        %v7208 = vadd.f32 %v7085, %v7183
        %v7209 = vadd.f32 %v7086, %v7184
        %v7210 = vadd.f32 %v7087, %v7185
        %v7211 = vadd.f32 %v7088, %v7166
        %v7212 = vadd.f32 %v7089, %v7168
        %v7213 = vadd.f32 %v7090, %v7186
        %v7214 = vadd.f32 %v7091, %v7187
        %v7215 = vadd.f32 %v7092, %v7188
        %v7216 = vadd.f32 %v7093, %v7174
        %v7217 = vadd.f32 %v7094, %v7176
        %v7218 = vadd.f32 %v7095, %v7189
        %v7219 = vadd.f32 %v7096, %v7190
        %v7220 = vadd.f32 %v7097, %v7191
        %v7221 = vadd.f32 %v7098, %v7182
        %v7222 = vlaneseq
        %v7223 = vshrl.u32 %v7222, 7
        %v7224 = vsub.s32 0, %v7223
        %v7225 = vrot.slane %v6869, %v7224
        %v7226 = vlaneseq
        %v7227 = vshrl.u32 %v7226, 7
        %v7228 = vsub.s32 0, %v7227
        %v7229 = vrot.slane %v6870, %v7228
        %v7230 = vlaneseq
        %v7231 = vshrl.u32 %v7230, 7
        %v7232 = vsub.s32 0, %v7231
        %v7233 = vrot.slane %v6871, %v7232
        %v7234 = vlaneseq
        %v7235 = vshrl.u32 %v7234, 7
        %v7236 = vsub.s32 0, %v7235
        %v7237 = vrot.slane %v6872, %v7236
        %v7238 = vmul.f32 %v3851, %v7225
        %v7239 = vmul.f32 %v3852, %v7229
        %v7240 = vmul.f32 %v4647, %v7233
        %v7241 = vmul.f32 %v5757, %v7237
        %v7242 = vmul.f32 %v3856, %v7225
        %v7243 = vmul.f32 %v3857, %v7229
        %v7244 = vmul.f32 %v4648, %v7233
        %v7245 = vmul.f32 %v5758, %v7237
        %v7254 = vrot.slane %v7238, 1
        %v7255 = vrot.slane %v7239, 1
        %v7256 = vrot.slane %v7240, 1
        %v7257 = vrot.slane %v7241, 1
        %v7258 = vrot.slane %v7242, 1
        %v7259 = vsel %vm603, %v7254, %v7258
        %v7260 = vrot.slane %v7243, 1
        %v7261 = vsel %vm603, %v7255, %v7260
        %v7262 = vrot.slane %v7244, 1
        %v7263 = vsel %vm603, %v7256, %v7262
        %v7264 = vrot.slane %v7245, 1
        %v7265 = vsel %vm603, %v7257, %v7264
        %7266 = vrot.lane.b32.xlu0 %v7254, 96
        %v7267 = vpop.permute.xlu0 %7266
        %7268 = vrot.lane.b32.xlu0 %v7255, 96
        %v7269 = vpop.permute.xlu0 %7268
        %7270 = vrot.lane.b32.xlu0 %v7256, 96
        %v7271 = vpop.permute.xlu0 %7270
        %7272 = vrot.lane.b32.xlu0 %v7257, 96
        %v7273 = vpop.permute.xlu0 %7272
        %7274 = vrot.lane.b32.xlu0 %v7259, 96
        %v7275 = vpop.permute.xlu0 %7274
        %7276 = vrot.lane.b32.xlu0 %v7261, 96
        %v7277 = vpop.permute.xlu0 %7276
        %7278 = vrot.lane.b32.xlu0 %v7263, 96
        %v7279 = vpop.permute.xlu0 %7278
        %7280 = vrot.lane.b32.xlu0 %v7265, 96
        %v7281 = vpop.permute.xlu0 %7280
        %7282 = vrot.lane.b32.xlu0 %v7258, 96
        %v7283 = vpop.permute.xlu0 %7282
        %7284 = vrot.lane.b32.xlu0 %v7260, 96
        %v7285 = vpop.permute.xlu0 %7284
        %7286 = vrot.lane.b32.xlu0 %v7262, 96
        %v7287 = vpop.permute.xlu0 %7286
        %7288 = vrot.lane.b32.xlu0 %v7264, 96
        %v7289 = vpop.permute.xlu0 %7288
        %v7290 = vsel %vm1041, %v7267, %v7269
        %v7291 = vsel %vm1041, %v7269, %v7271
        %v7292 = vsel %vm1041, %v7271, %v7273
        %v7293 = vsel %vm1041, %v7275, %v7277
        %v7294 = vsel %vm1041, %v7277, %v7279
        %v7295 = vsel %vm1041, %v7279, %v7281
        %v7296 = vsel %vm1041, %v7283, %v7285
        %v7297 = vsel %vm1041, %v7285, %v7287
        %v7298 = vsel %vm1041, %v7287, %v7289
        %v7314 = vadd.f32 %v7207, %v7267
        %v7315 = vadd.f32 %v7208, %v7290
        %v7316 = vadd.f32 %v7209, %v7291
        %v7317 = vadd.f32 %v7210, %v7292
        %v7318 = vadd.f32 %v7211, %v7273
        %v7319 = vadd.f32 %v7212, %v7275
        %v7320 = vadd.f32 %v7213, %v7293
        %v7321 = vadd.f32 %v7214, %v7294
        %v7322 = vadd.f32 %v7215, %v7295
        %v7323 = vadd.f32 %v7216, %v7281
        %v7324 = vadd.f32 %v7217, %v7283
        %v7325 = vadd.f32 %v7218, %v7296
        %v7326 = vadd.f32 %v7219, %v7297
        %v7327 = vadd.f32 %v7220, %v7298
        %v7328 = vadd.f32 %v7221, %v7289
        %v7329 = vlaneseq
        %v7330 = vshrl.u32 %v7329, 7
        %v7331 = vsub.s32 1, %v7330
        %v7332 = vrot.slane %v6869, %v7331
        %v7333 = vlaneseq
        %v7334 = vshrl.u32 %v7333, 7
        %v7335 = vsub.s32 1, %v7334
        %v7336 = vrot.slane %v6870, %v7335
        %v7337 = vlaneseq
        %v7338 = vshrl.u32 %v7337, 7
        %v7339 = vsub.s32 1, %v7338
        %v7340 = vrot.slane %v6871, %v7339
        %v7341 = vlaneseq
        %v7342 = vshrl.u32 %v7341, 7
        %v7343 = vsub.s32 1, %v7342
        %v7344 = vrot.slane %v6872, %v7343
        %v7345 = vmul.f32 %v3851, %v7332
        %v7346 = vmul.f32 %v3852, %v7336
        %v7347 = vmul.f32 %v4647, %v7340
        %v7348 = vmul.f32 %v5757, %v7344
        %v7349 = vmul.f32 %v3856, %v7332
        %v7350 = vmul.f32 %v3857, %v7336
        %v7351 = vmul.f32 %v4648, %v7340
        %v7352 = vmul.f32 %v5758, %v7344
        %v7353 = vmul.f32 %v3861, %v7332
        %v7354 = vmul.f32 %v3862, %v7336
        %v7355 = vmul.f32 %v4649, %v7340
        %v7356 = vmul.f32 %v5759, %v7344
        %v7369 = vrot.slane %v7345, 4
        %v7370 = vrot.slane %v7346, 4
        %v7371 = vrot.slane %v7347, 4
        %v7372 = vrot.slane %v7348, 4
        %v7373 = vrot.slane %v7349, 4
        %v7374 = vsel %vm949, %v7369, %v7373
        %v7375 = vrot.slane %v7350, 4
        %v7376 = vsel %vm949, %v7370, %v7375
        %v7377 = vrot.slane %v7351, 4
        %v7378 = vsel %vm949, %v7371, %v7377
        %v7379 = vrot.slane %v7352, 4
        %v7380 = vsel %vm949, %v7372, %v7379
        %v7381 = vrot.slane %v7353, 4
        %v7382 = vsel %vm949, %v7373, %v7381
        %v7383 = vrot.slane %v7354, 4
        %v7384 = vsel %vm949, %v7375, %v7383
        %v7385 = vrot.slane %v7355, 4
        %v7386 = vsel %vm949, %v7377, %v7385
        %v7387 = vrot.slane %v7356, 4
        %v7388 = vsel %vm949, %v7379, %v7387
        %7389 = vrot.lane.b32.xlu0 %v7369, 96
        %v7390 = vpop.permute.xlu0 %7389
        %7391 = vrot.lane.b32.xlu0 %v7370, 96
        %v7392 = vpop.permute.xlu0 %7391
        %7393 = vrot.lane.b32.xlu0 %v7371, 96
        %v7394 = vpop.permute.xlu0 %7393
        %7395 = vrot.lane.b32.xlu0 %v7372, 96
        %v7396 = vpop.permute.xlu0 %7395
        %7397 = vrot.lane.b32.xlu0 %v7374, 96
        %v7398 = vpop.permute.xlu0 %7397
        %7399 = vrot.lane.b32.xlu0 %v7376, 96
        %v7400 = vpop.permute.xlu0 %7399
        %7401 = vrot.lane.b32.xlu0 %v7378, 96
        %v7402 = vpop.permute.xlu0 %7401
        %7403 = vrot.lane.b32.xlu0 %v7380, 96
        %v7404 = vpop.permute.xlu0 %7403
        %7405 = vrot.lane.b32.xlu0 %v7382, 96
        %v7406 = vpop.permute.xlu0 %7405
        %7407 = vrot.lane.b32.xlu0 %v7384, 96
        %v7408 = vpop.permute.xlu0 %7407
        %7409 = vrot.lane.b32.xlu0 %v7386, 96
        %v7410 = vpop.permute.xlu0 %7409
        %7411 = vrot.lane.b32.xlu0 %v7388, 96
        %v7412 = vpop.permute.xlu0 %7411
        %v7413 = vsel %vm1041, %v7390, %v7392
        %v7414 = vsel %vm1041, %v7392, %v7394
        %v7415 = vsel %vm1041, %v7394, %v7396
        %v7416 = vsel %vm1041, %v7398, %v7400
        %v7417 = vsel %vm1041, %v7400, %v7402
        %v7418 = vsel %vm1041, %v7402, %v7404
        %v7419 = vsel %vm1041, %v7406, %v7408
        %v7420 = vsel %vm1041, %v7408, %v7410
        %v7421 = vsel %vm1041, %v7410, %v7412
        %v7437 = vadd.f32 %v7314, %v7390
        %v7438 = vadd.f32 %v7315, %v7413
        %v7439 = vadd.f32 %v7316, %v7414
        %v7440 = vadd.f32 %v7317, %v7415
        %v7441 = vadd.f32 %v7318, %v7396
        %v7442 = vadd.f32 %v7319, %v7398
        %v7443 = vadd.f32 %v7320, %v7416
        %v7444 = vadd.f32 %v7321, %v7417
        %v7445 = vadd.f32 %v7322, %v7418
        %v7446 = vadd.f32 %v7323, %v7404
        %v7447 = vadd.f32 %v7324, %v7406
        %v7448 = vadd.f32 %v7325, %v7419
        %v7449 = vadd.f32 %v7326, %v7420
        %v7450 = vadd.f32 %v7327, %v7421
        %v7451 = vadd.f32 %v7328, %v7412
        %v7452 = vlaneseq
        %v7453 = vshrl.u32 %v7452, 7
        %v7454 = vsub.s32 2, %v7453
        %v7455 = vrot.slane %v6869, %v7454
        %v7456 = vlaneseq
        %v7457 = vshrl.u32 %v7456, 7
        %v7458 = vsub.s32 2, %v7457
        %v7459 = vrot.slane %v6870, %v7458
        %v7460 = vlaneseq
        %v7461 = vshrl.u32 %v7460, 7
        %v7462 = vsub.s32 2, %v7461
        %v7463 = vrot.slane %v6871, %v7462
        %v7464 = vlaneseq
        %v7465 = vshrl.u32 %v7464, 7
        %v7466 = vsub.s32 2, %v7465
        %v7467 = vrot.slane %v6872, %v7466
        %v7468 = vmul.f32 %v3851, %v7455
        %v7469 = vmul.f32 %v3852, %v7459
        %v7470 = vmul.f32 %v4647, %v7463
        %v7471 = vmul.f32 %v5757, %v7467
        %v7472 = vmul.f32 %v3856, %v7455
        %v7473 = vmul.f32 %v3857, %v7459
        %v7474 = vmul.f32 %v4648, %v7463
        %v7475 = vmul.f32 %v5758, %v7467
        %v7476 = vmul.f32 %v3861, %v7455
        %v7477 = vmul.f32 %v3862, %v7459
        %v7478 = vmul.f32 %v4649, %v7463
        %v7479 = vmul.f32 %v5759, %v7467
        %v7492 = vrot.slane %v7468, 7
        %v7493 = vrot.slane %v7469, 7
        %v7494 = vrot.slane %v7470, 7
        %v7495 = vrot.slane %v7471, 7
        %v7496 = vrot.slane %v7472, 7
        %v7497 = vsel %vm4468, %v7492, %v7496
        %v7498 = vrot.slane %v7473, 7
        %v7499 = vsel %vm4468, %v7493, %v7498
        %v7500 = vrot.slane %v7474, 7
        %v7501 = vsel %vm4468, %v7494, %v7500
        %v7502 = vrot.slane %v7475, 7
        %v7503 = vsel %vm4468, %v7495, %v7502
        %v7504 = vrot.slane %v7476, 7
        %v7505 = vsel %vm4468, %v7496, %v7504
        %v7506 = vrot.slane %v7477, 7
        %v7507 = vsel %vm4468, %v7498, %v7506
        %v7508 = vrot.slane %v7478, 7
        %v7509 = vsel %vm4468, %v7500, %v7508
        %v7510 = vrot.slane %v7479, 7
        %v7511 = vsel %vm4468, %v7502, %v7510
        %7512 = vrot.lane.b32.xlu0 %v7492, 96
        %v7513 = vpop.permute.xlu0 %7512
        %7514 = vrot.lane.b32.xlu0 %v7493, 96
        %v7515 = vpop.permute.xlu0 %7514
        %7516 = vrot.lane.b32.xlu0 %v7494, 96
        %v7517 = vpop.permute.xlu0 %7516
        %7518 = vrot.lane.b32.xlu0 %v7495, 96
        %v7519 = vpop.permute.xlu0 %7518
        %7520 = vrot.lane.b32.xlu0 %v7497, 96
        %v7521 = vpop.permute.xlu0 %7520
        %7522 = vrot.lane.b32.xlu0 %v7499, 96
        %v7523 = vpop.permute.xlu0 %7522
        %7524 = vrot.lane.b32.xlu0 %v7501, 96
        %v7525 = vpop.permute.xlu0 %7524
        %7526 = vrot.lane.b32.xlu0 %v7503, 96
        %v7527 = vpop.permute.xlu0 %7526
        %7528 = vrot.lane.b32.xlu0 %v7505, 96
        %v7529 = vpop.permute.xlu0 %7528
        %7530 = vrot.lane.b32.xlu0 %v7507, 96
        %v7531 = vpop.permute.xlu0 %7530
        %7532 = vrot.lane.b32.xlu0 %v7509, 96
        %v7533 = vpop.permute.xlu0 %7532
        %7534 = vrot.lane.b32.xlu0 %v7511, 96
        %v7535 = vpop.permute.xlu0 %7534
        %v7536 = vsel %vm1041, %v7513, %v7515
        %v7537 = vsel %vm1041, %v7515, %v7517
        %v7538 = vsel %vm1041, %v7517, %v7519
        %v7539 = vsel %vm1041, %v7521, %v7523
        %v7540 = vsel %vm1041, %v7523, %v7525
        %v7541 = vsel %vm1041, %v7525, %v7527
        %v7542 = vsel %vm1041, %v7529, %v7531
        %v7543 = vsel %vm1041, %v7531, %v7533
        %v7544 = vsel %vm1041, %v7533, %v7535
        %v7560 = vadd.f32 %v7437, %v7513
        %v7561 = vadd.f32 %v7438, %v7536
        %v7562 = vadd.f32 %v7439, %v7537
        %v7563 = vadd.f32 %v7440, %v7538
        %v7564 = vadd.f32 %v7441, %v7519
        %v7565 = vadd.f32 %v7442, %v7521
        %v7566 = vadd.f32 %v7443, %v7539
        %v7567 = vadd.f32 %v7444, %v7540
        %v7568 = vadd.f32 %v7445, %v7541
        %v7569 = vadd.f32 %v7446, %v7527
        %v7570 = vadd.f32 %v7447, %v7529
        %v7571 = vadd.f32 %v7448, %v7542
        %v7572 = vadd.f32 %v7449, %v7543
        %v7573 = vadd.f32 %v7450, %v7544
        %v7574 = vadd.f32 %v7451, %v7535
        %v7575 = vlaneseq
        %v7576 = vshrl.u32 %v7575, 7
        %v7577 = vsub.s32 3, %v7576
        %v7578 = vrot.slane %v6869, %v7577
        %v7579 = vlaneseq
        %v7580 = vshrl.u32 %v7579, 7
        %v7581 = vsub.s32 3, %v7580
        %v7582 = vrot.slane %v6870, %v7581
        %v7583 = vlaneseq
        %v7584 = vshrl.u32 %v7583, 7
        %v7585 = vsub.s32 3, %v7584
        %v7586 = vrot.slane %v6871, %v7585
        %v7587 = vlaneseq
        %v7588 = vshrl.u32 %v7587, 7
        %v7589 = vsub.s32 3, %v7588
        %v7590 = vrot.slane %v6872, %v7589
        %v7591 = vmul.f32 %v3856, %v7578
        %v7592 = vmul.f32 %v3857, %v7582
        %v7593 = vmul.f32 %v4648, %v7586
        %v7594 = vmul.f32 %v5758, %v7590
        %v7595 = vmul.f32 %v3861, %v7578
        %v7596 = vmul.f32 %v3862, %v7582
        %v7597 = vmul.f32 %v4649, %v7586
        %v7598 = vmul.f32 %v5759, %v7590
        %v7599 = vmul.f32 %v3866, %v7578
        %v7600 = vmul.f32 %v3867, %v7582
        %v7601 = vmul.f32 %v4650, %v7586
        %v7602 = vmul.f32 %v5760, %v7590
        %v7615 = vrot.slane %v7591, 2
        %v7616 = vrot.slane %v7592, 2
        %v7617 = vrot.slane %v7593, 2
        %v7618 = vrot.slane %v7594, 2
        %v7619 = vrot.slane %v7595, 2
        %v7620 = vsel %vm715, %v7615, %v7619
        %v7621 = vrot.slane %v7596, 2
        %v7622 = vsel %vm715, %v7616, %v7621
        %v7623 = vrot.slane %v7597, 2
        %v7624 = vsel %vm715, %v7617, %v7623
        %v7625 = vrot.slane %v7598, 2
        %v7626 = vsel %vm715, %v7618, %v7625
        %v7627 = vrot.slane %v7599, 2
        %v7628 = vsel %vm715, %v7619, %v7627
        %v7629 = vrot.slane %v7600, 2
        %v7630 = vsel %vm715, %v7621, %v7629
        %v7631 = vrot.slane %v7601, 2
        %v7632 = vsel %vm715, %v7623, %v7631
        %v7633 = vrot.slane %v7602, 2
        %v7634 = vsel %vm715, %v7625, %v7633
        %7635 = vrot.lane.b32.xlu0 %v7615, 96
        %v7636 = vpop.permute.xlu0 %7635
        %7637 = vrot.lane.b32.xlu0 %v7616, 96
        %v7638 = vpop.permute.xlu0 %7637
        %7639 = vrot.lane.b32.xlu0 %v7617, 96
        %v7640 = vpop.permute.xlu0 %7639
        %7641 = vrot.lane.b32.xlu0 %v7618, 96
        %v7642 = vpop.permute.xlu0 %7641
        %7643 = vrot.lane.b32.xlu0 %v7620, 96
        %v7644 = vpop.permute.xlu0 %7643
        %7645 = vrot.lane.b32.xlu0 %v7622, 96
        %v7646 = vpop.permute.xlu0 %7645
        %7647 = vrot.lane.b32.xlu0 %v7624, 96
        %v7648 = vpop.permute.xlu0 %7647
        %7649 = vrot.lane.b32.xlu0 %v7626, 96
        %v7650 = vpop.permute.xlu0 %7649
        %7651 = vrot.lane.b32.xlu0 %v7628, 96
        %v7652 = vpop.permute.xlu0 %7651
        %7653 = vrot.lane.b32.xlu0 %v7630, 96
        %v7654 = vpop.permute.xlu0 %7653
        %7655 = vrot.lane.b32.xlu0 %v7632, 96
        %v7656 = vpop.permute.xlu0 %7655
        %7657 = vrot.lane.b32.xlu0 %v7634, 96
        %v7658 = vpop.permute.xlu0 %7657
        %v7659 = vsel %vm1041, %v7636, %v7638
        %v7660 = vsel %vm1041, %v7638, %v7640
        %v7661 = vsel %vm1041, %v7640, %v7642
        %v7662 = vsel %vm1041, %v7644, %v7646
        %v7663 = vsel %vm1041, %v7646, %v7648
        %v7664 = vsel %vm1041, %v7648, %v7650
        %v7665 = vsel %vm1041, %v7652, %v7654
        %v7666 = vsel %vm1041, %v7654, %v7656
        %v7667 = vsel %vm1041, %v7656, %v7658
        %v7683 = vadd.f32 %v7560, %v7636
        %v7684 = vadd.f32 %v7561, %v7659
        %v7685 = vadd.f32 %v7562, %v7660
        %v7686 = vadd.f32 %v7563, %v7661
        %v7687 = vadd.f32 %v7564, %v7642
        %v7688 = vadd.f32 %v7565, %v7644
        %v7689 = vadd.f32 %v7566, %v7662
        %v7690 = vadd.f32 %v7567, %v7663
        %v7691 = vadd.f32 %v7568, %v7664
        %v7692 = vadd.f32 %v7569, %v7650
        %v7693 = vadd.f32 %v7570, %v7652
        %v7694 = vadd.f32 %v7571, %v7665
        %v7695 = vadd.f32 %v7572, %v7666
        %v7696 = vadd.f32 %v7573, %v7667
        %v7697 = vadd.f32 %v7574, %v7658
        %v7698 = vld [vmem:[#allocation3 + $0x38] sm:$0x80]
        %v7699 = vld [vmem:[#allocation3 + $0x88] sm:$0xff]
        %v7700 = vld [vmem:[#allocation3 + $0xd8] sm:$0xff]
        %v7701 = vld [vmem:[#allocation3 + $0x128] sm:$0xff]
        %v7702 = vld [vmem:[#allocation3 + $0x178] sm:$0xff]
        %v7703 = vld [vmem:[#allocation3 + $0x1c8] sm:$0x1]
        %v7704 = vld [vmem:[%s3 + $0x60] sm:$0xf0]
        %v7705 = vld [vmem:[%s3 + $0x68] sm:$0xf0]
        %v7706 = vld [vmem:[%s3 + $0x70] sm:$0xf0]
        %v7707 = vld [vmem:[%s3 + $0x78] sm:$0xf0]
        %v7708 = vld [vmem:[%s3 + $0x80] sm:$0x7]
        %v7709 = vld [vmem:[%s3 + $0x88] sm:$0x7]
        %v7710 = vld [vmem:[%s3 + $0x90] sm:$0x7]
        %v7711 = vld [vmem:[%s3 + $0x98] sm:$0x7]
        %v7712 = vlaneseq
        %v7713 = vshrl.u32 %v7712, 7
        %v7714 = vsub.s32 4, %v7713
        %v7715 = vrot.slane %v7704, %v7714
        %v7716 = vlaneseq
        %v7717 = vshrl.u32 %v7716, 7
        %v7718 = vsub.s32 4, %v7717
        %v7719 = vrot.slane %v7705, %v7718
        %v7720 = vlaneseq
        %v7721 = vshrl.u32 %v7720, 7
        %v7722 = vsub.s32 4, %v7721
        %v7723 = vrot.slane %v7706, %v7722
        %v7724 = vlaneseq
        %v7725 = vshrl.u32 %v7724, 7
        %v7726 = vsub.s32 4, %v7725
        %v7727 = vrot.slane %v7707, %v7726
        %7732 = vrot.lane.b32.xlu0 %v7715, 96
        %v7733 = vpop.permute.xlu0 %7732
        %7734 = vrot.lane.b32.xlu0 %v7719, 96
        %v7735 = vpop.permute.xlu0 %7734
        %7736 = vrot.lane.b32.xlu0 %v7723, 96
        %v7737 = vpop.permute.xlu0 %7736
        %7738 = vrot.lane.b32.xlu0 %v7727, 96
        %v7739 = vpop.permute.xlu0 %7738
        %v7740 = vsel %vm1041, %v7733, %v7735
        %v7741 = vsel %vm1041, %v7735, %v7737
        %v7742 = vsel %vm1041, %v7737, %v7739
        %v7748 = vmul.f32 %v3841, %v7733
        %v7749 = vmul.f32 %v3842, %v7740
        %v7750 = vmul.f32 %v4645, %v7741
        %v7751 = vmul.f32 %v5755, %v7742
        %v7752 = vmul.f32 %v7698, %v7739
        %v7753 = vmul.f32 %v3846, %v7733
        %v7754 = vmul.f32 %v3847, %v7740
        %v7755 = vmul.f32 %v4646, %v7741
        %v7756 = vmul.f32 %v5756, %v7742
        %v7757 = vmul.f32 %v7699, %v7739
        %v7758 = vmul.f32 %v3851, %v7733
        %v7759 = vmul.f32 %v3852, %v7740
        %v7760 = vmul.f32 %v4647, %v7741
        %v7761 = vmul.f32 %v5757, %v7742
        %v7762 = vmul.f32 %v7700, %v7739
        %v7763 = vadd.f32 %v7683, %v7748
        %v7764 = vadd.f32 %v7684, %v7749
        %v7765 = vadd.f32 %v7685, %v7750
        %v7766 = vadd.f32 %v7686, %v7751
        %v7767 = vadd.f32 %v7687, %v7752
        %v7768 = vadd.f32 %v7688, %v7753
        %v7769 = vadd.f32 %v7689, %v7754
        %v7770 = vadd.f32 %v7690, %v7755
        %v7771 = vadd.f32 %v7691, %v7756
        %v7772 = vadd.f32 %v7692, %v7757
        %v7773 = vadd.f32 %v7693, %v7758
        %v7774 = vadd.f32 %v7694, %v7759
        %v7775 = vadd.f32 %v7695, %v7760
        %v7776 = vadd.f32 %v7696, %v7761
        %v7777 = vadd.f32 %v7697, %v7762
        %v7778 = vlaneseq
        %v7779 = vshrl.u32 %v7778, 7
        %v7780 = vsub.s32 5, %v7779
        %v7781 = vrot.slane %v7704, %v7780
        %v7782 = vlaneseq
        %v7783 = vshrl.u32 %v7782, 7
        %v7784 = vsub.s32 5, %v7783
        %v7785 = vrot.slane %v7705, %v7784
        %v7786 = vlaneseq
        %v7787 = vshrl.u32 %v7786, 7
        %v7788 = vsub.s32 5, %v7787
        %v7789 = vrot.slane %v7706, %v7788
        %v7790 = vlaneseq
        %v7791 = vshrl.u32 %v7790, 7
        %v7792 = vsub.s32 5, %v7791
        %v7793 = vrot.slane %v7707, %v7792
        %7798 = vrot.lane.b32.xlu0 %v7781, 96
        %v7799 = vpop.permute.xlu0 %7798
        %7800 = vrot.lane.b32.xlu0 %v7785, 96
        %v7801 = vpop.permute.xlu0 %7800
        %7802 = vrot.lane.b32.xlu0 %v7789, 96
        %v7803 = vpop.permute.xlu0 %7802
        %7804 = vrot.lane.b32.xlu0 %v7793, 96
        %v7805 = vpop.permute.xlu0 %7804
        %v7806 = vsel %vm1041, %v7799, %v7801
        %v7807 = vsel %vm1041, %v7801, %v7803
        %v7808 = vsel %vm1041, %v7803, %v7805
        %v7814 = vmul.f32 %v3846, %v7799
        %v7815 = vmul.f32 %v3847, %v7806
        %v7816 = vmul.f32 %v4646, %v7807
        %v7817 = vmul.f32 %v5756, %v7808
        %v7818 = vmul.f32 %v7699, %v7805
        %v7819 = vmul.f32 %v3851, %v7799
        %v7820 = vmul.f32 %v3852, %v7806
        %v7821 = vmul.f32 %v4647, %v7807
        %v7822 = vmul.f32 %v5757, %v7808
        %v7823 = vmul.f32 %v7700, %v7805
        %v7824 = vmul.f32 %v3856, %v7799
        %v7825 = vmul.f32 %v3857, %v7806
        %v7826 = vmul.f32 %v4648, %v7807
        %v7827 = vmul.f32 %v5758, %v7808
        %v7828 = vmul.f32 %v7701, %v7805
        %v7844 = vrot.slane %v7814, 3
        %v7845 = vrot.slane %v7815, 3
        %v7846 = vrot.slane %v7816, 3
        %v7847 = vrot.slane %v7817, 3
        %v7848 = vrot.slane %v7818, 3
        %v7849 = vrot.slane %v7819, 3
        %v7850 = vsel %vm827, %v7844, %v7849
        %v7851 = vrot.slane %v7820, 3
        %v7852 = vsel %vm827, %v7845, %v7851
        %v7853 = vrot.slane %v7821, 3
        %v7854 = vsel %vm827, %v7846, %v7853
        %v7855 = vrot.slane %v7822, 3
        %v7856 = vsel %vm827, %v7847, %v7855
        %v7857 = vrot.slane %v7823, 3
        %v7858 = vsel %vm827, %v7848, %v7857
        %v7859 = vrot.slane %v7824, 3
        %v7860 = vsel %vm827, %v7849, %v7859
        %v7861 = vrot.slane %v7825, 3
        %v7862 = vsel %vm827, %v7851, %v7861
        %v7863 = vrot.slane %v7826, 3
        %v7864 = vsel %vm827, %v7853, %v7863
        %v7865 = vrot.slane %v7827, 3
        %v7866 = vsel %vm827, %v7855, %v7865
        %v7867 = vrot.slane %v7828, 3
        %v7868 = vsel %vm827, %v7857, %v7867
        %v7884 = vadd.f32 %v7763, %v7844
        %v7885 = vadd.f32 %v7764, %v7845
        %v7886 = vadd.f32 %v7765, %v7846
        %v7887 = vadd.f32 %v7766, %v7847
        %v7888 = vadd.f32 %v7767, %v7848
        %v7889 = vadd.f32 %v7768, %v7850
        %v7890 = vadd.f32 %v7769, %v7852
        %v7891 = vadd.f32 %v7770, %v7854
        %v7892 = vadd.f32 %v7771, %v7856
        %v7893 = vadd.f32 %v7772, %v7858
        %v7894 = vadd.f32 %v7773, %v7860
        %v7895 = vadd.f32 %v7774, %v7862
        %v7896 = vadd.f32 %v7775, %v7864
        %v7897 = vadd.f32 %v7776, %v7866
        %v7898 = vadd.f32 %v7777, %v7868
        %v7899 = vlaneseq
        %v7900 = vshrl.u32 %v7899, 7
        %v7901 = vsub.s32 6, %v7900
        %v7902 = vrot.slane %v7704, %v7901
        %v7903 = vlaneseq
        %v7904 = vshrl.u32 %v7903, 7
        %v7905 = vsub.s32 6, %v7904
        %v7906 = vrot.slane %v7705, %v7905
        %v7907 = vlaneseq
        %v7908 = vshrl.u32 %v7907, 7
        %v7909 = vsub.s32 6, %v7908
        %v7910 = vrot.slane %v7706, %v7909
        %v7911 = vlaneseq
        %v7912 = vshrl.u32 %v7911, 7
        %v7913 = vsub.s32 6, %v7912
        %v7914 = vrot.slane %v7707, %v7913
        %7919 = vrot.lane.b32.xlu0 %v7902, 96
        %v7920 = vpop.permute.xlu0 %7919
        %7921 = vrot.lane.b32.xlu0 %v7906, 96
        %v7922 = vpop.permute.xlu0 %7921
        %7923 = vrot.lane.b32.xlu0 %v7910, 96
        %v7924 = vpop.permute.xlu0 %7923
        %7925 = vrot.lane.b32.xlu0 %v7914, 96
        %v7926 = vpop.permute.xlu0 %7925
        %v7927 = vsel %vm1041, %v7920, %v7922
        %v7928 = vsel %vm1041, %v7922, %v7924
        %v7929 = vsel %vm1041, %v7924, %v7926
        %v7935 = vmul.f32 %v3846, %v7920
        %v7936 = vmul.f32 %v3847, %v7927
        %v7937 = vmul.f32 %v4646, %v7928
        %v7938 = vmul.f32 %v5756, %v7929
        %v7939 = vmul.f32 %v7699, %v7926
        %v7940 = vmul.f32 %v3851, %v7920
        %v7941 = vmul.f32 %v3852, %v7927
        %v7942 = vmul.f32 %v4647, %v7928
        %v7943 = vmul.f32 %v5757, %v7929
        %v7944 = vmul.f32 %v7700, %v7926
        %v7945 = vmul.f32 %v3856, %v7920
        %v7946 = vmul.f32 %v3857, %v7927
        %v7947 = vmul.f32 %v4648, %v7928
        %v7948 = vmul.f32 %v5758, %v7929
        %v7949 = vmul.f32 %v7701, %v7926
        %v7965 = vrot.slane %v7935, 6
        %v7966 = vrot.slane %v7936, 6
        %v7967 = vrot.slane %v7937, 6
        %v7968 = vrot.slane %v7938, 6
        %v7969 = vrot.slane %v7939, 6
        %v7970 = vrot.slane %v7940, 6
        %v7971 = vsel %vm3768, %v7965, %v7970
        %v7972 = vrot.slane %v7941, 6
        %v7973 = vsel %vm3768, %v7966, %v7972
        %v7974 = vrot.slane %v7942, 6
        %v7975 = vsel %vm3768, %v7967, %v7974
        %v7976 = vrot.slane %v7943, 6
        %v7977 = vsel %vm3768, %v7968, %v7976
        %v7978 = vrot.slane %v7944, 6
        %v7979 = vsel %vm3768, %v7969, %v7978
        %v7980 = vrot.slane %v7945, 6
        %v7981 = vsel %vm3768, %v7970, %v7980
        %v7982 = vrot.slane %v7946, 6
        %v7983 = vsel %vm3768, %v7972, %v7982
        %v7984 = vrot.slane %v7947, 6
        %v7985 = vsel %vm3768, %v7974, %v7984
        %v7986 = vrot.slane %v7948, 6
        %v7987 = vsel %vm3768, %v7976, %v7986
        %v7988 = vrot.slane %v7949, 6
        %v7989 = vsel %vm3768, %v7978, %v7988
        %v8005 = vadd.f32 %v7884, %v7965
        %v8006 = vadd.f32 %v7885, %v7966
        %v8007 = vadd.f32 %v7886, %v7967
        %v8008 = vadd.f32 %v7887, %v7968
        %v8009 = vadd.f32 %v7888, %v7969
        %v8010 = vadd.f32 %v7889, %v7971
        %v8011 = vadd.f32 %v7890, %v7973
        %v8012 = vadd.f32 %v7891, %v7975
        %v8013 = vadd.f32 %v7892, %v7977
        %v8014 = vadd.f32 %v7893, %v7979
        %v8015 = vadd.f32 %v7894, %v7981
        %v8016 = vadd.f32 %v7895, %v7983
        %v8017 = vadd.f32 %v7896, %v7985
        %v8018 = vadd.f32 %v7897, %v7987
        %v8019 = vadd.f32 %v7898, %v7989
        %v8020 = vlaneseq
        %v8021 = vshrl.u32 %v8020, 7
        %v8022 = vsub.s32 7, %v8021
        %v8023 = vrot.slane %v7704, %v8022
        %v8024 = vlaneseq
        %v8025 = vshrl.u32 %v8024, 7
        %v8026 = vsub.s32 7, %v8025
        %v8027 = vrot.slane %v7705, %v8026
        %v8028 = vlaneseq
        %v8029 = vshrl.u32 %v8028, 7
        %v8030 = vsub.s32 7, %v8029
        %v8031 = vrot.slane %v7706, %v8030
        %v8032 = vlaneseq
        %v8033 = vshrl.u32 %v8032, 7
        %v8034 = vsub.s32 7, %v8033
        %v8035 = vrot.slane %v7707, %v8034
        %8040 = vrot.lane.b32.xlu0 %v8023, 96
        %v8041 = vpop.permute.xlu0 %8040
        %8042 = vrot.lane.b32.xlu0 %v8027, 96
        %v8043 = vpop.permute.xlu0 %8042
        %8044 = vrot.lane.b32.xlu0 %v8031, 96
        %v8045 = vpop.permute.xlu0 %8044
        %8046 = vrot.lane.b32.xlu0 %v8035, 96
        %v8047 = vpop.permute.xlu0 %8046
        %v8048 = vsel %vm1041, %v8041, %v8043
        %v8049 = vsel %vm1041, %v8043, %v8045
        %v8050 = vsel %vm1041, %v8045, %v8047
        %v8056 = vmul.f32 %v3851, %v8041
        %v8057 = vmul.f32 %v3852, %v8048
        %v8058 = vmul.f32 %v4647, %v8049
        %v8059 = vmul.f32 %v5757, %v8050
        %v8060 = vmul.f32 %v7700, %v8047
        %v8061 = vmul.f32 %v3856, %v8041
        %v8062 = vmul.f32 %v3857, %v8048
        %v8063 = vmul.f32 %v4648, %v8049
        %v8064 = vmul.f32 %v5758, %v8050
        %v8065 = vmul.f32 %v7701, %v8047
        %v8076 = vrot.slane %v8056, 1
        %v8077 = vrot.slane %v8057, 1
        %v8078 = vrot.slane %v8058, 1
        %v8079 = vrot.slane %v8059, 1
        %v8080 = vrot.slane %v8060, 1
        %v8081 = vrot.slane %v8061, 1
        %v8082 = vsel %vm603, %v8076, %v8081
        %v8083 = vrot.slane %v8062, 1
        %v8084 = vsel %vm603, %v8077, %v8083
        %v8085 = vrot.slane %v8063, 1
        %v8086 = vsel %vm603, %v8078, %v8085
        %v8087 = vrot.slane %v8064, 1
        %v8088 = vsel %vm603, %v8079, %v8087
        %v8089 = vrot.slane %v8065, 1
        %v8090 = vsel %vm603, %v8080, %v8089
        %v8106 = vadd.f32 %v8005, %v8076
        %v8107 = vadd.f32 %v8006, %v8077
        %v8108 = vadd.f32 %v8007, %v8078
        %v8109 = vadd.f32 %v8008, %v8079
        %v8110 = vadd.f32 %v8009, %v8080
        %v8111 = vadd.f32 %v8010, %v8082
        %v8112 = vadd.f32 %v8011, %v8084
        %v8113 = vadd.f32 %v8012, %v8086
        %v8114 = vadd.f32 %v8013, %v8088
        %v8115 = vadd.f32 %v8014, %v8090
        %v8116 = vadd.f32 %v8015, %v8081
        %v8117 = vadd.f32 %v8016, %v8083
        %v8118 = vadd.f32 %v8017, %v8085
        %v8119 = vadd.f32 %v8018, %v8087
        %v8120 = vadd.f32 %v8019, %v8089
        %v8121 = vlaneseq
        %v8122 = vshrl.u32 %v8121, 7
        %v8123 = vsub.s32 0, %v8122
        %v8124 = vrot.slane %v7708, %v8123
        %v8125 = vlaneseq
        %v8126 = vshrl.u32 %v8125, 7
        %v8127 = vsub.s32 0, %v8126
        %v8128 = vrot.slane %v7709, %v8127
        %v8129 = vlaneseq
        %v8130 = vshrl.u32 %v8129, 7
        %v8131 = vsub.s32 0, %v8130
        %v8132 = vrot.slane %v7710, %v8131
        %v8133 = vlaneseq
        %v8134 = vshrl.u32 %v8133, 7
        %v8135 = vsub.s32 0, %v8134
        %v8136 = vrot.slane %v7711, %v8135
        %8141 = vrot.lane.b32.xlu0 %v8124, 96
        %v8142 = vpop.permute.xlu0 %8141
        %8143 = vrot.lane.b32.xlu0 %v8128, 96
        %v8144 = vpop.permute.xlu0 %8143
        %8145 = vrot.lane.b32.xlu0 %v8132, 96
        %v8146 = vpop.permute.xlu0 %8145
        %8147 = vrot.lane.b32.xlu0 %v8136, 96
        %v8148 = vpop.permute.xlu0 %8147
        %v8149 = vsel %vm1041, %v8142, %v8144
        %v8150 = vsel %vm1041, %v8144, %v8146
        %v8151 = vsel %vm1041, %v8146, %v8148
        %v8157 = vmul.f32 %v3851, %v8142
        %v8158 = vmul.f32 %v3852, %v8149
        %v8159 = vmul.f32 %v4647, %v8150
        %v8160 = vmul.f32 %v5757, %v8151
        %v8161 = vmul.f32 %v7700, %v8148
        %v8162 = vmul.f32 %v3856, %v8142
        %v8163 = vmul.f32 %v3857, %v8149
        %v8164 = vmul.f32 %v4648, %v8150
        %v8165 = vmul.f32 %v5758, %v8151
        %v8166 = vmul.f32 %v7701, %v8148
        %v8167 = vmul.f32 %v3861, %v8142
        %v8168 = vmul.f32 %v3862, %v8149
        %v8169 = vmul.f32 %v4649, %v8150
        %v8170 = vmul.f32 %v5759, %v8151
        %v8171 = vmul.f32 %v7702, %v8148
        %v8187 = vrot.slane %v8157, 4
        %v8188 = vrot.slane %v8158, 4
        %v8189 = vrot.slane %v8159, 4
        %v8190 = vrot.slane %v8160, 4
        %v8191 = vrot.slane %v8161, 4
        %v8192 = vrot.slane %v8162, 4
        %v8193 = vsel %vm949, %v8187, %v8192
        %v8194 = vrot.slane %v8163, 4
        %v8195 = vsel %vm949, %v8188, %v8194
        %v8196 = vrot.slane %v8164, 4
        %v8197 = vsel %vm949, %v8189, %v8196
        %v8198 = vrot.slane %v8165, 4
        %v8199 = vsel %vm949, %v8190, %v8198
        %v8200 = vrot.slane %v8166, 4
        %v8201 = vsel %vm949, %v8191, %v8200
        %v8202 = vrot.slane %v8167, 4
        %v8203 = vsel %vm949, %v8192, %v8202
        %v8204 = vrot.slane %v8168, 4
        %v8205 = vsel %vm949, %v8194, %v8204
        %v8206 = vrot.slane %v8169, 4
        %v8207 = vsel %vm949, %v8196, %v8206
        %v8208 = vrot.slane %v8170, 4
        %v8209 = vsel %vm949, %v8198, %v8208
        %v8210 = vrot.slane %v8171, 4
        %v8211 = vsel %vm949, %v8200, %v8210
        %v8227 = vadd.f32 %v8106, %v8187
        %v8228 = vadd.f32 %v8107, %v8188
        %v8229 = vadd.f32 %v8108, %v8189
        %v8230 = vadd.f32 %v8109, %v8190
        %v8231 = vadd.f32 %v8110, %v8191
        %v8232 = vadd.f32 %v8111, %v8193
        %v8233 = vadd.f32 %v8112, %v8195
        %v8234 = vadd.f32 %v8113, %v8197
        %v8235 = vadd.f32 %v8114, %v8199
        %v8236 = vadd.f32 %v8115, %v8201
        %v8237 = vadd.f32 %v8116, %v8203
        %v8238 = vadd.f32 %v8117, %v8205
        %v8239 = vadd.f32 %v8118, %v8207
        %v8240 = vadd.f32 %v8119, %v8209
        %v8241 = vadd.f32 %v8120, %v8211
        %v8242 = vlaneseq
        %v8243 = vshrl.u32 %v8242, 7
        %v8244 = vsub.s32 1, %v8243
        %v8245 = vrot.slane %v7708, %v8244
        %v8246 = vlaneseq
        %v8247 = vshrl.u32 %v8246, 7
        %v8248 = vsub.s32 1, %v8247
        %v8249 = vrot.slane %v7709, %v8248
        %v8250 = vlaneseq
        %v8251 = vshrl.u32 %v8250, 7
        %v8252 = vsub.s32 1, %v8251
        %v8253 = vrot.slane %v7710, %v8252
        %v8254 = vlaneseq
        %v8255 = vshrl.u32 %v8254, 7
        %v8256 = vsub.s32 1, %v8255
        %v8257 = vrot.slane %v7711, %v8256
        %8262 = vrot.lane.b32.xlu0 %v8245, 96
        %v8263 = vpop.permute.xlu0 %8262
        %8264 = vrot.lane.b32.xlu0 %v8249, 96
        %v8265 = vpop.permute.xlu0 %8264
        %8266 = vrot.lane.b32.xlu0 %v8253, 96
        %v8267 = vpop.permute.xlu0 %8266
        %8268 = vrot.lane.b32.xlu0 %v8257, 96
        %v8269 = vpop.permute.xlu0 %8268
        %v8270 = vsel %vm1041, %v8263, %v8265
        %v8271 = vsel %vm1041, %v8265, %v8267
        %v8272 = vsel %vm1041, %v8267, %v8269
        %v8278 = vmul.f32 %v3851, %v8263
        %v8279 = vmul.f32 %v3852, %v8270
        %v8280 = vmul.f32 %v4647, %v8271
        %v8281 = vmul.f32 %v5757, %v8272
        %v8282 = vmul.f32 %v7700, %v8269
        %v8283 = vmul.f32 %v3856, %v8263
        %v8284 = vmul.f32 %v3857, %v8270
        %v8285 = vmul.f32 %v4648, %v8271
        %v8286 = vmul.f32 %v5758, %v8272
        %v8287 = vmul.f32 %v7701, %v8269
        %v8288 = vmul.f32 %v3861, %v8263
        %v8289 = vmul.f32 %v3862, %v8270
        %v8290 = vmul.f32 %v4649, %v8271
        %v8291 = vmul.f32 %v5759, %v8272
        %v8292 = vmul.f32 %v7702, %v8269
        %v8308 = vrot.slane %v8278, 7
        %v8309 = vrot.slane %v8279, 7
        %v8310 = vrot.slane %v8280, 7
        %v8311 = vrot.slane %v8281, 7
        %v8312 = vrot.slane %v8282, 7
        %v8313 = vrot.slane %v8283, 7
        %v8314 = vsel %vm4468, %v8308, %v8313
        %v8315 = vrot.slane %v8284, 7
        %v8316 = vsel %vm4468, %v8309, %v8315
        %v8317 = vrot.slane %v8285, 7
        %v8318 = vsel %vm4468, %v8310, %v8317
        %v8319 = vrot.slane %v8286, 7
        %v8320 = vsel %vm4468, %v8311, %v8319
        %v8321 = vrot.slane %v8287, 7
        %v8322 = vsel %vm4468, %v8312, %v8321
        %v8323 = vrot.slane %v8288, 7
        %v8324 = vsel %vm4468, %v8313, %v8323
        %v8325 = vrot.slane %v8289, 7
        %v8326 = vsel %vm4468, %v8315, %v8325
        %v8327 = vrot.slane %v8290, 7
        %v8328 = vsel %vm4468, %v8317, %v8327
        %v8329 = vrot.slane %v8291, 7
        %v8330 = vsel %vm4468, %v8319, %v8329
        %v8331 = vrot.slane %v8292, 7
        %v8332 = vsel %vm4468, %v8321, %v8331
        %v8348 = vadd.f32 %v8227, %v8308
        %v8349 = vadd.f32 %v8228, %v8309
        %v8350 = vadd.f32 %v8229, %v8310
        %v8351 = vadd.f32 %v8230, %v8311
        %v8352 = vadd.f32 %v8231, %v8312
        %v8353 = vadd.f32 %v8232, %v8314
        %v8354 = vadd.f32 %v8233, %v8316
        %v8355 = vadd.f32 %v8234, %v8318
        %v8356 = vadd.f32 %v8235, %v8320
        %v8357 = vadd.f32 %v8236, %v8322
        %v8358 = vadd.f32 %v8237, %v8324
        %v8359 = vadd.f32 %v8238, %v8326
        %v8360 = vadd.f32 %v8239, %v8328
        %v8361 = vadd.f32 %v8240, %v8330
        %v8362 = vadd.f32 %v8241, %v8332
        %v8363 = vlaneseq
        %v8364 = vshrl.u32 %v8363, 7
        %v8365 = vsub.s32 2, %v8364
        %v8366 = vrot.slane %v7708, %v8365
        %v8367 = vlaneseq
        %v8368 = vshrl.u32 %v8367, 7
        %v8369 = vsub.s32 2, %v8368
        %v8370 = vrot.slane %v7709, %v8369
        %v8371 = vlaneseq
        %v8372 = vshrl.u32 %v8371, 7
        %v8373 = vsub.s32 2, %v8372
        %v8374 = vrot.slane %v7710, %v8373
        %v8375 = vlaneseq
        %v8376 = vshrl.u32 %v8375, 7
        %v8377 = vsub.s32 2, %v8376
        %v8378 = vrot.slane %v7711, %v8377
        %8383 = vrot.lane.b32.xlu0 %v8366, 96
        %v8384 = vpop.permute.xlu0 %8383
        %8385 = vrot.lane.b32.xlu0 %v8370, 96
        %v8386 = vpop.permute.xlu0 %8385
        %8387 = vrot.lane.b32.xlu0 %v8374, 96
        %v8388 = vpop.permute.xlu0 %8387
        %8389 = vrot.lane.b32.xlu0 %v8378, 96
        %v8390 = vpop.permute.xlu0 %8389
        %v8391 = vsel %vm1041, %v8384, %v8386
        %v8392 = vsel %vm1041, %v8386, %v8388
        %v8393 = vsel %vm1041, %v8388, %v8390
        %v8399 = vmul.f32 %v3856, %v8384
        %v8400 = vmul.f32 %v3857, %v8391
        %v8401 = vmul.f32 %v4648, %v8392
        %v8402 = vmul.f32 %v5758, %v8393
        %v8403 = vmul.f32 %v7701, %v8390
        %v8404 = vmul.f32 %v3861, %v8384
        %v8405 = vmul.f32 %v3862, %v8391
        %v8406 = vmul.f32 %v4649, %v8392
        %v8407 = vmul.f32 %v5759, %v8393
        %v8408 = vmul.f32 %v7702, %v8390
        %v8409 = vmul.f32 %v3866, %v8384
        %v8410 = vmul.f32 %v3867, %v8391
        %v8411 = vmul.f32 %v4650, %v8392
        %v8412 = vmul.f32 %v5760, %v8393
        %v8413 = vmul.f32 %v7703, %v8390
        %v8429 = vrot.slane %v8399, 2
        %v8430 = vrot.slane %v8400, 2
        %v8431 = vrot.slane %v8401, 2
        %v8432 = vrot.slane %v8402, 2
        %v8433 = vrot.slane %v8403, 2
        %v8434 = vrot.slane %v8404, 2
        %v8435 = vsel %vm715, %v8429, %v8434
        %v8436 = vrot.slane %v8405, 2
        %v8437 = vsel %vm715, %v8430, %v8436
        %v8438 = vrot.slane %v8406, 2
        %v8439 = vsel %vm715, %v8431, %v8438
        %v8440 = vrot.slane %v8407, 2
        %v8441 = vsel %vm715, %v8432, %v8440
        %v8442 = vrot.slane %v8408, 2
        %v8443 = vsel %vm715, %v8433, %v8442
        %v8444 = vrot.slane %v8409, 2
        %v8445 = vsel %vm715, %v8434, %v8444
        %v8446 = vrot.slane %v8410, 2
        %v8447 = vsel %vm715, %v8436, %v8446
        %v8448 = vrot.slane %v8411, 2
        %v8449 = vsel %vm715, %v8438, %v8448
        %v8450 = vrot.slane %v8412, 2
        %v8451 = vsel %vm715, %v8440, %v8450
        %v8452 = vrot.slane %v8413, 2
        %v8453 = vsel %vm715, %v8442, %v8452
        %v8469 = vadd.f32 %v8348, %v8429
        %v8470 = vadd.f32 %v8349, %v8430
        %v8471 = vadd.f32 %v8350, %v8431
        %v8472 = vadd.f32 %v8351, %v8432
        %v8473 = vadd.f32 %v8352, %v8433
        %v8474 = vadd.f32 %v8353, %v8435
        %v8475 = vadd.f32 %v8354, %v8437
        %v8476 = vadd.f32 %v8355, %v8439
        %v8477 = vadd.f32 %v8356, %v8441
        %v8478 = vadd.f32 %v8357, %v8443
        %v8479 = vadd.f32 %v8358, %v8445
        %v8480 = vadd.f32 %v8359, %v8447
        %v8481 = vadd.f32 %v8360, %v8449
        %v8482 = vadd.f32 %v8361, %v8451
        %v8483 = vadd.f32 %v8362, %v8453
        %v8484 = vld [vmem:[#allocation3 + $0x40] sm:$0x80]
        %v8485 = vld [vmem:[#allocation3 + $0x90] sm:$0xff]
        %v8486 = vld [vmem:[#allocation3 + $0xe0] sm:$0xff]
        %v8487 = vld [vmem:[#allocation3 + $0x130] sm:$0xff]
        %v8488 = vld [vmem:[#allocation3 + $0x180] sm:$0xff]
        %v8489 = vld [vmem:[#allocation3 + $0x1d0] sm:$0x1]
        %v8490 = vld [vmem:[%s3 + $0x80] sm:$0xf8]
        %v8491 = vld [vmem:[%s3 + $0x88] sm:$0xf8]
        %v8492 = vld [vmem:[%s3 + $0x90] sm:$0xf8]
        %v8493 = vld [vmem:[%s3 + $0x98] sm:$0xf8]
        %v8494 = vld [vmem:[%s3 + $0xa0] sm:$0x3]
        %v8495 = vld [vmem:[%s3 + $0xa8] sm:$0x3]
        %v8496 = vld [vmem:[%s3 + $0xb0] sm:$0x3]
        %v8497 = vld [vmem:[%s3 + $0xb8] sm:$0x3]
        %v8498 = vlaneseq
        %v8499 = vshrl.u32 %v8498, 7
        %v8500 = vsub.s32 3, %v8499
        %v8501 = vrot.slane %v8490, %v8500
        %v8502 = vlaneseq
        %v8503 = vshrl.u32 %v8502, 7
        %v8504 = vsub.s32 3, %v8503
        %v8505 = vrot.slane %v8491, %v8504
        %v8506 = vlaneseq
        %v8507 = vshrl.u32 %v8506, 7
        %v8508 = vsub.s32 3, %v8507
        %v8509 = vrot.slane %v8492, %v8508
        %v8510 = vlaneseq
        %v8511 = vshrl.u32 %v8510, 7
        %v8512 = vsub.s32 3, %v8511
        %v8513 = vrot.slane %v8493, %v8512
        %8518 = vrot.lane.b32.xlu0 %v8501, 64
        %v8519 = vpop.permute.xlu0 %8518
        %8520 = vrot.lane.b32.xlu0 %v8505, 64
        %v8521 = vpop.permute.xlu0 %8520
        %8522 = vrot.lane.b32.xlu0 %v8509, 64
        %v8523 = vpop.permute.xlu0 %8522
        %8524 = vrot.lane.b32.xlu0 %v8513, 64
        %v8525 = vpop.permute.xlu0 %8524
        %v8526 = vsel %vm498, %v8519, %v8521
        %v8527 = vsel %vm498, %v8521, %v8523
        %v8528 = vsel %vm498, %v8523, %v8525
        %v8534 = vmul.f32 %v3842, %v8519
        %v8535 = vmul.f32 %v4645, %v8526
        %v8536 = vmul.f32 %v5755, %v8527
        %v8537 = vmul.f32 %v7698, %v8528
        %v8538 = vmul.f32 %v8484, %v8525
        %v8539 = vmul.f32 %v3847, %v8519
        %v8540 = vmul.f32 %v4646, %v8526
        %v8541 = vmul.f32 %v5756, %v8527
        %v8542 = vmul.f32 %v7699, %v8528
        %v8543 = vmul.f32 %v8485, %v8525
        %v8544 = vmul.f32 %v3852, %v8519
        %v8545 = vmul.f32 %v4647, %v8526
        %v8546 = vmul.f32 %v5757, %v8527
        %v8547 = vmul.f32 %v7700, %v8528
        %v8548 = vmul.f32 %v8486, %v8525
        %8564 = vrot.lane.b32.xlu0 %v8534, 32
        %v8565 = vpop.permute.xlu0 %8564
        %8566 = vrot.lane.b32.xlu0 %v8535, 32
        %v8567 = vpop.permute.xlu0 %8566
        %8568 = vrot.lane.b32.xlu0 %v8536, 32
        %v8569 = vpop.permute.xlu0 %8568
        %8570 = vrot.lane.b32.xlu0 %v8537, 32
        %v8571 = vpop.permute.xlu0 %8570
        %8572 = vrot.lane.b32.xlu0 %v8538, 32
        %v8573 = vpop.permute.xlu0 %8572
        %8574 = vrot.lane.b32.xlu0 %v8539, 32
        %v8575 = vpop.permute.xlu0 %8574
        %8576 = vrot.lane.b32.xlu0 %v8540, 32
        %v8577 = vpop.permute.xlu0 %8576
        %8578 = vrot.lane.b32.xlu0 %v8541, 32
        %v8579 = vpop.permute.xlu0 %8578
        %8580 = vrot.lane.b32.xlu0 %v8542, 32
        %v8581 = vpop.permute.xlu0 %8580
        %8582 = vrot.lane.b32.xlu0 %v8543, 32
        %v8583 = vpop.permute.xlu0 %8582
        %8584 = vrot.lane.b32.xlu0 %v8544, 32
        %v8585 = vpop.permute.xlu0 %8584
        %8586 = vrot.lane.b32.xlu0 %v8545, 32
        %v8587 = vpop.permute.xlu0 %8586
        %8588 = vrot.lane.b32.xlu0 %v8546, 32
        %v8589 = vpop.permute.xlu0 %8588
        %8590 = vrot.lane.b32.xlu0 %v8547, 32
        %v8591 = vpop.permute.xlu0 %8590
        %8592 = vrot.lane.b32.xlu0 %v8548, 32
        %v8593 = vpop.permute.xlu0 %8592
        %v8594 = vsel %vm2423, %v8565, %v8567
        %v8595 = vsel %vm2423, %v8567, %v8569
        %v8596 = vsel %vm2423, %v8569, %v8571
        %v8597 = vsel %vm2423, %v8571, %v8573
        %v8598 = vsel %vm2423, %v8575, %v8577
        %v8599 = vsel %vm2423, %v8577, %v8579
        %v8600 = vsel %vm2423, %v8579, %v8581
        %v8601 = vsel %vm2423, %v8581, %v8583
        %v8602 = vsel %vm2423, %v8585, %v8587
        %v8603 = vsel %vm2423, %v8587, %v8589
        %v8604 = vsel %vm2423, %v8589, %v8591
        %v8605 = vsel %vm2423, %v8591, %v8593
        %v8621 = vadd.f32 %v8469, %v8565
        %v8622 = vadd.f32 %v8470, %v8594
        %v8623 = vadd.f32 %v8471, %v8595
        %v8624 = vadd.f32 %v8472, %v8596
        %v8625 = vadd.f32 %v8473, %v8597
        %v8626 = vadd.f32 %v8474, %v8575
        %v8627 = vadd.f32 %v8475, %v8598
        %v8628 = vadd.f32 %v8476, %v8599
        %v8629 = vadd.f32 %v8477, %v8600
        %v8630 = vadd.f32 %v8478, %v8601
        %v8631 = vadd.f32 %v8479, %v8585
        %v8632 = vadd.f32 %v8480, %v8602
        %v8633 = vadd.f32 %v8481, %v8603
        %v8634 = vadd.f32 %v8482, %v8604
        %v8635 = vadd.f32 %v8483, %v8605
        %v8636 = vlaneseq
        %v8637 = vshrl.u32 %v8636, 7
        %v8638 = vsub.s32 4, %v8637
        %v8639 = vrot.slane %v8490, %v8638
        %v8640 = vlaneseq
        %v8641 = vshrl.u32 %v8640, 7
        %v8642 = vsub.s32 4, %v8641
        %v8643 = vrot.slane %v8491, %v8642
        %v8644 = vlaneseq
        %v8645 = vshrl.u32 %v8644, 7
        %v8646 = vsub.s32 4, %v8645
        %v8647 = vrot.slane %v8492, %v8646
        %v8648 = vlaneseq
        %v8649 = vshrl.u32 %v8648, 7
        %v8650 = vsub.s32 4, %v8649
        %v8651 = vrot.slane %v8493, %v8650
        %8656 = vrot.lane.b32.xlu0 %v8639, 64
        %v8657 = vpop.permute.xlu0 %8656
        %8658 = vrot.lane.b32.xlu0 %v8643, 64
        %v8659 = vpop.permute.xlu0 %8658
        %8660 = vrot.lane.b32.xlu0 %v8647, 64
        %v8661 = vpop.permute.xlu0 %8660
        %8662 = vrot.lane.b32.xlu0 %v8651, 64
        %v8663 = vpop.permute.xlu0 %8662
        %v8664 = vsel %vm498, %v8657, %v8659
        %v8665 = vsel %vm498, %v8659, %v8661
        %v8666 = vsel %vm498, %v8661, %v8663
        %v8672 = vmul.f32 %v3847, %v8657
        %v8673 = vmul.f32 %v4646, %v8664
        %v8674 = vmul.f32 %v5756, %v8665
        %v8675 = vmul.f32 %v7699, %v8666
        %v8676 = vmul.f32 %v8485, %v8663
        %v8677 = vmul.f32 %v3852, %v8657
        %v8678 = vmul.f32 %v4647, %v8664
        %v8679 = vmul.f32 %v5757, %v8665
        %v8680 = vmul.f32 %v7700, %v8666
        %v8681 = vmul.f32 %v8486, %v8663
        %v8682 = vmul.f32 %v3857, %v8657
        %v8683 = vmul.f32 %v4648, %v8664
        %v8684 = vmul.f32 %v5758, %v8665
        %v8685 = vmul.f32 %v7701, %v8666
        %v8686 = vmul.f32 %v8487, %v8663
        %v8702 = vrot.slane %v8672, 3
        %v8703 = vrot.slane %v8673, 3
        %v8704 = vrot.slane %v8674, 3
        %v8705 = vrot.slane %v8675, 3
        %v8706 = vrot.slane %v8676, 3
        %v8707 = vrot.slane %v8677, 3
        %v8708 = vsel %vm827, %v8702, %v8707
        %v8709 = vrot.slane %v8678, 3
        %v8710 = vsel %vm827, %v8703, %v8709
        %v8711 = vrot.slane %v8679, 3
        %v8712 = vsel %vm827, %v8704, %v8711
        %v8713 = vrot.slane %v8680, 3
        %v8714 = vsel %vm827, %v8705, %v8713
        %v8715 = vrot.slane %v8681, 3
        %v8716 = vsel %vm827, %v8706, %v8715
        %v8717 = vrot.slane %v8682, 3
        %v8718 = vsel %vm827, %v8707, %v8717
        %v8719 = vrot.slane %v8683, 3
        %v8720 = vsel %vm827, %v8709, %v8719
        %v8721 = vrot.slane %v8684, 3
        %v8722 = vsel %vm827, %v8711, %v8721
        %v8723 = vrot.slane %v8685, 3
        %v8724 = vsel %vm827, %v8713, %v8723
        %v8725 = vrot.slane %v8686, 3
        %v8726 = vsel %vm827, %v8715, %v8725
        %8727 = vrot.lane.b32.xlu0 %v8702, 32
        %v8728 = vpop.permute.xlu0 %8727
        %8729 = vrot.lane.b32.xlu0 %v8703, 32
        %v8730 = vpop.permute.xlu0 %8729
        %8731 = vrot.lane.b32.xlu0 %v8704, 32
        %v8732 = vpop.permute.xlu0 %8731
        %8733 = vrot.lane.b32.xlu0 %v8705, 32
        %v8734 = vpop.permute.xlu0 %8733
        %8735 = vrot.lane.b32.xlu0 %v8706, 32
        %v8736 = vpop.permute.xlu0 %8735
        %8737 = vrot.lane.b32.xlu0 %v8708, 32
        %v8738 = vpop.permute.xlu0 %8737
        %8739 = vrot.lane.b32.xlu0 %v8710, 32
        %v8740 = vpop.permute.xlu0 %8739
        %8741 = vrot.lane.b32.xlu0 %v8712, 32
        %v8742 = vpop.permute.xlu0 %8741
        %8743 = vrot.lane.b32.xlu0 %v8714, 32
        %v8744 = vpop.permute.xlu0 %8743
        %8745 = vrot.lane.b32.xlu0 %v8716, 32
        %v8746 = vpop.permute.xlu0 %8745
        %8747 = vrot.lane.b32.xlu0 %v8718, 32
        %v8748 = vpop.permute.xlu0 %8747
        %8749 = vrot.lane.b32.xlu0 %v8720, 32
        %v8750 = vpop.permute.xlu0 %8749
        %8751 = vrot.lane.b32.xlu0 %v8722, 32
        %v8752 = vpop.permute.xlu0 %8751
        %8753 = vrot.lane.b32.xlu0 %v8724, 32
        %v8754 = vpop.permute.xlu0 %8753
        %8755 = vrot.lane.b32.xlu0 %v8726, 32
        %v8756 = vpop.permute.xlu0 %8755
        %v8757 = vsel %vm2423, %v8728, %v8730
        %v8758 = vsel %vm2423, %v8730, %v8732
        %v8759 = vsel %vm2423, %v8732, %v8734
        %v8760 = vsel %vm2423, %v8734, %v8736
        %v8761 = vsel %vm2423, %v8738, %v8740
        %v8762 = vsel %vm2423, %v8740, %v8742
        %v8763 = vsel %vm2423, %v8742, %v8744
        %v8764 = vsel %vm2423, %v8744, %v8746
        %v8765 = vsel %vm2423, %v8748, %v8750
        %v8766 = vsel %vm2423, %v8750, %v8752
        %v8767 = vsel %vm2423, %v8752, %v8754
        %v8768 = vsel %vm2423, %v8754, %v8756
        %v8784 = vadd.f32 %v8621, %v8728
        %v8785 = vadd.f32 %v8622, %v8757
        %v8786 = vadd.f32 %v8623, %v8758
        %v8787 = vadd.f32 %v8624, %v8759
        %v8788 = vadd.f32 %v8625, %v8760
        %v8789 = vadd.f32 %v8626, %v8738
        %v8790 = vadd.f32 %v8627, %v8761
        %v8791 = vadd.f32 %v8628, %v8762
        %v8792 = vadd.f32 %v8629, %v8763
        %v8793 = vadd.f32 %v8630, %v8764
        %v8794 = vadd.f32 %v8631, %v8748
        %v8795 = vadd.f32 %v8632, %v8765
        %v8796 = vadd.f32 %v8633, %v8766
        %v8797 = vadd.f32 %v8634, %v8767
        %v8798 = vadd.f32 %v8635, %v8768
        %v8799 = vlaneseq
        %v8800 = vshrl.u32 %v8799, 7
        %v8801 = vsub.s32 5, %v8800
        %v8802 = vrot.slane %v8490, %v8801
        %v8803 = vlaneseq
        %v8804 = vshrl.u32 %v8803, 7
        %v8805 = vsub.s32 5, %v8804
        %v8806 = vrot.slane %v8491, %v8805
        %v8807 = vlaneseq
        %v8808 = vshrl.u32 %v8807, 7
        %v8809 = vsub.s32 5, %v8808
        %v8810 = vrot.slane %v8492, %v8809
        %v8811 = vlaneseq
        %v8812 = vshrl.u32 %v8811, 7
        %v8813 = vsub.s32 5, %v8812
        %v8814 = vrot.slane %v8493, %v8813
        %8819 = vrot.lane.b32.xlu0 %v8802, 64
        %v8820 = vpop.permute.xlu0 %8819
        %8821 = vrot.lane.b32.xlu0 %v8806, 64
        %v8822 = vpop.permute.xlu0 %8821
        %8823 = vrot.lane.b32.xlu0 %v8810, 64
        %v8824 = vpop.permute.xlu0 %8823
        %8825 = vrot.lane.b32.xlu0 %v8814, 64
        %v8826 = vpop.permute.xlu0 %8825
        %v8827 = vsel %vm498, %v8820, %v8822
        %v8828 = vsel %vm498, %v8822, %v8824
        %v8829 = vsel %vm498, %v8824, %v8826
        %v8835 = vmul.f32 %v3847, %v8820
        %v8836 = vmul.f32 %v4646, %v8827
        %v8837 = vmul.f32 %v5756, %v8828
        %v8838 = vmul.f32 %v7699, %v8829
        %v8839 = vmul.f32 %v8485, %v8826
        %v8840 = vmul.f32 %v3852, %v8820
        %v8841 = vmul.f32 %v4647, %v8827
        %v8842 = vmul.f32 %v5757, %v8828
        %v8843 = vmul.f32 %v7700, %v8829
        %v8844 = vmul.f32 %v8486, %v8826
        %v8845 = vmul.f32 %v3857, %v8820
        %v8846 = vmul.f32 %v4648, %v8827
        %v8847 = vmul.f32 %v5758, %v8828
        %v8848 = vmul.f32 %v7701, %v8829
        %v8849 = vmul.f32 %v8487, %v8826
        %v8865 = vrot.slane %v8835, 6
        %v8866 = vrot.slane %v8836, 6
        %v8867 = vrot.slane %v8837, 6
        %v8868 = vrot.slane %v8838, 6
        %v8869 = vrot.slane %v8839, 6
        %v8870 = vrot.slane %v8840, 6
        %v8871 = vsel %vm3768, %v8865, %v8870
        %v8872 = vrot.slane %v8841, 6
        %v8873 = vsel %vm3768, %v8866, %v8872
        %v8874 = vrot.slane %v8842, 6
        %v8875 = vsel %vm3768, %v8867, %v8874
        %v8876 = vrot.slane %v8843, 6
        %v8877 = vsel %vm3768, %v8868, %v8876
        %v8878 = vrot.slane %v8844, 6
        %v8879 = vsel %vm3768, %v8869, %v8878
        %v8880 = vrot.slane %v8845, 6
        %v8881 = vsel %vm3768, %v8870, %v8880
        %v8882 = vrot.slane %v8846, 6
        %v8883 = vsel %vm3768, %v8872, %v8882
        %v8884 = vrot.slane %v8847, 6
        %v8885 = vsel %vm3768, %v8874, %v8884
        %v8886 = vrot.slane %v8848, 6
        %v8887 = vsel %vm3768, %v8876, %v8886
        %v8888 = vrot.slane %v8849, 6
        %v8889 = vsel %vm3768, %v8878, %v8888
        %8890 = vrot.lane.b32.xlu0 %v8865, 32
        %v8891 = vpop.permute.xlu0 %8890
        %8892 = vrot.lane.b32.xlu0 %v8866, 32
        %v8893 = vpop.permute.xlu0 %8892
        %8894 = vrot.lane.b32.xlu0 %v8867, 32
        %v8895 = vpop.permute.xlu0 %8894
        %8896 = vrot.lane.b32.xlu0 %v8868, 32
        %v8897 = vpop.permute.xlu0 %8896
        %8898 = vrot.lane.b32.xlu0 %v8869, 32
        %v8899 = vpop.permute.xlu0 %8898
        %8900 = vrot.lane.b32.xlu0 %v8871, 32
        %v8901 = vpop.permute.xlu0 %8900
        %8902 = vrot.lane.b32.xlu0 %v8873, 32
        %v8903 = vpop.permute.xlu0 %8902
        %8904 = vrot.lane.b32.xlu0 %v8875, 32
        %v8905 = vpop.permute.xlu0 %8904
        %8906 = vrot.lane.b32.xlu0 %v8877, 32
        %v8907 = vpop.permute.xlu0 %8906
        %8908 = vrot.lane.b32.xlu0 %v8879, 32
        %v8909 = vpop.permute.xlu0 %8908
        %8910 = vrot.lane.b32.xlu0 %v8881, 32
        %v8911 = vpop.permute.xlu0 %8910
        %8912 = vrot.lane.b32.xlu0 %v8883, 32
        %v8913 = vpop.permute.xlu0 %8912
        %8914 = vrot.lane.b32.xlu0 %v8885, 32
        %v8915 = vpop.permute.xlu0 %8914
        %8916 = vrot.lane.b32.xlu0 %v8887, 32
        %v8917 = vpop.permute.xlu0 %8916
        %8918 = vrot.lane.b32.xlu0 %v8889, 32
        %v8919 = vpop.permute.xlu0 %8918
        %v8920 = vsel %vm2423, %v8891, %v8893
        %v8921 = vsel %vm2423, %v8893, %v8895
        %v8922 = vsel %vm2423, %v8895, %v8897
        %v8923 = vsel %vm2423, %v8897, %v8899
        %v8924 = vsel %vm2423, %v8901, %v8903
        %v8925 = vsel %vm2423, %v8903, %v8905
        %v8926 = vsel %vm2423, %v8905, %v8907
        %v8927 = vsel %vm2423, %v8907, %v8909
        %v8928 = vsel %vm2423, %v8911, %v8913
        %v8929 = vsel %vm2423, %v8913, %v8915
        %v8930 = vsel %vm2423, %v8915, %v8917
        %v8931 = vsel %vm2423, %v8917, %v8919
        %v8947 = vadd.f32 %v8784, %v8891
        %v8948 = vadd.f32 %v8785, %v8920
        %v8949 = vadd.f32 %v8786, %v8921
        %v8950 = vadd.f32 %v8787, %v8922
        %v8951 = vadd.f32 %v8788, %v8923
        %v8952 = vadd.f32 %v8789, %v8901
        %v8953 = vadd.f32 %v8790, %v8924
        %v8954 = vadd.f32 %v8791, %v8925
        %v8955 = vadd.f32 %v8792, %v8926
        %v8956 = vadd.f32 %v8793, %v8927
        %v8957 = vadd.f32 %v8794, %v8911
        %v8958 = vadd.f32 %v8795, %v8928
        %v8959 = vadd.f32 %v8796, %v8929
        %v8960 = vadd.f32 %v8797, %v8930
        %v8961 = vadd.f32 %v8798, %v8931
        %v8962 = vlaneseq
        %v8963 = vshrl.u32 %v8962, 7
        %v8964 = vsub.s32 6, %v8963
        %v8965 = vrot.slane %v8490, %v8964
        %v8966 = vlaneseq
        %v8967 = vshrl.u32 %v8966, 7
        %v8968 = vsub.s32 6, %v8967
        %v8969 = vrot.slane %v8491, %v8968
        %v8970 = vlaneseq
        %v8971 = vshrl.u32 %v8970, 7
        %v8972 = vsub.s32 6, %v8971
        %v8973 = vrot.slane %v8492, %v8972
        %v8974 = vlaneseq
        %v8975 = vshrl.u32 %v8974, 7
        %v8976 = vsub.s32 6, %v8975
        %v8977 = vrot.slane %v8493, %v8976
        %8982 = vrot.lane.b32.xlu0 %v8965, 64
        %v8983 = vpop.permute.xlu0 %8982
        %8984 = vrot.lane.b32.xlu0 %v8969, 64
        %v8985 = vpop.permute.xlu0 %8984
        %8986 = vrot.lane.b32.xlu0 %v8973, 64
        %v8987 = vpop.permute.xlu0 %8986
        %8988 = vrot.lane.b32.xlu0 %v8977, 64
        %v8989 = vpop.permute.xlu0 %8988
        %v8990 = vsel %vm498, %v8983, %v8985
        %v8991 = vsel %vm498, %v8985, %v8987
        %v8992 = vsel %vm498, %v8987, %v8989
        %v8998 = vmul.f32 %v3852, %v8983
        %v8999 = vmul.f32 %v4647, %v8990
        %v9000 = vmul.f32 %v5757, %v8991
        %v9001 = vmul.f32 %v7700, %v8992
        %v9002 = vmul.f32 %v8486, %v8989
        %v9003 = vmul.f32 %v3857, %v8983
        %v9004 = vmul.f32 %v4648, %v8990
        %v9005 = vmul.f32 %v5758, %v8991
        %v9006 = vmul.f32 %v7701, %v8992
        %v9007 = vmul.f32 %v8487, %v8989
        %v9018 = vrot.slane %v8998, 1
        %v9019 = vrot.slane %v8999, 1
        %v9020 = vrot.slane %v9000, 1
        %v9021 = vrot.slane %v9001, 1
        %v9022 = vrot.slane %v9002, 1
        %v9023 = vrot.slane %v9003, 1
        %v9024 = vsel %vm603, %v9018, %v9023
        %v9025 = vrot.slane %v9004, 1
        %v9026 = vsel %vm603, %v9019, %v9025
        %v9027 = vrot.slane %v9005, 1
        %v9028 = vsel %vm603, %v9020, %v9027
        %v9029 = vrot.slane %v9006, 1
        %v9030 = vsel %vm603, %v9021, %v9029
        %v9031 = vrot.slane %v9007, 1
        %v9032 = vsel %vm603, %v9022, %v9031
        %9033 = vrot.lane.b32.xlu0 %v9018, 32
        %v9034 = vpop.permute.xlu0 %9033
        %9035 = vrot.lane.b32.xlu0 %v9019, 32
        %v9036 = vpop.permute.xlu0 %9035
        %9037 = vrot.lane.b32.xlu0 %v9020, 32
        %v9038 = vpop.permute.xlu0 %9037
        %9039 = vrot.lane.b32.xlu0 %v9021, 32
        %v9040 = vpop.permute.xlu0 %9039
        %9041 = vrot.lane.b32.xlu0 %v9022, 32
        %v9042 = vpop.permute.xlu0 %9041
        %9043 = vrot.lane.b32.xlu0 %v9024, 32
        %v9044 = vpop.permute.xlu0 %9043
        %9045 = vrot.lane.b32.xlu0 %v9026, 32
        %v9046 = vpop.permute.xlu0 %9045
        %9047 = vrot.lane.b32.xlu0 %v9028, 32
        %v9048 = vpop.permute.xlu0 %9047
        %9049 = vrot.lane.b32.xlu0 %v9030, 32
        %v9050 = vpop.permute.xlu0 %9049
        %9051 = vrot.lane.b32.xlu0 %v9032, 32
        %v9052 = vpop.permute.xlu0 %9051
        %9053 = vrot.lane.b32.xlu0 %v9023, 32
        %v9054 = vpop.permute.xlu0 %9053
        %9055 = vrot.lane.b32.xlu0 %v9025, 32
        %v9056 = vpop.permute.xlu0 %9055
        %9057 = vrot.lane.b32.xlu0 %v9027, 32
        %v9058 = vpop.permute.xlu0 %9057
        %9059 = vrot.lane.b32.xlu0 %v9029, 32
        %v9060 = vpop.permute.xlu0 %9059
        %9061 = vrot.lane.b32.xlu0 %v9031, 32
        %v9062 = vpop.permute.xlu0 %9061
        %v9063 = vsel %vm2423, %v9034, %v9036
        %v9064 = vsel %vm2423, %v9036, %v9038
        %v9065 = vsel %vm2423, %v9038, %v9040
        %v9066 = vsel %vm2423, %v9040, %v9042
        %v9067 = vsel %vm2423, %v9044, %v9046
        %v9068 = vsel %vm2423, %v9046, %v9048
        %v9069 = vsel %vm2423, %v9048, %v9050
        %v9070 = vsel %vm2423, %v9050, %v9052
        %v9071 = vsel %vm2423, %v9054, %v9056
        %v9072 = vsel %vm2423, %v9056, %v9058
        %v9073 = vsel %vm2423, %v9058, %v9060
        %v9074 = vsel %vm2423, %v9060, %v9062
        %v9090 = vadd.f32 %v8947, %v9034
        %v9091 = vadd.f32 %v8948, %v9063
        %v9092 = vadd.f32 %v8949, %v9064
        %v9093 = vadd.f32 %v8950, %v9065
        %v9094 = vadd.f32 %v8951, %v9066
        %v9095 = vadd.f32 %v8952, %v9044
        %v9096 = vadd.f32 %v8953, %v9067
        %v9097 = vadd.f32 %v8954, %v9068
        %v9098 = vadd.f32 %v8955, %v9069
        %v9099 = vadd.f32 %v8956, %v9070
        %v9100 = vadd.f32 %v8957, %v9054
        %v9101 = vadd.f32 %v8958, %v9071
        %v9102 = vadd.f32 %v8959, %v9072
        %v9103 = vadd.f32 %v8960, %v9073
        %v9104 = vadd.f32 %v8961, %v9074
        %v9105 = vlaneseq
        %v9106 = vshrl.u32 %v9105, 7
        %v9107 = vsub.s32 7, %v9106
        %v9108 = vrot.slane %v8490, %v9107
        %v9109 = vlaneseq
        %v9110 = vshrl.u32 %v9109, 7
        %v9111 = vsub.s32 7, %v9110
        %v9112 = vrot.slane %v8491, %v9111
        %v9113 = vlaneseq
        %v9114 = vshrl.u32 %v9113, 7
        %v9115 = vsub.s32 7, %v9114
        %v9116 = vrot.slane %v8492, %v9115
        %v9117 = vlaneseq
        %v9118 = vshrl.u32 %v9117, 7
        %v9119 = vsub.s32 7, %v9118
        %v9120 = vrot.slane %v8493, %v9119
        %9125 = vrot.lane.b32.xlu0 %v9108, 64
        %v9126 = vpop.permute.xlu0 %9125
        %9127 = vrot.lane.b32.xlu0 %v9112, 64
        %v9128 = vpop.permute.xlu0 %9127
        %9129 = vrot.lane.b32.xlu0 %v9116, 64
        %v9130 = vpop.permute.xlu0 %9129
        %9131 = vrot.lane.b32.xlu0 %v9120, 64
        %v9132 = vpop.permute.xlu0 %9131
        %v9133 = vsel %vm498, %v9126, %v9128
        %v9134 = vsel %vm498, %v9128, %v9130
        %v9135 = vsel %vm498, %v9130, %v9132
        %v9141 = vmul.f32 %v3852, %v9126
        %v9142 = vmul.f32 %v4647, %v9133
        %v9143 = vmul.f32 %v5757, %v9134
        %v9144 = vmul.f32 %v7700, %v9135
        %v9145 = vmul.f32 %v8486, %v9132
        %v9146 = vmul.f32 %v3857, %v9126
        %v9147 = vmul.f32 %v4648, %v9133
        %v9148 = vmul.f32 %v5758, %v9134
        %v9149 = vmul.f32 %v7701, %v9135
        %v9150 = vmul.f32 %v8487, %v9132
        %v9151 = vmul.f32 %v3862, %v9126
        %v9152 = vmul.f32 %v4649, %v9133
        %v9153 = vmul.f32 %v5759, %v9134
        %v9154 = vmul.f32 %v7702, %v9135
        %v9155 = vmul.f32 %v8488, %v9132
        %v9171 = vrot.slane %v9141, 4
        %v9172 = vrot.slane %v9142, 4
        %v9173 = vrot.slane %v9143, 4
        %v9174 = vrot.slane %v9144, 4
        %v9175 = vrot.slane %v9145, 4
        %v9176 = vrot.slane %v9146, 4
        %v9177 = vsel %vm949, %v9171, %v9176
        %v9178 = vrot.slane %v9147, 4
        %v9179 = vsel %vm949, %v9172, %v9178
        %v9180 = vrot.slane %v9148, 4
        %v9181 = vsel %vm949, %v9173, %v9180
        %v9182 = vrot.slane %v9149, 4
        %v9183 = vsel %vm949, %v9174, %v9182
        %v9184 = vrot.slane %v9150, 4
        %v9185 = vsel %vm949, %v9175, %v9184
        %v9186 = vrot.slane %v9151, 4
        %v9187 = vsel %vm949, %v9176, %v9186
        %v9188 = vrot.slane %v9152, 4
        %v9189 = vsel %vm949, %v9178, %v9188
        %v9190 = vrot.slane %v9153, 4
        %v9191 = vsel %vm949, %v9180, %v9190
        %v9192 = vrot.slane %v9154, 4
        %v9193 = vsel %vm949, %v9182, %v9192
        %v9194 = vrot.slane %v9155, 4
        %v9195 = vsel %vm949, %v9184, %v9194
        %9196 = vrot.lane.b32.xlu0 %v9171, 32
        %v9197 = vpop.permute.xlu0 %9196
        %9198 = vrot.lane.b32.xlu0 %v9172, 32
        %v9199 = vpop.permute.xlu0 %9198
        %9200 = vrot.lane.b32.xlu0 %v9173, 32
        %v9201 = vpop.permute.xlu0 %9200
        %9202 = vrot.lane.b32.xlu0 %v9174, 32
        %v9203 = vpop.permute.xlu0 %9202
        %9204 = vrot.lane.b32.xlu0 %v9175, 32
        %v9205 = vpop.permute.xlu0 %9204
        %9206 = vrot.lane.b32.xlu0 %v9177, 32
        %v9207 = vpop.permute.xlu0 %9206
        %9208 = vrot.lane.b32.xlu0 %v9179, 32
        %v9209 = vpop.permute.xlu0 %9208
        %9210 = vrot.lane.b32.xlu0 %v9181, 32
        %v9211 = vpop.permute.xlu0 %9210
        %9212 = vrot.lane.b32.xlu0 %v9183, 32
        %v9213 = vpop.permute.xlu0 %9212
        %9214 = vrot.lane.b32.xlu0 %v9185, 32
        %v9215 = vpop.permute.xlu0 %9214
        %9216 = vrot.lane.b32.xlu0 %v9187, 32
        %v9217 = vpop.permute.xlu0 %9216
        %9218 = vrot.lane.b32.xlu0 %v9189, 32
        %v9219 = vpop.permute.xlu0 %9218
        %9220 = vrot.lane.b32.xlu0 %v9191, 32
        %v9221 = vpop.permute.xlu0 %9220
        %9222 = vrot.lane.b32.xlu0 %v9193, 32
        %v9223 = vpop.permute.xlu0 %9222
        %9224 = vrot.lane.b32.xlu0 %v9195, 32
        %v9225 = vpop.permute.xlu0 %9224
        %v9226 = vsel %vm2423, %v9197, %v9199
        %v9227 = vsel %vm2423, %v9199, %v9201
        %v9228 = vsel %vm2423, %v9201, %v9203
        %v9229 = vsel %vm2423, %v9203, %v9205
        %v9230 = vsel %vm2423, %v9207, %v9209
        %v9231 = vsel %vm2423, %v9209, %v9211
        %v9232 = vsel %vm2423, %v9211, %v9213
        %v9233 = vsel %vm2423, %v9213, %v9215
        %v9234 = vsel %vm2423, %v9217, %v9219
        %v9235 = vsel %vm2423, %v9219, %v9221
        %v9236 = vsel %vm2423, %v9221, %v9223
        %v9237 = vsel %vm2423, %v9223, %v9225
        %v9253 = vadd.f32 %v9090, %v9197
        %v9254 = vadd.f32 %v9091, %v9226
        %v9255 = vadd.f32 %v9092, %v9227
        %v9256 = vadd.f32 %v9093, %v9228
        %v9257 = vadd.f32 %v9094, %v9229
        %v9258 = vadd.f32 %v9095, %v9207
        %v9259 = vadd.f32 %v9096, %v9230
        %v9260 = vadd.f32 %v9097, %v9231
        %v9261 = vadd.f32 %v9098, %v9232
        %v9262 = vadd.f32 %v9099, %v9233
        %v9263 = vadd.f32 %v9100, %v9217
        %v9264 = vadd.f32 %v9101, %v9234
        %v9265 = vadd.f32 %v9102, %v9235
        %v9266 = vadd.f32 %v9103, %v9236
        %v9267 = vadd.f32 %v9104, %v9237
        %v9268 = vlaneseq
        %v9269 = vshrl.u32 %v9268, 7
        %v9270 = vsub.s32 0, %v9269
        %v9271 = vrot.slane %v8494, %v9270
        %v9272 = vlaneseq
        %v9273 = vshrl.u32 %v9272, 7
        %v9274 = vsub.s32 0, %v9273
        %v9275 = vrot.slane %v8495, %v9274
        %v9276 = vlaneseq
        %v9277 = vshrl.u32 %v9276, 7
        %v9278 = vsub.s32 0, %v9277
        %v9279 = vrot.slane %v8496, %v9278
        %v9280 = vlaneseq
        %v9281 = vshrl.u32 %v9280, 7
        %v9282 = vsub.s32 0, %v9281
        %v9283 = vrot.slane %v8497, %v9282
        %9288 = vrot.lane.b32.xlu0 %v9271, 64
        %v9289 = vpop.permute.xlu0 %9288
        %9290 = vrot.lane.b32.xlu0 %v9275, 64
        %v9291 = vpop.permute.xlu0 %9290
        %9292 = vrot.lane.b32.xlu0 %v9279, 64
        %v9293 = vpop.permute.xlu0 %9292
        %9294 = vrot.lane.b32.xlu0 %v9283, 64
        %v9295 = vpop.permute.xlu0 %9294
        %v9296 = vsel %vm498, %v9289, %v9291
        %v9297 = vsel %vm498, %v9291, %v9293
        %v9298 = vsel %vm498, %v9293, %v9295
        %v9304 = vmul.f32 %v3852, %v9289
        %v9305 = vmul.f32 %v4647, %v9296
        %v9306 = vmul.f32 %v5757, %v9297
        %v9307 = vmul.f32 %v7700, %v9298
        %v9308 = vmul.f32 %v8486, %v9295
        %v9309 = vmul.f32 %v3857, %v9289
        %v9310 = vmul.f32 %v4648, %v9296
        %v9311 = vmul.f32 %v5758, %v9297
        %v9312 = vmul.f32 %v7701, %v9298
        %v9313 = vmul.f32 %v8487, %v9295
        %v9314 = vmul.f32 %v3862, %v9289
        %v9315 = vmul.f32 %v4649, %v9296
        %v9316 = vmul.f32 %v5759, %v9297
        %v9317 = vmul.f32 %v7702, %v9298
        %v9318 = vmul.f32 %v8488, %v9295
        %v9334 = vrot.slane %v9304, 7
        %v9335 = vrot.slane %v9305, 7
        %v9336 = vrot.slane %v9306, 7
        %v9337 = vrot.slane %v9307, 7
        %v9338 = vrot.slane %v9308, 7
        %v9339 = vrot.slane %v9309, 7
        %v9340 = vsel %vm4468, %v9334, %v9339
        %v9341 = vrot.slane %v9310, 7
        %v9342 = vsel %vm4468, %v9335, %v9341
        %v9343 = vrot.slane %v9311, 7
        %v9344 = vsel %vm4468, %v9336, %v9343
        %v9345 = vrot.slane %v9312, 7
        %v9346 = vsel %vm4468, %v9337, %v9345
        %v9347 = vrot.slane %v9313, 7
        %v9348 = vsel %vm4468, %v9338, %v9347
        %v9349 = vrot.slane %v9314, 7
        %v9350 = vsel %vm4468, %v9339, %v9349
        %v9351 = vrot.slane %v9315, 7
        %v9352 = vsel %vm4468, %v9341, %v9351
        %v9353 = vrot.slane %v9316, 7
        %v9354 = vsel %vm4468, %v9343, %v9353
        %v9355 = vrot.slane %v9317, 7
        %v9356 = vsel %vm4468, %v9345, %v9355
        %v9357 = vrot.slane %v9318, 7
        %v9358 = vsel %vm4468, %v9347, %v9357
        %9359 = vrot.lane.b32.xlu0 %v9334, 32
        %v9360 = vpop.permute.xlu0 %9359
        %9361 = vrot.lane.b32.xlu0 %v9335, 32
        %v9362 = vpop.permute.xlu0 %9361
        %9363 = vrot.lane.b32.xlu0 %v9336, 32
        %v9364 = vpop.permute.xlu0 %9363
        %9365 = vrot.lane.b32.xlu0 %v9337, 32
        %v9366 = vpop.permute.xlu0 %9365
        %9367 = vrot.lane.b32.xlu0 %v9338, 32
        %v9368 = vpop.permute.xlu0 %9367
        %9369 = vrot.lane.b32.xlu0 %v9340, 32
        %v9370 = vpop.permute.xlu0 %9369
        %9371 = vrot.lane.b32.xlu0 %v9342, 32
        %v9372 = vpop.permute.xlu0 %9371
        %9373 = vrot.lane.b32.xlu0 %v9344, 32
        %v9374 = vpop.permute.xlu0 %9373
        %9375 = vrot.lane.b32.xlu0 %v9346, 32
        %v9376 = vpop.permute.xlu0 %9375
        %9377 = vrot.lane.b32.xlu0 %v9348, 32
        %v9378 = vpop.permute.xlu0 %9377
        %9379 = vrot.lane.b32.xlu0 %v9350, 32
        %v9380 = vpop.permute.xlu0 %9379
        %9381 = vrot.lane.b32.xlu0 %v9352, 32
        %v9382 = vpop.permute.xlu0 %9381
        %9383 = vrot.lane.b32.xlu0 %v9354, 32
        %v9384 = vpop.permute.xlu0 %9383
        %9385 = vrot.lane.b32.xlu0 %v9356, 32
        %v9386 = vpop.permute.xlu0 %9385
        %9387 = vrot.lane.b32.xlu0 %v9358, 32
        %v9388 = vpop.permute.xlu0 %9387
        %v9389 = vsel %vm2423, %v9360, %v9362
        %v9390 = vsel %vm2423, %v9362, %v9364
        %v9391 = vsel %vm2423, %v9364, %v9366
        %v9392 = vsel %vm2423, %v9366, %v9368
        %v9393 = vsel %vm2423, %v9370, %v9372
        %v9394 = vsel %vm2423, %v9372, %v9374
        %v9395 = vsel %vm2423, %v9374, %v9376
        %v9396 = vsel %vm2423, %v9376, %v9378
        %v9397 = vsel %vm2423, %v9380, %v9382
        %v9398 = vsel %vm2423, %v9382, %v9384
        %v9399 = vsel %vm2423, %v9384, %v9386
        %v9400 = vsel %vm2423, %v9386, %v9388
        %v9416 = vadd.f32 %v9253, %v9360
        %v9417 = vadd.f32 %v9254, %v9389
        %v9418 = vadd.f32 %v9255, %v9390
        %v9419 = vadd.f32 %v9256, %v9391
        %v9420 = vadd.f32 %v9257, %v9392
        %v9421 = vadd.f32 %v9258, %v9370
        %v9422 = vadd.f32 %v9259, %v9393
        %v9423 = vadd.f32 %v9260, %v9394
        %v9424 = vadd.f32 %v9261, %v9395
        %v9425 = vadd.f32 %v9262, %v9396
        %v9426 = vadd.f32 %v9263, %v9380
        %v9427 = vadd.f32 %v9264, %v9397
        %v9428 = vadd.f32 %v9265, %v9398
        %v9429 = vadd.f32 %v9266, %v9399
        %v9430 = vadd.f32 %v9267, %v9400
        %v9431 = vlaneseq
        %v9432 = vshrl.u32 %v9431, 7
        %v9433 = vsub.s32 1, %v9432
        %v9434 = vrot.slane %v8494, %v9433
        %v9435 = vlaneseq
        %v9436 = vshrl.u32 %v9435, 7
        %v9437 = vsub.s32 1, %v9436
        %v9438 = vrot.slane %v8495, %v9437
        %v9439 = vlaneseq
        %v9440 = vshrl.u32 %v9439, 7
        %v9441 = vsub.s32 1, %v9440
        %v9442 = vrot.slane %v8496, %v9441
        %v9443 = vlaneseq
        %v9444 = vshrl.u32 %v9443, 7
        %v9445 = vsub.s32 1, %v9444
        %v9446 = vrot.slane %v8497, %v9445
        %9451 = vrot.lane.b32.xlu0 %v9434, 64
        %v9452 = vpop.permute.xlu0 %9451
        %9453 = vrot.lane.b32.xlu0 %v9438, 64
        %v9454 = vpop.permute.xlu0 %9453
        %9455 = vrot.lane.b32.xlu0 %v9442, 64
        %v9456 = vpop.permute.xlu0 %9455
        %9457 = vrot.lane.b32.xlu0 %v9446, 64
        %v9458 = vpop.permute.xlu0 %9457
        %v9459 = vsel %vm498, %v9452, %v9454
        %v9460 = vsel %vm498, %v9454, %v9456
        %v9461 = vsel %vm498, %v9456, %v9458
        %v9467 = vmul.f32 %v3857, %v9452
        %v9468 = vmul.f32 %v4648, %v9459
        %v9469 = vmul.f32 %v5758, %v9460
        %v9470 = vmul.f32 %v7701, %v9461
        %v9471 = vmul.f32 %v8487, %v9458
        %v9472 = vmul.f32 %v3862, %v9452
        %v9473 = vmul.f32 %v4649, %v9459
        %v9474 = vmul.f32 %v5759, %v9460
        %v9475 = vmul.f32 %v7702, %v9461
        %v9476 = vmul.f32 %v8488, %v9458
        %v9477 = vmul.f32 %v3867, %v9452
        %v9478 = vmul.f32 %v4650, %v9459
        %v9479 = vmul.f32 %v5760, %v9460
        %v9480 = vmul.f32 %v7703, %v9461
        %v9481 = vmul.f32 %v8489, %v9458
        %v9497 = vrot.slane %v9467, 2
        %v9498 = vrot.slane %v9468, 2
        %v9499 = vrot.slane %v9469, 2
        %v9500 = vrot.slane %v9470, 2
        %v9501 = vrot.slane %v9471, 2
        %v9502 = vrot.slane %v9472, 2
        %v9503 = vsel %vm715, %v9497, %v9502
        %v9504 = vrot.slane %v9473, 2
        %v9505 = vsel %vm715, %v9498, %v9504
        %v9506 = vrot.slane %v9474, 2
        %v9507 = vsel %vm715, %v9499, %v9506
        %v9508 = vrot.slane %v9475, 2
        %v9509 = vsel %vm715, %v9500, %v9508
        %v9510 = vrot.slane %v9476, 2
        %v9511 = vsel %vm715, %v9501, %v9510
        %v9512 = vrot.slane %v9477, 2
        %v9513 = vsel %vm715, %v9502, %v9512
        %v9514 = vrot.slane %v9478, 2
        %v9515 = vsel %vm715, %v9504, %v9514
        %v9516 = vrot.slane %v9479, 2
        %v9517 = vsel %vm715, %v9506, %v9516
        %v9518 = vrot.slane %v9480, 2
        %v9519 = vsel %vm715, %v9508, %v9518
        %v9520 = vrot.slane %v9481, 2
        %v9521 = vsel %vm715, %v9510, %v9520
        %9522 = vrot.lane.b32.xlu0 %v9497, 32
        %v9523 = vpop.permute.xlu0 %9522
        %9524 = vrot.lane.b32.xlu0 %v9498, 32
        %v9525 = vpop.permute.xlu0 %9524
        %9526 = vrot.lane.b32.xlu0 %v9499, 32
        %v9527 = vpop.permute.xlu0 %9526
        %9528 = vrot.lane.b32.xlu0 %v9500, 32
        %v9529 = vpop.permute.xlu0 %9528
        %9530 = vrot.lane.b32.xlu0 %v9501, 32
        %v9531 = vpop.permute.xlu0 %9530
        %9532 = vrot.lane.b32.xlu0 %v9503, 32
        %v9533 = vpop.permute.xlu0 %9532
        %9534 = vrot.lane.b32.xlu0 %v9505, 32
        %v9535 = vpop.permute.xlu0 %9534
        %9536 = vrot.lane.b32.xlu0 %v9507, 32
        %v9537 = vpop.permute.xlu0 %9536
        %9538 = vrot.lane.b32.xlu0 %v9509, 32
        %v9539 = vpop.permute.xlu0 %9538
        %9540 = vrot.lane.b32.xlu0 %v9511, 32
        %v9541 = vpop.permute.xlu0 %9540
        %9542 = vrot.lane.b32.xlu0 %v9513, 32
        %v9543 = vpop.permute.xlu0 %9542
        %9544 = vrot.lane.b32.xlu0 %v9515, 32
        %v9545 = vpop.permute.xlu0 %9544
        %9546 = vrot.lane.b32.xlu0 %v9517, 32
        %v9547 = vpop.permute.xlu0 %9546
        %9548 = vrot.lane.b32.xlu0 %v9519, 32
        %v9549 = vpop.permute.xlu0 %9548
        %9550 = vrot.lane.b32.xlu0 %v9521, 32
        %v9551 = vpop.permute.xlu0 %9550
        %v9552 = vsel %vm2423, %v9523, %v9525
        %v9553 = vsel %vm2423, %v9525, %v9527
        %v9554 = vsel %vm2423, %v9527, %v9529
        %v9555 = vsel %vm2423, %v9529, %v9531
        %v9556 = vsel %vm2423, %v9533, %v9535
        %v9557 = vsel %vm2423, %v9535, %v9537
        %v9558 = vsel %vm2423, %v9537, %v9539
        %v9559 = vsel %vm2423, %v9539, %v9541
        %v9560 = vsel %vm2423, %v9543, %v9545
        %v9561 = vsel %vm2423, %v9545, %v9547
        %v9562 = vsel %vm2423, %v9547, %v9549
        %v9563 = vsel %vm2423, %v9549, %v9551
        %v9579 = vadd.f32 %v9416, %v9523
        %v9580 = vadd.f32 %v9417, %v9552
        %v9581 = vadd.f32 %v9418, %v9553
        %v9582 = vadd.f32 %v9419, %v9554
        %v9583 = vadd.f32 %v9420, %v9555
        %v9584 = vadd.f32 %v9421, %v9533
        %v9585 = vadd.f32 %v9422, %v9556
        %v9586 = vadd.f32 %v9423, %v9557
        %v9587 = vadd.f32 %v9424, %v9558
        %v9588 = vadd.f32 %v9425, %v9559
        %v9589 = vadd.f32 %v9426, %v9543
        %v9590 = vadd.f32 %v9427, %v9560
        %v9591 = vadd.f32 %v9428, %v9561
        %v9592 = vadd.f32 %v9429, %v9562
        %v9593 = vadd.f32 %v9430, %v9563
        %v9594 = vld [vmem:[#allocation3 + $0x28] sm:$0x80]
        %v9595 = vld [vmem:[#allocation3 + $0x30] sm:$0x80]
        %v9596 = vld [vmem:[#allocation3 + $0x38] sm:$0x80]
        %v9597 = vld [vmem:[#allocation3 + $0x40] sm:$0x80]
        %v9598 = vld [vmem:[#allocation3 + $0x48] sm:$0x80]
        %v9599 = vld [vmem:[#allocation3 + $0x78] sm:$0xff]
        %v9600 = vld [vmem:[#allocation3 + $0x80] sm:$0xff]
        %v9601 = vld [vmem:[#allocation3 + $0x88] sm:$0xff]
        %v9602 = vld [vmem:[#allocation3 + $0x90] sm:$0xff]
        %v9603 = vld [vmem:[#allocation3 + $0x98] sm:$0xff]
        %v9604 = vld [vmem:[#allocation3 + $0xc8] sm:$0xff]
        %v9605 = vld [vmem:[#allocation3 + $0xd0] sm:$0xff]
        %v9606 = vld [vmem:[#allocation3 + $0xd8] sm:$0xff]
        %v9607 = vld [vmem:[#allocation3 + $0xe0] sm:$0xff]
        %v9608 = vld [vmem:[#allocation3 + $0xe8] sm:$0xff]
        %v9609 = vld [vmem:[#allocation3 + $0x118] sm:$0xff]
        %v9610 = vld [vmem:[#allocation3 + $0x120] sm:$0xff]
        %v9611 = vld [vmem:[#allocation3 + $0x128] sm:$0xff]
        %v9612 = vld [vmem:[#allocation3 + $0x130] sm:$0xff]
        %v9613 = vld [vmem:[#allocation3 + $0x138] sm:$0xff]
        %v9614 = vld [vmem:[#allocation3 + $0x168] sm:$0xff]
        %v9615 = vld [vmem:[#allocation3 + $0x170] sm:$0xff]
        %v9616 = vld [vmem:[#allocation3 + $0x178] sm:$0xff]
        %v9617 = vld [vmem:[#allocation3 + $0x180] sm:$0xff]
        %v9618 = vld [vmem:[#allocation3 + $0x188] sm:$0xff]
        %v9619 = vld [vmem:[#allocation3 + $0x1b8] sm:$0x1]
        %v9620 = vld [vmem:[#allocation3 + $0x1c0] sm:$0x1]
        %v9621 = vld [vmem:[#allocation3 + $0x1c8] sm:$0x1]
        %v9622 = vld [vmem:[#allocation3 + $0x1d0] sm:$0x1]
        %v9623 = vld [vmem:[#allocation3 + $0x1d8] sm:$0x1]
        %v9624 = vld [vmem:[%s3 + $0xa0] sm:$0xfc]
        %v9625 = vld [vmem:[%s3 + $0xa8] sm:$0xfc]
        %v9626 = vld [vmem:[%s3 + $0xb0] sm:$0xfc]
        %v9627 = vld [vmem:[%s3 + $0xb8] sm:$0xfc]
        %v9628 = vld [vmem:[%s3 + $0xc0] sm:$0x1]
        %v9629 = vld [vmem:[%s3 + $0xc8] sm:$0x1]
        %v9630 = vld [vmem:[%s3 + $0xd0] sm:$0x1]
        %v9631 = vld [vmem:[%s3 + $0xd8] sm:$0x1]
        %v9632 = vlaneseq
        %v9633 = vshrl.u32 %v9632, 7
        %v9634 = vsub.s32 2, %v9633
        %v9635 = vrot.slane %v9624, %v9634
        %v9636 = vlaneseq
        %v9637 = vshrl.u32 %v9636, 7
        %v9638 = vsub.s32 2, %v9637
        %v9639 = vrot.slane %v9625, %v9638
        %v9640 = vlaneseq
        %v9641 = vshrl.u32 %v9640, 7
        %v9642 = vsub.s32 2, %v9641
        %v9643 = vrot.slane %v9626, %v9642
        %v9644 = vlaneseq
        %v9645 = vshrl.u32 %v9644, 7
        %v9646 = vsub.s32 2, %v9645
        %v9647 = vrot.slane %v9627, %v9646
        %9652 = vrot.lane.b32.xlu0 %v9635, 32
        %v9653 = vpop.permute.xlu0 %9652
        %9654 = vrot.lane.b32.xlu0 %v9639, 32
        %v9655 = vpop.permute.xlu0 %9654
        %9656 = vrot.lane.b32.xlu0 %v9643, 32
        %v9657 = vpop.permute.xlu0 %9656
        %9658 = vrot.lane.b32.xlu0 %v9647, 32
        %v9659 = vpop.permute.xlu0 %9658
        %v9660 = vsel %vm2423, %v9653, %v9655
        %v9661 = vsel %vm2423, %v9655, %v9657
        %v9662 = vsel %vm2423, %v9657, %v9659
        %v9668 = vmul.f32 %v9594, %v9653
        %v9669 = vmul.f32 %v9595, %v9660
        %v9670 = vmul.f32 %v9596, %v9661
        %v9671 = vmul.f32 %v9597, %v9662
        %v9672 = vmul.f32 %v9598, %v9659
        %v9673 = vmul.f32 %v9599, %v9653
        %v9674 = vmul.f32 %v9600, %v9660
        %v9675 = vmul.f32 %v9601, %v9661
        %v9676 = vmul.f32 %v9602, %v9662
        %v9677 = vmul.f32 %v9603, %v9659
        %v9678 = vmul.f32 %v9604, %v9653
        %v9679 = vmul.f32 %v9605, %v9660
        %v9680 = vmul.f32 %v9606, %v9661
        %v9681 = vmul.f32 %v9607, %v9662
        %v9682 = vmul.f32 %v9608, %v9659
        %9698 = vrot.lane.b32.xlu0 %v9668, 64
        %v9699 = vpop.permute.xlu0 %9698
        %9700 = vrot.lane.b32.xlu0 %v9669, 64
        %v9701 = vpop.permute.xlu0 %9700
        %9702 = vrot.lane.b32.xlu0 %v9670, 64
        %v9703 = vpop.permute.xlu0 %9702
        %9704 = vrot.lane.b32.xlu0 %v9671, 64
        %v9705 = vpop.permute.xlu0 %9704
        %9706 = vrot.lane.b32.xlu0 %v9672, 64
        %v9707 = vpop.permute.xlu0 %9706
        %9708 = vrot.lane.b32.xlu0 %v9673, 64
        %v9709 = vpop.permute.xlu0 %9708
        %9710 = vrot.lane.b32.xlu0 %v9674, 64
        %v9711 = vpop.permute.xlu0 %9710
        %9712 = vrot.lane.b32.xlu0 %v9675, 64
        %v9713 = vpop.permute.xlu0 %9712
        %9714 = vrot.lane.b32.xlu0 %v9676, 64
        %v9715 = vpop.permute.xlu0 %9714
        %9716 = vrot.lane.b32.xlu0 %v9677, 64
        %v9717 = vpop.permute.xlu0 %9716
        %9718 = vrot.lane.b32.xlu0 %v9678, 64
        %v9719 = vpop.permute.xlu0 %9718
        %9720 = vrot.lane.b32.xlu0 %v9679, 64
        %v9721 = vpop.permute.xlu0 %9720
        %9722 = vrot.lane.b32.xlu0 %v9680, 64
        %v9723 = vpop.permute.xlu0 %9722
        %9724 = vrot.lane.b32.xlu0 %v9681, 64
        %v9725 = vpop.permute.xlu0 %9724
        %9726 = vrot.lane.b32.xlu0 %v9682, 64
        %v9727 = vpop.permute.xlu0 %9726
        %v9728 = vsel %vm498, %v9699, %v9701
        %v9729 = vsel %vm498, %v9701, %v9703
        %v9730 = vsel %vm498, %v9703, %v9705
        %v9731 = vsel %vm498, %v9705, %v9707
        %v9732 = vsel %vm498, %v9709, %v9711
        %v9733 = vsel %vm498, %v9711, %v9713
        %v9734 = vsel %vm498, %v9713, %v9715
        %v9735 = vsel %vm498, %v9715, %v9717
        %v9736 = vsel %vm498, %v9719, %v9721
        %v9737 = vsel %vm498, %v9721, %v9723
        %v9738 = vsel %vm498, %v9723, %v9725
        %v9739 = vsel %vm498, %v9725, %v9727
        %v9755 = vadd.f32 %v9579, %v9699
        %v9756 = vadd.f32 %v9580, %v9728
        %v9757 = vadd.f32 %v9581, %v9729
        %v9758 = vadd.f32 %v9582, %v9730
        %v9759 = vadd.f32 %v9583, %v9731
        %v9760 = vadd.f32 %v9584, %v9709
        %v9761 = vadd.f32 %v9585, %v9732
        %v9762 = vadd.f32 %v9586, %v9733
        %v9763 = vadd.f32 %v9587, %v9734
        %v9764 = vadd.f32 %v9588, %v9735
        %v9765 = vadd.f32 %v9589, %v9719
        %v9766 = vadd.f32 %v9590, %v9736
        %v9767 = vadd.f32 %v9591, %v9737
        %v9768 = vadd.f32 %v9592, %v9738
        %v9769 = vadd.f32 %v9593, %v9739
        %v9770 = vlaneseq
        %v9771 = vshrl.u32 %v9770, 7
        %v9772 = vsub.s32 3, %v9771
        %v9773 = vrot.slane %v9624, %v9772
        %v9774 = vlaneseq
        %v9775 = vshrl.u32 %v9774, 7
        %v9776 = vsub.s32 3, %v9775
        %v9777 = vrot.slane %v9625, %v9776
        %v9778 = vlaneseq
        %v9779 = vshrl.u32 %v9778, 7
        %v9780 = vsub.s32 3, %v9779
        %v9781 = vrot.slane %v9626, %v9780
        %v9782 = vlaneseq
        %v9783 = vshrl.u32 %v9782, 7
        %v9784 = vsub.s32 3, %v9783
        %v9785 = vrot.slane %v9627, %v9784
        %9790 = vrot.lane.b32.xlu0 %v9773, 32
        %v9791 = vpop.permute.xlu0 %9790
        %9792 = vrot.lane.b32.xlu0 %v9777, 32
        %v9793 = vpop.permute.xlu0 %9792
        %9794 = vrot.lane.b32.xlu0 %v9781, 32
        %v9795 = vpop.permute.xlu0 %9794
        %9796 = vrot.lane.b32.xlu0 %v9785, 32
        %v9797 = vpop.permute.xlu0 %9796
        %v9798 = vsel %vm2423, %v9791, %v9793
        %v9799 = vsel %vm2423, %v9793, %v9795
        %v9800 = vsel %vm2423, %v9795, %v9797
        %v9806 = vmul.f32 %v9599, %v9791
        %v9807 = vmul.f32 %v9600, %v9798
        %v9808 = vmul.f32 %v9601, %v9799
        %v9809 = vmul.f32 %v9602, %v9800
        %v9810 = vmul.f32 %v9603, %v9797
        %v9811 = vmul.f32 %v9604, %v9791
        %v9812 = vmul.f32 %v9605, %v9798
        %v9813 = vmul.f32 %v9606, %v9799
        %v9814 = vmul.f32 %v9607, %v9800
        %v9815 = vmul.f32 %v9608, %v9797
        %v9816 = vmul.f32 %v9609, %v9791
        %v9817 = vmul.f32 %v9610, %v9798
        %v9818 = vmul.f32 %v9611, %v9799
        %v9819 = vmul.f32 %v9612, %v9800
        %v9820 = vmul.f32 %v9613, %v9797
        %v9836 = vrot.slane %v9806, 3
        %v9837 = vrot.slane %v9807, 3
        %v9838 = vrot.slane %v9808, 3
        %v9839 = vrot.slane %v9809, 3
        %v9840 = vrot.slane %v9810, 3
        %v9841 = vrot.slane %v9811, 3
        %v9842 = vsel %vm827, %v9836, %v9841
        %v9843 = vrot.slane %v9812, 3
        %v9844 = vsel %vm827, %v9837, %v9843
        %v9845 = vrot.slane %v9813, 3
        %v9846 = vsel %vm827, %v9838, %v9845
        %v9847 = vrot.slane %v9814, 3
        %v9848 = vsel %vm827, %v9839, %v9847
        %v9849 = vrot.slane %v9815, 3
        %v9850 = vsel %vm827, %v9840, %v9849
        %v9851 = vrot.slane %v9816, 3
        %v9852 = vsel %vm827, %v9841, %v9851
        %v9853 = vrot.slane %v9817, 3
        %v9854 = vsel %vm827, %v9843, %v9853
        %v9855 = vrot.slane %v9818, 3
        %v9856 = vsel %vm827, %v9845, %v9855
        %v9857 = vrot.slane %v9819, 3
        %v9858 = vsel %vm827, %v9847, %v9857
        %v9859 = vrot.slane %v9820, 3
        %v9860 = vsel %vm827, %v9849, %v9859
        %9861 = vrot.lane.b32.xlu0 %v9836, 64
        %v9862 = vpop.permute.xlu0 %9861
        %9863 = vrot.lane.b32.xlu0 %v9837, 64
        %v9864 = vpop.permute.xlu0 %9863
        %9865 = vrot.lane.b32.xlu0 %v9838, 64
        %v9866 = vpop.permute.xlu0 %9865
        %9867 = vrot.lane.b32.xlu0 %v9839, 64
        %v9868 = vpop.permute.xlu0 %9867
        %9869 = vrot.lane.b32.xlu0 %v9840, 64
        %v9870 = vpop.permute.xlu0 %9869
        %9871 = vrot.lane.b32.xlu0 %v9842, 64
        %v9872 = vpop.permute.xlu0 %9871
        %9873 = vrot.lane.b32.xlu0 %v9844, 64
        %v9874 = vpop.permute.xlu0 %9873
        %9875 = vrot.lane.b32.xlu0 %v9846, 64
        %v9876 = vpop.permute.xlu0 %9875
        %9877 = vrot.lane.b32.xlu0 %v9848, 64
        %v9878 = vpop.permute.xlu0 %9877
        %9879 = vrot.lane.b32.xlu0 %v9850, 64
        %v9880 = vpop.permute.xlu0 %9879
        %9881 = vrot.lane.b32.xlu0 %v9852, 64
        %v9882 = vpop.permute.xlu0 %9881
        %9883 = vrot.lane.b32.xlu0 %v9854, 64
        %v9884 = vpop.permute.xlu0 %9883
        %9885 = vrot.lane.b32.xlu0 %v9856, 64
        %v9886 = vpop.permute.xlu0 %9885
        %9887 = vrot.lane.b32.xlu0 %v9858, 64
        %v9888 = vpop.permute.xlu0 %9887
        %9889 = vrot.lane.b32.xlu0 %v9860, 64
        %v9890 = vpop.permute.xlu0 %9889
        %v9891 = vsel %vm498, %v9862, %v9864
        %v9892 = vsel %vm498, %v9864, %v9866
        %v9893 = vsel %vm498, %v9866, %v9868
        %v9894 = vsel %vm498, %v9868, %v9870
        %v9895 = vsel %vm498, %v9872, %v9874
        %v9896 = vsel %vm498, %v9874, %v9876
        %v9897 = vsel %vm498, %v9876, %v9878
        %v9898 = vsel %vm498, %v9878, %v9880
        %v9899 = vsel %vm498, %v9882, %v9884
        %v9900 = vsel %vm498, %v9884, %v9886
        %v9901 = vsel %vm498, %v9886, %v9888
        %v9902 = vsel %vm498, %v9888, %v9890
        %v9918 = vadd.f32 %v9755, %v9862
        %v9919 = vadd.f32 %v9756, %v9891
        %v9920 = vadd.f32 %v9757, %v9892
        %v9921 = vadd.f32 %v9758, %v9893
        %v9922 = vadd.f32 %v9759, %v9894
        %v9923 = vadd.f32 %v9760, %v9872
        %v9924 = vadd.f32 %v9761, %v9895
        %v9925 = vadd.f32 %v9762, %v9896
        %v9926 = vadd.f32 %v9763, %v9897
        %v9927 = vadd.f32 %v9764, %v9898
        %v9928 = vadd.f32 %v9765, %v9882
        %v9929 = vadd.f32 %v9766, %v9899
        %v9930 = vadd.f32 %v9767, %v9900
        %v9931 = vadd.f32 %v9768, %v9901
        %v9932 = vadd.f32 %v9769, %v9902
        %v9933 = vlaneseq
        %v9934 = vshrl.u32 %v9933, 7
        %v9935 = vsub.s32 4, %v9934
        %v9936 = vrot.slane %v9624, %v9935
        %v9937 = vlaneseq
        %v9938 = vshrl.u32 %v9937, 7
        %v9939 = vsub.s32 4, %v9938
        %v9940 = vrot.slane %v9625, %v9939
        %v9941 = vlaneseq
        %v9942 = vshrl.u32 %v9941, 7
        %v9943 = vsub.s32 4, %v9942
        %v9944 = vrot.slane %v9626, %v9943
        %v9945 = vlaneseq
        %v9946 = vshrl.u32 %v9945, 7
        %v9947 = vsub.s32 4, %v9946
        %v9948 = vrot.slane %v9627, %v9947
        %9953 = vrot.lane.b32.xlu0 %v9936, 32
        %v9954 = vpop.permute.xlu0 %9953
        %9955 = vrot.lane.b32.xlu0 %v9940, 32
        %v9956 = vpop.permute.xlu0 %9955
        %9957 = vrot.lane.b32.xlu0 %v9944, 32
        %v9958 = vpop.permute.xlu0 %9957
        %9959 = vrot.lane.b32.xlu0 %v9948, 32
        %v9960 = vpop.permute.xlu0 %9959
        %v9961 = vsel %vm2423, %v9954, %v9956
        %v9962 = vsel %vm2423, %v9956, %v9958
        %v9963 = vsel %vm2423, %v9958, %v9960
        %v9969 = vmul.f32 %v9599, %v9954
        %v9970 = vmul.f32 %v9600, %v9961
        %v9971 = vmul.f32 %v9601, %v9962
        %v9972 = vmul.f32 %v9602, %v9963
        %v9973 = vmul.f32 %v9603, %v9960
        %v9974 = vmul.f32 %v9604, %v9954
        %v9975 = vmul.f32 %v9605, %v9961
        %v9976 = vmul.f32 %v9606, %v9962
        %v9977 = vmul.f32 %v9607, %v9963
        %v9978 = vmul.f32 %v9608, %v9960
        %v9979 = vmul.f32 %v9609, %v9954
        %v9980 = vmul.f32 %v9610, %v9961
        %v9981 = vmul.f32 %v9611, %v9962
        %v9982 = vmul.f32 %v9612, %v9963
        %v9983 = vmul.f32 %v9613, %v9960
        %v9999 = vrot.slane %v9969, 6
        %v10000 = vrot.slane %v9970, 6
        %v10001 = vrot.slane %v9971, 6
        %v10002 = vrot.slane %v9972, 6
        %v10003 = vrot.slane %v9973, 6
        %v10004 = vrot.slane %v9974, 6
        %v10005 = vsel %vm3768, %v9999, %v10004
        %v10006 = vrot.slane %v9975, 6
        %v10007 = vsel %vm3768, %v10000, %v10006
        %v10008 = vrot.slane %v9976, 6
        %v10009 = vsel %vm3768, %v10001, %v10008
        %v10010 = vrot.slane %v9977, 6
        %v10011 = vsel %vm3768, %v10002, %v10010
        %v10012 = vrot.slane %v9978, 6
        %v10013 = vsel %vm3768, %v10003, %v10012
        %v10014 = vrot.slane %v9979, 6
        %v10015 = vsel %vm3768, %v10004, %v10014
        %v10016 = vrot.slane %v9980, 6
        %v10017 = vsel %vm3768, %v10006, %v10016
        %v10018 = vrot.slane %v9981, 6
        %v10019 = vsel %vm3768, %v10008, %v10018
        %v10020 = vrot.slane %v9982, 6
        %v10021 = vsel %vm3768, %v10010, %v10020
        %v10022 = vrot.slane %v9983, 6
        %v10023 = vsel %vm3768, %v10012, %v10022
        %10024 = vrot.lane.b32.xlu0 %v9999, 64
        %v10025 = vpop.permute.xlu0 %10024
        %10026 = vrot.lane.b32.xlu0 %v10000, 64
        %v10027 = vpop.permute.xlu0 %10026
        %10028 = vrot.lane.b32.xlu0 %v10001, 64
        %v10029 = vpop.permute.xlu0 %10028
        %10030 = vrot.lane.b32.xlu0 %v10002, 64
        %v10031 = vpop.permute.xlu0 %10030
        %10032 = vrot.lane.b32.xlu0 %v10003, 64
        %v10033 = vpop.permute.xlu0 %10032
        %10034 = vrot.lane.b32.xlu0 %v10005, 64
        %v10035 = vpop.permute.xlu0 %10034
        %10036 = vrot.lane.b32.xlu0 %v10007, 64
        %v10037 = vpop.permute.xlu0 %10036
        %10038 = vrot.lane.b32.xlu0 %v10009, 64
        %v10039 = vpop.permute.xlu0 %10038
        %10040 = vrot.lane.b32.xlu0 %v10011, 64
        %v10041 = vpop.permute.xlu0 %10040
        %10042 = vrot.lane.b32.xlu0 %v10013, 64
        %v10043 = vpop.permute.xlu0 %10042
        %10044 = vrot.lane.b32.xlu0 %v10015, 64
        %v10045 = vpop.permute.xlu0 %10044
        %10046 = vrot.lane.b32.xlu0 %v10017, 64
        %v10047 = vpop.permute.xlu0 %10046
        %10048 = vrot.lane.b32.xlu0 %v10019, 64
        %v10049 = vpop.permute.xlu0 %10048
        %10050 = vrot.lane.b32.xlu0 %v10021, 64
        %v10051 = vpop.permute.xlu0 %10050
        %10052 = vrot.lane.b32.xlu0 %v10023, 64
        %v10053 = vpop.permute.xlu0 %10052
        %v10054 = vsel %vm498, %v10025, %v10027
        %v10055 = vsel %vm498, %v10027, %v10029
        %v10056 = vsel %vm498, %v10029, %v10031
        %v10057 = vsel %vm498, %v10031, %v10033
        %v10058 = vsel %vm498, %v10035, %v10037
        %v10059 = vsel %vm498, %v10037, %v10039
        %v10060 = vsel %vm498, %v10039, %v10041
        %v10061 = vsel %vm498, %v10041, %v10043
        %v10062 = vsel %vm498, %v10045, %v10047
        %v10063 = vsel %vm498, %v10047, %v10049
        %v10064 = vsel %vm498, %v10049, %v10051
        %v10065 = vsel %vm498, %v10051, %v10053
        %v10081 = vadd.f32 %v9918, %v10025
        %v10082 = vadd.f32 %v9919, %v10054
        %v10083 = vadd.f32 %v9920, %v10055
        %v10084 = vadd.f32 %v9921, %v10056
        %v10085 = vadd.f32 %v9922, %v10057
        %v10086 = vadd.f32 %v9923, %v10035
        %v10087 = vadd.f32 %v9924, %v10058
        %v10088 = vadd.f32 %v9925, %v10059
        %v10089 = vadd.f32 %v9926, %v10060
        %v10090 = vadd.f32 %v9927, %v10061
        %v10091 = vadd.f32 %v9928, %v10045
        %v10092 = vadd.f32 %v9929, %v10062
        %v10093 = vadd.f32 %v9930, %v10063
        %v10094 = vadd.f32 %v9931, %v10064
        %v10095 = vadd.f32 %v9932, %v10065
        %v10096 = vlaneseq
        %v10097 = vshrl.u32 %v10096, 7
        %v10098 = vsub.s32 5, %v10097
        %v10099 = vrot.slane %v9624, %v10098
        %v10100 = vlaneseq
        %v10101 = vshrl.u32 %v10100, 7
        %v10102 = vsub.s32 5, %v10101
        %v10103 = vrot.slane %v9625, %v10102
        %v10104 = vlaneseq
        %v10105 = vshrl.u32 %v10104, 7
        %v10106 = vsub.s32 5, %v10105
        %v10107 = vrot.slane %v9626, %v10106
        %v10108 = vlaneseq
        %v10109 = vshrl.u32 %v10108, 7
        %v10110 = vsub.s32 5, %v10109
        %v10111 = vrot.slane %v9627, %v10110
        %10116 = vrot.lane.b32.xlu0 %v10099, 32
        %v10117 = vpop.permute.xlu0 %10116
        %10118 = vrot.lane.b32.xlu0 %v10103, 32
        %v10119 = vpop.permute.xlu0 %10118
        %10120 = vrot.lane.b32.xlu0 %v10107, 32
        %v10121 = vpop.permute.xlu0 %10120
        %10122 = vrot.lane.b32.xlu0 %v10111, 32
        %v10123 = vpop.permute.xlu0 %10122
        %v10124 = vsel %vm2423, %v10117, %v10119
        %v10125 = vsel %vm2423, %v10119, %v10121
        %v10126 = vsel %vm2423, %v10121, %v10123
        %v10132 = vmul.f32 %v9604, %v10117
        %v10133 = vmul.f32 %v9605, %v10124
        %v10134 = vmul.f32 %v9606, %v10125
        %v10135 = vmul.f32 %v9607, %v10126
        %v10136 = vmul.f32 %v9608, %v10123
        %v10137 = vmul.f32 %v9609, %v10117
        %v10138 = vmul.f32 %v9610, %v10124
        %v10139 = vmul.f32 %v9611, %v10125
        %v10140 = vmul.f32 %v9612, %v10126
        %v10141 = vmul.f32 %v9613, %v10123
        %v10152 = vrot.slane %v10132, 1
        %v10153 = vrot.slane %v10133, 1
        %v10154 = vrot.slane %v10134, 1
        %v10155 = vrot.slane %v10135, 1
        %v10156 = vrot.slane %v10136, 1
        %v10157 = vrot.slane %v10137, 1
        %v10158 = vsel %vm603, %v10152, %v10157
        %v10159 = vrot.slane %v10138, 1
        %v10160 = vsel %vm603, %v10153, %v10159
        %v10161 = vrot.slane %v10139, 1
        %v10162 = vsel %vm603, %v10154, %v10161
        %v10163 = vrot.slane %v10140, 1
        %v10164 = vsel %vm603, %v10155, %v10163
        %v10165 = vrot.slane %v10141, 1
        %v10166 = vsel %vm603, %v10156, %v10165
        %10167 = vrot.lane.b32.xlu0 %v10152, 64
        %v10168 = vpop.permute.xlu0 %10167
        %10169 = vrot.lane.b32.xlu0 %v10153, 64
        %v10170 = vpop.permute.xlu0 %10169
        %10171 = vrot.lane.b32.xlu0 %v10154, 64
        %v10172 = vpop.permute.xlu0 %10171
        %10173 = vrot.lane.b32.xlu0 %v10155, 64
        %v10174 = vpop.permute.xlu0 %10173
        %10175 = vrot.lane.b32.xlu0 %v10156, 64
        %v10176 = vpop.permute.xlu0 %10175
        %10177 = vrot.lane.b32.xlu0 %v10158, 64
        %v10178 = vpop.permute.xlu0 %10177
        %10179 = vrot.lane.b32.xlu0 %v10160, 64
        %v10180 = vpop.permute.xlu0 %10179
        %10181 = vrot.lane.b32.xlu0 %v10162, 64
        %v10182 = vpop.permute.xlu0 %10181
        %10183 = vrot.lane.b32.xlu0 %v10164, 64
        %v10184 = vpop.permute.xlu0 %10183
        %10185 = vrot.lane.b32.xlu0 %v10166, 64
        %v10186 = vpop.permute.xlu0 %10185
        %10187 = vrot.lane.b32.xlu0 %v10157, 64
        %v10188 = vpop.permute.xlu0 %10187
        %10189 = vrot.lane.b32.xlu0 %v10159, 64
        %v10190 = vpop.permute.xlu0 %10189
        %10191 = vrot.lane.b32.xlu0 %v10161, 64
        %v10192 = vpop.permute.xlu0 %10191
        %10193 = vrot.lane.b32.xlu0 %v10163, 64
        %v10194 = vpop.permute.xlu0 %10193
        %10195 = vrot.lane.b32.xlu0 %v10165, 64
        %v10196 = vpop.permute.xlu0 %10195
        %v10197 = vsel %vm498, %v10168, %v10170
        %v10198 = vsel %vm498, %v10170, %v10172
        %v10199 = vsel %vm498, %v10172, %v10174
        %v10200 = vsel %vm498, %v10174, %v10176
        %v10201 = vsel %vm498, %v10178, %v10180
        %v10202 = vsel %vm498, %v10180, %v10182
        %v10203 = vsel %vm498, %v10182, %v10184
        %v10204 = vsel %vm498, %v10184, %v10186
        %v10205 = vsel %vm498, %v10188, %v10190
        %v10206 = vsel %vm498, %v10190, %v10192
        %v10207 = vsel %vm498, %v10192, %v10194
        %v10208 = vsel %vm498, %v10194, %v10196
        %v10224 = vadd.f32 %v10081, %v10168
        %v10225 = vadd.f32 %v10082, %v10197
        %v10226 = vadd.f32 %v10083, %v10198
        %v10227 = vadd.f32 %v10084, %v10199
        %v10228 = vadd.f32 %v10085, %v10200
        %v10229 = vadd.f32 %v10086, %v10178
        %v10230 = vadd.f32 %v10087, %v10201
        %v10231 = vadd.f32 %v10088, %v10202
        %v10232 = vadd.f32 %v10089, %v10203
        %v10233 = vadd.f32 %v10090, %v10204
        %v10234 = vadd.f32 %v10091, %v10188
        %v10235 = vadd.f32 %v10092, %v10205
        %v10236 = vadd.f32 %v10093, %v10206
        %v10237 = vadd.f32 %v10094, %v10207
        %v10238 = vadd.f32 %v10095, %v10208
        %v10239 = vlaneseq
        %v10240 = vshrl.u32 %v10239, 7
        %v10241 = vsub.s32 6, %v10240
        %v10242 = vrot.slane %v9624, %v10241
        %v10243 = vlaneseq
        %v10244 = vshrl.u32 %v10243, 7
        %v10245 = vsub.s32 6, %v10244
        %v10246 = vrot.slane %v9625, %v10245
        %v10247 = vlaneseq
        %v10248 = vshrl.u32 %v10247, 7
        %v10249 = vsub.s32 6, %v10248
        %v10250 = vrot.slane %v9626, %v10249
        %v10251 = vlaneseq
        %v10252 = vshrl.u32 %v10251, 7
        %v10253 = vsub.s32 6, %v10252
        %v10254 = vrot.slane %v9627, %v10253
        %10259 = vrot.lane.b32.xlu0 %v10242, 32
        %v10260 = vpop.permute.xlu0 %10259
        %10261 = vrot.lane.b32.xlu0 %v10246, 32
        %v10262 = vpop.permute.xlu0 %10261
        %10263 = vrot.lane.b32.xlu0 %v10250, 32
        %v10264 = vpop.permute.xlu0 %10263
        %10265 = vrot.lane.b32.xlu0 %v10254, 32
        %v10266 = vpop.permute.xlu0 %10265
        %v10267 = vsel %vm2423, %v10260, %v10262
        %v10268 = vsel %vm2423, %v10262, %v10264
        %v10269 = vsel %vm2423, %v10264, %v10266
        %v10275 = vmul.f32 %v9604, %v10260
        %v10276 = vmul.f32 %v9605, %v10267
        %v10277 = vmul.f32 %v9606, %v10268
        %v10278 = vmul.f32 %v9607, %v10269
        %v10279 = vmul.f32 %v9608, %v10266
        %v10280 = vmul.f32 %v9609, %v10260
        %v10281 = vmul.f32 %v9610, %v10267
        %v10282 = vmul.f32 %v9611, %v10268
        %v10283 = vmul.f32 %v9612, %v10269
        %v10284 = vmul.f32 %v9613, %v10266
        %v10285 = vmul.f32 %v9614, %v10260
        %v10286 = vmul.f32 %v9615, %v10267
        %v10287 = vmul.f32 %v9616, %v10268
        %v10288 = vmul.f32 %v9617, %v10269
        %v10289 = vmul.f32 %v9618, %v10266
        %v10305 = vrot.slane %v10275, 4
        %v10306 = vrot.slane %v10276, 4
        %v10307 = vrot.slane %v10277, 4
        %v10308 = vrot.slane %v10278, 4
        %v10309 = vrot.slane %v10279, 4
        %v10310 = vrot.slane %v10280, 4
        %v10311 = vsel %vm949, %v10305, %v10310
        %v10312 = vrot.slane %v10281, 4
        %v10313 = vsel %vm949, %v10306, %v10312
        %v10314 = vrot.slane %v10282, 4
        %v10315 = vsel %vm949, %v10307, %v10314
        %v10316 = vrot.slane %v10283, 4
        %v10317 = vsel %vm949, %v10308, %v10316
        %v10318 = vrot.slane %v10284, 4
        %v10319 = vsel %vm949, %v10309, %v10318
        %v10320 = vrot.slane %v10285, 4
        %v10321 = vsel %vm949, %v10310, %v10320
        %v10322 = vrot.slane %v10286, 4
        %v10323 = vsel %vm949, %v10312, %v10322
        %v10324 = vrot.slane %v10287, 4
        %v10325 = vsel %vm949, %v10314, %v10324
        %v10326 = vrot.slane %v10288, 4
        %v10327 = vsel %vm949, %v10316, %v10326
        %v10328 = vrot.slane %v10289, 4
        %v10329 = vsel %vm949, %v10318, %v10328
        %10330 = vrot.lane.b32.xlu0 %v10305, 64
        %v10331 = vpop.permute.xlu0 %10330
        %10332 = vrot.lane.b32.xlu0 %v10306, 64
        %v10333 = vpop.permute.xlu0 %10332
        %10334 = vrot.lane.b32.xlu0 %v10307, 64
        %v10335 = vpop.permute.xlu0 %10334
        %10336 = vrot.lane.b32.xlu0 %v10308, 64
        %v10337 = vpop.permute.xlu0 %10336
        %10338 = vrot.lane.b32.xlu0 %v10309, 64
        %v10339 = vpop.permute.xlu0 %10338
        %10340 = vrot.lane.b32.xlu0 %v10311, 64
        %v10341 = vpop.permute.xlu0 %10340
        %10342 = vrot.lane.b32.xlu0 %v10313, 64
        %v10343 = vpop.permute.xlu0 %10342
        %10344 = vrot.lane.b32.xlu0 %v10315, 64
        %v10345 = vpop.permute.xlu0 %10344
        %10346 = vrot.lane.b32.xlu0 %v10317, 64
        %v10347 = vpop.permute.xlu0 %10346
        %10348 = vrot.lane.b32.xlu0 %v10319, 64
        %v10349 = vpop.permute.xlu0 %10348
        %10350 = vrot.lane.b32.xlu0 %v10321, 64
        %v10351 = vpop.permute.xlu0 %10350
        %10352 = vrot.lane.b32.xlu0 %v10323, 64
        %v10353 = vpop.permute.xlu0 %10352
        %10354 = vrot.lane.b32.xlu0 %v10325, 64
        %v10355 = vpop.permute.xlu0 %10354
        %10356 = vrot.lane.b32.xlu0 %v10327, 64
        %v10357 = vpop.permute.xlu0 %10356
        %10358 = vrot.lane.b32.xlu0 %v10329, 64
        %v10359 = vpop.permute.xlu0 %10358
        %v10360 = vsel %vm498, %v10331, %v10333
        %v10361 = vsel %vm498, %v10333, %v10335
        %v10362 = vsel %vm498, %v10335, %v10337
        %v10363 = vsel %vm498, %v10337, %v10339
        %v10364 = vsel %vm498, %v10341, %v10343
        %v10365 = vsel %vm498, %v10343, %v10345
        %v10366 = vsel %vm498, %v10345, %v10347
        %v10367 = vsel %vm498, %v10347, %v10349
        %v10368 = vsel %vm498, %v10351, %v10353
        %v10369 = vsel %vm498, %v10353, %v10355
        %v10370 = vsel %vm498, %v10355, %v10357
        %v10371 = vsel %vm498, %v10357, %v10359
        %v10387 = vadd.f32 %v10224, %v10331
        %v10388 = vadd.f32 %v10225, %v10360
        %v10389 = vadd.f32 %v10226, %v10361
        %v10390 = vadd.f32 %v10227, %v10362
        %v10391 = vadd.f32 %v10228, %v10363
        %v10392 = vadd.f32 %v10229, %v10341
        %v10393 = vadd.f32 %v10230, %v10364
        %v10394 = vadd.f32 %v10231, %v10365
        %v10395 = vadd.f32 %v10232, %v10366
        %v10396 = vadd.f32 %v10233, %v10367
        %v10397 = vadd.f32 %v10234, %v10351
        %v10398 = vadd.f32 %v10235, %v10368
        %v10399 = vadd.f32 %v10236, %v10369
        %v10400 = vadd.f32 %v10237, %v10370
        %v10401 = vadd.f32 %v10238, %v10371
        %v10402 = vlaneseq
        %v10403 = vshrl.u32 %v10402, 7
        %v10404 = vsub.s32 7, %v10403
        %v10405 = vrot.slane %v9624, %v10404
        %v10406 = vlaneseq
        %v10407 = vshrl.u32 %v10406, 7
        %v10408 = vsub.s32 7, %v10407
        %v10409 = vrot.slane %v9625, %v10408
        %v10410 = vlaneseq
        %v10411 = vshrl.u32 %v10410, 7
        %v10412 = vsub.s32 7, %v10411
        %v10413 = vrot.slane %v9626, %v10412
        %v10414 = vlaneseq
        %v10415 = vshrl.u32 %v10414, 7
        %v10416 = vsub.s32 7, %v10415
        %v10417 = vrot.slane %v9627, %v10416
        %10422 = vrot.lane.b32.xlu0 %v10405, 32
        %v10423 = vpop.permute.xlu0 %10422
        %10424 = vrot.lane.b32.xlu0 %v10409, 32
        %v10425 = vpop.permute.xlu0 %10424
        %10426 = vrot.lane.b32.xlu0 %v10413, 32
        %v10427 = vpop.permute.xlu0 %10426
        %10428 = vrot.lane.b32.xlu0 %v10417, 32
        %v10429 = vpop.permute.xlu0 %10428
        %v10430 = vsel %vm2423, %v10423, %v10425
        %v10431 = vsel %vm2423, %v10425, %v10427
        %v10432 = vsel %vm2423, %v10427, %v10429
        %v10438 = vmul.f32 %v9604, %v10423
        %v10439 = vmul.f32 %v9605, %v10430
        %v10440 = vmul.f32 %v9606, %v10431
        %v10441 = vmul.f32 %v9607, %v10432
        %v10442 = vmul.f32 %v9608, %v10429
        %v10443 = vmul.f32 %v9609, %v10423
        %v10444 = vmul.f32 %v9610, %v10430
        %v10445 = vmul.f32 %v9611, %v10431
        %v10446 = vmul.f32 %v9612, %v10432
        %v10447 = vmul.f32 %v9613, %v10429
        %v10448 = vmul.f32 %v9614, %v10423
        %v10449 = vmul.f32 %v9615, %v10430
        %v10450 = vmul.f32 %v9616, %v10431
        %v10451 = vmul.f32 %v9617, %v10432
        %v10452 = vmul.f32 %v9618, %v10429
        %v10468 = vrot.slane %v10438, 7
        %v10469 = vrot.slane %v10439, 7
        %v10470 = vrot.slane %v10440, 7
        %v10471 = vrot.slane %v10441, 7
        %v10472 = vrot.slane %v10442, 7
        %v10473 = vrot.slane %v10443, 7
        %v10474 = vsel %vm4468, %v10468, %v10473
        %v10475 = vrot.slane %v10444, 7
        %v10476 = vsel %vm4468, %v10469, %v10475
        %v10477 = vrot.slane %v10445, 7
        %v10478 = vsel %vm4468, %v10470, %v10477
        %v10479 = vrot.slane %v10446, 7
        %v10480 = vsel %vm4468, %v10471, %v10479
        %v10481 = vrot.slane %v10447, 7
        %v10482 = vsel %vm4468, %v10472, %v10481
        %v10483 = vrot.slane %v10448, 7
        %v10484 = vsel %vm4468, %v10473, %v10483
        %v10485 = vrot.slane %v10449, 7
        %v10486 = vsel %vm4468, %v10475, %v10485
        %v10487 = vrot.slane %v10450, 7
        %v10488 = vsel %vm4468, %v10477, %v10487
        %v10489 = vrot.slane %v10451, 7
        %v10490 = vsel %vm4468, %v10479, %v10489
        %v10491 = vrot.slane %v10452, 7
        %v10492 = vsel %vm4468, %v10481, %v10491
        %10493 = vrot.lane.b32.xlu0 %v10468, 64
        %v10494 = vpop.permute.xlu0 %10493
        %10495 = vrot.lane.b32.xlu0 %v10469, 64
        %v10496 = vpop.permute.xlu0 %10495
        %10497 = vrot.lane.b32.xlu0 %v10470, 64
        %v10498 = vpop.permute.xlu0 %10497
        %10499 = vrot.lane.b32.xlu0 %v10471, 64
        %v10500 = vpop.permute.xlu0 %10499
        %10501 = vrot.lane.b32.xlu0 %v10472, 64
        %v10502 = vpop.permute.xlu0 %10501
        %10503 = vrot.lane.b32.xlu0 %v10474, 64
        %v10504 = vpop.permute.xlu0 %10503
        %10505 = vrot.lane.b32.xlu0 %v10476, 64
        %v10506 = vpop.permute.xlu0 %10505
        %10507 = vrot.lane.b32.xlu0 %v10478, 64
        %v10508 = vpop.permute.xlu0 %10507
        %10509 = vrot.lane.b32.xlu0 %v10480, 64
        %v10510 = vpop.permute.xlu0 %10509
        %10511 = vrot.lane.b32.xlu0 %v10482, 64
        %v10512 = vpop.permute.xlu0 %10511
        %10513 = vrot.lane.b32.xlu0 %v10484, 64
        %v10514 = vpop.permute.xlu0 %10513
        %10515 = vrot.lane.b32.xlu0 %v10486, 64
        %v10516 = vpop.permute.xlu0 %10515
        %10517 = vrot.lane.b32.xlu0 %v10488, 64
        %v10518 = vpop.permute.xlu0 %10517
        %10519 = vrot.lane.b32.xlu0 %v10490, 64
        %v10520 = vpop.permute.xlu0 %10519
        %10521 = vrot.lane.b32.xlu0 %v10492, 64
        %v10522 = vpop.permute.xlu0 %10521
        %v10523 = vsel %vm498, %v10494, %v10496
        %v10524 = vsel %vm498, %v10496, %v10498
        %v10525 = vsel %vm498, %v10498, %v10500
        %v10526 = vsel %vm498, %v10500, %v10502
        %v10527 = vsel %vm498, %v10504, %v10506
        %v10528 = vsel %vm498, %v10506, %v10508
        %v10529 = vsel %vm498, %v10508, %v10510
        %v10530 = vsel %vm498, %v10510, %v10512
        %v10531 = vsel %vm498, %v10514, %v10516
        %v10532 = vsel %vm498, %v10516, %v10518
        %v10533 = vsel %vm498, %v10518, %v10520
        %v10534 = vsel %vm498, %v10520, %v10522
        %v10550 = vadd.f32 %v10387, %v10494
        %v10551 = vadd.f32 %v10388, %v10523
        %v10552 = vadd.f32 %v10389, %v10524
        %v10553 = vadd.f32 %v10390, %v10525
        %v10554 = vadd.f32 %v10391, %v10526
        %v10555 = vadd.f32 %v10392, %v10504
        %v10556 = vadd.f32 %v10393, %v10527
        %v10557 = vadd.f32 %v10394, %v10528
        %v10558 = vadd.f32 %v10395, %v10529
        %v10559 = vadd.f32 %v10396, %v10530
        %v10560 = vadd.f32 %v10397, %v10514
        %v10561 = vadd.f32 %v10398, %v10531
        %v10562 = vadd.f32 %v10399, %v10532
        %v10563 = vadd.f32 %v10400, %v10533
        %v10564 = vadd.f32 %v10401, %v10534
        %v10565 = vlaneseq
        %v10566 = vshrl.u32 %v10565, 7
        %v10567 = vsub.s32 0, %v10566
        %v10568 = vrot.slane %v9628, %v10567
        %v10569 = vlaneseq
        %v10570 = vshrl.u32 %v10569, 7
        %v10571 = vsub.s32 0, %v10570
        %v10572 = vrot.slane %v9629, %v10571
        %v10573 = vlaneseq
        %v10574 = vshrl.u32 %v10573, 7
        %v10575 = vsub.s32 0, %v10574
        %v10576 = vrot.slane %v9630, %v10575
        %v10577 = vlaneseq
        %v10578 = vshrl.u32 %v10577, 7
        %v10579 = vsub.s32 0, %v10578
        %v10580 = vrot.slane %v9631, %v10579
        %10585 = vrot.lane.b32.xlu0 %v10568, 32
        %v10586 = vpop.permute.xlu0 %10585
        %10587 = vrot.lane.b32.xlu0 %v10572, 32
        %v10588 = vpop.permute.xlu0 %10587
        %10589 = vrot.lane.b32.xlu0 %v10576, 32
        %v10590 = vpop.permute.xlu0 %10589
        %10591 = vrot.lane.b32.xlu0 %v10580, 32
        %v10592 = vpop.permute.xlu0 %10591
        %v10593 = vsel %vm2423, %v10586, %v10588
        %v10594 = vsel %vm2423, %v10588, %v10590
        %v10595 = vsel %vm2423, %v10590, %v10592
        %v10601 = vmul.f32 %v9609, %v10586
        %v10602 = vmul.f32 %v9610, %v10593
        %v10603 = vmul.f32 %v9611, %v10594
        %v10604 = vmul.f32 %v9612, %v10595
        %v10605 = vmul.f32 %v9613, %v10592
        %v10606 = vmul.f32 %v9614, %v10586
        %v10607 = vmul.f32 %v9615, %v10593
        %v10608 = vmul.f32 %v9616, %v10594
        %v10609 = vmul.f32 %v9617, %v10595
        %v10610 = vmul.f32 %v9618, %v10592
        %v10611 = vmul.f32 %v9619, %v10586
        %v10612 = vmul.f32 %v9620, %v10593
        %v10613 = vmul.f32 %v9621, %v10594
        %v10614 = vmul.f32 %v9622, %v10595
        %v10615 = vmul.f32 %v9623, %v10592
        %v10631 = vrot.slane %v10601, 2
        %v10632 = vrot.slane %v10602, 2
        %v10633 = vrot.slane %v10603, 2
        %v10634 = vrot.slane %v10604, 2
        %v10635 = vrot.slane %v10605, 2
        %v10636 = vrot.slane %v10606, 2
        %v10637 = vsel %vm715, %v10631, %v10636
        %v10638 = vrot.slane %v10607, 2
        %v10639 = vsel %vm715, %v10632, %v10638
        %v10640 = vrot.slane %v10608, 2
        %v10641 = vsel %vm715, %v10633, %v10640
        %v10642 = vrot.slane %v10609, 2
        %v10643 = vsel %vm715, %v10634, %v10642
        %v10644 = vrot.slane %v10610, 2
        %v10645 = vsel %vm715, %v10635, %v10644
        %v10646 = vrot.slane %v10611, 2
        %v10647 = vsel %vm715, %v10636, %v10646
        %v10648 = vrot.slane %v10612, 2
        %v10649 = vsel %vm715, %v10638, %v10648
        %v10650 = vrot.slane %v10613, 2
        %v10651 = vsel %vm715, %v10640, %v10650
        %v10652 = vrot.slane %v10614, 2
        %v10653 = vsel %vm715, %v10642, %v10652
        %v10654 = vrot.slane %v10615, 2
        %v10655 = vsel %vm715, %v10644, %v10654
        %10656 = vrot.lane.b32.xlu0 %v10631, 64
        %v10657 = vpop.permute.xlu0 %10656
        %10658 = vrot.lane.b32.xlu0 %v10632, 64
        %v10659 = vpop.permute.xlu0 %10658
        %10660 = vrot.lane.b32.xlu0 %v10633, 64
        %v10661 = vpop.permute.xlu0 %10660
        %10662 = vrot.lane.b32.xlu0 %v10634, 64
        %v10663 = vpop.permute.xlu0 %10662
        %10664 = vrot.lane.b32.xlu0 %v10635, 64
        %v10665 = vpop.permute.xlu0 %10664
        %10666 = vrot.lane.b32.xlu0 %v10637, 64
        %v10667 = vpop.permute.xlu0 %10666
        %10668 = vrot.lane.b32.xlu0 %v10639, 64
        %v10669 = vpop.permute.xlu0 %10668
        %10670 = vrot.lane.b32.xlu0 %v10641, 64
        %v10671 = vpop.permute.xlu0 %10670
        %10672 = vrot.lane.b32.xlu0 %v10643, 64
        %v10673 = vpop.permute.xlu0 %10672
        %10674 = vrot.lane.b32.xlu0 %v10645, 64
        %v10675 = vpop.permute.xlu0 %10674
        %10676 = vrot.lane.b32.xlu0 %v10647, 64
        %v10677 = vpop.permute.xlu0 %10676
        %10678 = vrot.lane.b32.xlu0 %v10649, 64
        %v10679 = vpop.permute.xlu0 %10678
        %10680 = vrot.lane.b32.xlu0 %v10651, 64
        %v10681 = vpop.permute.xlu0 %10680
        %10682 = vrot.lane.b32.xlu0 %v10653, 64
        %v10683 = vpop.permute.xlu0 %10682
        %10684 = vrot.lane.b32.xlu0 %v10655, 64
        %v10685 = vpop.permute.xlu0 %10684
        %v10686 = vsel %vm498, %v10657, %v10659
        %v10687 = vsel %vm498, %v10659, %v10661
        %v10688 = vsel %vm498, %v10661, %v10663
        %v10689 = vsel %vm498, %v10663, %v10665
        %v10690 = vsel %vm498, %v10667, %v10669
        %v10691 = vsel %vm498, %v10669, %v10671
        %v10692 = vsel %vm498, %v10671, %v10673
        %v10693 = vsel %vm498, %v10673, %v10675
        %v10694 = vsel %vm498, %v10677, %v10679
        %v10695 = vsel %vm498, %v10679, %v10681
        %v10696 = vsel %vm498, %v10681, %v10683
        %v10697 = vsel %vm498, %v10683, %v10685
        %v10713 = vadd.f32 %v10550, %v10657
        %v10714 = vadd.f32 %v10551, %v10686
        %v10715 = vadd.f32 %v10552, %v10687
        %v10716 = vadd.f32 %v10553, %v10688
        %v10717 = vadd.f32 %v10554, %v10689
        %v10718 = vadd.f32 %v10555, %v10667
        %v10719 = vadd.f32 %v10556, %v10690
        %v10720 = vadd.f32 %v10557, %v10691
        %v10721 = vadd.f32 %v10558, %v10692
        %v10722 = vadd.f32 %v10559, %v10693
        %v10723 = vadd.f32 %v10560, %v10677
        %v10724 = vadd.f32 %v10561, %v10694
        %v10725 = vadd.f32 %v10562, %v10695
        %v10726 = vadd.f32 %v10563, %v10696
        %v10727 = vadd.f32 %v10564, %v10697
        %v10728 = vld [vmem:[%s4] sm:$0xf]
        %v10730 = vlaneseq
        %v10731 = vshrl.u32 %v10730, 7
        %v10732 = vsub.s32 0, %v10731
        %v10733 = vrot.slane %v10728, %v10732
        %v10734 = vlaneseq
        %v10735 = vshrl.u32 %v10734, 7
        %v10736 = vsub.s32 1, %v10735
        %v10737 = vrot.slane %v10728, %v10736
        %v10738 = vlaneseq
        %v10739 = vshrl.u32 %v10738, 7
        %v10740 = vsub.s32 2, %v10739
        %v10741 = vrot.slane %v10728, %v10740
        %v10742 = vlaneseq
        %v10743 = vshrl.u32 %v10742, 7
        %v10744 = vsub.s32 3, %v10743
        %v10745 = vrot.slane %v10728, %v10744
        %10746 = vrot.lane.b32.xlu0 %v10733, 96
        %v10747 = vpop.permute.xlu0 %10746
        %10748 = vrot.lane.b32.xlu0 %v10737, 96
        %v10749 = vpop.permute.xlu0 %10748
        %10750 = vrot.lane.b32.xlu0 %v10741, 96
        %v10751 = vpop.permute.xlu0 %10750
        %10752 = vrot.lane.b32.xlu0 %v10745, 96
        %v10753 = vpop.permute.xlu0 %10752
        %v10754 = vsel %vm1041, %v10747, %v10749
        %v10755 = vsel %vm1041, %v10749, %v10751
        %v10756 = vsel %vm1041, %v10751, %v10753
        %v10762 = vadd.f32 %v10713, %v10747
        %v10763 = vadd.f32 %v10714, %v10754
        %v10764 = vadd.f32 %v10715, %v10755
        %v10765 = vadd.f32 %v10716, %v10756
        %v10766 = vadd.f32 %v10717, %v10753
        %v10767 = vadd.f32 %v10718, %v10747
        %v10768 = vadd.f32 %v10719, %v10754
        %v10769 = vadd.f32 %v10720, %v10755
        %v10770 = vadd.f32 %v10721, %v10756
        %v10771 = vadd.f32 %v10722, %v10753
        %v10772 = vadd.f32 %v10723, %v10747
        %v10773 = vadd.f32 %v10724, %v10754
        %v10774 = vadd.f32 %v10725, %v10755
        %v10775 = vadd.f32 %v10726, %v10756
        %v10776 = vadd.f32 %v10727, %v10753
        %v10777 = vld [vmem:[#allocation4] sm:$0xff]
        %v10778 = vld [vmem:[#allocation4 + $0x8] sm:$0xff]
        %v10779 = vld [vmem:[#allocation4 + $0x10] sm:$0xff]
        %v10780 = vld [vmem:[#allocation4 + $0x18] sm:$0xff]
        %v10781 = vld [vmem:[#allocation4 + $0x20] sm:$0xff]
        %v10782 = vld [vmem:[#allocation4 + $0x28] sm:$0xff]
        %v10783 = vld [vmem:[#allocation4 + $0x30] sm:$0xff]
        %v10784 = vld [vmem:[#allocation4 + $0x38] sm:$0xff]
        %v10785 = vld [vmem:[#allocation4 + $0x40] sm:$0xff]
        %v10786 = vld [vmem:[#allocation4 + $0x48] sm:$0xff]
        %v10787 = vld [vmem:[#allocation4 + $0x50] sm:$0xff]
        %v10788 = vld [vmem:[#allocation4 + $0x58] sm:$0xff]
        %v10789 = vld [vmem:[#allocation4 + $0x60] sm:$0xff]
        %v10790 = vld [vmem:[#allocation4 + $0x68] sm:$0xff]
        %v10791 = vld [vmem:[#allocation4 + $0x70] sm:$0xff]
        %v10792 = vld [vmem:[#allocation4 + $0x78] sm:$0xff]
        %v10799 = vrot.slane %v10762, 7
        %v10800 = vrot.slane %v10767, 7
        %v10801 = vsel %vm4468, %v10799, %v10800
        %v10802 = vrot.slane %v10763, 7
        %v10803 = vrot.slane %v10768, 7
        %v10804 = vsel %vm4468, %v10802, %v10803
        %v10805 = vrot.slane %v10772, 7
        %v10806 = vsel %vm4468, %v10800, %v10805
        %v10807 = vrot.slane %v10773, 7
        %v10808 = vsel %vm4468, %v10803, %v10807
        %10809 = vrot.lane.b32.xlu0 %v10801, 32
        %v10810 = vpop.permute.xlu0 %10809
        %10811 = vrot.lane.b32.xlu0 %v10804, 32
        %v10812 = vpop.permute.xlu0 %10811
        %10813 = vrot.lane.b32.xlu0 %v10806, 32
        %v10814 = vpop.permute.xlu0 %10813
        %10815 = vrot.lane.b32.xlu0 %v10808, 32
        %v10816 = vpop.permute.xlu0 %10815
        %v10817 = vsel %vm2423, %v10810, %v10812
        %v10818 = vsel %vm2423, %v10814, %v10816
        %10821 = vmatprep.subr.mxu0 0.0
        %10822 = vmatpush1.msra.mxu0 %v10777
        %10823 = vmatprep.subr.mxu0 0.0
        %10824 = vmatpush1.msra.mxu0 %v10778
        %10825 = vmatprep.subr.mxu0 0.0
        %10826 = vmatpush1.msra.mxu0 %v10779
        %10827 = vmatprep.subr.mxu0 0.0
        %10828 = vmatpush1.msra.mxu0 %v10780
        %10829 = vmatprep.subr.mxu0 0.0
        %10830 = vmatpush1.msra.mxu0 %v10781
        %10831 = vmatprep.subr.mxu0 0.0
        %10832 = vmatpush1.msra.mxu0 %v10782
        %10833 = vmatprep.subr.mxu0 0.0
        %10834 = vmatpush1.msra.mxu0 %v10783
        %10835 = vmatprep.subr.mxu0 0.0
        %10836 = vmatpush1.msra.mxu0 %v10784
        %10837 = vmatprep.subr.mxu0 0.0
        %10838 = vmatpush1.msra.mxu0 %v10785
        %10839 = vmatprep.subr.mxu0 0.0
        %10840 = vmatpush1.msra.mxu0 %v10786
        %10841 = vmatprep.subr.mxu0 0.0
        %10842 = vmatpush1.msra.mxu0 %v10787
        %10843 = vmatprep.subr.mxu0 0.0
        %10844 = vmatpush1.msra.mxu0 %v10788
        %10845 = vmatprep.subr.mxu0 0.0
        %10846 = vmatpush1.msra.mxu0 %v10789
        %10847 = vmatprep.subr.mxu0 0.0
        %10848 = vmatpush1.msra.mxu0 %v10790
        %10849 = vmatprep.subr.mxu0 0.0
        %10850 = vmatpush1.msra.mxu0 %v10791
        %10851 = vmatprep.subr.mxu0 0.0
        %10852 = vmatpush1.msra.mxu0 %v10792
        %10853 = vmatprep.subr.mxu0 0.0
        %10854 = vmatpush1.msra.mxu0 0.0
        %10855 = vmatprep.subr.mxu0 0.0
        %10856 = vmatpush1.msra.mxu0 0.0
        %10857 = vmatprep.subr.mxu0 0.0
        %10858 = vmatpush1.msra.mxu0 0.0
        %10859 = vmatprep.subr.mxu0 0.0
        %10860 = vmatpush1.msra.mxu0 0.0
        %10861 = vmatprep.subr.mxu0 0.0
        %10862 = vmatpush1.msra.mxu0 0.0
        %10863 = vmatprep.subr.mxu0 0.0
        %10864 = vmatpush1.msra.mxu0 0.0
        %10865 = vmatprep.subr.mxu0 0.0
        %10866 = vmatpush1.msra.mxu0 0.0
        %10867 = vmatprep.subr.mxu0 0.0
        %10868 = vmatpush1.msra.mxu0 0.0
        %10869 = vmatprep.subr.mxu0 0.0
        %10870 = vmatpush1.msra.mxu0 0.0
        %10871 = vmatprep.subr.mxu0 0.0
        %10872 = vmatpush1.msra.mxu0 0.0
        %10873 = vmatprep.subr.mxu0 0.0
        %10874 = vmatpush1.msra.mxu0 0.0
        %10875 = vmatprep.subr.mxu0 0.0
        %10876 = vmatpush1.msra.mxu0 0.0
        %10877 = vmatprep.subr.mxu0 0.0
        %10878 = vmatpush1.msra.mxu0 0.0
        %10879 = vmatprep.subr.mxu0 0.0
        %10880 = vmatpush1.msra.mxu0 0.0
        %10881 = vmatprep.subr.mxu0 0.0
        %10882 = vmatpush1.msra.mxu0 0.0
        %10883 = vmatprep.subr.mxu0 0.0
        %10884 = vmatpush1.msra.mxu0 0.0
        %10885 = vmatprep.mubr.f32.mxu0 0.0
        %10886 = vmatmul.mubr.f32.gmra.mrb[0].mxu0 %v10817
        %v10887 = vpop.f32.mrb[0].mxu0
        %v10888 = vadd.f32 0.0, %v10887
        %v10889 = vpop.f32.mrb[0].mxu0
        %10890 = vmatprep.mubr.f32.mxu0 0.0
        %10891 = vmatmul.mubr.f32.gmra.mrb[0].mxu0 %v10818
        %v10892 = vpop.f32.mrb[0].mxu0
        %v10893 = vadd.f32 0.0, %v10892
        %v10894 = vpop.f32.mrb[0].mxu0
        %10895 = vdwg.mxu0
        %v10899 = vrot.slane %v10764, 7
        %v10900 = vrot.slane %v10769, 7
        %v10901 = vsel %vm4468, %v10899, %v10900
        %v10902 = vrot.slane %v10774, 7
        %v10903 = vsel %vm4468, %v10900, %v10902
        %10904 = vrot.lane.b32.xlu0 %v10901, 32
        %v10905 = vpop.permute.xlu0 %10904
        %10906 = vrot.lane.b32.xlu0 %v10903, 32
        %v10907 = vpop.permute.xlu0 %10906
        %v10908 = vsel %vm2423, %v10812, %v10905
        %v10909 = vsel %vm2423, %v10816, %v10907
        %10912 = vmatprep.subr.mxu0 0.0
        %10913 = vmatpush1.msra.mxu0 %v10777
        %10914 = vmatprep.subr.mxu0 0.0
        %10915 = vmatpush1.msra.mxu0 %v10778
        %10916 = vmatprep.subr.mxu0 0.0
        %10917 = vmatpush1.msra.mxu0 %v10779
        %10918 = vmatprep.subr.mxu0 0.0
        %10919 = vmatpush1.msra.mxu0 %v10780
        %10920 = vmatprep.subr.mxu0 0.0
        %10921 = vmatpush1.msra.mxu0 %v10781
        %10922 = vmatprep.subr.mxu0 0.0
        %10923 = vmatpush1.msra.mxu0 %v10782
        %10924 = vmatprep.subr.mxu0 0.0
        %10925 = vmatpush1.msra.mxu0 %v10783
        %10926 = vmatprep.subr.mxu0 0.0
        %10927 = vmatpush1.msra.mxu0 %v10784
        %10928 = vmatprep.subr.mxu0 0.0
        %10929 = vmatpush1.msra.mxu0 %v10785
        %10930 = vmatprep.subr.mxu0 0.0
        %10931 = vmatpush1.msra.mxu0 %v10786
        %10932 = vmatprep.subr.mxu0 0.0
        %10933 = vmatpush1.msra.mxu0 %v10787
        %10934 = vmatprep.subr.mxu0 0.0
        %10935 = vmatpush1.msra.mxu0 %v10788
        %10936 = vmatprep.subr.mxu0 0.0
        %10937 = vmatpush1.msra.mxu0 %v10789
        %10938 = vmatprep.subr.mxu0 0.0
        %10939 = vmatpush1.msra.mxu0 %v10790
        %10940 = vmatprep.subr.mxu0 0.0
        %10941 = vmatpush1.msra.mxu0 %v10791
        %10942 = vmatprep.subr.mxu0 0.0
        %10943 = vmatpush1.msra.mxu0 %v10792
        %10944 = vmatprep.subr.mxu0 0.0
        %10945 = vmatpush1.msra.mxu0 0.0
        %10946 = vmatprep.subr.mxu0 0.0
        %10947 = vmatpush1.msra.mxu0 0.0
        %10948 = vmatprep.subr.mxu0 0.0
        %10949 = vmatpush1.msra.mxu0 0.0
        %10950 = vmatprep.subr.mxu0 0.0
        %10951 = vmatpush1.msra.mxu0 0.0
        %10952 = vmatprep.subr.mxu0 0.0
        %10953 = vmatpush1.msra.mxu0 0.0
        %10954 = vmatprep.subr.mxu0 0.0
        %10955 = vmatpush1.msra.mxu0 0.0
        %10956 = vmatprep.subr.mxu0 0.0
        %10957 = vmatpush1.msra.mxu0 0.0
        %10958 = vmatprep.subr.mxu0 0.0
        %10959 = vmatpush1.msra.mxu0 0.0
        %10960 = vmatprep.subr.mxu0 0.0
        %10961 = vmatpush1.msra.mxu0 0.0
        %10962 = vmatprep.subr.mxu0 0.0
        %10963 = vmatpush1.msra.mxu0 0.0
        %10964 = vmatprep.subr.mxu0 0.0
        %10965 = vmatpush1.msra.mxu0 0.0
        %10966 = vmatprep.subr.mxu0 0.0
        %10967 = vmatpush1.msra.mxu0 0.0
        %10968 = vmatprep.subr.mxu0 0.0
        %10969 = vmatpush1.msra.mxu0 0.0
        %10970 = vmatprep.subr.mxu0 0.0
        %10971 = vmatpush1.msra.mxu0 0.0
        %10972 = vmatprep.subr.mxu0 0.0
        %10973 = vmatpush1.msra.mxu0 0.0
        %10974 = vmatprep.subr.mxu0 0.0
        %10975 = vmatpush1.msra.mxu0 0.0
        %10976 = vmatprep.mubr.f32.mxu0 0.0
        %10977 = vmatmul.mubr.f32.gmra.mrb[0].mxu0 %v10908
        %v10978 = vpop.f32.mrb[0].mxu0
        %v10979 = vadd.f32 0.0, %v10978
        %v10980 = vpop.f32.mrb[0].mxu0
        %10981 = vmatprep.mubr.f32.mxu0 0.0
        %10982 = vmatmul.mubr.f32.gmra.mrb[0].mxu0 %v10909
        %v10983 = vpop.f32.mrb[0].mxu0
        %v10984 = vadd.f32 0.0, %v10983
        %v10985 = vpop.f32.mrb[0].mxu0
        %10986 = vdwg.mxu0
        %v10990 = vrot.slane %v10765, 7
        %v10991 = vrot.slane %v10770, 7
        %v10992 = vsel %vm4468, %v10990, %v10991
        %v10993 = vrot.slane %v10775, 7
        %v10994 = vsel %vm4468, %v10991, %v10993
        %10995 = vrot.lane.b32.xlu0 %v10992, 32
        %v10996 = vpop.permute.xlu0 %10995
        %10997 = vrot.lane.b32.xlu0 %v10994, 32
        %v10998 = vpop.permute.xlu0 %10997
        %v10999 = vsel %vm2423, %v10905, %v10996
        %v11000 = vsel %vm2423, %v10907, %v10998
        %11003 = vmatprep.subr.mxu0 0.0
        %11004 = vmatpush1.msra.mxu0 %v10777
        %11005 = vmatprep.subr.mxu0 0.0
        %11006 = vmatpush1.msra.mxu0 %v10778
        %11007 = vmatprep.subr.mxu0 0.0
        %11008 = vmatpush1.msra.mxu0 %v10779
        %11009 = vmatprep.subr.mxu0 0.0
        %11010 = vmatpush1.msra.mxu0 %v10780
        %11011 = vmatprep.subr.mxu0 0.0
        %11012 = vmatpush1.msra.mxu0 %v10781
        %11013 = vmatprep.subr.mxu0 0.0
        %11014 = vmatpush1.msra.mxu0 %v10782
        %11015 = vmatprep.subr.mxu0 0.0
        %11016 = vmatpush1.msra.mxu0 %v10783
        %11017 = vmatprep.subr.mxu0 0.0
        %11018 = vmatpush1.msra.mxu0 %v10784
        %11019 = vmatprep.subr.mxu0 0.0
        %11020 = vmatpush1.msra.mxu0 %v10785
        %11021 = vmatprep.subr.mxu0 0.0
        %11022 = vmatpush1.msra.mxu0 %v10786
        %11023 = vmatprep.subr.mxu0 0.0
        %11024 = vmatpush1.msra.mxu0 %v10787
        %11025 = vmatprep.subr.mxu0 0.0
        %11026 = vmatpush1.msra.mxu0 %v10788
        %11027 = vmatprep.subr.mxu0 0.0
        %11028 = vmatpush1.msra.mxu0 %v10789
        %11029 = vmatprep.subr.mxu0 0.0
        %11030 = vmatpush1.msra.mxu0 %v10790
        %11031 = vmatprep.subr.mxu0 0.0
        %11032 = vmatpush1.msra.mxu0 %v10791
        %11033 = vmatprep.subr.mxu0 0.0
        %11034 = vmatpush1.msra.mxu0 %v10792
        %11035 = vmatprep.subr.mxu0 0.0
        %11036 = vmatpush1.msra.mxu0 0.0
        %11037 = vmatprep.subr.mxu0 0.0
        %11038 = vmatpush1.msra.mxu0 0.0
        %11039 = vmatprep.subr.mxu0 0.0
        %11040 = vmatpush1.msra.mxu0 0.0
        %11041 = vmatprep.subr.mxu0 0.0
        %11042 = vmatpush1.msra.mxu0 0.0
        %11043 = vmatprep.subr.mxu0 0.0
        %11044 = vmatpush1.msra.mxu0 0.0
        %11045 = vmatprep.subr.mxu0 0.0
        %11046 = vmatpush1.msra.mxu0 0.0
        %11047 = vmatprep.subr.mxu0 0.0
        %11048 = vmatpush1.msra.mxu0 0.0
        %11049 = vmatprep.subr.mxu0 0.0
        %11050 = vmatpush1.msra.mxu0 0.0
        %11051 = vmatprep.subr.mxu0 0.0
        %11052 = vmatpush1.msra.mxu0 0.0
        %11053 = vmatprep.subr.mxu0 0.0
        %11054 = vmatpush1.msra.mxu0 0.0
        %11055 = vmatprep.subr.mxu0 0.0
        %11056 = vmatpush1.msra.mxu0 0.0
        %11057 = vmatprep.subr.mxu0 0.0
        %11058 = vmatpush1.msra.mxu0 0.0
        %11059 = vmatprep.subr.mxu0 0.0
        %11060 = vmatpush1.msra.mxu0 0.0
        %11061 = vmatprep.subr.mxu0 0.0
        %11062 = vmatpush1.msra.mxu0 0.0
        %11063 = vmatprep.subr.mxu0 0.0
        %11064 = vmatpush1.msra.mxu0 0.0
        %11065 = vmatprep.subr.mxu0 0.0
        %11066 = vmatpush1.msra.mxu0 0.0
        %11067 = vmatprep.mubr.f32.mxu0 0.0
        %11068 = vmatmul.mubr.f32.gmra.mrb[0].mxu0 %v10999
        %v11069 = vpop.f32.mrb[0].mxu0
        %v11070 = vadd.f32 0.0, %v11069
        %v11071 = vpop.f32.mrb[0].mxu0
        %11072 = vmatprep.mubr.f32.mxu0 0.0
        %11073 = vmatmul.mubr.f32.gmra.mrb[0].mxu0 %v11000
        %v11074 = vpop.f32.mrb[0].mxu0
        %v11075 = vadd.f32 0.0, %v11074
        %v11076 = vpop.f32.mrb[0].mxu0
        %11077 = vdwg.mxu0
        %v11081 = vrot.slane %v10766, 7
        %v11082 = vrot.slane %v10771, 7
        %v11083 = vsel %vm4468, %v11081, %v11082
        %v11084 = vrot.slane %v10776, 7
        %v11085 = vsel %vm4468, %v11082, %v11084
        %11086 = vrot.lane.b32.xlu0 %v11083, 32
        %v11087 = vpop.permute.xlu0 %11086
        %11088 = vrot.lane.b32.xlu0 %v11085, 32
        %v11089 = vpop.permute.xlu0 %11088
        %v11090 = vsel %vm2423, %v10996, %v11087
        %v11091 = vsel %vm2423, %v10998, %v11089
        %11094 = vmatprep.subr.mxu0 0.0
        %11095 = vmatpush1.msra.mxu0 %v10777
        %11096 = vmatprep.subr.mxu0 0.0
        %11097 = vmatpush1.msra.mxu0 %v10778
        %11098 = vmatprep.subr.mxu0 0.0
        %11099 = vmatpush1.msra.mxu0 %v10779
        %11100 = vmatprep.subr.mxu0 0.0
        %11101 = vmatpush1.msra.mxu0 %v10780
        %11102 = vmatprep.subr.mxu0 0.0
        %11103 = vmatpush1.msra.mxu0 %v10781
        %11104 = vmatprep.subr.mxu0 0.0
        %11105 = vmatpush1.msra.mxu0 %v10782
        %11106 = vmatprep.subr.mxu0 0.0
        %11107 = vmatpush1.msra.mxu0 %v10783
        %11108 = vmatprep.subr.mxu0 0.0
        %11109 = vmatpush1.msra.mxu0 %v10784
        %11110 = vmatprep.subr.mxu0 0.0
        %11111 = vmatpush1.msra.mxu0 %v10785
        %11112 = vmatprep.subr.mxu0 0.0
        %11113 = vmatpush1.msra.mxu0 %v10786
        %11114 = vmatprep.subr.mxu0 0.0
        %11115 = vmatpush1.msra.mxu0 %v10787
        %11116 = vmatprep.subr.mxu0 0.0
        %11117 = vmatpush1.msra.mxu0 %v10788
        %11118 = vmatprep.subr.mxu0 0.0
        %11119 = vmatpush1.msra.mxu0 %v10789
        %11120 = vmatprep.subr.mxu0 0.0
        %11121 = vmatpush1.msra.mxu0 %v10790
        %11122 = vmatprep.subr.mxu0 0.0
        %11123 = vmatpush1.msra.mxu0 %v10791
        %11124 = vmatprep.subr.mxu0 0.0
        %11125 = vmatpush1.msra.mxu0 %v10792
        %11126 = vmatprep.subr.mxu0 0.0
        %11127 = vmatpush1.msra.mxu0 0.0
        %11128 = vmatprep.subr.mxu0 0.0
        %11129 = vmatpush1.msra.mxu0 0.0
        %11130 = vmatprep.subr.mxu0 0.0
        %11131 = vmatpush1.msra.mxu0 0.0
        %11132 = vmatprep.subr.mxu0 0.0
        %11133 = vmatpush1.msra.mxu0 0.0
        %11134 = vmatprep.subr.mxu0 0.0
        %11135 = vmatpush1.msra.mxu0 0.0
        %11136 = vmatprep.subr.mxu0 0.0
        %11137 = vmatpush1.msra.mxu0 0.0
        %11138 = vmatprep.subr.mxu0 0.0
        %11139 = vmatpush1.msra.mxu0 0.0
        %11140 = vmatprep.subr.mxu0 0.0
        %11141 = vmatpush1.msra.mxu0 0.0
        %11142 = vmatprep.subr.mxu0 0.0
        %11143 = vmatpush1.msra.mxu0 0.0
        %11144 = vmatprep.subr.mxu0 0.0
        %11145 = vmatpush1.msra.mxu0 0.0
        %11146 = vmatprep.subr.mxu0 0.0
        %11147 = vmatpush1.msra.mxu0 0.0
        %11148 = vmatprep.subr.mxu0 0.0
        %11149 = vmatpush1.msra.mxu0 0.0
        %11150 = vmatprep.subr.mxu0 0.0
        %11151 = vmatpush1.msra.mxu0 0.0
        %11152 = vmatprep.subr.mxu0 0.0
        %11153 = vmatpush1.msra.mxu0 0.0
        %11154 = vmatprep.subr.mxu0 0.0
        %11155 = vmatpush1.msra.mxu0 0.0
        %11156 = vmatprep.subr.mxu0 0.0
        %11157 = vmatpush1.msra.mxu0 0.0
        %11158 = vmatprep.mubr.f32.mxu0 0.0
        %11159 = vmatmul.mubr.f32.gmra.mrb[0].mxu0 %v11090
        %v11160 = vpop.f32.mrb[0].mxu0
        %v11161 = vadd.f32 0.0, %v11160
        %v11162 = vpop.f32.mrb[0].mxu0
        %11163 = vmatprep.mubr.f32.mxu0 0.0
        %11164 = vmatmul.mubr.f32.gmra.mrb[0].mxu0 %v11091
        %v11165 = vpop.f32.mrb[0].mxu0
        %v11166 = vadd.f32 0.0, %v11165
        %v11167 = vpop.f32.mrb[0].mxu0
        %11168 = vdwg.mxu0
        %v11169 = vld [vmem:[%s6] sm:$0xf]
        %v11171 = vlaneseq
        %v11172 = vshrl.u32 %v11171, 7
        %v11173 = vsub.s32 0, %v11172
        %v11174 = vrot.slane %v11169, %v11173
        %v11175 = vlaneseq
        %v11176 = vshrl.u32 %v11175, 7
        %v11177 = vsub.s32 1, %v11176
        %v11178 = vrot.slane %v11169, %v11177
        %v11179 = vlaneseq
        %v11180 = vshrl.u32 %v11179, 7
        %v11181 = vsub.s32 2, %v11180
        %v11182 = vrot.slane %v11169, %v11181
        %v11183 = vlaneseq
        %v11184 = vshrl.u32 %v11183, 7
        %v11185 = vsub.s32 3, %v11184
        %v11186 = vrot.slane %v11169, %v11185
        %v11191 = vadd.f32 %v10888, %v11174
        %v11192 = vadd.f32 %v10979, %v11178
        %v11193 = vadd.f32 %v11070, %v11182
        %v11194 = vadd.f32 %v11161, %v11186
        %v11195 = vadd.f32 %v10893, %v11174
        %v11196 = vadd.f32 %v10984, %v11178
        %v11197 = vadd.f32 %v11075, %v11182
        %v11198 = vadd.f32 %v11166, %v11186
        %v11199 = vld [vmem:[%s345] sm:$0xff]
        %v11200 = vld [vmem:[%s345 + $0x8] sm:$0xff]
        %v11201 = vld [vmem:[%s345 + $0x10] sm:$0xff]
        %v11202 = vld [vmem:[%s345 + $0x18] sm:$0xff]
        %v11203 = vld [vmem:[%s345 + $0x20] sm:$0xff]
        %v11204 = vld [vmem:[%s345 + $0x28] sm:$0xff]
        %v11205 = vld [vmem:[%s345 + $0x30] sm:$0xff]
        %v11206 = vld [vmem:[%s345 + $0x38] sm:$0xff]
        %v11207 = vadd.f32 %v11199, %v11203
        %v11208 = vrot.slane %v11207, 4
        %v11209 = vadd.f32 %v11207, %v11208
        %v11210 = vrot.slane %v11209, 2
        %v11211 = vadd.f32 %v11209, %v11210
        %v11212 = vrot.slane %v11211, 1
        %v11213 = vadd.f32 %v11211, %v11212
        %v11214 = vadd.f32 %v11200, %v11204
        %v11215 = vrot.slane %v11214, 4
        %v11216 = vadd.f32 %v11214, %v11215
        %v11217 = vrot.slane %v11216, 2
        %v11218 = vadd.f32 %v11216, %v11217
        %v11219 = vrot.slane %v11218, 1
        %v11220 = vadd.f32 %v11218, %v11219
        %v11221 = vadd.f32 %v11201, %v11205
        %v11222 = vrot.slane %v11221, 4
        %v11223 = vadd.f32 %v11221, %v11222
        %v11224 = vrot.slane %v11223, 2
        %v11225 = vadd.f32 %v11223, %v11224
        %v11226 = vrot.slane %v11225, 1
        %v11227 = vadd.f32 %v11225, %v11226
        %v11228 = vadd.f32 %v11202, %v11206
        %v11229 = vrot.slane %v11228, 4
        %v11230 = vadd.f32 %v11228, %v11229
        %v11231 = vrot.slane %v11230, 2
        %v11232 = vadd.f32 %v11230, %v11231
        %v11233 = vrot.slane %v11232, 1
        %v11234 = vadd.f32 %v11232, %v11233
        %v11235 = vld [vmem:[%s7] sm:$0xff]
        %v11236 = vld [vmem:[%s7 + $0x8] sm:$0xff]
        %v11237 = vld [vmem:[%s7 + $0x10] sm:$0xff]
        %v11238 = vld [vmem:[%s7 + $0x18] sm:$0xff]
        %v11239 = vld [vmem:[%s7 + $0x20] sm:$0xff]
        %v11240 = vld [vmem:[%s7 + $0x28] sm:$0xff]
        %v11241 = vld [vmem:[%s7 + $0x30] sm:$0xff]
        %v11242 = vld [vmem:[%s7 + $0x38] sm:$0xff]
        %v11243 = vld [vmem:[%s7 + $0x40] sm:$0xff]
        %v11244 = vld [vmem:[%s7 + $0x48] sm:$0xff]
        %v11245 = vld [vmem:[%s7 + $0x50] sm:$0xff]
        %v11246 = vld [vmem:[%s7 + $0x58] sm:$0xff]
        %v11247 = vld [vmem:[%s7 + $0x60] sm:$0xff]
        %v11248 = vld [vmem:[%s7 + $0x68] sm:$0xff]
        %v11249 = vld [vmem:[%s7 + $0x70] sm:$0xff]
        %v11250 = vld [vmem:[%s7 + $0x78] sm:$0xff]
        %v11251 = vld [vmem:[%s7 + $0x80] sm:$0xff]
        %v11252 = vld [vmem:[%s7 + $0x88] sm:$0xff]
        %v11253 = vld [vmem:[%s7 + $0x90] sm:$0xff]
        %v11254 = vld [vmem:[%s7 + $0x98] sm:$0xff]
        %v11255 = vld [vmem:[%s7 + $0xa0] sm:$0xff]
        %v11256 = vld [vmem:[%s7 + $0xa8] sm:$0xff]
        %v11257 = vld [vmem:[%s7 + $0xb0] sm:$0xff]
        %v11258 = vld [vmem:[%s7 + $0xb8] sm:$0xff]
        %v11259 = vld [vmem:[%s7 + $0xc0] sm:$0xff]
        %v11260 = vld [vmem:[%s7 + $0xc8] sm:$0xff]
        %v11261 = vld [vmem:[%s7 + $0xd0] sm:$0xff]
        %v11262 = vld [vmem:[%s7 + $0xd8] sm:$0xff]
        %v11263 = vld [vmem:[%s7 + $0xe0] sm:$0xff]
        %v11264 = vld [vmem:[%s7 + $0xe8] sm:$0xff]
        %v11265 = vld [vmem:[%s7 + $0xf0] sm:$0xff]
        %v11266 = vld [vmem:[%s7 + $0xf8] sm:$0xff]
        %v11267 = vld [vmem:[%s7 + $0x100] sm:$0xff]
        %v11268 = vld [vmem:[%s7 + $0x108] sm:$0xff]
        %v11269 = vld [vmem:[%s7 + $0x110] sm:$0xff]
        %v11270 = vld [vmem:[%s7 + $0x118] sm:$0xff]
        %v11271 = vld [vmem:[%s7 + $0x120] sm:$0xff]
        %v11272 = vld [vmem:[%s7 + $0x128] sm:$0xff]
        %v11273 = vld [vmem:[%s7 + $0x130] sm:$0xff]
        %v11274 = vld [vmem:[%s7 + $0x138] sm:$0xff]
        %v11275 = vld [vmem:[%s7 + $0x140] sm:$0xff]
        %v11276 = vld [vmem:[%s7 + $0x148] sm:$0xff]
        %v11277 = vld [vmem:[%s7 + $0x150] sm:$0xff]
        %v11278 = vld [vmem:[%s7 + $0x158] sm:$0xff]
        %v11279 = vld [vmem:[%s7 + $0x160] sm:$0xff]
        %v11280 = vld [vmem:[%s7 + $0x168] sm:$0xff]
        %v11281 = vld [vmem:[%s7 + $0x170] sm:$0xff]
        %v11282 = vld [vmem:[%s7 + $0x178] sm:$0xff]
        %v11283 = vld [vmem:[%s7 + $0x180] sm:$0xff]
        %v11284 = vld [vmem:[%s7 + $0x188] sm:$0xff]
        %v11285 = vld [vmem:[%s7 + $0x190] sm:$0xff]
        %v11286 = vld [vmem:[%s7 + $0x198] sm:$0xff]
        %v11287 = vld [vmem:[%s7 + $0x1a0] sm:$0xff]
        %v11288 = vld [vmem:[%s7 + $0x1a8] sm:$0xff]
        %v11289 = vld [vmem:[%s7 + $0x1b0] sm:$0xff]
        %v11290 = vld [vmem:[%s7 + $0x1b8] sm:$0xff]
        %v11291 = vld [vmem:[%s7 + $0x1c0] sm:$0xff]
        %v11292 = vld [vmem:[%s7 + $0x1c8] sm:$0xff]
        %v11293 = vld [vmem:[%s7 + $0x1d0] sm:$0xff]
        %v11294 = vld [vmem:[%s7 + $0x1d8] sm:$0xff]
        %v11295 = vld [vmem:[%s7 + $0x1e0] sm:$0xff]
        %v11296 = vld [vmem:[%s7 + $0x1e8] sm:$0xff]
        %v11297 = vld [vmem:[%s7 + $0x1f0] sm:$0xff]
        %v11298 = vld [vmem:[%s7 + $0x1f8] sm:$0xff]
        %11299 = vmatprep.subr.mxu0 0.0
        %11300 = vmatpush1.msra.mxu0 %v11235
        %11301 = vmatprep.subr.mxu0 0.0
        %11302 = vmatpush1.msra.mxu0 %v11236
        %11303 = vmatprep.subr.mxu0 0.0
        %11304 = vmatpush1.msra.mxu0 %v11237
        %11305 = vmatprep.subr.mxu0 0.0
        %11306 = vmatpush1.msra.mxu0 %v11238
        %11307 = vmatprep.subr.mxu0 0.0
        %11308 = vmatpush1.msra.mxu0 %v11239
        %11309 = vmatprep.subr.mxu0 0.0
        %11310 = vmatpush1.msra.mxu0 %v11240
        %11311 = vmatprep.subr.mxu0 0.0
        %11312 = vmatpush1.msra.mxu0 %v11241
        %11313 = vmatprep.subr.mxu0 0.0
        %11314 = vmatpush1.msra.mxu0 %v11242
        %11315 = vmatprep.subr.mxu0 0.0
        %11316 = vmatpush1.msra.mxu0 %v11243
        %11317 = vmatprep.subr.mxu0 0.0
        %11318 = vmatpush1.msra.mxu0 %v11244
        %11319 = vmatprep.subr.mxu0 0.0
        %11320 = vmatpush1.msra.mxu0 %v11245
        %11321 = vmatprep.subr.mxu0 0.0
        %11322 = vmatpush1.msra.mxu0 %v11246
        %11323 = vmatprep.subr.mxu0 0.0
        %11324 = vmatpush1.msra.mxu0 %v11247
        %11325 = vmatprep.subr.mxu0 0.0
        %11326 = vmatpush1.msra.mxu0 %v11248
        %11327 = vmatprep.subr.mxu0 0.0
        %11328 = vmatpush1.msra.mxu0 %v11249
        %11329 = vmatprep.subr.mxu0 0.0
        %11330 = vmatpush1.msra.mxu0 %v11250
        %11331 = vmatprep.subr.mxu0 0.0
        %11332 = vmatpush1.msra.mxu0 %v11251
        %11333 = vmatprep.subr.mxu0 0.0
        %11334 = vmatpush1.msra.mxu0 %v11252
        %11335 = vmatprep.subr.mxu0 0.0
        %11336 = vmatpush1.msra.mxu0 %v11253
        %11337 = vmatprep.subr.mxu0 0.0
        %11338 = vmatpush1.msra.mxu0 %v11254
        %11339 = vmatprep.subr.mxu0 0.0
        %11340 = vmatpush1.msra.mxu0 %v11255
        %11341 = vmatprep.subr.mxu0 0.0
        %11342 = vmatpush1.msra.mxu0 %v11256
        %11343 = vmatprep.subr.mxu0 0.0
        %11344 = vmatpush1.msra.mxu0 %v11257
        %11345 = vmatprep.subr.mxu0 0.0
        %11346 = vmatpush1.msra.mxu0 %v11258
        %11347 = vmatprep.subr.mxu0 0.0
        %11348 = vmatpush1.msra.mxu0 %v11259
        %11349 = vmatprep.subr.mxu0 0.0
        %11350 = vmatpush1.msra.mxu0 %v11260
        %11351 = vmatprep.subr.mxu0 0.0
        %11352 = vmatpush1.msra.mxu0 %v11261
        %11353 = vmatprep.subr.mxu0 0.0
        %11354 = vmatpush1.msra.mxu0 %v11262
        %11355 = vmatprep.subr.mxu0 0.0
        %11356 = vmatpush1.msra.mxu0 %v11263
        %11357 = vmatprep.subr.mxu0 0.0
        %11358 = vmatpush1.msra.mxu0 %v11264
        %11359 = vmatprep.subr.mxu0 0.0
        %11360 = vmatpush1.msra.mxu0 %v11265
        %11361 = vmatprep.subr.mxu0 0.0
        %11362 = vmatpush1.msra.mxu0 %v11266
        %11363 = vmatprep.mubr.f32.mxu0 %v11220
        %11364 = vmatmul.mubr.f32.gmra.mrb[0].mxu0 %v11213
        %v11365 = vpop.f32.mrb[0].mxu0
        %v11366 = vadd.f32 0.0, %v11365
        %v11367 = vpop.f32.mrb[0].mxu0
        %11368 = vdwg.mxu0
        %11369 = vmatprep.subr.mxu0 0.0
        %11370 = vmatpush1.msra.mxu0 %v11267
        %11371 = vmatprep.subr.mxu0 0.0
        %11372 = vmatpush1.msra.mxu0 %v11268
        %11373 = vmatprep.subr.mxu0 0.0
        %11374 = vmatpush1.msra.mxu0 %v11269
        %11375 = vmatprep.subr.mxu0 0.0
        %11376 = vmatpush1.msra.mxu0 %v11270
        %11377 = vmatprep.subr.mxu0 0.0
        %11378 = vmatpush1.msra.mxu0 %v11271
        %11379 = vmatprep.subr.mxu0 0.0
        %11380 = vmatpush1.msra.mxu0 %v11272
        %11381 = vmatprep.subr.mxu0 0.0
        %11382 = vmatpush1.msra.mxu0 %v11273
        %11383 = vmatprep.subr.mxu0 0.0
        %11384 = vmatpush1.msra.mxu0 %v11274
        %11385 = vmatprep.subr.mxu0 0.0
        %11386 = vmatpush1.msra.mxu0 %v11275
        %11387 = vmatprep.subr.mxu0 0.0
        %11388 = vmatpush1.msra.mxu0 %v11276
        %11389 = vmatprep.subr.mxu0 0.0
        %11390 = vmatpush1.msra.mxu0 %v11277
        %11391 = vmatprep.subr.mxu0 0.0
        %11392 = vmatpush1.msra.mxu0 %v11278
        %11393 = vmatprep.subr.mxu0 0.0
        %11394 = vmatpush1.msra.mxu0 %v11279
        %11395 = vmatprep.subr.mxu0 0.0
        %11396 = vmatpush1.msra.mxu0 %v11280
        %11397 = vmatprep.subr.mxu0 0.0
        %11398 = vmatpush1.msra.mxu0 %v11281
        %11399 = vmatprep.subr.mxu0 0.0
        %11400 = vmatpush1.msra.mxu0 %v11282
        %11401 = vmatprep.subr.mxu0 0.0
        %11402 = vmatpush1.msra.mxu0 %v11283
        %11403 = vmatprep.subr.mxu0 0.0
        %11404 = vmatpush1.msra.mxu0 %v11284
        %11405 = vmatprep.subr.mxu0 0.0
        %11406 = vmatpush1.msra.mxu0 %v11285
        %11407 = vmatprep.subr.mxu0 0.0
        %11408 = vmatpush1.msra.mxu0 %v11286
        %11409 = vmatprep.subr.mxu0 0.0
        %11410 = vmatpush1.msra.mxu0 %v11287
        %11411 = vmatprep.subr.mxu0 0.0
        %11412 = vmatpush1.msra.mxu0 %v11288
        %11413 = vmatprep.subr.mxu0 0.0
        %11414 = vmatpush1.msra.mxu0 %v11289
        %11415 = vmatprep.subr.mxu0 0.0
        %11416 = vmatpush1.msra.mxu0 %v11290
        %11417 = vmatprep.subr.mxu0 0.0
        %11418 = vmatpush1.msra.mxu0 %v11291
        %11419 = vmatprep.subr.mxu0 0.0
        %11420 = vmatpush1.msra.mxu0 %v11292
        %11421 = vmatprep.subr.mxu0 0.0
        %11422 = vmatpush1.msra.mxu0 %v11293
        %11423 = vmatprep.subr.mxu0 0.0
        %11424 = vmatpush1.msra.mxu0 %v11294
        %11425 = vmatprep.subr.mxu0 0.0
        %11426 = vmatpush1.msra.mxu0 %v11295
        %11427 = vmatprep.subr.mxu0 0.0
        %11428 = vmatpush1.msra.mxu0 %v11296
        %11429 = vmatprep.subr.mxu0 0.0
        %11430 = vmatpush1.msra.mxu0 %v11297
        %11431 = vmatprep.subr.mxu0 0.0
        %11432 = vmatpush1.msra.mxu0 %v11298
        %11433 = vmatprep.mubr.f32.mxu0 %v11234
        %11434 = vmatmul.mubr.f32.gmra.mrb[0].mxu0 %v11227
        %v11435 = vpop.f32.mrb[0].mxu0
        %v11436 = vadd.f32 %v11366, %v11435
        %v11437 = vpop.f32.mrb[0].mxu0
        %11438 = vdwg.mxu0
        %v11439 = vmax.f32 %v11436, 0.0
        %v11440 = vld [vmem:[%s8] sm:$0xff]
        %v11441 = vld [vmem:[%s8 + $0x8] sm:$0xff]
        %v11442 = vld [vmem:[%s8 + $0x10] sm:$0xff]
        %v11443 = vld [vmem:[%s8 + $0x18] sm:$0xff]
        %vm11444 = vcmask 64512
        %v11446 = vsel %vm11444, %v11439, 0
        %11448 = vmatprep.subr.mxu0 %v11441
        %11449 = vmatpush1.msra.mxu0 %v11440
        %11450 = vmatprep.subr.mxu0 0.0
        %11451 = vmatpush1.msra.mxu0 0.0
        %11452 = vmatprep.subr.mxu0 0.0
        %11453 = vmatpush1.msra.mxu0 0.0
        %11454 = vmatprep.subr.mxu0 0.0
        %11455 = vmatpush1.msra.mxu0 0.0
        %11456 = vmatprep.subr.mxu0 0.0
        %11457 = vmatpush1.msra.mxu0 0.0
        %11458 = vmatprep.subr.mxu0 0.0
        %11459 = vmatpush1.msra.mxu0 0.0
        %11460 = vmatprep.subr.mxu0 0.0
        %11461 = vmatpush1.msra.mxu0 0.0
        %11462 = vmatprep.subr.mxu0 0.0
        %11463 = vmatpush1.msra.mxu0 0.0
        %11464 = vmatprep.subr.mxu0 0.0
        %11465 = vmatpush1.msra.mxu0 0.0
        %11466 = vmatprep.subr.mxu0 0.0
        %11467 = vmatpush1.msra.mxu0 0.0
        %11468 = vmatprep.subr.mxu0 0.0
        %11469 = vmatpush1.msra.mxu0 0.0
        %11470 = vmatprep.subr.mxu0 0.0
        %11471 = vmatpush1.msra.mxu0 0.0
        %11472 = vmatprep.subr.mxu0 0.0
        %11473 = vmatpush1.msra.mxu0 0.0
        %11474 = vmatprep.subr.mxu0 0.0
        %11475 = vmatpush1.msra.mxu0 0.0
        %11476 = vmatprep.subr.mxu0 0.0
        %11477 = vmatpush1.msra.mxu0 0.0
        %11478 = vmatprep.subr.mxu0 0.0
        %11479 = vmatpush1.msra.mxu0 0.0
        %11480 = vmatprep.subr.mxu0 0.0
        %11481 = vmatpush1.msra.mxu0 0.0
        %11482 = vmatprep.subr.mxu0 0.0
        %11483 = vmatpush1.msra.mxu0 0.0
        %11484 = vmatprep.subr.mxu0 0.0
        %11485 = vmatpush1.msra.mxu0 0.0
        %11486 = vmatprep.subr.mxu0 0.0
        %11487 = vmatpush1.msra.mxu0 0.0
        %11488 = vmatprep.subr.mxu0 0.0
        %11489 = vmatpush1.msra.mxu0 0.0
        %11490 = vmatprep.subr.mxu0 0.0
        %11491 = vmatpush1.msra.mxu0 0.0
        %11492 = vmatprep.subr.mxu0 0.0
        %11493 = vmatpush1.msra.mxu0 0.0
        %11494 = vmatprep.subr.mxu0 0.0
        %11495 = vmatpush1.msra.mxu0 0.0
        %11496 = vmatprep.subr.mxu0 0.0
        %11497 = vmatpush1.msra.mxu0 0.0
        %11498 = vmatprep.subr.mxu0 0.0
        %11499 = vmatpush1.msra.mxu0 0.0
        %11500 = vmatprep.subr.mxu0 0.0
        %11501 = vmatpush1.msra.mxu0 0.0
        %11502 = vmatprep.subr.mxu0 0.0
        %11503 = vmatpush1.msra.mxu0 0.0
        %11504 = vmatprep.subr.mxu0 0.0
        %11505 = vmatpush1.msra.mxu0 0.0
        %11506 = vmatprep.subr.mxu0 0.0
        %11507 = vmatpush1.msra.mxu0 0.0
        %11508 = vmatprep.subr.mxu0 0.0
        %11509 = vmatpush1.msra.mxu0 0.0
        %11510 = vmatprep.subr.mxu0 0.0
        %11511 = vmatpush1.msra.mxu0 0.0
        %11512 = vmatprep.mubr.f32.mxu0 0.0
        %11513 = vmatmul.mubr.f32.gmra.mrb[0].mxu0 %v11446
        %v11514 = vpop.f32.mrb[0].mxu0
        %v11515 = vadd.f32 0.0, %v11514
        %v11516 = vpop.f32.mrb[0].mxu0
        %v11517 = vadd.f32 0.0, %v11516
        %11518 = vdwg.mxu0
        %11519 = vmatprep.subr.mxu0 %v11443
        %11520 = vmatpush1.msra.mxu0 %v11442
        %11521 = vmatprep.subr.mxu0 0.0
        %11522 = vmatpush1.msra.mxu0 0.0
        %11523 = vmatprep.subr.mxu0 0.0
        %11524 = vmatpush1.msra.mxu0 0.0
        %11525 = vmatprep.subr.mxu0 0.0
        %11526 = vmatpush1.msra.mxu0 0.0
        %11527 = vmatprep.subr.mxu0 0.0
        %11528 = vmatpush1.msra.mxu0 0.0
        %11529 = vmatprep.subr.mxu0 0.0
        %11530 = vmatpush1.msra.mxu0 0.0
        %11531 = vmatprep.subr.mxu0 0.0
        %11532 = vmatpush1.msra.mxu0 0.0
        %11533 = vmatprep.subr.mxu0 0.0
        %11534 = vmatpush1.msra.mxu0 0.0
        %11535 = vmatprep.subr.mxu0 0.0
        %11536 = vmatpush1.msra.mxu0 0.0
        %11537 = vmatprep.subr.mxu0 0.0
        %11538 = vmatpush1.msra.mxu0 0.0
        %11539 = vmatprep.subr.mxu0 0.0
        %11540 = vmatpush1.msra.mxu0 0.0
        %11541 = vmatprep.subr.mxu0 0.0
        %11542 = vmatpush1.msra.mxu0 0.0
        %11543 = vmatprep.subr.mxu0 0.0
        %11544 = vmatpush1.msra.mxu0 0.0
        %11545 = vmatprep.subr.mxu0 0.0
        %11546 = vmatpush1.msra.mxu0 0.0
        %11547 = vmatprep.subr.mxu0 0.0
        %11548 = vmatpush1.msra.mxu0 0.0
        %11549 = vmatprep.subr.mxu0 0.0
        %11550 = vmatpush1.msra.mxu0 0.0
        %11551 = vmatprep.subr.mxu0 0.0
        %11552 = vmatpush1.msra.mxu0 0.0
        %11553 = vmatprep.subr.mxu0 0.0
        %11554 = vmatpush1.msra.mxu0 0.0
        %11555 = vmatprep.subr.mxu0 0.0
        %11556 = vmatpush1.msra.mxu0 0.0
        %11557 = vmatprep.subr.mxu0 0.0
        %11558 = vmatpush1.msra.mxu0 0.0
        %11559 = vmatprep.subr.mxu0 0.0
        %11560 = vmatpush1.msra.mxu0 0.0
        %11561 = vmatprep.subr.mxu0 0.0
        %11562 = vmatpush1.msra.mxu0 0.0
        %11563 = vmatprep.subr.mxu0 0.0
        %11564 = vmatpush1.msra.mxu0 0.0
        %11565 = vmatprep.subr.mxu0 0.0
        %11566 = vmatpush1.msra.mxu0 0.0
        %11567 = vmatprep.subr.mxu0 0.0
        %11568 = vmatpush1.msra.mxu0 0.0
        %11569 = vmatprep.subr.mxu0 0.0
        %11570 = vmatpush1.msra.mxu0 0.0
        %11571 = vmatprep.subr.mxu0 0.0
        %11572 = vmatpush1.msra.mxu0 0.0
        %11573 = vmatprep.subr.mxu0 0.0
        %11574 = vmatpush1.msra.mxu0 0.0
        %11575 = vmatprep.subr.mxu0 0.0
        %11576 = vmatpush1.msra.mxu0 0.0
        %11577 = vmatprep.subr.mxu0 0.0
        %11578 = vmatpush1.msra.mxu0 0.0
        %11579 = vmatprep.subr.mxu0 0.0
        %11580 = vmatpush1.msra.mxu0 0.0
        %11581 = vmatprep.subr.mxu0 0.0
        %11582 = vmatpush1.msra.mxu0 0.0
        %11583 = vmatprep.mubr.f32.mxu0 0.0
        %11584 = vmatmul.mubr.f32.gmra.mrb[0].mxu0 %v11446
        %v11585 = vpop.f32.mrb[0].mxu0
        %v11586 = vadd.f32 0.0, %v11585
        %v11587 = vpop.f32.mrb[0].mxu0
        %v11588 = vadd.f32 0.0, %v11587
        %11589 = vdwg.mxu0
        %v11590 = vsub.f32 0.0, %v11515
        %v11591 = vsub.f32 0.0, %v11517
        %v11592 = vsub.f32 0.0, %v11586
        %v11593 = vsub.f32 0.0, %v11588
        %v11594 = vmul.f32 %v11590, 1.442695
        %v11595 = vpow.pop %v11594
        %v11596 = vmul.f32 %v11591, 1.442695
        %v11597 = vpow.pop %v11596
        %v11598 = vmul.f32 %v11592, 1.442695
        %v11599 = vpow.pop %v11598
        %v11600 = vmul.f32 %v11593, 1.442695
        %v11601 = vpow.pop %v11600
        %v11602 = vadd.f32 %v11595, 1.0
        %v11603 = vadd.f32 %v11597, 1.0
        %v11604 = vadd.f32 %v11599, 1.0
        %v11605 = vadd.f32 %v11601, 1.0
        %v11606 = vrcp.pop %v11602
        %v11607 = vmul.f32 1.0, %v11606
        %v11608 = vrcp.pop %v11603
        %v11609 = vmul.f32 1.0, %v11608
        %v11610 = vrcp.pop %v11604
        %v11611 = vmul.f32 1.0, %v11610
        %v11612 = vrcp.pop %v11605
        %v11613 = vmul.f32 1.0, %v11612
        %v11614 = vlaneseq
        %v11615 = vshrl.u32 %v11614, 7
        %v11616 = vsub.s32 0, %v11615
        %v11617 = vrot.slane %v11607, %v11616
        %v11618 = vlaneseq
        %v11619 = vshrl.u32 %v11618, 7
        %v11620 = vsub.s32 0, %v11619
        %v11621 = vrot.slane %v11609, %v11620
        %v11622 = vlaneseq
        %v11623 = vshrl.u32 %v11622, 7
        %v11624 = vsub.s32 0, %v11623
        %v11625 = vrot.slane %v11611, %v11624
        %v11626 = vlaneseq
        %v11627 = vshrl.u32 %v11626, 7
        %v11628 = vsub.s32 0, %v11627
        %v11629 = vrot.slane %v11613, %v11628
        %v11630 = vmul.f32 %v11617, %v11191
        %v11631 = vmul.f32 %v11621, %v11192
        %v11632 = vmul.f32 %v11625, %v11193
        %v11633 = vmul.f32 %v11629, %v11194
        %v11634 = vmul.f32 %v11617, %v11195
        %v11635 = vmul.f32 %v11621, %v11196
        %v11636 = vmul.f32 %v11625, %v11197
        %v11637 = vmul.f32 %v11629, %v11198
        %v11638 = vmul.f32 %v11630, %v11199
        %v11639 = vmul.f32 %v11631, %v11200
        %v11640 = vmul.f32 %v11632, %v11201
        %v11641 = vmul.f32 %v11633, %v11202
        %v11642 = vmul.f32 %v11634, %v11203
        %v11643 = vmul.f32 %v11635, %v11204
        %v11644 = vmul.f32 %v11636, %v11205
        %v11645 = vmul.f32 %v11637, %v11206
        %11646 = vst [vmem:[%s340] sm:$0xff] %v11638
        %11647 = vst [vmem:[%s340 + $0x8] sm:$0xff] %v11639
        %11648 = vst [vmem:[%s340 + $0x10] sm:$0xff] %v11640
        %11649 = vst [vmem:[%s340 + $0x18] sm:$0xff] %v11641
        %11650 = vst [vmem:[%s340 + $0x20] sm:$0xff] %v11642
        %11651 = vst [vmem:[%s340 + $0x28] sm:$0xff] %v11643
        %11652 = vst [vmem:[%s340 + $0x30] sm:$0xff] %v11644
        %11653 = vst [vmem:[%s340 + $0x38] sm:$0xff] %v11645
        %s11654 = sand.u32 %s226, 1
        %s11655 = scalar_lea.sflag [#allocation6], %s11654
        %s11656 = sand.u32 %s226, 1
        %s11657 = smul.addr %s11656, 64
        %s11658 = scalar_lea.vmem [#allocation7], %s11657
        // Predicated region
        $region61: #{tpu_custom_call.1} parent=55 // pred_check
          %p11659 = pneg %p236
        $region62: #{tpu_custom_call.1} parent=55 // pred_check_branch
          %11661 = sbr.rel (%p11659) target = $region64
        $region63: #{tpu_custom_call.1} parent=55 // pred_region
          %s11663 = ssub.s32 1024, 1024
          %11664 = vsyncadd %s11655, %s11663
          %s11665 = smul.addr %s24, 8
          %s11666 = smul.addr %s11665, 128
          %s11667 = scalar_lea.hbm %s9, %s11666
          %s11668 = sshll.u32 %s11658, 4
          %s11669 = int_to_ptr.vmem [resolvable:$true] %s11668
          %11674 = dma.vmem_to_hbm [thread:$0]  %s11669, 1024, %s11667, %s11655, 512, 512, 32
        $region64: #{tpu_custom_call.1} parent=55 // pred_fallthru
          _
      $region56: #{tpu_custom_call.1} parent=5 // pred_fallthru
        _
      %p11675 = scmp.le.s32.totalorder 2, %s19
      // Predicated region
      $region65: #{tpu_custom_call.1} parent=5 // pred_check
        %p11676 = pneg %p11675
      $region66: #{tpu_custom_call.1} parent=5 // pred_check_branch
        %11678 = sbr.rel (%p11676) target = $region68
      $region67: #{tpu_custom_call.1} parent=5 // pred_region
        %s11679 = ssub.s32 %s19, 2
        // Predicated region
        $region69: #{tpu_custom_call.1} parent=67 // pred_check
          %p11680 = pneg %p242
        $region70: #{tpu_custom_call.1} parent=67 // pred_check_branch
          %11682 = sbr.rel (%p11680) target = $region72
        $region71: #{tpu_custom_call.1} parent=67 // pred_region
          %s11683 = sand.u32 %s227, 1
          %s11684 = scalar_lea.sflag [#allocation6], %s11683
          %s11685 = sand.u32 %s227, 1
          %s11686 = smul.addr %s11685, 64
          %s11687 = scalar_lea.vmem [#allocation7], %s11686
          %11688 = dma.done %s11684, 1024
        $region72: #{tpu_custom_call.1} parent=67 // pred_fallthru
          _
      $region68: #{tpu_custom_call.1} parent=5 // pred_fallthru
        _
    $region6: #{tpu_custom_call.1} parent=1 // loop_footer
      %s23 = sadd.s32 1, %s19
    $region7: #{tpu_custom_call.1} parent=1 // loop_footer_branch
      %18 = sbr.rel target = $region3
    $region8: #{tpu_custom_call.1} parent=1 // loop_exit
      _
    %11689 = vsyncpa [#allocation5], 1
    %s11690 = scalar_lea.sflag [#allocation5], 1
    %11691 = vsyncpa %s11690, 1
    %11692 = vsyncpa [#allocation6], 1
    %s11693 = scalar_lea.sflag [#allocation6], 1
    %11694 = vsyncpa %s11693, 1

</llo_original>
